<compile_context>
chip_gen: v7x
topology: tpu7x:2x2x1
jax: 0.10.0
libtpu: 0.0.40
codegen_flags: <defaults>
</compile_context>

<pallas_src>
import jax
import jax.numpy as jnp
from jax import lax
from jax.experimental import pallas as pl
from jax.experimental.pallas import tpu as pltpu


# ----------------------------------------------------------------------------
# Fused RNNoise kernel (everything lives in VMEM, no grid)
# ----------------------------------------------------------------------------
def _rnnoise_kernel(x_ref,                        # ((T+2)*B, Din) f32, zero frame at each end
                    c1w_ref, c1b_ref,             # (3, Din, C1) bf16, (1, C1) f32
                    c2w_ref, c2b_ref,             # (3, C1, H)  bf16, (1, H)  f32
                    g1_wih_ref, g1_whh_ref, g1_b_ref,
                    g2_wih_ref, g2_whh_ref, g2_b_ref,
                    g3_wih_ref, g3_whh_ref, g3_b_ref,
                    hw_ref, hb_ref,               # (H, Dout+1) bf16, (1, Dout+1) f32
                    h0_ref,                       # (3*B, H) f32
                    heads_ref,                    # out: (T*B, Dout+1) f32
                    hT_ref,                       # out: (3*B, H) f32
                    xp_ref,                       # scratch ((T+2)*B, C1) f32
                    gi_ref,                       # scratch (T*B, 3H) f32
                    y_ref):                       # scratch (T*B, H)  f32
    f32, bf16 = jnp.float32, jnp.bfloat16
    H = h0_ref.shape[1]
    B = h0_ref.shape[0] // 3
    TB = heads_ref.shape[0]
    T = TB // B

    def conv_tanh(src_ref, w_ref, b_ref):
        # src_ref is time-major-flat and padded by one zero frame at each end;
        # conv tap k multiplies the input shifted by (k - 1) frames, so tap k
        # reads rows [k*B, k*B + T*B) of the padded slab.  Each tap is one
        # (T*B, Cin) @ (Cin, Cout) MXU matmul with f32 accumulation.
        acc = b_ref[0][None, :]
        for k in range(3):                        # static -> unrolled
            xk = src_ref[pl.ds(k * B, TB)].astype(bf16)
            acc = acc + jnp.dot(xk, w_ref[k], preferred_element_type=f32)
        return jnp.tanh(acc)

    # conv1 (input already padded by the wrapper) ----------------------------
    a = conv_tanh(x_ref, c1w_ref, c1b_ref)                      # (TB, C1) f32

    # conv2: pad conv1 output with one zero frame at each end via VMEM scratch
    xp_ref[...] = jnp.zeros(xp_ref.shape, f32)
    xp_ref[pl.ds(B, TB)] = a
    a = conv_tanh(xp_ref, c2w_ref, c2b_ref)                     # (TB, H) f32

    def gru(xf, wih_ref, whh_ref, b_ref, h0):
        # Hoisted input projection: one (TB, Hin) @ (Hin, 3H) matmul for all
        # timesteps; the recurrence only does the (B, H) @ (H, 3H) dot.
        gi_ref[...] = (jnp.dot(xf.astype(bf16), wih_ref[...],
                               preferred_element_type=f32)
                       + b_ref[0][None, :])
        whh = whh_ref[...]                        # keep W_hh resident in vregs
        bhh = b_ref[1][None, :]
        h = h0
        for t in range(T):                # static loop -> fully unrolled (T small)
            gi = gi_ref[pl.ds(t * B, B)]                        # (B, 3H)
            gh = jnp.dot(h.astype(bf16), whh,
                         preferred_element_type=f32) + bhh
            r = jax.nn.sigmoid(gi[:, 0:H] + gh[:, 0:H])
            z = jax.nn.sigmoid(gi[:, H:2 * H] + gh[:, H:2 * H])
            n = jnp.tanh(gi[:, 2 * H:3 * H] + r * gh[:, 2 * H:3 * H])
            h = (1.0 - z) * n + z * h
            y_ref[pl.ds(t * B, B)] = h
        return h

    h1 = gru(a, g1_wih_ref, g1_whh_ref, g1_b_ref, h0_ref[pl.ds(0, B)])
    h2 = gru(y_ref[...], g2_wih_ref, g2_whh_ref, g2_b_ref, h0_ref[pl.ds(B, B)])
    h3 = gru(y_ref[...], g3_wih_ref, g3_whh_ref, g3_b_ref, h0_ref[pl.ds(2 * B, B)])

    # Fused gain+vad head: one (TB, H) @ (H, Dout+1) matmul + sigmoid.
    heads = (jnp.dot(y_ref[...].astype(bf16), hw_ref[...],
                     preferred_element_type=f32) + hb_ref[0][None, :])
    heads_ref[...] = jax.nn.sigmoid(heads)

    hT_ref[pl.ds(0, B)] = h1
    hT_ref[pl.ds(B, B)] = h2
    hT_ref[pl.ds(2 * B, B)] = h3


# ----------------------------------------------------------------------------
# Wrapper
# ----------------------------------------------------------------------------
def rnnoise_forward(params, features, states=None):
    """features: (B, T, input_dim) f32.  Returns (gain, vad, [h1, h2, h3])."""
    B, T, Din = features.shape
    C1 = params["conv1_b"].shape[1]
    H = params["conv2_b"].shape[1]
    Dout1 = params["head_b"].shape[1]
    out_dim = Dout1 - 1

    if states is None:
        h0 = jnp.zeros((3 * B, H), jnp.float32)
    else:
        h0 = jnp.concatenate([s.reshape(B, H) for s in states], axis=0)

    # Time-major flat layout (row index = t*B + b), one zero frame at each end
    # for the conv1 boundary.
    x_tm = jnp.transpose(features, (1, 0, 2))                   # (T, B, Din)
    x_tm = jnp.pad(x_tm, ((1, 1), (0, 0), (0, 0)))              # (T+2, B, Din)
    x_flat = x_tm.reshape((T + 2) * B, Din)

    vmem = lambda: pl.BlockSpec(memory_space=pltpu.MemorySpace.VMEM)
    heads, hT = pl.pallas_call(
        _rnnoise_kernel,
        out_shape=(jax.ShapeDtypeStruct((T * B, Dout1), jnp.float32),
                   jax.ShapeDtypeStruct((3 * B, H), jnp.float32)),
        in_specs=[vmem() for _ in range(17)],
        out_specs=(vmem(), vmem()),
        scratch_shapes=[
            pltpu.VMEM(((T + 2) * B, C1), jnp.float32),  # padded conv2 input
            pltpu.VMEM((T * B, 3 * H), jnp.float32),     # hoisted GRU input proj
            pltpu.VMEM((T * B, H), jnp.float32),         # GRU layer output slab
        ],
        compiler_params=pltpu.CompilerParams(vmem_limit_bytes=64 << 20),
    )(x_flat,
      params["conv1_w"], params["conv1_b"],
      params["conv2_w"], params["conv2_b"],
      params["gru1_wih"], params["gru1_whh"], params["gru1_b"],
      params["gru2_wih"], params["gru2_whh"], params["gru2_b"],
      params["gru3_wih"], params["gru3_whh"], params["gru3_b"],
      params["head_w"], params["head_b"],
      h0)

    heads = jnp.transpose(heads.reshape(T, B, Dout1), (1, 0, 2))  # (B, T, Dout+1)
    gain = heads[..., :out_dim]
    vad = heads[..., out_dim:]
    states_out = [hT[i * B:(i + 1) * B][None, :, :] for i in range(3)]
    return gain, vad, states_out


# ----------------------------------------------------------------------------
# Parameters (created directly in kernel-ready layout)
# ----------------------------------------------------------------------------
def init_params(key, input_dim=65, output_dim=32, cond_size=128, gru_size=256):
    """Kernel-ready layout: conv taps (3, Cin, Cout); GRU W_ih/W_hh as
    (Hin, 3H)/(H, 3H) with gate order [r, z, n]; gain+vad head fused into one
    (H, output_dim + 1) matrix.  Matmul weights in bf16, biases in f32."""
    ks = iter(jax.random.split(key, 20))
    s = 0.1

    def rnd(shape):
        return s * jax.random.normal(next(ks), shape, jnp.float32)

    p = {
        "conv1_w": rnd((3, input_dim, cond_size)).astype(jnp.bfloat16),
        "conv1_b": rnd((1, cond_size)),
        "conv2_w": rnd((3, cond_size, gru_size)).astype(jnp.bfloat16),
        "conv2_b": rnd((1, gru_size)),
        "head_w": jnp.concatenate(
            [rnd((gru_size, output_dim)), rnd((gru_size, 1))],
            axis=1).astype(jnp.bfloat16),
        "head_b": jnp.concatenate([rnd((1, output_dim)), rnd((1, 1))], axis=1),
    }
    for g in ("gru1", "gru2", "gru3"):
        p[f"{g}_wih"] = rnd((gru_size, 3 * gru_size)).astype(jnp.bfloat16)
        p[f"{g}_whh"] = rnd((gru_size, 3 * gru_size)).astype(jnp.bfloat16)
        p[f"{g}_b"] = rnd((2, 3 * gru_size))   # row 0: b_ih, row 1: b_hh
    return p
    # TODO(synk): GRUSparsifier / sparsify() is a training-time weight-masking
    # hook (and init_weights' orthogonal init is init-time only); neither is
    # part of the forward pass, so they are intentionally not implemented.


# ----------------------------------------------------------------------------
# Pure-JAX reference (PyTorch GRU / Conv1d semantics, same bf16 operand cast)
# ----------------------------------------------------------------------------
def ref_forward(params, features, states=None):
    B, T, Din = features.shape
    H = params["conv2_b"].shape[1]
    Dout1 = params["head_b"].shape[1]
    out_dim = Dout1 - 1
    f32, bf16 = jnp.float32, jnp.bfloat16

    def conv_tanh(x, w, b):
        Tt = x.shape[1]
        xpad = jnp.pad(x, ((0, 0), (1, 1), (0, 0))).astype(bf16)
        acc = sum(jnp.einsum("btc,cd->btd", xpad[:, k:k + Tt, :], w[k],
                             preferred_element_type=f32) for k in range(3))
        return jnp.tanh(acc + b[0])

    def gru(x, wih, whh, b, h0):
        def step(h, x_t):
            gi = jnp.dot(x_t.astype(bf16), wih, preferred_element_type=f32) + b[0]
            gh = jnp.dot(h.astype(bf16), whh, preferred_element_type=f32) + b[1]
            r = jax.nn.sigmoid(gi[:, :H] + gh[:, :H])
            z = jax.nn.sigmoid(gi[:, H:2 * H] + gh[:, H:2 * H])
            n = jnp.tanh(gi[:, 2 * H:] + r * gh[:, 2 * H:])
            h_new = (1.0 - z) * n + z * h
            return h_new, h_new
        hT, ys = lax.scan(step, h0, jnp.transpose(x, (1, 0, 2)))
        return jnp.transpose(ys, (1, 0, 2)), hT

    if states is None:
        h = [jnp.zeros((B, H), f32) for _ in range(3)]
    else:
        h = [s.reshape(B, H) for s in states]

    x = conv_tanh(features, params["conv1_w"], params["conv1_b"])
    x = conv_tanh(x, params["conv2_w"], params["conv2_b"])
    x, h[0] = gru(x, params["gru1_wih"], params["gru1_whh"], params["gru1_b"], h[0])
    x, h[1] = gru(x, params["gru2_wih"], params["gru2_whh"], params["gru2_b"], h[1])
    x, h[2] = gru(x, params["gru3_wih"], params["gru3_whh"], params["gru3_b"], h[2])

    heads = jax.nn.sigmoid(
        jnp.einsum("bth,hd->btd", x.astype(bf16), params["head_w"],
                   preferred_element_type=f32) + params["head_b"][0])
    gain = heads[..., :out_dim]
    vad = heads[..., out_dim:]
    states_out = [hh[None, :, :] for hh in h]
    return gain, vad, states_out


if __name__ == "__main__":
    B, T = 2, 8
    input_dim, output_dim, cond_size, gru_size = 65, 32, 128, 256

    key = jax.random.PRNGKey(0)
    pkey, xkey = jax.random.split(key)
    params = init_params(pkey, input_dim, output_dim, cond_size, gru_size)
    features = jax.random.normal(xkey, (B, T, input_dim), jnp.float32)

    fwd = jax.jit(rnnoise_forward)
    gain, vad, states = fwd(params, features)
    jax.block_until_ready((gain, vad, states))

    assert gain.shape == (B, T, output_dim)
    assert vad.shape == (B, T, 1)
    assert all(s.shape == (1, B, gru_size) for s in states)

    gain_ref, vad_ref, states_ref = ref_forward(params, features)
    assert jnp.allclose(gain, gain_ref, atol=3e-3, rtol=3e-3), \
        float(jnp.max(jnp.abs(gain - gain_ref)))
    assert jnp.allclose(vad, vad_ref, atol=3e-3, rtol=3e-3), \
        float(jnp.max(jnp.abs(vad - vad_ref)))
    assert jnp.allclose(jnp.stack(states), jnp.stack(states_ref),
                        atol=3e-3, rtol=3e-3)

    print("KERNEL_OK")
</pallas_src>

<mosaic_0001>
module attributes {stable_mosaic.version = 11 : i64} {
  func.func @_rnnoise_kernel(%arg0: memref<20x65xf32, #tpu.memory_space<vmem>>, %arg1: memref<3x65x128xbf16, #tpu.memory_space<vmem>>, %arg2: memref<1x128xf32, #tpu.memory_space<vmem>>, %arg3: memref<3x128x256xbf16, #tpu.memory_space<vmem>>, %arg4: memref<1x256xf32, #tpu.memory_space<vmem>>, %arg5: memref<256x768xbf16, #tpu.memory_space<vmem>>, %arg6: memref<256x768xbf16, #tpu.memory_space<vmem>>, %arg7: memref<2x768xf32, #tpu.memory_space<vmem>>, %arg8: memref<256x768xbf16, #tpu.memory_space<vmem>>, %arg9: memref<256x768xbf16, #tpu.memory_space<vmem>>, %arg10: memref<2x768xf32, #tpu.memory_space<vmem>>, %arg11: memref<256x768xbf16, #tpu.memory_space<vmem>>, %arg12: memref<256x768xbf16, #tpu.memory_space<vmem>>, %arg13: memref<2x768xf32, #tpu.memory_space<vmem>>, %arg14: memref<256x33xbf16, #tpu.memory_space<vmem>>, %arg15: memref<1x33xf32, #tpu.memory_space<vmem>>, %arg16: memref<6x256xf32, #tpu.memory_space<vmem>>, %arg17: memref<16x33xf32, #tpu.memory_space<vmem>>, %arg18: memref<6x256xf32, #tpu.memory_space<vmem>>, %arg19: memref<20x128xf32, #tpu.memory_space<vmem>>, %arg20: memref<16x768xf32, #tpu.memory_space<vmem>>, %arg21: memref<16x256xf32, #tpu.memory_space<vmem>>) attributes {dimension_semantics = [], scalar_prefetch = 0 : i64, scratch_operands = 3 : i64, tpu.core_type = #tpu.core_type<tc>} {
    %c0 = arith.constant 0 : index
    %c0_0 = arith.constant 0 : index
    %0 = vector.load %arg2[%c0, %c0_0] : memref<1x128xf32, #tpu.memory_space<vmem>>, vector<1x128xf32>
    %1 = vector.shape_cast %0 : vector<1x128xf32> to vector<128xf32>
    %2 = vector.shape_cast %1 : vector<128xf32> to vector<1x128xf32>
    %c0_1 = arith.constant 0 : index
    %c0_2 = arith.constant 0 : index
    %3 = vector.load %arg0[%c0_1, %c0_2] : memref<20x65xf32, #tpu.memory_space<vmem>>, vector<16x65xf32>
    %4 = arith.truncf %3 : vector<16x65xf32> to vector<16x65xbf16>
    %c0_3 = arith.constant 0 : index
    %c0_4 = arith.constant 0 : index
    %c0_5 = arith.constant 0 : index
    %5 = vector.load %arg1[%c0_3, %c0_4, %c0_5] : memref<3x65x128xbf16, #tpu.memory_space<vmem>>, vector<1x65x128xbf16>
    %6 = vector.shape_cast %5 : vector<1x65x128xbf16> to vector<65x128xbf16>
    %cst = arith.constant dense<0.000000e+00> : vector<16x128xf32>
    %7 = tpu.matmul %4, %6, %cst {dimension_numbers = #tpu.dot_dimension_numbers<[1], [0], [0], [1], [0, 0, 1, 1], [], []>} : vector<16x65xbf16>, vector<65x128xbf16>, vector<16x128xf32> -> vector<16x128xf32>
    %8 = vector.broadcast %2 : vector<1x128xf32> to vector<16x128xf32>
    %9 = arith.addf %8, %7 : vector<16x128xf32>
    %c2 = arith.constant 2 : index
    %c0_6 = arith.constant 0 : index
    %10 = vector.load %arg0[%c2, %c0_6] : memref<20x65xf32, #tpu.memory_space<vmem>>, vector<16x65xf32>
    %11 = arith.truncf %10 : vector<16x65xf32> to vector<16x65xbf16>
    %c1 = arith.constant 1 : index
    %c0_7 = arith.constant 0 : index
    %c0_8 = arith.constant 0 : index
    %12 = vector.load %arg1[%c1, %c0_7, %c0_8] : memref<3x65x128xbf16, #tpu.memory_space<vmem>>, vector<1x65x128xbf16>
    %13 = vector.shape_cast %12 : vector<1x65x128xbf16> to vector<65x128xbf16>
    %cst_9 = arith.constant dense<0.000000e+00> : vector<16x128xf32>
    %14 = tpu.matmul %11, %13, %cst_9 {dimension_numbers = #tpu.dot_dimension_numbers<[1], [0], [0], [1], [0, 0, 1, 1], [], []>} : vector<16x65xbf16>, vector<65x128xbf16>, vector<16x128xf32> -> vector<16x128xf32>
    %15 = arith.addf %9, %14 : vector<16x128xf32>
    %c4 = arith.constant 4 : index
    %c0_10 = arith.constant 0 : index
    %16 = vector.load %arg0[%c4, %c0_10] : memref<20x65xf32, #tpu.memory_space<vmem>>, vector<16x65xf32>
    %17 = arith.truncf %16 : vector<16x65xf32> to vector<16x65xbf16>
    %c2_11 = arith.constant 2 : index
    %c0_12 = arith.constant 0 : index
    %c0_13 = arith.constant 0 : index
    %18 = vector.load %arg1[%c2_11, %c0_12, %c0_13] : memref<3x65x128xbf16, #tpu.memory_space<vmem>>, vector<1x65x128xbf16>
    %19 = vector.shape_cast %18 : vector<1x65x128xbf16> to vector<65x128xbf16>
    %cst_14 = arith.constant dense<0.000000e+00> : vector<16x128xf32>
    %20 = tpu.matmul %17, %19, %cst_14 {dimension_numbers = #tpu.dot_dimension_numbers<[1], [0], [0], [1], [0, 0, 1, 1], [], []>} : vector<16x65xbf16>, vector<65x128xbf16>, vector<16x128xf32> -> vector<16x128xf32>
    %21 = arith.addf %15, %20 : vector<16x128xf32>
    %22 = math.tanh %21 : vector<16x128xf32>
    %cst_15 = arith.constant 0.000000e+00 : f32
    %23 = vector.broadcast %cst_15 : f32 to vector<20x128xf32>
    %c0_16 = arith.constant 0 : index
    %c0_17 = arith.constant 0 : index
    %24 = vector.load %arg19[%c0_16, %c0_17] : memref<20x128xf32, #tpu.memory_space<vmem>>, vector<20x128xf32>
    tpu.vector_store %arg19[%c0_16, %c0_17], %23 {strides = array<i32>} : memref<20x128xf32, #tpu.memory_space<vmem>>, vector<20x128xf32>,
    %c2_18 = arith.constant 2 : index
    %c0_19 = arith.constant 0 : index
    %25 = vector.load %arg19[%c2_18, %c0_19] : memref<20x128xf32, #tpu.memory_space<vmem>>, vector<16x128xf32>
    tpu.vector_store %arg19[%c2_18, %c0_19], %22 {strides = array<i32>} : memref<20x128xf32, #tpu.memory_space<vmem>>, vector<16x128xf32>,
    %c0_20 = arith.constant 0 : index
    %c0_21 = arith.constant 0 : index
    %26 = vector.load %arg4[%c0_20, %c0_21] : memref<1x256xf32, #tpu.memory_space<vmem>>, vector<1x256xf32>
    %27 = vector.shape_cast %26 : vector<1x256xf32> to vector<256xf32>
    %28 = vector.shape_cast %27 : vector<256xf32> to vector<1x256xf32>
    %c0_22 = arith.constant 0 : index
    %c0_23 = arith.constant 0 : index
    %29 = vector.load %arg19[%c0_22, %c0_23] : memref<20x128xf32, #tpu.memory_space<vmem>>, vector<16x128xf32>
    %30 = arith.truncf %29 : vector<16x128xf32> to vector<16x128xbf16>
    %c0_24 = arith.constant 0 : index
    %c0_25 = arith.constant 0 : index
    %c0_26 = arith.constant 0 : index
    %31 = vector.load %arg3[%c0_24, %c0_25, %c0_26] : memref<3x128x256xbf16, #tpu.memory_space<vmem>>, vector<1x128x256xbf16>
    %32 = vector.shape_cast %31 : vector<1x128x256xbf16> to vector<128x256xbf16>
    %cst_27 = arith.constant dense<0.000000e+00> : vector<16x256xf32>
    %33 = tpu.matmul %30, %32, %cst_27 {dimension_numbers = #tpu.dot_dimension_numbers<[1], [0], [0], [1], [0, 0, 1, 1], [], []>} : vector<16x128xbf16>, vector<128x256xbf16>, vector<16x256xf32> -> vector<16x256xf32>
    %34 = vector.broadcast %28 : vector<1x256xf32> to vector<16x256xf32>
    %35 = arith.addf %34, %33 : vector<16x256xf32>
    %c2_28 = arith.constant 2 : index
    %c0_29 = arith.constant 0 : index
    %36 = vector.load %arg19[%c2_28, %c0_29] : memref<20x128xf32, #tpu.memory_space<vmem>>, vector<16x128xf32>
    %37 = arith.truncf %36 : vector<16x128xf32> to vector<16x128xbf16>
    %c1_30 = arith.constant 1 : index
    %c0_31 = arith.constant 0 : index
    %c0_32 = arith.constant 0 : index
    %38 = vector.load %arg3[%c1_30, %c0_31, %c0_32] : memref<3x128x256xbf16, #tpu.memory_space<vmem>>, vector<1x128x256xbf16>
    %39 = vector.shape_cast %38 : vector<1x128x256xbf16> to vector<128x256xbf16>
    %cst_33 = arith.constant dense<0.000000e+00> : vector<16x256xf32>
    %40 = tpu.matmul %37, %39, %cst_33 {dimension_numbers = #tpu.dot_dimension_numbers<[1], [0], [0], [1], [0, 0, 1, 1], [], []>} : vector<16x128xbf16>, vector<128x256xbf16>, vector<16x256xf32> -> vector<16x256xf32>
    %41 = arith.addf %35, %40 : vector<16x256xf32>
    %c4_34 = arith.constant 4 : index
    %c0_35 = arith.constant 0 : index
    %42 = vector.load %arg19[%c4_34, %c0_35] : memref<20x128xf32, #tpu.memory_space<vmem>>, vector<16x128xf32>
    %43 = arith.truncf %42 : vector<16x128xf32> to vector<16x128xbf16>
    %c2_36 = arith.constant 2 : index
    %c0_37 = arith.constant 0 : index
    %c0_38 = arith.constant 0 : index
    %44 = vector.load %arg3[%c2_36, %c0_37, %c0_38] : memref<3x128x256xbf16, #tpu.memory_space<vmem>>, vector<1x128x256xbf16>
    %45 = vector.shape_cast %44 : vector<1x128x256xbf16> to vector<128x256xbf16>
    %cst_39 = arith.constant dense<0.000000e+00> : vector<16x256xf32>
    %46 = tpu.matmul %43, %45, %cst_39 {dimension_numbers = #tpu.dot_dimension_numbers<[1], [0], [0], [1], [0, 0, 1, 1], [], []>} : vector<16x128xbf16>, vector<128x256xbf16>, vector<16x256xf32> -> vector<16x256xf32>
    %47 = arith.addf %41, %46 : vector<16x256xf32>
    %48 = math.tanh %47 : vector<16x256xf32>
    %c0_40 = arith.constant 0 : index
    %c0_41 = arith.constant 0 : index
    %49 = vector.load %arg16[%c0_40, %c0_41] : memref<6x256xf32, #tpu.memory_space<vmem>>, vector<2x256xf32>
    %50 = arith.truncf %48 : vector<16x256xf32> to vector<16x256xbf16>
    %c0_42 = arith.constant 0 : index
    %c0_43 = arith.constant 0 : index
    %51 = vector.load %arg5[%c0_42, %c0_43] : memref<256x768xbf16, #tpu.memory_space<vmem>>, vector<256x768xbf16>
    %cst_44 = arith.constant dense<0.000000e+00> : vector<16x768xf32>
    %52 = tpu.matmul %50, %51, %cst_44 {dimension_numbers = #tpu.dot_dimension_numbers<[1], [0], [0], [1], [0, 0, 1, 1], [], []>} : vector<16x256xbf16>, vector<256x768xbf16>, vector<16x768xf32> -> vector<16x768xf32>
    %c0_45 = arith.constant 0 : index
    %c0_46 = arith.constant 0 : index
    %53 = vector.load %arg7[%c0_45, %c0_46] : memref<2x768xf32, #tpu.memory_space<vmem>>, vector<1x768xf32>
    %54 = vector.shape_cast %53 : vector<1x768xf32> to vector<768xf32>
    %55 = vector.shape_cast %54 : vector<768xf32> to vector<1x768xf32>
    %56 = vector.broadcast %55 : vector<1x768xf32> to vector<16x768xf32>
    %57 = arith.addf %52, %56 : vector<16x768xf32>
    %c0_47 = arith.constant 0 : index
    %c0_48 = arith.constant 0 : index
    %58 = vector.load %arg20[%c0_47, %c0_48] : memref<16x768xf32, #tpu.memory_space<vmem>>, vector<16x768xf32>
    tpu.vector_store %arg20[%c0_47, %c0_48], %57 {strides = array<i32>} : memref<16x768xf32, #tpu.memory_space<vmem>>, vector<16x768xf32>,
    %c0_49 = arith.constant 0 : index
    %c0_50 = arith.constant 0 : index
    %59 = vector.load %arg6[%c0_49, %c0_50] : memref<256x768xbf16, #tpu.memory_space<vmem>>, vector<256x768xbf16>
    %c1_51 = arith.constant 1 : index
    %c0_52 = arith.constant 0 : index
    %60 = vector.load %arg7[%c1_51, %c0_52] : memref<2x768xf32, #tpu.memory_space<vmem>>, vector<1x768xf32>
    %61 = vector.shape_cast %60 : vector<1x768xf32> to vector<768xf32>
    %62 = vector.shape_cast %61 : vector<768xf32> to vector<1x768xf32>
    %c0_53 = arith.constant 0 : index
    %c0_54 = arith.constant 0 : index
    %63 = vector.load %arg20[%c0_53, %c0_54] : memref<16x768xf32, #tpu.memory_space<vmem>>, vector<2x768xf32>
    %64 = arith.truncf %49 : vector<2x256xf32> to vector<2x256xbf16>
    %cst_55 = arith.constant dense<0.000000e+00> : vector<2x768xf32>
    %65 = tpu.matmul %64, %59, %cst_55 {dimension_numbers = #tpu.dot_dimension_numbers<[1], [0], [0], [1], [0, 0, 1, 1], [], []>} : vector<2x256xbf16>, vector<256x768xbf16>, vector<2x768xf32> -> vector<2x768xf32>
    %66 = vector.broadcast %62 : vector<1x768xf32> to vector<2x768xf32>
    %67 = arith.addf %65, %66 : vector<2x768xf32>
    %68 = vector.extract_strided_slice %63 {offsets = [0, 0], sizes = [2, 256], strides = [1, 1]} : vector<2x768xf32> to vector<2x256xf32>
    %69 = vector.extract_strided_slice %67 {offsets = [0, 0], sizes = [2, 256], strides = [1, 1]} : vector<2x768xf32> to vector<2x256xf32>
    %70 = arith.addf %68, %69 : vector<2x256xf32>
    %71 = arith.negf %70 : vector<2x256xf32>
    %72 = math.exp %71 : vector<2x256xf32>
    %cst_56 = arith.constant 1.000000e+00 : f32
    %73 = vector.broadcast %cst_56 : f32 to vector<2x256xf32>
    %74 = arith.addf %73, %72 : vector<2x256xf32>
    %75 = arith.divf %73, %74 : vector<2x256xf32>
    %76 = vector.extract_strided_slice %63 {offsets = [0, 256], sizes = [2, 256], strides = [1, 1]} : vector<2x768xf32> to vector<2x256xf32>
    %77 = vector.extract_strided_slice %67 {offsets = [0, 256], sizes = [2, 256], strides = [1, 1]} : vector<2x768xf32> to vector<2x256xf32>
    %78 = arith.addf %76, %77 : vector<2x256xf32>
    %79 = arith.negf %78 : vector<2x256xf32>
    %80 = math.exp %79 : vector<2x256xf32>
    %cst_57 = arith.constant 1.000000e+00 : f32
    %81 = vector.broadcast %cst_57 : f32 to vector<2x256xf32>
    %82 = arith.addf %81, %80 : vector<2x256xf32>
    %83 = arith.divf %81, %82 : vector<2x256xf32>
    %84 = vector.extract_strided_slice %63 {offsets = [0, 512], sizes = [2, 256], strides = [1, 1]} : vector<2x768xf32> to vector<2x256xf32>
    %85 = vector.extract_strided_slice %67 {offsets = [0, 512], sizes = [2, 256], strides = [1, 1]} : vector<2x768xf32> to vector<2x256xf32>
    %86 = arith.mulf %75, %85 : vector<2x256xf32>
    %87 = arith.addf %84, %86 : vector<2x256xf32>
    %88 = math.tanh %87 : vector<2x256xf32>
    %cst_58 = arith.constant 1.000000e+00 : f32
    %89 = vector.broadcast %cst_58 : f32 to vector<2x256xf32>
    %90 = arith.subf %89, %83 : vector<2x256xf32>
    %91 = arith.mulf %90, %88 : vector<2x256xf32>
    %92 = arith.mulf %83, %49 : vector<2x256xf32>
    %93 = arith.addf %91, %92 : vector<2x256xf32>
    %c0_59 = arith.constant 0 : index
    %c0_60 = arith.constant 0 : index
    %94 = vector.load %arg21[%c0_59, %c0_60] : memref<16x256xf32, #tpu.memory_space<vmem>>, vector<2x256xf32>
    tpu.vector_store %arg21[%c0_59, %c0_60], %93 {strides = array<i32>} : memref<16x256xf32, #tpu.memory_space<vmem>>, vector<2x256xf32>,
    %c2_61 = arith.constant 2 : index
    %c0_62 = arith.constant 0 : index
    %95 = vector.load %arg20[%c2_61, %c0_62] : memref<16x768xf32, #tpu.memory_space<vmem>>, vector<2x768xf32>
    %96 = arith.truncf %93 : vector<2x256xf32> to vector<2x256xbf16>
    %cst_63 = arith.constant dense<0.000000e+00> : vector<2x768xf32>
    %97 = tpu.matmul %96, %59, %cst_63 {dimension_numbers = #tpu.dot_dimension_numbers<[1], [0], [0], [1], [0, 0, 1, 1], [], []>} : vector<2x256xbf16>, vector<256x768xbf16>, vector<2x768xf32> -> vector<2x768xf32>
    %98 = vector.broadcast %62 : vector<1x768xf32> to vector<2x768xf32>
    %99 = arith.addf %97, %98 : vector<2x768xf32>
    %100 = vector.extract_strided_slice %95 {offsets = [0, 0], sizes = [2, 256], strides = [1, 1]} : vector<2x768xf32> to vector<2x256xf32>
    %101 = vector.extract_strided_slice %99 {offsets = [0, 0], sizes = [2, 256], strides = [1, 1]} : vector<2x768xf32> to vector<2x256xf32>
    %102 = arith.addf %100, %101 : vector<2x256xf32>
    %103 = arith.negf %102 : vector<2x256xf32>
    %104 = math.exp %103 : vector<2x256xf32>
    %cst_64 = arith.constant 1.000000e+00 : f32
    %105 = vector.broadcast %cst_64 : f32 to vector<2x256xf32>
    %106 = arith.addf %105, %104 : vector<2x256xf32>
    %107 = arith.divf %105, %106 : vector<2x256xf32>
    %108 = vector.extract_strided_slice %95 {offsets = [0, 256], sizes = [2, 256], strides = [1, 1]} : vector<2x768xf32> to vector<2x256xf32>
    %109 = vector.extract_strided_slice %99 {offsets = [0, 256], sizes = [2, 256], strides = [1, 1]} : vector<2x768xf32> to vector<2x256xf32>
    %110 = arith.addf %108, %109 : vector<2x256xf32>
    %111 = arith.negf %110 : vector<2x256xf32>
    %112 = math.exp %111 : vector<2x256xf32>
    %cst_65 = arith.constant 1.000000e+00 : f32
    %113 = vector.broadcast %cst_65 : f32 to vector<2x256xf32>
    %114 = arith.addf %113, %112 : vector<2x256xf32>
    %115 = arith.divf %113, %114 : vector<2x256xf32>
    %116 = vector.extract_strided_slice %95 {offsets = [0, 512], sizes = [2, 256], strides = [1, 1]} : vector<2x768xf32> to vector<2x256xf32>
    %117 = vector.extract_strided_slice %99 {offsets = [0, 512], sizes = [2, 256], strides = [1, 1]} : vector<2x768xf32> to vector<2x256xf32>
    %118 = arith.mulf %107, %117 : vector<2x256xf32>
    %119 = arith.addf %116, %118 : vector<2x256xf32>
    %120 = math.tanh %119 : vector<2x256xf32>
    %cst_66 = arith.constant 1.000000e+00 : f32
    %121 = vector.broadcast %cst_66 : f32 to vector<2x256xf32>
    %122 = arith.subf %121, %115 : vector<2x256xf32>
    %123 = arith.mulf %122, %120 : vector<2x256xf32>
    %124 = arith.mulf %115, %93 : vector<2x256xf32>
    %125 = arith.addf %123, %124 : vector<2x256xf32>
    %c2_67 = arith.constant 2 : index
    %c0_68 = arith.constant 0 : index
    %126 = vector.load %arg21[%c2_67, %c0_68] : memref<16x256xf32, #tpu.memory_space<vmem>>, vector<2x256xf32>
    tpu.vector_store %arg21[%c2_67, %c0_68], %125 {strides = array<i32>} : memref<16x256xf32, #tpu.memory_space<vmem>>, vector<2x256xf32>,
    %c4_69 = arith.constant 4 : index
    %c0_70 = arith.constant 0 : index
    %127 = vector.load %arg20[%c4_69, %c0_70] : memref<16x768xf32, #tpu.memory_space<vmem>>, vector<2x768xf32>
    %128 = arith.truncf %125 : vector<2x256xf32> to vector<2x256xbf16>
    %cst_71 = arith.constant dense<0.000000e+00> : vector<2x768xf32>
    %129 = tpu.matmul %128, %59, %cst_71 {dimension_numbers = #tpu.dot_dimension_numbers<[1], [0], [0], [1], [0, 0, 1, 1], [], []>} : vector<2x256xbf16>, vector<256x768xbf16>, vector<2x768xf32> -> vector<2x768xf32>
    %130 = vector.broadcast %62 : vector<1x768xf32> to vector<2x768xf32>
    %131 = arith.addf %129, %130 : vector<2x768xf32>
    %132 = vector.extract_strided_slice %127 {offsets = [0, 0], sizes = [2, 256], strides = [1, 1]} : vector<2x768xf32> to vector<2x256xf32>
    %133 = vector.extract_strided_slice %131 {offsets = [0, 0], sizes = [2, 256], strides = [1, 1]} : vector<2x768xf32> to vector<2x256xf32>
    %134 = arith.addf %132, %133 : vector<2x256xf32>
    %135 = arith.negf %134 : vector<2x256xf32>
    %136 = math.exp %135 : vector<2x256xf32>
    %cst_72 = arith.constant 1.000000e+00 : f32
    %137 = vector.broadcast %cst_72 : f32 to vector<2x256xf32>
    %138 = arith.addf %137, %136 : vector<2x256xf32>
    %139 = arith.divf %137, %138 : vector<2x256xf32>
    %140 = vector.extract_strided_slice %127 {offsets = [0, 256], sizes = [2, 256], strides = [1, 1]} : vector<2x768xf32> to vector<2x256xf32>
    %141 = vector.extract_strided_slice %131 {offsets = [0, 256], sizes = [2, 256], strides = [1, 1]} : vector<2x768xf32> to vector<2x256xf32>
    %142 = arith.addf %140, %141 : vector<2x256xf32>
    %143 = arith.negf %142 : vector<2x256xf32>
    %144 = math.exp %143 : vector<2x256xf32>
    %cst_73 = arith.constant 1.000000e+00 : f32
    %145 = vector.broadcast %cst_73 : f32 to vector<2x256xf32>
    %146 = arith.addf %145, %144 : vector<2x256xf32>
    %147 = arith.divf %145, %146 : vector<2x256xf32>
    %148 = vector.extract_strided_slice %127 {offsets = [0, 512], sizes = [2, 256], strides = [1, 1]} : vector<2x768xf32> to vector<2x256xf32>
    %149 = vector.extract_strided_slice %131 {offsets = [0, 512], sizes = [2, 256], strides = [1, 1]} : vector<2x768xf32> to vector<2x256xf32>
    %150 = arith.mulf %139, %149 : vector<2x256xf32>
    %151 = arith.addf %148, %150 : vector<2x256xf32>
    %152 = math.tanh %151 : vector<2x256xf32>
    %cst_74 = arith.constant 1.000000e+00 : f32
    %153 = vector.broadcast %cst_74 : f32 to vector<2x256xf32>
    %154 = arith.subf %153, %147 : vector<2x256xf32>
    %155 = arith.mulf %154, %152 : vector<2x256xf32>
    %156 = arith.mulf %147, %125 : vector<2x256xf32>
    %157 = arith.addf %155, %156 : vector<2x256xf32>
    %c4_75 = arith.constant 4 : index
    %c0_76 = arith.constant 0 : index
    %158 = vector.load %arg21[%c4_75, %c0_76] : memref<16x256xf32, #tpu.memory_space<vmem>>, vector<2x256xf32>
    tpu.vector_store %arg21[%c4_75, %c0_76], %157 {strides = array<i32>} : memref<16x256xf32, #tpu.memory_space<vmem>>, vector<2x256xf32>,
    %c6 = arith.constant 6 : index
    %c0_77 = arith.constant 0 : index
    %159 = vector.load %arg20[%c6, %c0_77] : memref<16x768xf32, #tpu.memory_space<vmem>>, vector<2x768xf32>
    %160 = arith.truncf %157 : vector<2x256xf32> to vector<2x256xbf16>
    %cst_78 = arith.constant dense<0.000000e+00> : vector<2x768xf32>
    %161 = tpu.matmul %160, %59, %cst_78 {dimension_numbers = #tpu.dot_dimension_numbers<[1], [0], [0], [1], [0, 0, 1, 1], [], []>} : vector<2x256xbf16>, vector<256x768xbf16>, vector<2x768xf32> -> vector<2x768xf32>
    %162 = vector.broadcast %62 : vector<1x768xf32> to vector<2x768xf32>
    %163 = arith.addf %161, %162 : vector<2x768xf32>
    %164 = vector.extract_strided_slice %159 {offsets = [0, 0], sizes = [2, 256], strides = [1, 1]} : vector<2x768xf32> to vector<2x256xf32>
    %165 = vector.extract_strided_slice %163 {offsets = [0, 0], sizes = [2, 256], strides = [1, 1]} : vector<2x768xf32> to vector<2x256xf32>
    %166 = arith.addf %164, %165 : vector<2x256xf32>
    %167 = arith.negf %166 : vector<2x256xf32>
    %168 = math.exp %167 : vector<2x256xf32>
    %cst_79 = arith.constant 1.000000e+00 : f32
    %169 = vector.broadcast %cst_79 : f32 to vector<2x256xf32>
    %170 = arith.addf %169, %168 : vector<2x256xf32>
    %171 = arith.divf %169, %170 : vector<2x256xf32>
    %172 = vector.extract_strided_slice %159 {offsets = [0, 256], sizes = [2, 256], strides = [1, 1]} : vector<2x768xf32> to vector<2x256xf32>
    %173 = vector.extract_strided_slice %163 {offsets = [0, 256], sizes = [2, 256], strides = [1, 1]} : vector<2x768xf32> to vector<2x256xf32>
    %174 = arith.addf %172, %173 : vector<2x256xf32>
    %175 = arith.negf %174 : vector<2x256xf32>
    %176 = math.exp %175 : vector<2x256xf32>
    %cst_80 = arith.constant 1.000000e+00 : f32
    %177 = vector.broadcast %cst_80 : f32 to vector<2x256xf32>
    %178 = arith.addf %177, %176 : vector<2x256xf32>
    %179 = arith.divf %177, %178 : vector<2x256xf32>
    %180 = vector.extract_strided_slice %159 {offsets = [0, 512], sizes = [2, 256], strides = [1, 1]} : vector<2x768xf32> to vector<2x256xf32>
    %181 = vector.extract_strided_slice %163 {offsets = [0, 512], sizes = [2, 256], strides = [1, 1]} : vector<2x768xf32> to vector<2x256xf32>
    %182 = arith.mulf %171, %181 : vector<2x256xf32>
    %183 = arith.addf %180, %182 : vector<2x256xf32>
    %184 = math.tanh %183 : vector<2x256xf32>
    %cst_81 = arith.constant 1.000000e+00 : f32
    %185 = vector.broadcast %cst_81 : f32 to vector<2x256xf32>
    %186 = arith.subf %185, %179 : vector<2x256xf32>
    %187 = arith.mulf %186, %184 : vector<2x256xf32>
    %188 = arith.mulf %179, %157 : vector<2x256xf32>
    %189 = arith.addf %187, %188 : vector<2x256xf32>
    %c6_82 = arith.constant 6 : index
    %c0_83 = arith.constant 0 : index
    %190 = vector.load %arg21[%c6_82, %c0_83] : memref<16x256xf32, #tpu.memory_space<vmem>>, vector<2x256xf32>
    tpu.vector_store %arg21[%c6_82, %c0_83], %189 {strides = array<i32>} : memref<16x256xf32, #tpu.memory_space<vmem>>, vector<2x256xf32>,
    %c8 = arith.constant 8 : index
    %c0_84 = arith.constant 0 : index
    %191 = vector.load %arg20[%c8, %c0_84] : memref<16x768xf32, #tpu.memory_space<vmem>>, vector<2x768xf32>
    %192 = arith.truncf %189 : vector<2x256xf32> to vector<2x256xbf16>
    %cst_85 = arith.constant dense<0.000000e+00> : vector<2x768xf32>
    %193 = tpu.matmul %192, %59, %cst_85 {dimension_numbers = #tpu.dot_dimension_numbers<[1], [0], [0], [1], [0, 0, 1, 1], [], []>} : vector<2x256xbf16>, vector<256x768xbf16>, vector<2x768xf32> -> vector<2x768xf32>
    %194 = vector.broadcast %62 : vector<1x768xf32> to vector<2x768xf32>
    %195 = arith.addf %193, %194 : vector<2x768xf32>
    %196 = vector.extract_strided_slice %191 {offsets = [0, 0], sizes = [2, 256], strides = [1, 1]} : vector<2x768xf32> to vector<2x256xf32>
    %197 = vector.extract_strided_slice %195 {offsets = [0, 0], sizes = [2, 256], strides = [1, 1]} : vector<2x768xf32> to vector<2x256xf32>
    %198 = arith.addf %196, %197 : vector<2x256xf32>
    %199 = arith.negf %198 : vector<2x256xf32>
    %200 = math.exp %199 : vector<2x256xf32>
    %cst_86 = arith.constant 1.000000e+00 : f32
    %201 = vector.broadcast %cst_86 : f32 to vector<2x256xf32>
    %202 = arith.addf %201, %200 : vector<2x256xf32>
    %203 = arith.divf %201, %202 : vector<2x256xf32>
    %204 = vector.extract_strided_slice %191 {offsets = [0, 256], sizes = [2, 256], strides = [1, 1]} : vector<2x768xf32> to vector<2x256xf32>
    %205 = vector.extract_strided_slice %195 {offsets = [0, 256], sizes = [2, 256], strides = [1, 1]} : vector<2x768xf32> to vector<2x256xf32>
    %206 = arith.addf %204, %205 : vector<2x256xf32>
    %207 = arith.negf %206 : vector<2x256xf32>
    %208 = math.exp %207 : vector<2x256xf32>
    %cst_87 = arith.constant 1.000000e+00 : f32
    %209 = vector.broadcast %cst_87 : f32 to vector<2x256xf32>
    %210 = arith.addf %209, %208 : vector<2x256xf32>
    %211 = arith.divf %209, %210 : vector<2x256xf32>
    %212 = vector.extract_strided_slice %191 {offsets = [0, 512], sizes = [2, 256], strides = [1, 1]} : vector<2x768xf32> to vector<2x256xf32>
    %213 = vector.extract_strided_slice %195 {offsets = [0, 512], sizes = [2, 256], strides = [1, 1]} : vector<2x768xf32> to vector<2x256xf32>
    %214 = arith.mulf %203, %213 : vector<2x256xf32>
    %215 = arith.addf %212, %214 : vector<2x256xf32>
    %216 = math.tanh %215 : vector<2x256xf32>
    %cst_88 = arith.constant 1.000000e+00 : f32
    %217 = vector.broadcast %cst_88 : f32 to vector<2x256xf32>
    %218 = arith.subf %217, %211 : vector<2x256xf32>
    %219 = arith.mulf %218, %216 : vector<2x256xf32>
    %220 = arith.mulf %211, %189 : vector<2x256xf32>
    %221 = arith.addf %219, %220 : vector<2x256xf32>
    %c8_89 = arith.constant 8 : index
    %c0_90 = arith.constant 0 : index
    %222 = vector.load %arg21[%c8_89, %c0_90] : memref<16x256xf32, #tpu.memory_space<vmem>>, vector<2x256xf32>
    tpu.vector_store %arg21[%c8_89, %c0_90], %221 {strides = array<i32>} : memref<16x256xf32, #tpu.memory_space<vmem>>, vector<2x256xf32>,
    %c10 = arith.constant 10 : index
    %c0_91 = arith.constant 0 : index
    %223 = vector.load %arg20[%c10, %c0_91] : memref<16x768xf32, #tpu.memory_space<vmem>>, vector<2x768xf32>
    %224 = arith.truncf %221 : vector<2x256xf32> to vector<2x256xbf16>
    %cst_92 = arith.constant dense<0.000000e+00> : vector<2x768xf32>
    %225 = tpu.matmul %224, %59, %cst_92 {dimension_numbers = #tpu.dot_dimension_numbers<[1], [0], [0], [1], [0, 0, 1, 1], [], []>} : vector<2x256xbf16>, vector<256x768xbf16>, vector<2x768xf32> -> vector<2x768xf32>
    %226 = vector.broadcast %62 : vector<1x768xf32> to vector<2x768xf32>
    %227 = arith.addf %225, %226 : vector<2x768xf32>
    %228 = vector.extract_strided_slice %223 {offsets = [0, 0], sizes = [2, 256], strides = [1, 1]} : vector<2x768xf32> to vector<2x256xf32>
    %229 = vector.extract_strided_slice %227 {offsets = [0, 0], sizes = [2, 256], strides = [1, 1]} : vector<2x768xf32> to vector<2x256xf32>
    %230 = arith.addf %228, %229 : vector<2x256xf32>
    %231 = arith.negf %230 : vector<2x256xf32>
    %232 = math.exp %231 : vector<2x256xf32>
    %cst_93 = arith.constant 1.000000e+00 : f32
    %233 = vector.broadcast %cst_93 : f32 to vector<2x256xf32>
    %234 = arith.addf %233, %232 : vector<2x256xf32>
    %235 = arith.divf %233, %234 : vector<2x256xf32>
    %236 = vector.extract_strided_slice %223 {offsets = [0, 256], sizes = [2, 256], strides = [1, 1]} : vector<2x768xf32> to vector<2x256xf32>
    %237 = vector.extract_strided_slice %227 {offsets = [0, 256], sizes = [2, 256], strides = [1, 1]} : vector<2x768xf32> to vector<2x256xf32>
    %238 = arith.addf %236, %237 : vector<2x256xf32>
    %239 = arith.negf %238 : vector<2x256xf32>
    %240 = math.exp %239 : vector<2x256xf32>
    %cst_94 = arith.constant 1.000000e+00 : f32
    %241 = vector.broadcast %cst_94 : f32 to vector<2x256xf32>
    %242 = arith.addf %241, %240 : vector<2x256xf32>
    %243 = arith.divf %241, %242 : vector<2x256xf32>
    %244 = vector.extract_strided_slice %223 {offsets = [0, 512], sizes = [2, 256], strides = [1, 1]} : vector<2x768xf32> to vector<2x256xf32>
    %245 = vector.extract_strided_slice %227 {offsets = [0, 512], sizes = [2, 256], strides = [1, 1]} : vector<2x768xf32> to vector<2x256xf32>
    %246 = arith.mulf %235, %245 : vector<2x256xf32>
    %247 = arith.addf %244, %246 : vector<2x256xf32>
    %248 = math.tanh %247 : vector<2x256xf32>
    %cst_95 = arith.constant 1.000000e+00 : f32
    %249 = vector.broadcast %cst_95 : f32 to vector<2x256xf32>
    %250 = arith.subf %249, %243 : vector<2x256xf32>
    %251 = arith.mulf %250, %248 : vector<2x256xf32>
    %252 = arith.mulf %243, %221 : vector<2x256xf32>
    %253 = arith.addf %251, %252 : vector<2x256xf32>
    %c10_96 = arith.constant 10 : index
    %c0_97 = arith.constant 0 : index
    %254 = vector.load %arg21[%c10_96, %c0_97] : memref<16x256xf32, #tpu.memory_space<vmem>>, vector<2x256xf32>
    tpu.vector_store %arg21[%c10_96, %c0_97], %253 {strides = array<i32>} : memref<16x256xf32, #tpu.memory_space<vmem>>, vector<2x256xf32>,
    %c12 = arith.constant 12 : index
    %c0_98 = arith.constant 0 : index
    %255 = vector.load %arg20[%c12, %c0_98] : memref<16x768xf32, #tpu.memory_space<vmem>>, vector<2x768xf32>
    %256 = arith.truncf %253 : vector<2x256xf32> to vector<2x256xbf16>
    %cst_99 = arith.constant dense<0.000000e+00> : vector<2x768xf32>
    %257 = tpu.matmul %256, %59, %cst_99 {dimension_numbers = #tpu.dot_dimension_numbers<[1], [0], [0], [1], [0, 0, 1, 1], [], []>} : vector<2x256xbf16>, vector<256x768xbf16>, vector<2x768xf32> -> vector<2x768xf32>
    %258 = vector.broadcast %62 : vector<1x768xf32> to vector<2x768xf32>
    %259 = arith.addf %257, %258 : vector<2x768xf32>
    %260 = vector.extract_strided_slice %255 {offsets = [0, 0], sizes = [2, 256], strides = [1, 1]} : vector<2x768xf32> to vector<2x256xf32>
    %261 = vector.extract_strided_slice %259 {offsets = [0, 0], sizes = [2, 256], strides = [1, 1]} : vector<2x768xf32> to vector<2x256xf32>
    %262 = arith.addf %260, %261 : vector<2x256xf32>
    %263 = arith.negf %262 : vector<2x256xf32>
    %264 = math.exp %263 : vector<2x256xf32>
    %cst_100 = arith.constant 1.000000e+00 : f32
    %265 = vector.broadcast %cst_100 : f32 to vector<2x256xf32>
    %266 = arith.addf %265, %264 : vector<2x256xf32>
    %267 = arith.divf %265, %266 : vector<2x256xf32>
    %268 = vector.extract_strided_slice %255 {offsets = [0, 256], sizes = [2, 256], strides = [1, 1]} : vector<2x768xf32> to vector<2x256xf32>
    %269 = vector.extract_strided_slice %259 {offsets = [0, 256], sizes = [2, 256], strides = [1, 1]} : vector<2x768xf32> to vector<2x256xf32>
    %270 = arith.addf %268, %269 : vector<2x256xf32>
    %271 = arith.negf %270 : vector<2x256xf32>
    %272 = math.exp %271 : vector<2x256xf32>
    %cst_101 = arith.constant 1.000000e+00 : f32
    %273 = vector.broadcast %cst_101 : f32 to vector<2x256xf32>
    %274 = arith.addf %273, %272 : vector<2x256xf32>
    %275 = arith.divf %273, %274 : vector<2x256xf32>
    %276 = vector.extract_strided_slice %255 {offsets = [0, 512], sizes = [2, 256], strides = [1, 1]} : vector<2x768xf32> to vector<2x256xf32>
    %277 = vector.extract_strided_slice %259 {offsets = [0, 512], sizes = [2, 256], strides = [1, 1]} : vector<2x768xf32> to vector<2x256xf32>
    %278 = arith.mulf %267, %277 : vector<2x256xf32>
    %279 = arith.addf %276, %278 : vector<2x256xf32>
    %280 = math.tanh %279 : vector<2x256xf32>
    %cst_102 = arith.constant 1.000000e+00 : f32
    %281 = vector.broadcast %cst_102 : f32 to vector<2x256xf32>
    %282 = arith.subf %281, %275 : vector<2x256xf32>
    %283 = arith.mulf %282, %280 : vector<2x256xf32>
    %284 = arith.mulf %275, %253 : vector<2x256xf32>
    %285 = arith.addf %283, %284 : vector<2x256xf32>
    %c12_103 = arith.constant 12 : index
    %c0_104 = arith.constant 0 : index
    %286 = vector.load %arg21[%c12_103, %c0_104] : memref<16x256xf32, #tpu.memory_space<vmem>>, vector<2x256xf32>
    tpu.vector_store %arg21[%c12_103, %c0_104], %285 {strides = array<i32>} : memref<16x256xf32, #tpu.memory_space<vmem>>, vector<2x256xf32>,
    %c14 = arith.constant 14 : index
    %c0_105 = arith.constant 0 : index
    %287 = vector.load %arg20[%c14, %c0_105] : memref<16x768xf32, #tpu.memory_space<vmem>>, vector<2x768xf32>
    %288 = arith.truncf %285 : vector<2x256xf32> to vector<2x256xbf16>
    %cst_106 = arith.constant dense<0.000000e+00> : vector<2x768xf32>
    %289 = tpu.matmul %288, %59, %cst_106 {dimension_numbers = #tpu.dot_dimension_numbers<[1], [0], [0], [1], [0, 0, 1, 1], [], []>} : vector<2x256xbf16>, vector<256x768xbf16>, vector<2x768xf32> -> vector<2x768xf32>
    %290 = vector.broadcast %62 : vector<1x768xf32> to vector<2x768xf32>
    %291 = arith.addf %289, %290 : vector<2x768xf32>
    %292 = vector.extract_strided_slice %287 {offsets = [0, 0], sizes = [2, 256], strides = [1, 1]} : vector<2x768xf32> to vector<2x256xf32>
    %293 = vector.extract_strided_slice %291 {offsets = [0, 0], sizes = [2, 256], strides = [1, 1]} : vector<2x768xf32> to vector<2x256xf32>
    %294 = arith.addf %292, %293 : vector<2x256xf32>
    %295 = arith.negf %294 : vector<2x256xf32>
    %296 = math.exp %295 : vector<2x256xf32>
    %cst_107 = arith.constant 1.000000e+00 : f32
    %297 = vector.broadcast %cst_107 : f32 to vector<2x256xf32>
    %298 = arith.addf %297, %296 : vector<2x256xf32>
    %299 = arith.divf %297, %298 : vector<2x256xf32>
    %300 = vector.extract_strided_slice %287 {offsets = [0, 256], sizes = [2, 256], strides = [1, 1]} : vector<2x768xf32> to vector<2x256xf32>
    %301 = vector.extract_strided_slice %291 {offsets = [0, 256], sizes = [2, 256], strides = [1, 1]} : vector<2x768xf32> to vector<2x256xf32>
    %302 = arith.addf %300, %301 : vector<2x256xf32>
    %303 = arith.negf %302 : vector<2x256xf32>
    %304 = math.exp %303 : vector<2x256xf32>
    %cst_108 = arith.constant 1.000000e+00 : f32
    %305 = vector.broadcast %cst_108 : f32 to vector<2x256xf32>
    %306 = arith.addf %305, %304 : vector<2x256xf32>
    %307 = arith.divf %305, %306 : vector<2x256xf32>
    %308 = vector.extract_strided_slice %287 {offsets = [0, 512], sizes = [2, 256], strides = [1, 1]} : vector<2x768xf32> to vector<2x256xf32>
    %309 = vector.extract_strided_slice %291 {offsets = [0, 512], sizes = [2, 256], strides = [1, 1]} : vector<2x768xf32> to vector<2x256xf32>
    %310 = arith.mulf %299, %309 : vector<2x256xf32>
    %311 = arith.addf %308, %310 : vector<2x256xf32>
    %312 = math.tanh %311 : vector<2x256xf32>
    %cst_109 = arith.constant 1.000000e+00 : f32
    %313 = vector.broadcast %cst_109 : f32 to vector<2x256xf32>
    %314 = arith.subf %313, %307 : vector<2x256xf32>
    %315 = arith.mulf %314, %312 : vector<2x256xf32>
    %316 = arith.mulf %307, %285 : vector<2x256xf32>
    %317 = arith.addf %315, %316 : vector<2x256xf32>
    %c14_110 = arith.constant 14 : index
    %c0_111 = arith.constant 0 : index
    %318 = vector.load %arg21[%c14_110, %c0_111] : memref<16x256xf32, #tpu.memory_space<vmem>>, vector<2x256xf32>
    tpu.vector_store %arg21[%c14_110, %c0_111], %317 {strides = array<i32>} : memref<16x256xf32, #tpu.memory_space<vmem>>, vector<2x256xf32>,
    %c0_112 = arith.constant 0 : index
    %c0_113 = arith.constant 0 : index
    %319 = vector.load %arg21[%c0_112, %c0_113] : memref<16x256xf32, #tpu.memory_space<vmem>>, vector<16x256xf32>
    %c2_114 = arith.constant 2 : index
    %c0_115 = arith.constant 0 : index
    %320 = vector.load %arg16[%c2_114, %c0_115] : memref<6x256xf32, #tpu.memory_space<vmem>>, vector<2x256xf32>
    %321 = arith.truncf %319 : vector<16x256xf32> to vector<16x256xbf16>
    %c0_116 = arith.constant 0 : index
    %c0_117 = arith.constant 0 : index
    %322 = vector.load %arg8[%c0_116, %c0_117] : memref<256x768xbf16, #tpu.memory_space<vmem>>, vector<256x768xbf16>
    %cst_118 = arith.constant dense<0.000000e+00> : vector<16x768xf32>
    %323 = tpu.matmul %321, %322, %cst_118 {dimension_numbers = #tpu.dot_dimension_numbers<[1], [0], [0], [1], [0, 0, 1, 1], [], []>} : vector<16x256xbf16>, vector<256x768xbf16>, vector<16x768xf32> -> vector<16x768xf32>
    %c0_119 = arith.constant 0 : index
    %c0_120 = arith.constant 0 : index
    %324 = vector.load %arg10[%c0_119, %c0_120] : memref<2x768xf32, #tpu.memory_space<vmem>>, vector<1x768xf32>
    %325 = vector.shape_cast %324 : vector<1x768xf32> to vector<768xf32>
    %326 = vector.shape_cast %325 : vector<768xf32> to vector<1x768xf32>
    %327 = vector.broadcast %326 : vector<1x768xf32> to vector<16x768xf32>
    %328 = arith.addf %323, %327 : vector<16x768xf32>
    %c0_121 = arith.constant 0 : index
    %c0_122 = arith.constant 0 : index
    %329 = vector.load %arg20[%c0_121, %c0_122] : memref<16x768xf32, #tpu.memory_space<vmem>>, vector<16x768xf32>
    tpu.vector_store %arg20[%c0_121, %c0_122], %328 {strides = array<i32>} : memref<16x768xf32, #tpu.memory_space<vmem>>, vector<16x768xf32>,
    %c0_123 = arith.constant 0 : index
    %c0_124 = arith.constant 0 : index
    %330 = vector.load %arg9[%c0_123, %c0_124] : memref<256x768xbf16, #tpu.memory_space<vmem>>, vector<256x768xbf16>
    %c1_125 = arith.constant 1 : index
    %c0_126 = arith.constant 0 : index
    %331 = vector.load %arg10[%c1_125, %c0_126] : memref<2x768xf32, #tpu.memory_space<vmem>>, vector<1x768xf32>
    %332 = vector.shape_cast %331 : vector<1x768xf32> to vector<768xf32>
    %333 = vector.shape_cast %332 : vector<768xf32> to vector<1x768xf32>
    %c0_127 = arith.constant 0 : index
    %c0_128 = arith.constant 0 : index
    %334 = vector.load %arg20[%c0_127, %c0_128] : memref<16x768xf32, #tpu.memory_space<vmem>>, vector<2x768xf32>
    %335 = arith.truncf %320 : vector<2x256xf32> to vector<2x256xbf16>
    %cst_129 = arith.constant dense<0.000000e+00> : vector<2x768xf32>
    %336 = tpu.matmul %335, %330, %cst_129 {dimension_numbers = #tpu.dot_dimension_numbers<[1], [0], [0], [1], [0, 0, 1, 1], [], []>} : vector<2x256xbf16>, vector<256x768xbf16>, vector<2x768xf32> -> vector<2x768xf32>
    %337 = vector.broadcast %333 : vector<1x768xf32> to vector<2x768xf32>
    %338 = arith.addf %336, %337 : vector<2x768xf32>
    %339 = vector.extract_strided_slice %334 {offsets = [0, 0], sizes = [2, 256], strides = [1, 1]} : vector<2x768xf32> to vector<2x256xf32>
    %340 = vector.extract_strided_slice %338 {offsets = [0, 0], sizes = [2, 256], strides = [1, 1]} : vector<2x768xf32> to vector<2x256xf32>
    %341 = arith.addf %339, %340 : vector<2x256xf32>
    %342 = arith.negf %341 : vector<2x256xf32>
    %343 = math.exp %342 : vector<2x256xf32>
    %cst_130 = arith.constant 1.000000e+00 : f32
    %344 = vector.broadcast %cst_130 : f32 to vector<2x256xf32>
    %345 = arith.addf %344, %343 : vector<2x256xf32>
    %346 = arith.divf %344, %345 : vector<2x256xf32>
    %347 = vector.extract_strided_slice %334 {offsets = [0, 256], sizes = [2, 256], strides = [1, 1]} : vector<2x768xf32> to vector<2x256xf32>
    %348 = vector.extract_strided_slice %338 {offsets = [0, 256], sizes = [2, 256], strides = [1, 1]} : vector<2x768xf32> to vector<2x256xf32>
    %349 = arith.addf %347, %348 : vector<2x256xf32>
    %350 = arith.negf %349 : vector<2x256xf32>
    %351 = math.exp %350 : vector<2x256xf32>
    %cst_131 = arith.constant 1.000000e+00 : f32
    %352 = vector.broadcast %cst_131 : f32 to vector<2x256xf32>
    %353 = arith.addf %352, %351 : vector<2x256xf32>
    %354 = arith.divf %352, %353 : vector<2x256xf32>
    %355 = vector.extract_strided_slice %334 {offsets = [0, 512], sizes = [2, 256], strides = [1, 1]} : vector<2x768xf32> to vector<2x256xf32>
    %356 = vector.extract_strided_slice %338 {offsets = [0, 512], sizes = [2, 256], strides = [1, 1]} : vector<2x768xf32> to vector<2x256xf32>
    %357 = arith.mulf %346, %356 : vector<2x256xf32>
    %358 = arith.addf %355, %357 : vector<2x256xf32>
    %359 = math.tanh %358 : vector<2x256xf32>
    %cst_132 = arith.constant 1.000000e+00 : f32
    %360 = vector.broadcast %cst_132 : f32 to vector<2x256xf32>
    %361 = arith.subf %360, %354 : vector<2x256xf32>
    %362 = arith.mulf %361, %359 : vector<2x256xf32>
    %363 = arith.mulf %354, %320 : vector<2x256xf32>
    %364 = arith.addf %362, %363 : vector<2x256xf32>
    %c0_133 = arith.constant 0 : index
    %c0_134 = arith.constant 0 : index
    %365 = vector.load %arg21[%c0_133, %c0_134] : memref<16x256xf32, #tpu.memory_space<vmem>>, vector<2x256xf32>
    tpu.vector_store %arg21[%c0_133, %c0_134], %364 {strides = array<i32>} : memref<16x256xf32, #tpu.memory_space<vmem>>, vector<2x256xf32>,
    %c2_135 = arith.constant 2 : index
    %c0_136 = arith.constant 0 : index
    %366 = vector.load %arg20[%c2_135, %c0_136] : memref<16x768xf32, #tpu.memory_space<vmem>>, vector<2x768xf32>
    %367 = arith.truncf %364 : vector<2x256xf32> to vector<2x256xbf16>
    %cst_137 = arith.constant dense<0.000000e+00> : vector<2x768xf32>
    %368 = tpu.matmul %367, %330, %cst_137 {dimension_numbers = #tpu.dot_dimension_numbers<[1], [0], [0], [1], [0, 0, 1, 1], [], []>} : vector<2x256xbf16>, vector<256x768xbf16>, vector<2x768xf32> -> vector<2x768xf32>
    %369 = vector.broadcast %333 : vector<1x768xf32> to vector<2x768xf32>
    %370 = arith.addf %368, %369 : vector<2x768xf32>
    %371 = vector.extract_strided_slice %366 {offsets = [0, 0], sizes = [2, 256], strides = [1, 1]} : vector<2x768xf32> to vector<2x256xf32>
    %372 = vector.extract_strided_slice %370 {offsets = [0, 0], sizes = [2, 256], strides = [1, 1]} : vector<2x768xf32> to vector<2x256xf32>
    %373 = arith.addf %371, %372 : vector<2x256xf32>
    %374 = arith.negf %373 : vector<2x256xf32>
    %375 = math.exp %374 : vector<2x256xf32>
    %cst_138 = arith.constant 1.000000e+00 : f32
    %376 = vector.broadcast %cst_138 : f32 to vector<2x256xf32>
    %377 = arith.addf %376, %375 : vector<2x256xf32>
    %378 = arith.divf %376, %377 : vector<2x256xf32>
    %379 = vector.extract_strided_slice %366 {offsets = [0, 256], sizes = [2, 256], strides = [1, 1]} : vector<2x768xf32> to vector<2x256xf32>
    %380 = vector.extract_strided_slice %370 {offsets = [0, 256], sizes = [2, 256], strides = [1, 1]} : vector<2x768xf32> to vector<2x256xf32>
    %381 = arith.addf %379, %380 : vector<2x256xf32>
    %382 = arith.negf %381 : vector<2x256xf32>
    %383 = math.exp %382 : vector<2x256xf32>
    %cst_139 = arith.constant 1.000000e+00 : f32
    %384 = vector.broadcast %cst_139 : f32 to vector<2x256xf32>
    %385 = arith.addf %384, %383 : vector<2x256xf32>
    %386 = arith.divf %384, %385 : vector<2x256xf32>
    %387 = vector.extract_strided_slice %366 {offsets = [0, 512], sizes = [2, 256], strides = [1, 1]} : vector<2x768xf32> to vector<2x256xf32>
    %388 = vector.extract_strided_slice %370 {offsets = [0, 512], sizes = [2, 256], strides = [1, 1]} : vector<2x768xf32> to vector<2x256xf32>
    %389 = arith.mulf %378, %388 : vector<2x256xf32>
    %390 = arith.addf %387, %389 : vector<2x256xf32>
    %391 = math.tanh %390 : vector<2x256xf32>
    %cst_140 = arith.constant 1.000000e+00 : f32
    %392 = vector.broadcast %cst_140 : f32 to vector<2x256xf32>
    %393 = arith.subf %392, %386 : vector<2x256xf32>
    %394 = arith.mulf %393, %391 : vector<2x256xf32>
    %395 = arith.mulf %386, %364 : vector<2x256xf32>
    %396 = arith.addf %394, %395 : vector<2x256xf32>
    %c2_141 = arith.constant 2 : index
    %c0_142 = arith.constant 0 : index
    %397 = vector.load %arg21[%c2_141, %c0_142] : memref<16x256xf32, #tpu.memory_space<vmem>>, vector<2x256xf32>
    tpu.vector_store %arg21[%c2_141, %c0_142], %396 {strides = array<i32>} : memref<16x256xf32, #tpu.memory_space<vmem>>, vector<2x256xf32>,
    %c4_143 = arith.constant 4 : index
    %c0_144 = arith.constant 0 : index
    %398 = vector.load %arg20[%c4_143, %c0_144] : memref<16x768xf32, #tpu.memory_space<vmem>>, vector<2x768xf32>
    %399 = arith.truncf %396 : vector<2x256xf32> to vector<2x256xbf16>
    %cst_145 = arith.constant dense<0.000000e+00> : vector<2x768xf32>
    %400 = tpu.matmul %399, %330, %cst_145 {dimension_numbers = #tpu.dot_dimension_numbers<[1], [0], [0], [1], [0, 0, 1, 1], [], []>} : vector<2x256xbf16>, vector<256x768xbf16>, vector<2x768xf32> -> vector<2x768xf32>
    %401 = vector.broadcast %333 : vector<1x768xf32> to vector<2x768xf32>
    %402 = arith.addf %400, %401 : vector<2x768xf32>
    %403 = vector.extract_strided_slice %398 {offsets = [0, 0], sizes = [2, 256], strides = [1, 1]} : vector<2x768xf32> to vector<2x256xf32>
    %404 = vector.extract_strided_slice %402 {offsets = [0, 0], sizes = [2, 256], strides = [1, 1]} : vector<2x768xf32> to vector<2x256xf32>
    %405 = arith.addf %403, %404 : vector<2x256xf32>
    %406 = arith.negf %405 : vector<2x256xf32>
    %407 = math.exp %406 : vector<2x256xf32>
    %cst_146 = arith.constant 1.000000e+00 : f32
    %408 = vector.broadcast %cst_146 : f32 to vector<2x256xf32>
    %409 = arith.addf %408, %407 : vector<2x256xf32>
    %410 = arith.divf %408, %409 : vector<2x256xf32>
    %411 = vector.extract_strided_slice %398 {offsets = [0, 256], sizes = [2, 256], strides = [1, 1]} : vector<2x768xf32> to vector<2x256xf32>
    %412 = vector.extract_strided_slice %402 {offsets = [0, 256], sizes = [2, 256], strides = [1, 1]} : vector<2x768xf32> to vector<2x256xf32>
    %413 = arith.addf %411, %412 : vector<2x256xf32>
    %414 = arith.negf %413 : vector<2x256xf32>
    %415 = math.exp %414 : vector<2x256xf32>
    %cst_147 = arith.constant 1.000000e+00 : f32
    %416 = vector.broadcast %cst_147 : f32 to vector<2x256xf32>
    %417 = arith.addf %416, %415 : vector<2x256xf32>
    %418 = arith.divf %416, %417 : vector<2x256xf32>
    %419 = vector.extract_strided_slice %398 {offsets = [0, 512], sizes = [2, 256], strides = [1, 1]} : vector<2x768xf32> to vector<2x256xf32>
    %420 = vector.extract_strided_slice %402 {offsets = [0, 512], sizes = [2, 256], strides = [1, 1]} : vector<2x768xf32> to vector<2x256xf32>
    %421 = arith.mulf %410, %420 : vector<2x256xf32>
    %422 = arith.addf %419, %421 : vector<2x256xf32>
    %423 = math.tanh %422 : vector<2x256xf32>
    %cst_148 = arith.constant 1.000000e+00 : f32
    %424 = vector.broadcast %cst_148 : f32 to vector<2x256xf32>
    %425 = arith.subf %424, %418 : vector<2x256xf32>
    %426 = arith.mulf %425, %423 : vector<2x256xf32>
    %427 = arith.mulf %418, %396 : vector<2x256xf32>
    %428 = arith.addf %426, %427 : vector<2x256xf32>
    %c4_149 = arith.constant 4 : index
    %c0_150 = arith.constant 0 : index
    %429 = vector.load %arg21[%c4_149, %c0_150] : memref<16x256xf32, #tpu.memory_space<vmem>>, vector<2x256xf32>
    tpu.vector_store %arg21[%c4_149, %c0_150], %428 {strides = array<i32>} : memref<16x256xf32, #tpu.memory_space<vmem>>, vector<2x256xf32>,
    %c6_151 = arith.constant 6 : index
    %c0_152 = arith.constant 0 : index
    %430 = vector.load %arg20[%c6_151, %c0_152] : memref<16x768xf32, #tpu.memory_space<vmem>>, vector<2x768xf32>
    %431 = arith.truncf %428 : vector<2x256xf32> to vector<2x256xbf16>
    %cst_153 = arith.constant dense<0.000000e+00> : vector<2x768xf32>
    %432 = tpu.matmul %431, %330, %cst_153 {dimension_numbers = #tpu.dot_dimension_numbers<[1], [0], [0], [1], [0, 0, 1, 1], [], []>} : vector<2x256xbf16>, vector<256x768xbf16>, vector<2x768xf32> -> vector<2x768xf32>
    %433 = vector.broadcast %333 : vector<1x768xf32> to vector<2x768xf32>
    %434 = arith.addf %432, %433 : vector<2x768xf32>
    %435 = vector.extract_strided_slice %430 {offsets = [0, 0], sizes = [2, 256], strides = [1, 1]} : vector<2x768xf32> to vector<2x256xf32>
    %436 = vector.extract_strided_slice %434 {offsets = [0, 0], sizes = [2, 256], strides = [1, 1]} : vector<2x768xf32> to vector<2x256xf32>
    %437 = arith.addf %435, %436 : vector<2x256xf32>
    %438 = arith.negf %437 : vector<2x256xf32>
    %439 = math.exp %438 : vector<2x256xf32>
    %cst_154 = arith.constant 1.000000e+00 : f32
    %440 = vector.broadcast %cst_154 : f32 to vector<2x256xf32>
    %441 = arith.addf %440, %439 : vector<2x256xf32>
    %442 = arith.divf %440, %441 : vector<2x256xf32>
    %443 = vector.extract_strided_slice %430 {offsets = [0, 256], sizes = [2, 256], strides = [1, 1]} : vector<2x768xf32> to vector<2x256xf32>
    %444 = vector.extract_strided_slice %434 {offsets = [0, 256], sizes = [2, 256], strides = [1, 1]} : vector<2x768xf32> to vector<2x256xf32>
    %445 = arith.addf %443, %444 : vector<2x256xf32>
    %446 = arith.negf %445 : vector<2x256xf32>
    %447 = math.exp %446 : vector<2x256xf32>
    %cst_155 = arith.constant 1.000000e+00 : f32
    %448 = vector.broadcast %cst_155 : f32 to vector<2x256xf32>
    %449 = arith.addf %448, %447 : vector<2x256xf32>
    %450 = arith.divf %448, %449 : vector<2x256xf32>
    %451 = vector.extract_strided_slice %430 {offsets = [0, 512], sizes = [2, 256], strides = [1, 1]} : vector<2x768xf32> to vector<2x256xf32>
    %452 = vector.extract_strided_slice %434 {offsets = [0, 512], sizes = [2, 256], strides = [1, 1]} : vector<2x768xf32> to vector<2x256xf32>
    %453 = arith.mulf %442, %452 : vector<2x256xf32>
    %454 = arith.addf %451, %453 : vector<2x256xf32>
    %455 = math.tanh %454 : vector<2x256xf32>
    %cst_156 = arith.constant 1.000000e+00 : f32
    %456 = vector.broadcast %cst_156 : f32 to vector<2x256xf32>
    %457 = arith.subf %456, %450 : vector<2x256xf32>
    %458 = arith.mulf %457, %455 : vector<2x256xf32>
    %459 = arith.mulf %450, %428 : vector<2x256xf32>
    %460 = arith.addf %458, %459 : vector<2x256xf32>
    %c6_157 = arith.constant 6 : index
    %c0_158 = arith.constant 0 : index
    %461 = vector.load %arg21[%c6_157, %c0_158] : memref<16x256xf32, #tpu.memory_space<vmem>>, vector<2x256xf32>
    tpu.vector_store %arg21[%c6_157, %c0_158], %460 {strides = array<i32>} : memref<16x256xf32, #tpu.memory_space<vmem>>, vector<2x256xf32>,
    %c8_159 = arith.constant 8 : index
    %c0_160 = arith.constant 0 : index
    %462 = vector.load %arg20[%c8_159, %c0_160] : memref<16x768xf32, #tpu.memory_space<vmem>>, vector<2x768xf32>
    %463 = arith.truncf %460 : vector<2x256xf32> to vector<2x256xbf16>
    %cst_161 = arith.constant dense<0.000000e+00> : vector<2x768xf32>
    %464 = tpu.matmul %463, %330, %cst_161 {dimension_numbers = #tpu.dot_dimension_numbers<[1], [0], [0], [1], [0, 0, 1, 1], [], []>} : vector<2x256xbf16>, vector<256x768xbf16>, vector<2x768xf32> -> vector<2x768xf32>
    %465 = vector.broadcast %333 : vector<1x768xf32> to vector<2x768xf32>
    %466 = arith.addf %464, %465 : vector<2x768xf32>
    %467 = vector.extract_strided_slice %462 {offsets = [0, 0], sizes = [2, 256], strides = [1, 1]} : vector<2x768xf32> to vector<2x256xf32>
    %468 = vector.extract_strided_slice %466 {offsets = [0, 0], sizes = [2, 256], strides = [1, 1]} : vector<2x768xf32> to vector<2x256xf32>
    %469 = arith.addf %467, %468 : vector<2x256xf32>
    %470 = arith.negf %469 : vector<2x256xf32>
    %471 = math.exp %470 : vector<2x256xf32>
    %cst_162 = arith.constant 1.000000e+00 : f32
    %472 = vector.broadcast %cst_162 : f32 to vector<2x256xf32>
    %473 = arith.addf %472, %471 : vector<2x256xf32>
    %474 = arith.divf %472, %473 : vector<2x256xf32>
    %475 = vector.extract_strided_slice %462 {offsets = [0, 256], sizes = [2, 256], strides = [1, 1]} : vector<2x768xf32> to vector<2x256xf32>
    %476 = vector.extract_strided_slice %466 {offsets = [0, 256], sizes = [2, 256], strides = [1, 1]} : vector<2x768xf32> to vector<2x256xf32>
    %477 = arith.addf %475, %476 : vector<2x256xf32>
    %478 = arith.negf %477 : vector<2x256xf32>
    %479 = math.exp %478 : vector<2x256xf32>
    %cst_163 = arith.constant 1.000000e+00 : f32
    %480 = vector.broadcast %cst_163 : f32 to vector<2x256xf32>
    %481 = arith.addf %480, %479 : vector<2x256xf32>
    %482 = arith.divf %480, %481 : vector<2x256xf32>
    %483 = vector.extract_strided_slice %462 {offsets = [0, 512], sizes = [2, 256], strides = [1, 1]} : vector<2x768xf32> to vector<2x256xf32>
    %484 = vector.extract_strided_slice %466 {offsets = [0, 512], sizes = [2, 256], strides = [1, 1]} : vector<2x768xf32> to vector<2x256xf32>
    %485 = arith.mulf %474, %484 : vector<2x256xf32>
    %486 = arith.addf %483, %485 : vector<2x256xf32>
    %487 = math.tanh %486 : vector<2x256xf32>
    %cst_164 = arith.constant 1.000000e+00 : f32
    %488 = vector.broadcast %cst_164 : f32 to vector<2x256xf32>
    %489 = arith.subf %488, %482 : vector<2x256xf32>
    %490 = arith.mulf %489, %487 : vector<2x256xf32>
    %491 = arith.mulf %482, %460 : vector<2x256xf32>
    %492 = arith.addf %490, %491 : vector<2x256xf32>
    %c8_165 = arith.constant 8 : index
    %c0_166 = arith.constant 0 : index
    %493 = vector.load %arg21[%c8_165, %c0_166] : memref<16x256xf32, #tpu.memory_space<vmem>>, vector<2x256xf32>
    tpu.vector_store %arg21[%c8_165, %c0_166], %492 {strides = array<i32>} : memref<16x256xf32, #tpu.memory_space<vmem>>, vector<2x256xf32>,
    %c10_167 = arith.constant 10 : index
    %c0_168 = arith.constant 0 : index
    %494 = vector.load %arg20[%c10_167, %c0_168] : memref<16x768xf32, #tpu.memory_space<vmem>>, vector<2x768xf32>
    %495 = arith.truncf %492 : vector<2x256xf32> to vector<2x256xbf16>
    %cst_169 = arith.constant dense<0.000000e+00> : vector<2x768xf32>
    %496 = tpu.matmul %495, %330, %cst_169 {dimension_numbers = #tpu.dot_dimension_numbers<[1], [0], [0], [1], [0, 0, 1, 1], [], []>} : vector<2x256xbf16>, vector<256x768xbf16>, vector<2x768xf32> -> vector<2x768xf32>
    %497 = vector.broadcast %333 : vector<1x768xf32> to vector<2x768xf32>
    %498 = arith.addf %496, %497 : vector<2x768xf32>
    %499 = vector.extract_strided_slice %494 {offsets = [0, 0], sizes = [2, 256], strides = [1, 1]} : vector<2x768xf32> to vector<2x256xf32>
    %500 = vector.extract_strided_slice %498 {offsets = [0, 0], sizes = [2, 256], strides = [1, 1]} : vector<2x768xf32> to vector<2x256xf32>
    %501 = arith.addf %499, %500 : vector<2x256xf32>
    %502 = arith.negf %501 : vector<2x256xf32>
    %503 = math.exp %502 : vector<2x256xf32>
    %cst_170 = arith.constant 1.000000e+00 : f32
    %504 = vector.broadcast %cst_170 : f32 to vector<2x256xf32>
    %505 = arith.addf %504, %503 : vector<2x256xf32>
    %506 = arith.divf %504, %505 : vector<2x256xf32>
    %507 = vector.extract_strided_slice %494 {offsets = [0, 256], sizes = [2, 256], strides = [1, 1]} : vector<2x768xf32> to vector<2x256xf32>
    %508 = vector.extract_strided_slice %498 {offsets = [0, 256], sizes = [2, 256], strides = [1, 1]} : vector<2x768xf32> to vector<2x256xf32>
    %509 = arith.addf %507, %508 : vector<2x256xf32>
    %510 = arith.negf %509 : vector<2x256xf32>
    %511 = math.exp %510 : vector<2x256xf32>
    %cst_171 = arith.constant 1.000000e+00 : f32
    %512 = vector.broadcast %cst_171 : f32 to vector<2x256xf32>
    %513 = arith.addf %512, %511 : vector<2x256xf32>
    %514 = arith.divf %512, %513 : vector<2x256xf32>
    %515 = vector.extract_strided_slice %494 {offsets = [0, 512], sizes = [2, 256], strides = [1, 1]} : vector<2x768xf32> to vector<2x256xf32>
    %516 = vector.extract_strided_slice %498 {offsets = [0, 512], sizes = [2, 256], strides = [1, 1]} : vector<2x768xf32> to vector<2x256xf32>
    %517 = arith.mulf %506, %516 : vector<2x256xf32>
    %518 = arith.addf %515, %517 : vector<2x256xf32>
    %519 = math.tanh %518 : vector<2x256xf32>
    %cst_172 = arith.constant 1.000000e+00 : f32
    %520 = vector.broadcast %cst_172 : f32 to vector<2x256xf32>
    %521 = arith.subf %520, %514 : vector<2x256xf32>
    %522 = arith.mulf %521, %519 : vector<2x256xf32>
    %523 = arith.mulf %514, %492 : vector<2x256xf32>
    %524 = arith.addf %522, %523 : vector<2x256xf32>
    %c10_173 = arith.constant 10 : index
    %c0_174 = arith.constant 0 : index
    %525 = vector.load %arg21[%c10_173, %c0_174] : memref<16x256xf32, #tpu.memory_space<vmem>>, vector<2x256xf32>
    tpu.vector_store %arg21[%c10_173, %c0_174], %524 {strides = array<i32>} : memref<16x256xf32, #tpu.memory_space<vmem>>, vector<2x256xf32>,
    %c12_175 = arith.constant 12 : index
    %c0_176 = arith.constant 0 : index
    %526 = vector.load %arg20[%c12_175, %c0_176] : memref<16x768xf32, #tpu.memory_space<vmem>>, vector<2x768xf32>
    %527 = arith.truncf %524 : vector<2x256xf32> to vector<2x256xbf16>
    %cst_177 = arith.constant dense<0.000000e+00> : vector<2x768xf32>
    %528 = tpu.matmul %527, %330, %cst_177 {dimension_numbers = #tpu.dot_dimension_numbers<[1], [0], [0], [1], [0, 0, 1, 1], [], []>} : vector<2x256xbf16>, vector<256x768xbf16>, vector<2x768xf32> -> vector<2x768xf32>
    %529 = vector.broadcast %333 : vector<1x768xf32> to vector<2x768xf32>
    %530 = arith.addf %528, %529 : vector<2x768xf32>
    %531 = vector.extract_strided_slice %526 {offsets = [0, 0], sizes = [2, 256], strides = [1, 1]} : vector<2x768xf32> to vector<2x256xf32>
    %532 = vector.extract_strided_slice %530 {offsets = [0, 0], sizes = [2, 256], strides = [1, 1]} : vector<2x768xf32> to vector<2x256xf32>
    %533 = arith.addf %531, %532 : vector<2x256xf32>
    %534 = arith.negf %533 : vector<2x256xf32>
    %535 = math.exp %534 : vector<2x256xf32>
    %cst_178 = arith.constant 1.000000e+00 : f32
    %536 = vector.broadcast %cst_178 : f32 to vector<2x256xf32>
    %537 = arith.addf %536, %535 : vector<2x256xf32>
    %538 = arith.divf %536, %537 : vector<2x256xf32>
    %539 = vector.extract_strided_slice %526 {offsets = [0, 256], sizes = [2, 256], strides = [1, 1]} : vector<2x768xf32> to vector<2x256xf32>
    %540 = vector.extract_strided_slice %530 {offsets = [0, 256], sizes = [2, 256], strides = [1, 1]} : vector<2x768xf32> to vector<2x256xf32>
    %541 = arith.addf %539, %540 : vector<2x256xf32>
    %542 = arith.negf %541 : vector<2x256xf32>
    %543 = math.exp %542 : vector<2x256xf32>
    %cst_179 = arith.constant 1.000000e+00 : f32
    %544 = vector.broadcast %cst_179 : f32 to vector<2x256xf32>
    %545 = arith.addf %544, %543 : vector<2x256xf32>
    %546 = arith.divf %544, %545 : vector<2x256xf32>
    %547 = vector.extract_strided_slice %526 {offsets = [0, 512], sizes = [2, 256], strides = [1, 1]} : vector<2x768xf32> to vector<2x256xf32>
    %548 = vector.extract_strided_slice %530 {offsets = [0, 512], sizes = [2, 256], strides = [1, 1]} : vector<2x768xf32> to vector<2x256xf32>
    %549 = arith.mulf %538, %548 : vector<2x256xf32>
    %550 = arith.addf %547, %549 : vector<2x256xf32>
    %551 = math.tanh %550 : vector<2x256xf32>
    %cst_180 = arith.constant 1.000000e+00 : f32
    %552 = vector.broadcast %cst_180 : f32 to vector<2x256xf32>
    %553 = arith.subf %552, %546 : vector<2x256xf32>
    %554 = arith.mulf %553, %551 : vector<2x256xf32>
    %555 = arith.mulf %546, %524 : vector<2x256xf32>
    %556 = arith.addf %554, %555 : vector<2x256xf32>
    %c12_181 = arith.constant 12 : index
    %c0_182 = arith.constant 0 : index
    %557 = vector.load %arg21[%c12_181, %c0_182] : memref<16x256xf32, #tpu.memory_space<vmem>>, vector<2x256xf32>
    tpu.vector_store %arg21[%c12_181, %c0_182], %556 {strides = array<i32>} : memref<16x256xf32, #tpu.memory_space<vmem>>, vector<2x256xf32>,
    %c14_183 = arith.constant 14 : index
    %c0_184 = arith.constant 0 : index
    %558 = vector.load %arg20[%c14_183, %c0_184] : memref<16x768xf32, #tpu.memory_space<vmem>>, vector<2x768xf32>
    %559 = arith.truncf %556 : vector<2x256xf32> to vector<2x256xbf16>
    %cst_185 = arith.constant dense<0.000000e+00> : vector<2x768xf32>
    %560 = tpu.matmul %559, %330, %cst_185 {dimension_numbers = #tpu.dot_dimension_numbers<[1], [0], [0], [1], [0, 0, 1, 1], [], []>} : vector<2x256xbf16>, vector<256x768xbf16>, vector<2x768xf32> -> vector<2x768xf32>
    %561 = vector.broadcast %333 : vector<1x768xf32> to vector<2x768xf32>
    %562 = arith.addf %560, %561 : vector<2x768xf32>
    %563 = vector.extract_strided_slice %558 {offsets = [0, 0], sizes = [2, 256], strides = [1, 1]} : vector<2x768xf32> to vector<2x256xf32>
    %564 = vector.extract_strided_slice %562 {offsets = [0, 0], sizes = [2, 256], strides = [1, 1]} : vector<2x768xf32> to vector<2x256xf32>
    %565 = arith.addf %563, %564 : vector<2x256xf32>
    %566 = arith.negf %565 : vector<2x256xf32>
    %567 = math.exp %566 : vector<2x256xf32>
    %cst_186 = arith.constant 1.000000e+00 : f32
    %568 = vector.broadcast %cst_186 : f32 to vector<2x256xf32>
    %569 = arith.addf %568, %567 : vector<2x256xf32>
    %570 = arith.divf %568, %569 : vector<2x256xf32>
    %571 = vector.extract_strided_slice %558 {offsets = [0, 256], sizes = [2, 256], strides = [1, 1]} : vector<2x768xf32> to vector<2x256xf32>
    %572 = vector.extract_strided_slice %562 {offsets = [0, 256], sizes = [2, 256], strides = [1, 1]} : vector<2x768xf32> to vector<2x256xf32>
    %573 = arith.addf %571, %572 : vector<2x256xf32>
    %574 = arith.negf %573 : vector<2x256xf32>
    %575 = math.exp %574 : vector<2x256xf32>
    %cst_187 = arith.constant 1.000000e+00 : f32
    %576 = vector.broadcast %cst_187 : f32 to vector<2x256xf32>
    %577 = arith.addf %576, %575 : vector<2x256xf32>
    %578 = arith.divf %576, %577 : vector<2x256xf32>
    %579 = vector.extract_strided_slice %558 {offsets = [0, 512], sizes = [2, 256], strides = [1, 1]} : vector<2x768xf32> to vector<2x256xf32>
    %580 = vector.extract_strided_slice %562 {offsets = [0, 512], sizes = [2, 256], strides = [1, 1]} : vector<2x768xf32> to vector<2x256xf32>
    %581 = arith.mulf %570, %580 : vector<2x256xf32>
    %582 = arith.addf %579, %581 : vector<2x256xf32>
    %583 = math.tanh %582 : vector<2x256xf32>
    %cst_188 = arith.constant 1.000000e+00 : f32
    %584 = vector.broadcast %cst_188 : f32 to vector<2x256xf32>
    %585 = arith.subf %584, %578 : vector<2x256xf32>
    %586 = arith.mulf %585, %583 : vector<2x256xf32>
    %587 = arith.mulf %578, %556 : vector<2x256xf32>
    %588 = arith.addf %586, %587 : vector<2x256xf32>
    %c14_189 = arith.constant 14 : index
    %c0_190 = arith.constant 0 : index
    %589 = vector.load %arg21[%c14_189, %c0_190] : memref<16x256xf32, #tpu.memory_space<vmem>>, vector<2x256xf32>
    tpu.vector_store %arg21[%c14_189, %c0_190], %588 {strides = array<i32>} : memref<16x256xf32, #tpu.memory_space<vmem>>, vector<2x256xf32>,
    %c0_191 = arith.constant 0 : index
    %c0_192 = arith.constant 0 : index
    %590 = vector.load %arg21[%c0_191, %c0_192] : memref<16x256xf32, #tpu.memory_space<vmem>>, vector<16x256xf32>
    %c4_193 = arith.constant 4 : index
    %c0_194 = arith.constant 0 : index
    %591 = vector.load %arg16[%c4_193, %c0_194] : memref<6x256xf32, #tpu.memory_space<vmem>>, vector<2x256xf32>
    %592 = arith.truncf %590 : vector<16x256xf32> to vector<16x256xbf16>
    %c0_195 = arith.constant 0 : index
    %c0_196 = arith.constant 0 : index
    %593 = vector.load %arg11[%c0_195, %c0_196] : memref<256x768xbf16, #tpu.memory_space<vmem>>, vector<256x768xbf16>
    %cst_197 = arith.constant dense<0.000000e+00> : vector<16x768xf32>
    %594 = tpu.matmul %592, %593, %cst_197 {dimension_numbers = #tpu.dot_dimension_numbers<[1], [0], [0], [1], [0, 0, 1, 1], [], []>} : vector<16x256xbf16>, vector<256x768xbf16>, vector<16x768xf32> -> vector<16x768xf32>
    %c0_198 = arith.constant 0 : index
    %c0_199 = arith.constant 0 : index
    %595 = vector.load %arg13[%c0_198, %c0_199] : memref<2x768xf32, #tpu.memory_space<vmem>>, vector<1x768xf32>
    %596 = vector.shape_cast %595 : vector<1x768xf32> to vector<768xf32>
    %597 = vector.shape_cast %596 : vector<768xf32> to vector<1x768xf32>
    %598 = vector.broadcast %597 : vector<1x768xf32> to vector<16x768xf32>
    %599 = arith.addf %594, %598 : vector<16x768xf32>
    %c0_200 = arith.constant 0 : index
    %c0_201 = arith.constant 0 : index
    %600 = vector.load %arg20[%c0_200, %c0_201] : memref<16x768xf32, #tpu.memory_space<vmem>>, vector<16x768xf32>
    tpu.vector_store %arg20[%c0_200, %c0_201], %599 {strides = array<i32>} : memref<16x768xf32, #tpu.memory_space<vmem>>, vector<16x768xf32>,
    %c0_202 = arith.constant 0 : index
    %c0_203 = arith.constant 0 : index
    %601 = vector.load %arg12[%c0_202, %c0_203] : memref<256x768xbf16, #tpu.memory_space<vmem>>, vector<256x768xbf16>
    %c1_204 = arith.constant 1 : index
    %c0_205 = arith.constant 0 : index
    %602 = vector.load %arg13[%c1_204, %c0_205] : memref<2x768xf32, #tpu.memory_space<vmem>>, vector<1x768xf32>
    %603 = vector.shape_cast %602 : vector<1x768xf32> to vector<768xf32>
    %604 = vector.shape_cast %603 : vector<768xf32> to vector<1x768xf32>
    %c0_206 = arith.constant 0 : index
    %c0_207 = arith.constant 0 : index
    %605 = vector.load %arg20[%c0_206, %c0_207] : memref<16x768xf32, #tpu.memory_space<vmem>>, vector<2x768xf32>
    %606 = arith.truncf %591 : vector<2x256xf32> to vector<2x256xbf16>
    %cst_208 = arith.constant dense<0.000000e+00> : vector<2x768xf32>
    %607 = tpu.matmul %606, %601, %cst_208 {dimension_numbers = #tpu.dot_dimension_numbers<[1], [0], [0], [1], [0, 0, 1, 1], [], []>} : vector<2x256xbf16>, vector<256x768xbf16>, vector<2x768xf32> -> vector<2x768xf32>
    %608 = vector.broadcast %604 : vector<1x768xf32> to vector<2x768xf32>
    %609 = arith.addf %607, %608 : vector<2x768xf32>
    %610 = vector.extract_strided_slice %605 {offsets = [0, 0], sizes = [2, 256], strides = [1, 1]} : vector<2x768xf32> to vector<2x256xf32>
    %611 = vector.extract_strided_slice %609 {offsets = [0, 0], sizes = [2, 256], strides = [1, 1]} : vector<2x768xf32> to vector<2x256xf32>
    %612 = arith.addf %610, %611 : vector<2x256xf32>
    %613 = arith.negf %612 : vector<2x256xf32>
    %614 = math.exp %613 : vector<2x256xf32>
    %cst_209 = arith.constant 1.000000e+00 : f32
    %615 = vector.broadcast %cst_209 : f32 to vector<2x256xf32>
    %616 = arith.addf %615, %614 : vector<2x256xf32>
    %617 = arith.divf %615, %616 : vector<2x256xf32>
    %618 = vector.extract_strided_slice %605 {offsets = [0, 256], sizes = [2, 256], strides = [1, 1]} : vector<2x768xf32> to vector<2x256xf32>
    %619 = vector.extract_strided_slice %609 {offsets = [0, 256], sizes = [2, 256], strides = [1, 1]} : vector<2x768xf32> to vector<2x256xf32>
    %620 = arith.addf %618, %619 : vector<2x256xf32>
    %621 = arith.negf %620 : vector<2x256xf32>
    %622 = math.exp %621 : vector<2x256xf32>
    %cst_210 = arith.constant 1.000000e+00 : f32
    %623 = vector.broadcast %cst_210 : f32 to vector<2x256xf32>
    %624 = arith.addf %623, %622 : vector<2x256xf32>
    %625 = arith.divf %623, %624 : vector<2x256xf32>
    %626 = vector.extract_strided_slice %605 {offsets = [0, 512], sizes = [2, 256], strides = [1, 1]} : vector<2x768xf32> to vector<2x256xf32>
    %627 = vector.extract_strided_slice %609 {offsets = [0, 512], sizes = [2, 256], strides = [1, 1]} : vector<2x768xf32> to vector<2x256xf32>
    %628 = arith.mulf %617, %627 : vector<2x256xf32>
    %629 = arith.addf %626, %628 : vector<2x256xf32>
    %630 = math.tanh %629 : vector<2x256xf32>
    %cst_211 = arith.constant 1.000000e+00 : f32
    %631 = vector.broadcast %cst_211 : f32 to vector<2x256xf32>
    %632 = arith.subf %631, %625 : vector<2x256xf32>
    %633 = arith.mulf %632, %630 : vector<2x256xf32>
    %634 = arith.mulf %625, %591 : vector<2x256xf32>
    %635 = arith.addf %633, %634 : vector<2x256xf32>
    %c0_212 = arith.constant 0 : index
    %c0_213 = arith.constant 0 : index
    %636 = vector.load %arg21[%c0_212, %c0_213] : memref<16x256xf32, #tpu.memory_space<vmem>>, vector<2x256xf32>
    tpu.vector_store %arg21[%c0_212, %c0_213], %635 {strides = array<i32>} : memref<16x256xf32, #tpu.memory_space<vmem>>, vector<2x256xf32>,
    %c2_214 = arith.constant 2 : index
    %c0_215 = arith.constant 0 : index
    %637 = vector.load %arg20[%c2_214, %c0_215] : memref<16x768xf32, #tpu.memory_space<vmem>>, vector<2x768xf32>
    %638 = arith.truncf %635 : vector<2x256xf32> to vector<2x256xbf16>
    %cst_216 = arith.constant dense<0.000000e+00> : vector<2x768xf32>
    %639 = tpu.matmul %638, %601, %cst_216 {dimension_numbers = #tpu.dot_dimension_numbers<[1], [0], [0], [1], [0, 0, 1, 1], [], []>} : vector<2x256xbf16>, vector<256x768xbf16>, vector<2x768xf32> -> vector<2x768xf32>
    %640 = vector.broadcast %604 : vector<1x768xf32> to vector<2x768xf32>
    %641 = arith.addf %639, %640 : vector<2x768xf32>
    %642 = vector.extract_strided_slice %637 {offsets = [0, 0], sizes = [2, 256], strides = [1, 1]} : vector<2x768xf32> to vector<2x256xf32>
    %643 = vector.extract_strided_slice %641 {offsets = [0, 0], sizes = [2, 256], strides = [1, 1]} : vector<2x768xf32> to vector<2x256xf32>
    %644 = arith.addf %642, %643 : vector<2x256xf32>
    %645 = arith.negf %644 : vector<2x256xf32>
    %646 = math.exp %645 : vector<2x256xf32>
    %cst_217 = arith.constant 1.000000e+00 : f32
    %647 = vector.broadcast %cst_217 : f32 to vector<2x256xf32>
    %648 = arith.addf %647, %646 : vector<2x256xf32>
    %649 = arith.divf %647, %648 : vector<2x256xf32>
    %650 = vector.extract_strided_slice %637 {offsets = [0, 256], sizes = [2, 256], strides = [1, 1]} : vector<2x768xf32> to vector<2x256xf32>
    %651 = vector.extract_strided_slice %641 {offsets = [0, 256], sizes = [2, 256], strides = [1, 1]} : vector<2x768xf32> to vector<2x256xf32>
    %652 = arith.addf %650, %651 : vector<2x256xf32>
    %653 = arith.negf %652 : vector<2x256xf32>
    %654 = math.exp %653 : vector<2x256xf32>
    %cst_218 = arith.constant 1.000000e+00 : f32
    %655 = vector.broadcast %cst_218 : f32 to vector<2x256xf32>
    %656 = arith.addf %655, %654 : vector<2x256xf32>
    %657 = arith.divf %655, %656 : vector<2x256xf32>
    %658 = vector.extract_strided_slice %637 {offsets = [0, 512], sizes = [2, 256], strides = [1, 1]} : vector<2x768xf32> to vector<2x256xf32>
    %659 = vector.extract_strided_slice %641 {offsets = [0, 512], sizes = [2, 256], strides = [1, 1]} : vector<2x768xf32> to vector<2x256xf32>
    %660 = arith.mulf %649, %659 : vector<2x256xf32>
    %661 = arith.addf %658, %660 : vector<2x256xf32>
    %662 = math.tanh %661 : vector<2x256xf32>
    %cst_219 = arith.constant 1.000000e+00 : f32
    %663 = vector.broadcast %cst_219 : f32 to vector<2x256xf32>
    %664 = arith.subf %663, %657 : vector<2x256xf32>
    %665 = arith.mulf %664, %662 : vector<2x256xf32>
    %666 = arith.mulf %657, %635 : vector<2x256xf32>
    %667 = arith.addf %665, %666 : vector<2x256xf32>
    %c2_220 = arith.constant 2 : index
    %c0_221 = arith.constant 0 : index
    %668 = vector.load %arg21[%c2_220, %c0_221] : memref<16x256xf32, #tpu.memory_space<vmem>>, vector<2x256xf32>
    tpu.vector_store %arg21[%c2_220, %c0_221], %667 {strides = array<i32>} : memref<16x256xf32, #tpu.memory_space<vmem>>, vector<2x256xf32>,
    %c4_222 = arith.constant 4 : index
    %c0_223 = arith.constant 0 : index
    %669 = vector.load %arg20[%c4_222, %c0_223] : memref<16x768xf32, #tpu.memory_space<vmem>>, vector<2x768xf32>
    %670 = arith.truncf %667 : vector<2x256xf32> to vector<2x256xbf16>
    %cst_224 = arith.constant dense<0.000000e+00> : vector<2x768xf32>
    %671 = tpu.matmul %670, %601, %cst_224 {dimension_numbers = #tpu.dot_dimension_numbers<[1], [0], [0], [1], [0, 0, 1, 1], [], []>} : vector<2x256xbf16>, vector<256x768xbf16>, vector<2x768xf32> -> vector<2x768xf32>
    %672 = vector.broadcast %604 : vector<1x768xf32> to vector<2x768xf32>
    %673 = arith.addf %671, %672 : vector<2x768xf32>
    %674 = vector.extract_strided_slice %669 {offsets = [0, 0], sizes = [2, 256], strides = [1, 1]} : vector<2x768xf32> to vector<2x256xf32>
    %675 = vector.extract_strided_slice %673 {offsets = [0, 0], sizes = [2, 256], strides = [1, 1]} : vector<2x768xf32> to vector<2x256xf32>
    %676 = arith.addf %674, %675 : vector<2x256xf32>
    %677 = arith.negf %676 : vector<2x256xf32>
    %678 = math.exp %677 : vector<2x256xf32>
    %cst_225 = arith.constant 1.000000e+00 : f32
    %679 = vector.broadcast %cst_225 : f32 to vector<2x256xf32>
    %680 = arith.addf %679, %678 : vector<2x256xf32>
    %681 = arith.divf %679, %680 : vector<2x256xf32>
    %682 = vector.extract_strided_slice %669 {offsets = [0, 256], sizes = [2, 256], strides = [1, 1]} : vector<2x768xf32> to vector<2x256xf32>
    %683 = vector.extract_strided_slice %673 {offsets = [0, 256], sizes = [2, 256], strides = [1, 1]} : vector<2x768xf32> to vector<2x256xf32>
    %684 = arith.addf %682, %683 : vector<2x256xf32>
    %685 = arith.negf %684 : vector<2x256xf32>
    %686 = math.exp %685 : vector<2x256xf32>
    %cst_226 = arith.constant 1.000000e+00 : f32
    %687 = vector.broadcast %cst_226 : f32 to vector<2x256xf32>
    %688 = arith.addf %687, %686 : vector<2x256xf32>
    %689 = arith.divf %687, %688 : vector<2x256xf32>
    %690 = vector.extract_strided_slice %669 {offsets = [0, 512], sizes = [2, 256], strides = [1, 1]} : vector<2x768xf32> to vector<2x256xf32>
    %691 = vector.extract_strided_slice %673 {offsets = [0, 512], sizes = [2, 256], strides = [1, 1]} : vector<2x768xf32> to vector<2x256xf32>
    %692 = arith.mulf %681, %691 : vector<2x256xf32>
    %693 = arith.addf %690, %692 : vector<2x256xf32>
    %694 = math.tanh %693 : vector<2x256xf32>
    %cst_227 = arith.constant 1.000000e+00 : f32
    %695 = vector.broadcast %cst_227 : f32 to vector<2x256xf32>
    %696 = arith.subf %695, %689 : vector<2x256xf32>
    %697 = arith.mulf %696, %694 : vector<2x256xf32>
    %698 = arith.mulf %689, %667 : vector<2x256xf32>
    %699 = arith.addf %697, %698 : vector<2x256xf32>
    %c4_228 = arith.constant 4 : index
    %c0_229 = arith.constant 0 : index
    %700 = vector.load %arg21[%c4_228, %c0_229] : memref<16x256xf32, #tpu.memory_space<vmem>>, vector<2x256xf32>
    tpu.vector_store %arg21[%c4_228, %c0_229], %699 {strides = array<i32>} : memref<16x256xf32, #tpu.memory_space<vmem>>, vector<2x256xf32>,
    %c6_230 = arith.constant 6 : index
    %c0_231 = arith.constant 0 : index
    %701 = vector.load %arg20[%c6_230, %c0_231] : memref<16x768xf32, #tpu.memory_space<vmem>>, vector<2x768xf32>
    %702 = arith.truncf %699 : vector<2x256xf32> to vector<2x256xbf16>
    %cst_232 = arith.constant dense<0.000000e+00> : vector<2x768xf32>
    %703 = tpu.matmul %702, %601, %cst_232 {dimension_numbers = #tpu.dot_dimension_numbers<[1], [0], [0], [1], [0, 0, 1, 1], [], []>} : vector<2x256xbf16>, vector<256x768xbf16>, vector<2x768xf32> -> vector<2x768xf32>
    %704 = vector.broadcast %604 : vector<1x768xf32> to vector<2x768xf32>
    %705 = arith.addf %703, %704 : vector<2x768xf32>
    %706 = vector.extract_strided_slice %701 {offsets = [0, 0], sizes = [2, 256], strides = [1, 1]} : vector<2x768xf32> to vector<2x256xf32>
    %707 = vector.extract_strided_slice %705 {offsets = [0, 0], sizes = [2, 256], strides = [1, 1]} : vector<2x768xf32> to vector<2x256xf32>
    %708 = arith.addf %706, %707 : vector<2x256xf32>
    %709 = arith.negf %708 : vector<2x256xf32>
    %710 = math.exp %709 : vector<2x256xf32>
    %cst_233 = arith.constant 1.000000e+00 : f32
    %711 = vector.broadcast %cst_233 : f32 to vector<2x256xf32>
    %712 = arith.addf %711, %710 : vector<2x256xf32>
    %713 = arith.divf %711, %712 : vector<2x256xf32>
    %714 = vector.extract_strided_slice %701 {offsets = [0, 256], sizes = [2, 256], strides = [1, 1]} : vector<2x768xf32> to vector<2x256xf32>
    %715 = vector.extract_strided_slice %705 {offsets = [0, 256], sizes = [2, 256], strides = [1, 1]} : vector<2x768xf32> to vector<2x256xf32>
    %716 = arith.addf %714, %715 : vector<2x256xf32>
    %717 = arith.negf %716 : vector<2x256xf32>
    %718 = math.exp %717 : vector<2x256xf32>
    %cst_234 = arith.constant 1.000000e+00 : f32
    %719 = vector.broadcast %cst_234 : f32 to vector<2x256xf32>
    %720 = arith.addf %719, %718 : vector<2x256xf32>
    %721 = arith.divf %719, %720 : vector<2x256xf32>
    %722 = vector.extract_strided_slice %701 {offsets = [0, 512], sizes = [2, 256], strides = [1, 1]} : vector<2x768xf32> to vector<2x256xf32>
    %723 = vector.extract_strided_slice %705 {offsets = [0, 512], sizes = [2, 256], strides = [1, 1]} : vector<2x768xf32> to vector<2x256xf32>
    %724 = arith.mulf %713, %723 : vector<2x256xf32>
    %725 = arith.addf %722, %724 : vector<2x256xf32>
    %726 = math.tanh %725 : vector<2x256xf32>
    %cst_235 = arith.constant 1.000000e+00 : f32
    %727 = vector.broadcast %cst_235 : f32 to vector<2x256xf32>
    %728 = arith.subf %727, %721 : vector<2x256xf32>
    %729 = arith.mulf %728, %726 : vector<2x256xf32>
    %730 = arith.mulf %721, %699 : vector<2x256xf32>
    %731 = arith.addf %729, %730 : vector<2x256xf32>
    %c6_236 = arith.constant 6 : index
    %c0_237 = arith.constant 0 : index
    %732 = vector.load %arg21[%c6_236, %c0_237] : memref<16x256xf32, #tpu.memory_space<vmem>>, vector<2x256xf32>
    tpu.vector_store %arg21[%c6_236, %c0_237], %731 {strides = array<i32>} : memref<16x256xf32, #tpu.memory_space<vmem>>, vector<2x256xf32>,
    %c8_238 = arith.constant 8 : index
    %c0_239 = arith.constant 0 : index
    %733 = vector.load %arg20[%c8_238, %c0_239] : memref<16x768xf32, #tpu.memory_space<vmem>>, vector<2x768xf32>
    %734 = arith.truncf %731 : vector<2x256xf32> to vector<2x256xbf16>
    %cst_240 = arith.constant dense<0.000000e+00> : vector<2x768xf32>
    %735 = tpu.matmul %734, %601, %cst_240 {dimension_numbers = #tpu.dot_dimension_numbers<[1], [0], [0], [1], [0, 0, 1, 1], [], []>} : vector<2x256xbf16>, vector<256x768xbf16>, vector<2x768xf32> -> vector<2x768xf32>
    %736 = vector.broadcast %604 : vector<1x768xf32> to vector<2x768xf32>
    %737 = arith.addf %735, %736 : vector<2x768xf32>
    %738 = vector.extract_strided_slice %733 {offsets = [0, 0], sizes = [2, 256], strides = [1, 1]} : vector<2x768xf32> to vector<2x256xf32>
    %739 = vector.extract_strided_slice %737 {offsets = [0, 0], sizes = [2, 256], strides = [1, 1]} : vector<2x768xf32> to vector<2x256xf32>
    %740 = arith.addf %738, %739 : vector<2x256xf32>
    %741 = arith.negf %740 : vector<2x256xf32>
    %742 = math.exp %741 : vector<2x256xf32>
    %cst_241 = arith.constant 1.000000e+00 : f32
    %743 = vector.broadcast %cst_241 : f32 to vector<2x256xf32>
    %744 = arith.addf %743, %742 : vector<2x256xf32>
    %745 = arith.divf %743, %744 : vector<2x256xf32>
    %746 = vector.extract_strided_slice %733 {offsets = [0, 256], sizes = [2, 256], strides = [1, 1]} : vector<2x768xf32> to vector<2x256xf32>
    %747 = vector.extract_strided_slice %737 {offsets = [0, 256], sizes = [2, 256], strides = [1, 1]} : vector<2x768xf32> to vector<2x256xf32>
    %748 = arith.addf %746, %747 : vector<2x256xf32>
    %749 = arith.negf %748 : vector<2x256xf32>
    %750 = math.exp %749 : vector<2x256xf32>
    %cst_242 = arith.constant 1.000000e+00 : f32
    %751 = vector.broadcast %cst_242 : f32 to vector<2x256xf32>
    %752 = arith.addf %751, %750 : vector<2x256xf32>
    %753 = arith.divf %751, %752 : vector<2x256xf32>
    %754 = vector.extract_strided_slice %733 {offsets = [0, 512], sizes = [2, 256], strides = [1, 1]} : vector<2x768xf32> to vector<2x256xf32>
    %755 = vector.extract_strided_slice %737 {offsets = [0, 512], sizes = [2, 256], strides = [1, 1]} : vector<2x768xf32> to vector<2x256xf32>
    %756 = arith.mulf %745, %755 : vector<2x256xf32>
    %757 = arith.addf %754, %756 : vector<2x256xf32>
    %758 = math.tanh %757 : vector<2x256xf32>
    %cst_243 = arith.constant 1.000000e+00 : f32
    %759 = vector.broadcast %cst_243 : f32 to vector<2x256xf32>
    %760 = arith.subf %759, %753 : vector<2x256xf32>
    %761 = arith.mulf %760, %758 : vector<2x256xf32>
    %762 = arith.mulf %753, %731 : vector<2x256xf32>
    %763 = arith.addf %761, %762 : vector<2x256xf32>
    %c8_244 = arith.constant 8 : index
    %c0_245 = arith.constant 0 : index
    %764 = vector.load %arg21[%c8_244, %c0_245] : memref<16x256xf32, #tpu.memory_space<vmem>>, vector<2x256xf32>
    tpu.vector_store %arg21[%c8_244, %c0_245], %763 {strides = array<i32>} : memref<16x256xf32, #tpu.memory_space<vmem>>, vector<2x256xf32>,
    %c10_246 = arith.constant 10 : index
    %c0_247 = arith.constant 0 : index
    %765 = vector.load %arg20[%c10_246, %c0_247] : memref<16x768xf32, #tpu.memory_space<vmem>>, vector<2x768xf32>
    %766 = arith.truncf %763 : vector<2x256xf32> to vector<2x256xbf16>
    %cst_248 = arith.constant dense<0.000000e+00> : vector<2x768xf32>
    %767 = tpu.matmul %766, %601, %cst_248 {dimension_numbers = #tpu.dot_dimension_numbers<[1], [0], [0], [1], [0, 0, 1, 1], [], []>} : vector<2x256xbf16>, vector<256x768xbf16>, vector<2x768xf32> -> vector<2x768xf32>
    %768 = vector.broadcast %604 : vector<1x768xf32> to vector<2x768xf32>
    %769 = arith.addf %767, %768 : vector<2x768xf32>
    %770 = vector.extract_strided_slice %765 {offsets = [0, 0], sizes = [2, 256], strides = [1, 1]} : vector<2x768xf32> to vector<2x256xf32>
    %771 = vector.extract_strided_slice %769 {offsets = [0, 0], sizes = [2, 256], strides = [1, 1]} : vector<2x768xf32> to vector<2x256xf32>
    %772 = arith.addf %770, %771 : vector<2x256xf32>
    %773 = arith.negf %772 : vector<2x256xf32>
    %774 = math.exp %773 : vector<2x256xf32>
    %cst_249 = arith.constant 1.000000e+00 : f32
    %775 = vector.broadcast %cst_249 : f32 to vector<2x256xf32>
    %776 = arith.addf %775, %774 : vector<2x256xf32>
    %777 = arith.divf %775, %776 : vector<2x256xf32>
    %778 = vector.extract_strided_slice %765 {offsets = [0, 256], sizes = [2, 256], strides = [1, 1]} : vector<2x768xf32> to vector<2x256xf32>
    %779 = vector.extract_strided_slice %769 {offsets = [0, 256], sizes = [2, 256], strides = [1, 1]} : vector<2x768xf32> to vector<2x256xf32>
    %780 = arith.addf %778, %779 : vector<2x256xf32>
    %781 = arith.negf %780 : vector<2x256xf32>
    %782 = math.exp %781 : vector<2x256xf32>
    %cst_250 = arith.constant 1.000000e+00 : f32
    %783 = vector.broadcast %cst_250 : f32 to vector<2x256xf32>
    %784 = arith.addf %783, %782 : vector<2x256xf32>
    %785 = arith.divf %783, %784 : vector<2x256xf32>
    %786 = vector.extract_strided_slice %765 {offsets = [0, 512], sizes = [2, 256], strides = [1, 1]} : vector<2x768xf32> to vector<2x256xf32>
    %787 = vector.extract_strided_slice %769 {offsets = [0, 512], sizes = [2, 256], strides = [1, 1]} : vector<2x768xf32> to vector<2x256xf32>
    %788 = arith.mulf %777, %787 : vector<2x256xf32>
    %789 = arith.addf %786, %788 : vector<2x256xf32>
    %790 = math.tanh %789 : vector<2x256xf32>
    %cst_251 = arith.constant 1.000000e+00 : f32
    %791 = vector.broadcast %cst_251 : f32 to vector<2x256xf32>
    %792 = arith.subf %791, %785 : vector<2x256xf32>
    %793 = arith.mulf %792, %790 : vector<2x256xf32>
    %794 = arith.mulf %785, %763 : vector<2x256xf32>
    %795 = arith.addf %793, %794 : vector<2x256xf32>
    %c10_252 = arith.constant 10 : index
    %c0_253 = arith.constant 0 : index
    %796 = vector.load %arg21[%c10_252, %c0_253] : memref<16x256xf32, #tpu.memory_space<vmem>>, vector<2x256xf32>
    tpu.vector_store %arg21[%c10_252, %c0_253], %795 {strides = array<i32>} : memref<16x256xf32, #tpu.memory_space<vmem>>, vector<2x256xf32>,
    %c12_254 = arith.constant 12 : index
    %c0_255 = arith.constant 0 : index
    %797 = vector.load %arg20[%c12_254, %c0_255] : memref<16x768xf32, #tpu.memory_space<vmem>>, vector<2x768xf32>
    %798 = arith.truncf %795 : vector<2x256xf32> to vector<2x256xbf16>
    %cst_256 = arith.constant dense<0.000000e+00> : vector<2x768xf32>
    %799 = tpu.matmul %798, %601, %cst_256 {dimension_numbers = #tpu.dot_dimension_numbers<[1], [0], [0], [1], [0, 0, 1, 1], [], []>} : vector<2x256xbf16>, vector<256x768xbf16>, vector<2x768xf32> -> vector<2x768xf32>
    %800 = vector.broadcast %604 : vector<1x768xf32> to vector<2x768xf32>
    %801 = arith.addf %799, %800 : vector<2x768xf32>
    %802 = vector.extract_strided_slice %797 {offsets = [0, 0], sizes = [2, 256], strides = [1, 1]} : vector<2x768xf32> to vector<2x256xf32>
    %803 = vector.extract_strided_slice %801 {offsets = [0, 0], sizes = [2, 256], strides = [1, 1]} : vector<2x768xf32> to vector<2x256xf32>
    %804 = arith.addf %802, %803 : vector<2x256xf32>
    %805 = arith.negf %804 : vector<2x256xf32>
    %806 = math.exp %805 : vector<2x256xf32>
    %cst_257 = arith.constant 1.000000e+00 : f32
    %807 = vector.broadcast %cst_257 : f32 to vector<2x256xf32>
    %808 = arith.addf %807, %806 : vector<2x256xf32>
    %809 = arith.divf %807, %808 : vector<2x256xf32>
    %810 = vector.extract_strided_slice %797 {offsets = [0, 256], sizes = [2, 256], strides = [1, 1]} : vector<2x768xf32> to vector<2x256xf32>
    %811 = vector.extract_strided_slice %801 {offsets = [0, 256], sizes = [2, 256], strides = [1, 1]} : vector<2x768xf32> to vector<2x256xf32>
    %812 = arith.addf %810, %811 : vector<2x256xf32>
    %813 = arith.negf %812 : vector<2x256xf32>
    %814 = math.exp %813 : vector<2x256xf32>
    %cst_258 = arith.constant 1.000000e+00 : f32
    %815 = vector.broadcast %cst_258 : f32 to vector<2x256xf32>
    %816 = arith.addf %815, %814 : vector<2x256xf32>
    %817 = arith.divf %815, %816 : vector<2x256xf32>
    %818 = vector.extract_strided_slice %797 {offsets = [0, 512], sizes = [2, 256], strides = [1, 1]} : vector<2x768xf32> to vector<2x256xf32>
    %819 = vector.extract_strided_slice %801 {offsets = [0, 512], sizes = [2, 256], strides = [1, 1]} : vector<2x768xf32> to vector<2x256xf32>
    %820 = arith.mulf %809, %819 : vector<2x256xf32>
    %821 = arith.addf %818, %820 : vector<2x256xf32>
    %822 = math.tanh %821 : vector<2x256xf32>
    %cst_259 = arith.constant 1.000000e+00 : f32
    %823 = vector.broadcast %cst_259 : f32 to vector<2x256xf32>
    %824 = arith.subf %823, %817 : vector<2x256xf32>
    %825 = arith.mulf %824, %822 : vector<2x256xf32>
    %826 = arith.mulf %817, %795 : vector<2x256xf32>
    %827 = arith.addf %825, %826 : vector<2x256xf32>
    %c12_260 = arith.constant 12 : index
    %c0_261 = arith.constant 0 : index
    %828 = vector.load %arg21[%c12_260, %c0_261] : memref<16x256xf32, #tpu.memory_space<vmem>>, vector<2x256xf32>
    tpu.vector_store %arg21[%c12_260, %c0_261], %827 {strides = array<i32>} : memref<16x256xf32, #tpu.memory_space<vmem>>, vector<2x256xf32>,
    %c14_262 = arith.constant 14 : index
    %c0_263 = arith.constant 0 : index
    %829 = vector.load %arg20[%c14_262, %c0_263] : memref<16x768xf32, #tpu.memory_space<vmem>>, vector<2x768xf32>
    %830 = arith.truncf %827 : vector<2x256xf32> to vector<2x256xbf16>
    %cst_264 = arith.constant dense<0.000000e+00> : vector<2x768xf32>
    %831 = tpu.matmul %830, %601, %cst_264 {dimension_numbers = #tpu.dot_dimension_numbers<[1], [0], [0], [1], [0, 0, 1, 1], [], []>} : vector<2x256xbf16>, vector<256x768xbf16>, vector<2x768xf32> -> vector<2x768xf32>
    %832 = vector.broadcast %604 : vector<1x768xf32> to vector<2x768xf32>
    %833 = arith.addf %831, %832 : vector<2x768xf32>
    %834 = vector.extract_strided_slice %829 {offsets = [0, 0], sizes = [2, 256], strides = [1, 1]} : vector<2x768xf32> to vector<2x256xf32>
    %835 = vector.extract_strided_slice %833 {offsets = [0, 0], sizes = [2, 256], strides = [1, 1]} : vector<2x768xf32> to vector<2x256xf32>
    %836 = arith.addf %834, %835 : vector<2x256xf32>
    %837 = arith.negf %836 : vector<2x256xf32>
    %838 = math.exp %837 : vector<2x256xf32>
    %cst_265 = arith.constant 1.000000e+00 : f32
    %839 = vector.broadcast %cst_265 : f32 to vector<2x256xf32>
    %840 = arith.addf %839, %838 : vector<2x256xf32>
    %841 = arith.divf %839, %840 : vector<2x256xf32>
    %842 = vector.extract_strided_slice %829 {offsets = [0, 256], sizes = [2, 256], strides = [1, 1]} : vector<2x768xf32> to vector<2x256xf32>
    %843 = vector.extract_strided_slice %833 {offsets = [0, 256], sizes = [2, 256], strides = [1, 1]} : vector<2x768xf32> to vector<2x256xf32>
    %844 = arith.addf %842, %843 : vector<2x256xf32>
    %845 = arith.negf %844 : vector<2x256xf32>
    %846 = math.exp %845 : vector<2x256xf32>
    %cst_266 = arith.constant 1.000000e+00 : f32
    %847 = vector.broadcast %cst_266 : f32 to vector<2x256xf32>
    %848 = arith.addf %847, %846 : vector<2x256xf32>
    %849 = arith.divf %847, %848 : vector<2x256xf32>
    %850 = vector.extract_strided_slice %829 {offsets = [0, 512], sizes = [2, 256], strides = [1, 1]} : vector<2x768xf32> to vector<2x256xf32>
    %851 = vector.extract_strided_slice %833 {offsets = [0, 512], sizes = [2, 256], strides = [1, 1]} : vector<2x768xf32> to vector<2x256xf32>
    %852 = arith.mulf %841, %851 : vector<2x256xf32>
    %853 = arith.addf %850, %852 : vector<2x256xf32>
    %854 = math.tanh %853 : vector<2x256xf32>
    %cst_267 = arith.constant 1.000000e+00 : f32
    %855 = vector.broadcast %cst_267 : f32 to vector<2x256xf32>
    %856 = arith.subf %855, %849 : vector<2x256xf32>
    %857 = arith.mulf %856, %854 : vector<2x256xf32>
    %858 = arith.mulf %849, %827 : vector<2x256xf32>
    %859 = arith.addf %857, %858 : vector<2x256xf32>
    %c14_268 = arith.constant 14 : index
    %c0_269 = arith.constant 0 : index
    %860 = vector.load %arg21[%c14_268, %c0_269] : memref<16x256xf32, #tpu.memory_space<vmem>>, vector<2x256xf32>
    tpu.vector_store %arg21[%c14_268, %c0_269], %859 {strides = array<i32>} : memref<16x256xf32, #tpu.memory_space<vmem>>, vector<2x256xf32>,
    %c0_270 = arith.constant 0 : index
    %c0_271 = arith.constant 0 : index
    %861 = vector.load %arg21[%c0_270, %c0_271] : memref<16x256xf32, #tpu.memory_space<vmem>>, vector<16x256xf32>
    %862 = arith.truncf %861 : vector<16x256xf32> to vector<16x256xbf16>
    %c0_272 = arith.constant 0 : index
    %c0_273 = arith.constant 0 : index
    %863 = vector.load %arg14[%c0_272, %c0_273] : memref<256x33xbf16, #tpu.memory_space<vmem>>, vector<256x33xbf16>
    %cst_274 = arith.constant dense<0.000000e+00> : vector<16x33xf32>
    %864 = tpu.matmul %862, %863, %cst_274 {dimension_numbers = #tpu.dot_dimension_numbers<[1], [0], [0], [1], [0, 0, 1, 1], [], []>} : vector<16x256xbf16>, vector<256x33xbf16>, vector<16x33xf32> -> vector<16x33xf32>
    %c0_275 = arith.constant 0 : index
    %c0_276 = arith.constant 0 : index
    %865 = vector.load %arg15[%c0_275, %c0_276] : memref<1x33xf32, #tpu.memory_space<vmem>>, vector<1x33xf32>
    %866 = vector.shape_cast %865 : vector<1x33xf32> to vector<33xf32>
    %867 = vector.shape_cast %866 : vector<33xf32> to vector<1x33xf32>
    %868 = vector.broadcast %867 : vector<1x33xf32> to vector<16x33xf32>
    %869 = arith.addf %864, %868 : vector<16x33xf32>
    %870 = arith.negf %869 : vector<16x33xf32>
    %871 = math.exp %870 : vector<16x33xf32>
    %cst_277 = arith.constant 1.000000e+00 : f32
    %872 = vector.broadcast %cst_277 : f32 to vector<16x33xf32>
    %873 = arith.addf %872, %871 : vector<16x33xf32>
    %874 = arith.divf %872, %873 : vector<16x33xf32>
    %c0_278 = arith.constant 0 : index
    %c0_279 = arith.constant 0 : index
    %875 = vector.load %arg17[%c0_278, %c0_279] : memref<16x33xf32, #tpu.memory_space<vmem>>, vector<16x33xf32>
    tpu.vector_store %arg17[%c0_278, %c0_279], %874 {strides = array<i32>} : memref<16x33xf32, #tpu.memory_space<vmem>>, vector<16x33xf32>,
    %c0_280 = arith.constant 0 : index
    %c0_281 = arith.constant 0 : index
    %876 = vector.load %arg18[%c0_280, %c0_281] : memref<6x256xf32, #tpu.memory_space<vmem>>, vector<2x256xf32>
    tpu.vector_store %arg18[%c0_280, %c0_281], %317 {strides = array<i32>} : memref<6x256xf32, #tpu.memory_space<vmem>>, vector<2x256xf32>,
    %c2_282 = arith.constant 2 : index
    %c0_283 = arith.constant 0 : index
    %877 = vector.load %arg18[%c2_282, %c0_283] : memref<6x256xf32, #tpu.memory_space<vmem>>, vector<2x256xf32>
    tpu.vector_store %arg18[%c2_282, %c0_283], %588 {strides = array<i32>} : memref<6x256xf32, #tpu.memory_space<vmem>>, vector<2x256xf32>,
    %c4_284 = arith.constant 4 : index
    %c0_285 = arith.constant 0 : index
    %878 = vector.load %arg18[%c4_284, %c0_285] : memref<6x256xf32, #tpu.memory_space<vmem>>, vector<2x256xf32>
    tpu.vector_store %arg18[%c4_284, %c0_285], %859 {strides = array<i32>} : memref<6x256xf32, #tpu.memory_space<vmem>>, vector<2x256xf32>,
    return
  }
}

</mosaic_0001>

<llo_original>
// kernel: rnnoise_forward.1
$region0: #{rnnoise_forward.1}
  #allocation0 [shape = 'u32[]', space=smem, size = 0x4, offset = 0x4, fixed_abs, tag = 'smem constant byte address 0x4 - core index']
  #allocation1 [shape = 'u32[144,128]{1,0:T(1,128)}', space=vmem, size = 0x12000, scoped, tag = 'internal scratch']
  #allocation2 [shape = 'f32[20,128]{1,0:T(8,128)}', space=vmem, size = 0x3000, scoped, tag = 'scratch operand']
  #allocation3 [shape = 'f32[16,768]{1,0:T(8,128)}', space=vmem, size = 0xc000, scoped, tag = 'scratch operand']
  #allocation4 [shape = 'f32[16,256]{1,0:T(8,128)}', space=vmem, size = 0x4000, scoped, tag = 'scratch operand']
  %s0 = inlined_call_operand.hbm [shape: f32[20,65], index: 0, kind: input, shape index: {}]
  %s1 = inlined_call_operand.hbm [shape: bf16[3,65,128], index: 1, kind: input, shape index: {}]
  %s2 = inlined_call_operand.hbm [shape: f32[1,128], index: 2, kind: input, shape index: {}]
  %s3 = inlined_call_operand.hbm [shape: bf16[3,128,256], index: 3, kind: input, shape index: {}]
  %s4 = inlined_call_operand.hbm [shape: f32[1,256], index: 4, kind: input, shape index: {}]
  %s5 = inlined_call_operand.hbm [shape: bf16[256,768], index: 5, kind: input, shape index: {}]
  %s6 = inlined_call_operand.hbm [shape: bf16[256,768], index: 6, kind: input, shape index: {}]
  %s7 = inlined_call_operand.hbm [shape: f32[2,768], index: 7, kind: input, shape index: {}]
  %s8 = inlined_call_operand.hbm [shape: bf16[256,768], index: 8, kind: input, shape index: {}]
  %s9 = inlined_call_operand.hbm [shape: bf16[256,768], index: 9, kind: input, shape index: {}]
  %s10 = inlined_call_operand.hbm [shape: f32[2,768], index: 10, kind: input, shape index: {}]
  %s11 = inlined_call_operand.hbm [shape: bf16[256,768], index: 11, kind: input, shape index: {}]
  %s12 = inlined_call_operand.hbm [shape: bf16[256,768], index: 12, kind: input, shape index: {}]
  %s13 = inlined_call_operand.hbm [shape: f32[2,768], index: 13, kind: input, shape index: {}]
  %s14 = inlined_call_operand.hbm [shape: bf16[256,33], index: 14, kind: input, shape index: {}]
  %s15 = inlined_call_operand.hbm [shape: f32[1,33], index: 15, kind: input, shape index: {}]
  %s16 = inlined_call_operand.hbm [shape: f32[6,256], index: 16, kind: input, shape index: {}]
  %s17 = inlined_call_operand.hbm [shape: f32[16,33], index: 17, kind: output, shape index: {0}]
  %s18 = inlined_call_operand.hbm [shape: f32[6,256], index: 18, kind: output, shape index: {1}]
  %19 = xla_tuple %s17, %s18
  %s20 = sld [smem:[#allocation0]]
  $region154: #{rnnoise_forward.1} parent=0
    _
  %s22 = ssub.s32 1, %s20
  %s23 = scalar_select 0, %s22, %s20
  $region1: #{rnnoise_forward.1} parent=0
    #allocation5 [shape = 'u8[12288]{0}', space=vmem, size = 0x3000, scoped, tag = 'input window, operand 0, single buffered']
    #allocation6 [shape = 's32[1]{0}', space=sflag, size = 0x4, scoped, tag = 'scoped memory for rnnoise_forward.1']
    #allocation7 [shape = 's32[1]{0}', space=sflag, size = 0x4, scoped, tag = 'scoped memory for rnnoise_forward.1']
    #allocation8 [shape = 'u8[55296]{0}', space=vmem, size = 0xd800, scoped, tag = 'input window, operand 1, single buffered']
    #allocation9 [shape = 's32[1]{0}', space=sflag, size = 0x4, scoped, tag = 'scoped memory for rnnoise_forward.1']
    #allocation10 [shape = 'u8[512]{0}', space=vmem, size = 0x400, scoped, tag = 'input window, operand 2, single buffered']
    #allocation11 [shape = 'u8[196608]{0}', space=vmem, size = 0x30000, scoped, tag = 'input window, operand 3, single buffered']
    #allocation12 [shape = 's32[1]{0}', space=sflag, size = 0x4, scoped, tag = 'scoped memory for rnnoise_forward.1']
    #allocation13 [shape = 'u8[1024]{0}', space=vmem, size = 0x400, scoped, tag = 'input window, operand 4, single buffered']
    #allocation14 [shape = 'u8[393216]{0}', space=vmem, size = 0x60000, scoped, tag = 'input window, operand 5, single buffered']
    #allocation15 [shape = 's32[1]{0}', space=sflag, size = 0x4, scoped, tag = 'scoped memory for rnnoise_forward.1']
    #allocation16 [shape = 'u8[393216]{0}', space=vmem, size = 0x60000, scoped, tag = 'input window, operand 6, single buffered']
    #allocation17 [shape = 'u8[6144]{0}', space=vmem, size = 0x1800, scoped, tag = 'input window, operand 7, single buffered']
    #allocation18 [shape = 's32[1]{0}', space=sflag, size = 0x4, scoped, tag = 'scoped memory for rnnoise_forward.1']
    #allocation19 [shape = 'u8[393216]{0}', space=vmem, size = 0x60000, scoped, tag = 'input window, operand 8, single buffered']
    #allocation20 [shape = 'u8[393216]{0}', space=vmem, size = 0x60000, scoped, tag = 'input window, operand 9, single buffered']
    #allocation21 [shape = 's32[1]{0}', space=sflag, size = 0x4, scoped, tag = 'scoped memory for rnnoise_forward.1']
    #allocation22 [shape = 'u8[6144]{0}', space=vmem, size = 0x1800, scoped, tag = 'input window, operand 10, single buffered']
    #allocation23 [shape = 'u8[393216]{0}', space=vmem, size = 0x60000, scoped, tag = 'input window, operand 11, single buffered']
    #allocation24 [shape = 's32[1]{0}', space=sflag, size = 0x4, scoped, tag = 'scoped memory for rnnoise_forward.1']
    #allocation25 [shape = 'u8[393216]{0}', space=vmem, size = 0x60000, scoped, tag = 'input window, operand 12, single buffered']
    #allocation26 [shape = 'u8[6144]{0}', space=vmem, size = 0x1800, scoped, tag = 'input window, operand 13, single buffered']
    #allocation27 [shape = 's32[1]{0}', space=sflag, size = 0x4, scoped, tag = 'scoped memory for rnnoise_forward.1']
    #allocation28 [shape = 'u8[65536]{0}', space=vmem, size = 0x10000, scoped, tag = 'input window, operand 14, single buffered']
    #allocation29 [shape = 'u8[512]{0}', space=vmem, size = 0x400, scoped, tag = 'input window, operand 15, single buffered']
    #allocation30 [shape = 's32[1]{0}', space=sflag, size = 0x4, scoped, tag = 'scoped memory for rnnoise_forward.1']
    #allocation31 [shape = 'u8[8192]{0}', space=vmem, size = 0x2000, scoped, tag = 'input window, operand 16, single buffered']
    #allocation32 [shape = 'u8[8192]{0}', space=vmem, size = 0x2000, scoped, tag = 'output window, operand 0, single buffered']
    #allocation33 [shape = 'u8[8192]{0}', space=vmem, size = 0x2000, scoped, tag = 'output window, operand 1, single buffered']
    #allocation34 [shape = 's32[1]{0}', space=sflag, size = 0x4, scoped, tag = 'scoped memory for rnnoise_forward.1']
    %24 = vsyncpa [#allocation6], 0
    %25 = vsyncpa [#allocation9], 0
    %26 = vsyncpa [#allocation12], 0
    %27 = vsyncpa [#allocation15], 0
    %28 = vsyncpa [#allocation18], 0
    %29 = vsyncpa [#allocation21], 0
    %30 = vsyncpa [#allocation24], 0
    %31 = vsyncpa [#allocation27], 0
    %32 = vsyncpa [#allocation30], 0
    %33 = vsyncpa [#allocation7], 0
    %34 = vsyncpa [#allocation34], 0
    // Predicated region
    $region2: #{rnnoise_forward.1} parent=1 // pred_check
      _
    $region3: #{rnnoise_forward.1} parent=1 // pred_check_branch
      %36 = sbr.rel (0) target = $region5
    $region4: #{rnnoise_forward.1} parent=1 // pred_region
      %s38 = ssub.s32 384, 384
      %39 = vsyncadd [#allocation6], %s38
      %s40 = sshll.u32 [#allocation5], 4
      %s41 = int_to_ptr.vmem [resolvable:$true] %s40
      %46 = dma.hbm_to_vmem [thread:$0]  %s0, 384, %s41, [#allocation6], 128, 128, 8
    $region5: #{rnnoise_forward.1} parent=1 // pred_fallthru
      _
    // Predicated region
    $region6: #{rnnoise_forward.1} parent=1 // pred_check
      _
    $region7: #{rnnoise_forward.1} parent=1 // pred_check_branch
      %48 = sbr.rel (0) target = $region9
    $region8: #{rnnoise_forward.1} parent=1 // pred_region
      %s50 = ssub.s32 1728, 1728
      %51 = vsyncadd [#allocation9], %s50
      %s52 = sshll.u32 [#allocation8], 4
      %s53 = int_to_ptr.vmem [resolvable:$true] %s52
      %58 = dma.hbm_to_vmem [thread:$0]  %s1, 1728, %s53, [#allocation9], 64, 64, 4
    $region9: #{rnnoise_forward.1} parent=1 // pred_fallthru
      _
    // Predicated region
    $region10: #{rnnoise_forward.1} parent=1 // pred_check
      _
    $region11: #{rnnoise_forward.1} parent=1 // pred_check_branch
      %60 = sbr.rel (0) target = $region13
    $region12: #{rnnoise_forward.1} parent=1 // pred_region
      %s62 = ssub.s32 16, 16
      %63 = vsyncadd [#allocation9], %s62
      %s65 = sshll.u32 [#allocation10], 4
      %s66 = int_to_ptr.vmem [resolvable:$true] %s65
      %68 = dma.hbm_to_vmem [thread:$0]  %s2, 16, %s66, [#allocation9]
    $region13: #{rnnoise_forward.1} parent=1 // pred_fallthru
      _
    // Predicated region
    $region14: #{rnnoise_forward.1} parent=1 // pred_check
      _
    $region15: #{rnnoise_forward.1} parent=1 // pred_check_branch
      %70 = sbr.rel (0) target = $region17
    $region16: #{rnnoise_forward.1} parent=1 // pred_region
      %s72 = ssub.s32 6144, 6144
      %73 = vsyncadd [#allocation12], %s72
      %s74 = sshll.u32 [#allocation11], 4
      %s75 = int_to_ptr.vmem [resolvable:$true] %s74
      %80 = dma.hbm_to_vmem [thread:$0]  %s3, 6144, %s75, [#allocation12], 128, 128, 8
    $region17: #{rnnoise_forward.1} parent=1 // pred_fallthru
      _
    // Predicated region
    $region18: #{rnnoise_forward.1} parent=1 // pred_check
      _
    $region19: #{rnnoise_forward.1} parent=1 // pred_check_branch
      %82 = sbr.rel (0) target = $region21
    $region20: #{rnnoise_forward.1} parent=1 // pred_region
      %s84 = ssub.s32 32, 32
      %85 = vsyncadd [#allocation12], %s84
      %s87 = sshll.u32 [#allocation13], 4
      %s88 = int_to_ptr.vmem [resolvable:$true] %s87
      %90 = dma.hbm_to_vmem [thread:$0]  %s4, 32, %s88, [#allocation12]
    $region21: #{rnnoise_forward.1} parent=1 // pred_fallthru
      _
    // Predicated region
    $region22: #{rnnoise_forward.1} parent=1 // pred_check
      _
    $region23: #{rnnoise_forward.1} parent=1 // pred_check_branch
      %92 = sbr.rel (0) target = $region25
    $region24: #{rnnoise_forward.1} parent=1 // pred_region
      %s94 = ssub.s32 12288, 12288
      %95 = vsyncadd [#allocation15], %s94
      %s96 = sshll.u32 [#allocation14], 4
      %s97 = int_to_ptr.vmem [resolvable:$true] %s96
      %102 = dma.hbm_to_vmem [thread:$0]  %s5, 12288, %s97, [#allocation15], 384, 384, 24
    $region25: #{rnnoise_forward.1} parent=1 // pred_fallthru
      _
    // Predicated region
    $region26: #{rnnoise_forward.1} parent=1 // pred_check
      _
    $region27: #{rnnoise_forward.1} parent=1 // pred_check_branch
      %104 = sbr.rel (0) target = $region29
    $region28: #{rnnoise_forward.1} parent=1 // pred_region
      %s106 = ssub.s32 12288, 12288
      %107 = vsyncadd [#allocation15], %s106
      %s108 = sshll.u32 [#allocation16], 4
      %s109 = int_to_ptr.vmem [resolvable:$true] %s108
      %114 = dma.hbm_to_vmem [thread:$0]  %s6, 12288, %s109, [#allocation15], 384, 384, 24
    $region29: #{rnnoise_forward.1} parent=1 // pred_fallthru
      _
    // Predicated region
    $region30: #{rnnoise_forward.1} parent=1 // pred_check
      _
    $region31: #{rnnoise_forward.1} parent=1 // pred_check_branch
      %116 = sbr.rel (0) target = $region33
    $region32: #{rnnoise_forward.1} parent=1 // pred_region
      %s118 = ssub.s32 192, 192
      %119 = vsyncadd [#allocation18], %s118
      %s121 = sshll.u32 [#allocation17], 4
      %s122 = int_to_ptr.vmem [resolvable:$true] %s121
      %124 = dma.hbm_to_vmem [thread:$0]  %s7, 192, %s122, [#allocation18]
    $region33: #{rnnoise_forward.1} parent=1 // pred_fallthru
      _
    // Predicated region
    $region34: #{rnnoise_forward.1} parent=1 // pred_check
      _
    $region35: #{rnnoise_forward.1} parent=1 // pred_check_branch
      %126 = sbr.rel (0) target = $region37
    $region36: #{rnnoise_forward.1} parent=1 // pred_region
      %s128 = ssub.s32 12288, 12288
      %129 = vsyncadd [#allocation18], %s128
      %s130 = sshll.u32 [#allocation19], 4
      %s131 = int_to_ptr.vmem [resolvable:$true] %s130
      %136 = dma.hbm_to_vmem [thread:$0]  %s8, 12288, %s131, [#allocation18], 384, 384, 24
    $region37: #{rnnoise_forward.1} parent=1 // pred_fallthru
      _
    // Predicated region
    $region38: #{rnnoise_forward.1} parent=1 // pred_check
      _
    $region39: #{rnnoise_forward.1} parent=1 // pred_check_branch
      %138 = sbr.rel (0) target = $region41
    $region40: #{rnnoise_forward.1} parent=1 // pred_region
      %s140 = ssub.s32 12288, 12288
      %141 = vsyncadd [#allocation21], %s140
      %s142 = sshll.u32 [#allocation20], 4
      %s143 = int_to_ptr.vmem [resolvable:$true] %s142
      %148 = dma.hbm_to_vmem [thread:$0]  %s9, 12288, %s143, [#allocation21], 384, 384, 24
    $region41: #{rnnoise_forward.1} parent=1 // pred_fallthru
      _
    // Predicated region
    $region42: #{rnnoise_forward.1} parent=1 // pred_check
      _
    $region43: #{rnnoise_forward.1} parent=1 // pred_check_branch
      %150 = sbr.rel (0) target = $region45
    $region44: #{rnnoise_forward.1} parent=1 // pred_region
      %s152 = ssub.s32 192, 192
      %153 = vsyncadd [#allocation21], %s152
      %s155 = sshll.u32 [#allocation22], 4
      %s156 = int_to_ptr.vmem [resolvable:$true] %s155
      %158 = dma.hbm_to_vmem [thread:$0]  %s10, 192, %s156, [#allocation21]
    $region45: #{rnnoise_forward.1} parent=1 // pred_fallthru
      _
    // Predicated region
    $region46: #{rnnoise_forward.1} parent=1 // pred_check
      _
    $region47: #{rnnoise_forward.1} parent=1 // pred_check_branch
      %160 = sbr.rel (0) target = $region49
    $region48: #{rnnoise_forward.1} parent=1 // pred_region
      %s162 = ssub.s32 12288, 12288
      %163 = vsyncadd [#allocation24], %s162
      %s164 = sshll.u32 [#allocation23], 4
      %s165 = int_to_ptr.vmem [resolvable:$true] %s164
      %170 = dma.hbm_to_vmem [thread:$0]  %s11, 12288, %s165, [#allocation24], 384, 384, 24
    $region49: #{rnnoise_forward.1} parent=1 // pred_fallthru
      _
    // Predicated region
    $region50: #{rnnoise_forward.1} parent=1 // pred_check
      _
    $region51: #{rnnoise_forward.1} parent=1 // pred_check_branch
      %172 = sbr.rel (0) target = $region53
    $region52: #{rnnoise_forward.1} parent=1 // pred_region
      %s174 = ssub.s32 12288, 12288
      %175 = vsyncadd [#allocation24], %s174
      %s176 = sshll.u32 [#allocation25], 4
      %s177 = int_to_ptr.vmem [resolvable:$true] %s176
      %182 = dma.hbm_to_vmem [thread:$0]  %s12, 12288, %s177, [#allocation24], 384, 384, 24
    $region53: #{rnnoise_forward.1} parent=1 // pred_fallthru
      _
    // Predicated region
    $region54: #{rnnoise_forward.1} parent=1 // pred_check
      _
    $region55: #{rnnoise_forward.1} parent=1 // pred_check_branch
      %184 = sbr.rel (0) target = $region57
    $region56: #{rnnoise_forward.1} parent=1 // pred_region
      %s186 = ssub.s32 192, 192
      %187 = vsyncadd [#allocation27], %s186
      %s189 = sshll.u32 [#allocation26], 4
      %s190 = int_to_ptr.vmem [resolvable:$true] %s189
      %192 = dma.hbm_to_vmem [thread:$0]  %s13, 192, %s190, [#allocation27]
    $region57: #{rnnoise_forward.1} parent=1 // pred_fallthru
      _
    // Predicated region
    $region58: #{rnnoise_forward.1} parent=1 // pred_check
      _
    $region59: #{rnnoise_forward.1} parent=1 // pred_check_branch
      %194 = sbr.rel (0) target = $region61
    $region60: #{rnnoise_forward.1} parent=1 // pred_region
      %s196 = ssub.s32 2048, 2048
      %197 = vsyncadd [#allocation27], %s196
      %s198 = sshll.u32 [#allocation28], 4
      %s199 = int_to_ptr.vmem [resolvable:$true] %s198
      %204 = dma.hbm_to_vmem [thread:$0]  %s14, 2048, %s199, [#allocation27], 64, 64, 4
    $region61: #{rnnoise_forward.1} parent=1 // pred_fallthru
      _
    // Predicated region
    $region62: #{rnnoise_forward.1} parent=1 // pred_check
      _
    $region63: #{rnnoise_forward.1} parent=1 // pred_check_branch
      %206 = sbr.rel (0) target = $region65
    $region64: #{rnnoise_forward.1} parent=1 // pred_region
      %s208 = ssub.s32 16, 16
      %209 = vsyncadd [#allocation30], %s208
      %s211 = sshll.u32 [#allocation29], 4
      %s212 = int_to_ptr.vmem [resolvable:$true] %s211
      %214 = dma.hbm_to_vmem [thread:$0]  %s15, 16, %s212, [#allocation30]
    $region65: #{rnnoise_forward.1} parent=1 // pred_fallthru
      _
    // Predicated region
    $region66: #{rnnoise_forward.1} parent=1 // pred_check
      _
    $region67: #{rnnoise_forward.1} parent=1 // pred_check_branch
      %216 = sbr.rel (0) target = $region69
    $region68: #{rnnoise_forward.1} parent=1 // pred_region
      %s218 = ssub.s32 256, 256
      %219 = vsyncadd [#allocation30], %s218
      %s221 = sshll.u32 [#allocation31], 4
      %s222 = int_to_ptr.vmem [resolvable:$true] %s221
      %224 = dma.hbm_to_vmem [thread:$0]  %s16, 256, %s222, [#allocation30]
    $region69: #{rnnoise_forward.1} parent=1 // pred_fallthru
      _
    // Predicated region
    $region70: #{rnnoise_forward.1} parent=1 // pred_check
      _
    $region71: #{rnnoise_forward.1} parent=1 // pred_check_branch
      %226 = sbr.rel (0) target = $region73
    $region72: #{rnnoise_forward.1} parent=1 // pred_region
      %227 = dma.done [#allocation6], 384
    $region73: #{rnnoise_forward.1} parent=1 // pred_fallthru
      _
    // Predicated region
    $region74: #{rnnoise_forward.1} parent=1 // pred_check
      _
    $region75: #{rnnoise_forward.1} parent=1 // pred_check_branch
      %229 = sbr.rel (0) target = $region77
    $region76: #{rnnoise_forward.1} parent=1 // pred_region
      %230 = dma.done [#allocation9], 1728
    $region77: #{rnnoise_forward.1} parent=1 // pred_fallthru
      _
    // Predicated region
    $region78: #{rnnoise_forward.1} parent=1 // pred_check
      _
    $region79: #{rnnoise_forward.1} parent=1 // pred_check_branch
      %232 = sbr.rel (0) target = $region81
    $region80: #{rnnoise_forward.1} parent=1 // pred_region
      %233 = dma.done [#allocation9], 16
    $region81: #{rnnoise_forward.1} parent=1 // pred_fallthru
      _
    // Predicated region
    $region82: #{rnnoise_forward.1} parent=1 // pred_check
      _
    $region83: #{rnnoise_forward.1} parent=1 // pred_check_branch
      %235 = sbr.rel (0) target = $region85
    $region84: #{rnnoise_forward.1} parent=1 // pred_region
      %236 = dma.done [#allocation12], 6144
    $region85: #{rnnoise_forward.1} parent=1 // pred_fallthru
      _
    // Predicated region
    $region86: #{rnnoise_forward.1} parent=1 // pred_check
      _
    $region87: #{rnnoise_forward.1} parent=1 // pred_check_branch
      %238 = sbr.rel (0) target = $region89
    $region88: #{rnnoise_forward.1} parent=1 // pred_region
      %239 = dma.done [#allocation12], 32
    $region89: #{rnnoise_forward.1} parent=1 // pred_fallthru
      _
    // Predicated region
    $region90: #{rnnoise_forward.1} parent=1 // pred_check
      _
    $region91: #{rnnoise_forward.1} parent=1 // pred_check_branch
      %241 = sbr.rel (0) target = $region93
    $region92: #{rnnoise_forward.1} parent=1 // pred_region
      %242 = dma.done [#allocation15], 12288
    $region93: #{rnnoise_forward.1} parent=1 // pred_fallthru
      _
    // Predicated region
    $region94: #{rnnoise_forward.1} parent=1 // pred_check
      _
    $region95: #{rnnoise_forward.1} parent=1 // pred_check_branch
      %244 = sbr.rel (0) target = $region97
    $region96: #{rnnoise_forward.1} parent=1 // pred_region
      %245 = dma.done [#allocation15], 12288
    $region97: #{rnnoise_forward.1} parent=1 // pred_fallthru
      _
    // Predicated region
    $region98: #{rnnoise_forward.1} parent=1 // pred_check
      _
    $region99: #{rnnoise_forward.1} parent=1 // pred_check_branch
      %247 = sbr.rel (0) target = $region101
    $region100: #{rnnoise_forward.1} parent=1 // pred_region
      %248 = dma.done [#allocation18], 192
    $region101: #{rnnoise_forward.1} parent=1 // pred_fallthru
      _
    // Predicated region
    $region102: #{rnnoise_forward.1} parent=1 // pred_check
      _
    $region103: #{rnnoise_forward.1} parent=1 // pred_check_branch
      %250 = sbr.rel (0) target = $region105
    $region104: #{rnnoise_forward.1} parent=1 // pred_region
      %251 = dma.done [#allocation18], 12288
    $region105: #{rnnoise_forward.1} parent=1 // pred_fallthru
      _
    // Predicated region
    $region106: #{rnnoise_forward.1} parent=1 // pred_check
      _
    $region107: #{rnnoise_forward.1} parent=1 // pred_check_branch
      %253 = sbr.rel (0) target = $region109
    $region108: #{rnnoise_forward.1} parent=1 // pred_region
      %254 = dma.done [#allocation21], 12288
    $region109: #{rnnoise_forward.1} parent=1 // pred_fallthru
      _
    // Predicated region
    $region110: #{rnnoise_forward.1} parent=1 // pred_check
      _
    $region111: #{rnnoise_forward.1} parent=1 // pred_check_branch
      %256 = sbr.rel (0) target = $region113
    $region112: #{rnnoise_forward.1} parent=1 // pred_region
      %257 = dma.done [#allocation21], 192
    $region113: #{rnnoise_forward.1} parent=1 // pred_fallthru
      _
    // Predicated region
    $region114: #{rnnoise_forward.1} parent=1 // pred_check
      _
    $region115: #{rnnoise_forward.1} parent=1 // pred_check_branch
      %259 = sbr.rel (0) target = $region117
    $region116: #{rnnoise_forward.1} parent=1 // pred_region
      %260 = dma.done [#allocation24], 12288
    $region117: #{rnnoise_forward.1} parent=1 // pred_fallthru
      _
    // Predicated region
    $region118: #{rnnoise_forward.1} parent=1 // pred_check
      _
    $region119: #{rnnoise_forward.1} parent=1 // pred_check_branch
      %262 = sbr.rel (0) target = $region121
    $region120: #{rnnoise_forward.1} parent=1 // pred_region
      %263 = dma.done [#allocation24], 12288
    $region121: #{rnnoise_forward.1} parent=1 // pred_fallthru
      _
    // Predicated region
    $region122: #{rnnoise_forward.1} parent=1 // pred_check
      _
    $region123: #{rnnoise_forward.1} parent=1 // pred_check_branch
      %265 = sbr.rel (0) target = $region125
    $region124: #{rnnoise_forward.1} parent=1 // pred_region
      %266 = dma.done [#allocation27], 192
    $region125: #{rnnoise_forward.1} parent=1 // pred_fallthru
      _
    // Predicated region
    $region126: #{rnnoise_forward.1} parent=1 // pred_check
      _
    $region127: #{rnnoise_forward.1} parent=1 // pred_check_branch
      %268 = sbr.rel (0) target = $region129
    $region128: #{rnnoise_forward.1} parent=1 // pred_region
      %269 = dma.done [#allocation27], 2048
    $region129: #{rnnoise_forward.1} parent=1 // pred_fallthru
      _
    // Predicated region
    $region130: #{rnnoise_forward.1} parent=1 // pred_check
      _
    $region131: #{rnnoise_forward.1} parent=1 // pred_check_branch
      %271 = sbr.rel (0) target = $region133
    $region132: #{rnnoise_forward.1} parent=1 // pred_region
      %272 = dma.done [#allocation30], 16
    $region133: #{rnnoise_forward.1} parent=1 // pred_fallthru
      _
    // Predicated region
    $region134: #{rnnoise_forward.1} parent=1 // pred_check
      _
    $region135: #{rnnoise_forward.1} parent=1 // pred_check_branch
      %274 = sbr.rel (0) target = $region137
    $region136: #{rnnoise_forward.1} parent=1 // pred_region
      %275 = dma.done [#allocation30], 256
    $region137: #{rnnoise_forward.1} parent=1 // pred_fallthru
      _
    %v277 = vld [vmem:[#allocation10] sm:$0x1]
    %v278 = vld [vmem:[#allocation5] sm:$0xff]
    %v279 = vld [vmem:[#allocation5 + $0x8] sm:$0xff]
    %v280 = vpack.c.bf16 %v279, %v278
    %v281 = vld [vmem:[#allocation8] sm:$0xf]
    %v282 = vld [vmem:[#allocation8 + $0x4] sm:$0xf]
    %v283 = vld [vmem:[#allocation8 + $0x8] sm:$0xf]
    %v284 = vld [vmem:[#allocation8 + $0xc] sm:$0xf]
    %v285 = vld [vmem:[#allocation8 + $0x10] sm:$0xf]
    %v286 = vld [vmem:[#allocation8 + $0x14] sm:$0xf]
    %v287 = vld [vmem:[#allocation8 + $0x18] sm:$0xf]
    %v288 = vld [vmem:[#allocation8 + $0x1c] sm:$0xf]
    %v289 = vld [vmem:[#allocation8 + $0x20] sm:$0x1]
    %v299 = vunpack.c.l.b16 %v281
    %v300 = vunpack.c.l.b16 %v282
    %v301 = vunpack.c.l.b16 %v283
    %v302 = vunpack.c.l.b16 %v284
    %v303 = vunpack.c.l.b16 %v285
    %v304 = vunpack.c.l.b16 %v286
    %v305 = vunpack.c.l.b16 %v287
    %v306 = vunpack.c.l.b16 %v288
    %v307 = vunpack.c.l.b16 %v289
    %v308 = vpack.c.b16 %v300, %v299
    %v309 = vpack.c.b16 %v302, %v301
    %v310 = vpack.c.b16 %v304, %v303
    %v311 = vpack.c.b16 %v306, %v305
    %v312 = vpack.c.b16 %v307, %v307
    %vm317 = vcmask 531456
    %v319 = vsel %vm317, %v280, 0
    %vm321 = vcmask 1040384
    %v322 = vsel 0, 4294967295, 65535
    %v323 = vsel %vm321, %v322, 0
    %v325 = vand.u32 %v312, %v323
    %327 = vmatprep.subr.bf16.mxu0 0
    %328 = vmatpush1.bf16.msra.mxu0 %v308
    %329 = vmatprep.subr.bf16.mxu0 0
    %330 = vmatpush1.bf16.msra.mxu0 %v309
    %331 = vmatprep.subr.bf16.mxu0 0
    %332 = vmatpush1.bf16.msra.mxu0 %v310
    %333 = vmatprep.subr.bf16.mxu0 0
    %334 = vmatpush1.bf16.msra.mxu0 %v311
    %335 = vmatprep.subr.bf16.mxu0 0
    %336 = vmatpush1.bf16.msra.mxu0 %v325
    %337 = vmatprep.subr.bf16.mxu0 0
    %338 = vmatpush1.bf16.msra.mxu0 0
    %339 = vmatprep.subr.bf16.mxu0 0
    %340 = vmatpush1.bf16.msra.mxu0 0
    %341 = vmatprep.subr.bf16.mxu0 0
    %342 = vmatpush1.bf16.msra.mxu0 0
    %343 = vmatprep.subr.bf16.mxu0 0
    %344 = vmatpush1.bf16.msra.mxu0 0
    %345 = vmatprep.subr.bf16.mxu0 0
    %346 = vmatpush1.bf16.msra.mxu0 0
    %347 = vmatprep.subr.bf16.mxu0 0
    %348 = vmatpush1.bf16.msra.mxu0 0
    %349 = vmatprep.subr.bf16.mxu0 0
    %350 = vmatpush1.bf16.msra.mxu0 0
    %351 = vmatprep.subr.bf16.mxu0 0
    %352 = vmatpush1.bf16.msra.mxu0 0
    %353 = vmatprep.subr.bf16.mxu0 0
    %354 = vmatpush1.bf16.msra.mxu0 0
    %355 = vmatprep.subr.bf16.mxu0 0
    %356 = vmatpush1.bf16.msra.mxu0 0
    %357 = vmatprep.subr.bf16.mxu0 0
    %358 = vmatpush1.bf16.msra.mxu0 0
    %359 = vmatprep.mubr.bf16.mxu0 0
    %360 = vmatmul.mubr.bf16.gmra.mrb[0].mxu0 %v319
    %v361 = vpop.f32.mrb[0].mxu0
    %v362 = vadd.f32 0.0, %v361
    %v363 = vpop.f32.mrb[0].mxu0
    %v364 = vpop.f32.mrb[0].mxu0
    %v365 = vadd.f32 0.0, %v364
    %v366 = vpop.f32.mrb[0].mxu0
    %367 = vdwg.mxu0
    %v369 = vlaneseq
    %v370 = vshrl.u32 %v369, 7
    %v371 = vsub.s32 0, %v370
    %v372 = vrot.slane %v277, %v371
    %v374 = vadd.f32 %v372, %v362
    %v375 = vadd.f32 %v372, %v365
    %v376 = vld [vmem:[#allocation5 + $0x2] sm:$0xff]
    %v377 = vld [vmem:[#allocation5 + $0xa] sm:$0xff]
    %v378 = vpack.c.bf16 %v377, %v376
    %s379 = scalar_lea.vmem [#allocation8], 36
    %v380 = vld [vmem:[%s379] sm:$0xf]
    %v381 = vld [vmem:[%s379 + $0x4] sm:$0xf]
    %v382 = vld [vmem:[%s379 + $0x8] sm:$0xf]
    %v383 = vld [vmem:[%s379 + $0xc] sm:$0xf]
    %v384 = vld [vmem:[%s379 + $0x10] sm:$0xf]
    %v385 = vld [vmem:[%s379 + $0x14] sm:$0xf]
    %v386 = vld [vmem:[%s379 + $0x18] sm:$0xf]
    %v387 = vld [vmem:[%s379 + $0x1c] sm:$0xf]
    %v388 = vld [vmem:[%s379 + $0x20] sm:$0x1]
    %v398 = vunpack.c.l.b16 %v380
    %v399 = vunpack.c.l.b16 %v381
    %v400 = vunpack.c.l.b16 %v382
    %v401 = vunpack.c.l.b16 %v383
    %v402 = vunpack.c.l.b16 %v384
    %v403 = vunpack.c.l.b16 %v385
    %v404 = vunpack.c.l.b16 %v386
    %v405 = vunpack.c.l.b16 %v387
    %v406 = vunpack.c.l.b16 %v388
    %v407 = vpack.c.b16 %v399, %v398
    %v408 = vpack.c.b16 %v401, %v400
    %v409 = vpack.c.b16 %v403, %v402
    %v410 = vpack.c.b16 %v405, %v404
    %v411 = vpack.c.b16 %v406, %v406
    %v417 = vsel %vm317, %v378, 0
    %v420 = vand.u32 %v411, %v323
    %422 = vmatprep.subr.bf16.mxu0 0
    %423 = vmatpush1.bf16.msra.mxu0 %v407
    %424 = vmatprep.subr.bf16.mxu0 0
    %425 = vmatpush1.bf16.msra.mxu0 %v408
    %426 = vmatprep.subr.bf16.mxu0 0
    %427 = vmatpush1.bf16.msra.mxu0 %v409
    %428 = vmatprep.subr.bf16.mxu0 0
    %429 = vmatpush1.bf16.msra.mxu0 %v410
    %430 = vmatprep.subr.bf16.mxu0 0
    %431 = vmatpush1.bf16.msra.mxu0 %v420
    %432 = vmatprep.subr.bf16.mxu0 0
    %433 = vmatpush1.bf16.msra.mxu0 0
    %434 = vmatprep.subr.bf16.mxu0 0
    %435 = vmatpush1.bf16.msra.mxu0 0
    %436 = vmatprep.subr.bf16.mxu0 0
    %437 = vmatpush1.bf16.msra.mxu0 0
    %438 = vmatprep.subr.bf16.mxu0 0
    %439 = vmatpush1.bf16.msra.mxu0 0
    %440 = vmatprep.subr.bf16.mxu0 0
    %441 = vmatpush1.bf16.msra.mxu0 0
    %442 = vmatprep.subr.bf16.mxu0 0
    %443 = vmatpush1.bf16.msra.mxu0 0
    %444 = vmatprep.subr.bf16.mxu0 0
    %445 = vmatpush1.bf16.msra.mxu0 0
    %446 = vmatprep.subr.bf16.mxu0 0
    %447 = vmatpush1.bf16.msra.mxu0 0
    %448 = vmatprep.subr.bf16.mxu0 0
    %449 = vmatpush1.bf16.msra.mxu0 0
    %450 = vmatprep.subr.bf16.mxu0 0
    %451 = vmatpush1.bf16.msra.mxu0 0
    %452 = vmatprep.subr.bf16.mxu0 0
    %453 = vmatpush1.bf16.msra.mxu0 0
    %454 = vmatprep.mubr.bf16.mxu0 0
    %455 = vmatmul.mubr.bf16.gmra.mrb[0].mxu0 %v417
    %v456 = vpop.f32.mrb[0].mxu0
    %v457 = vadd.f32 0.0, %v456
    %v458 = vpop.f32.mrb[0].mxu0
    %v459 = vpop.f32.mrb[0].mxu0
    %v460 = vadd.f32 0.0, %v459
    %v461 = vpop.f32.mrb[0].mxu0
    %462 = vdwg.mxu0
    %v463 = vadd.f32 %v374, %v457
    %v464 = vadd.f32 %v375, %v460
    %v465 = vld [vmem:[#allocation5 + $0x4] sm:$0xff]
    %v466 = vld [vmem:[#allocation5 + $0xc] sm:$0xff]
    %v467 = vpack.c.bf16 %v466, %v465
    %s468 = scalar_lea.vmem [#allocation8], 72
    %v469 = vld [vmem:[%s468] sm:$0xf]
    %v470 = vld [vmem:[%s468 + $0x4] sm:$0xf]
    %v471 = vld [vmem:[%s468 + $0x8] sm:$0xf]
    %v472 = vld [vmem:[%s468 + $0xc] sm:$0xf]
    %v473 = vld [vmem:[%s468 + $0x10] sm:$0xf]
    %v474 = vld [vmem:[%s468 + $0x14] sm:$0xf]
    %v475 = vld [vmem:[%s468 + $0x18] sm:$0xf]
    %v476 = vld [vmem:[%s468 + $0x1c] sm:$0xf]
    %v477 = vld [vmem:[%s468 + $0x20] sm:$0x1]
    %v487 = vunpack.c.l.b16 %v469
    %v488 = vunpack.c.l.b16 %v470
    %v489 = vunpack.c.l.b16 %v471
    %v490 = vunpack.c.l.b16 %v472
    %v491 = vunpack.c.l.b16 %v473
    %v492 = vunpack.c.l.b16 %v474
    %v493 = vunpack.c.l.b16 %v475
    %v494 = vunpack.c.l.b16 %v476
    %v495 = vunpack.c.l.b16 %v477
    %v496 = vpack.c.b16 %v488, %v487
    %v497 = vpack.c.b16 %v490, %v489
    %v498 = vpack.c.b16 %v492, %v491
    %v499 = vpack.c.b16 %v494, %v493
    %v500 = vpack.c.b16 %v495, %v495
    %v506 = vsel %vm317, %v467, 0
    %v509 = vand.u32 %v500, %v323
    %511 = vmatprep.subr.bf16.mxu0 0
    %512 = vmatpush1.bf16.msra.mxu0 %v496
    %513 = vmatprep.subr.bf16.mxu0 0
    %514 = vmatpush1.bf16.msra.mxu0 %v497
    %515 = vmatprep.subr.bf16.mxu0 0
    %516 = vmatpush1.bf16.msra.mxu0 %v498
    %517 = vmatprep.subr.bf16.mxu0 0
    %518 = vmatpush1.bf16.msra.mxu0 %v499
    %519 = vmatprep.subr.bf16.mxu0 0
    %520 = vmatpush1.bf16.msra.mxu0 %v509
    %521 = vmatprep.subr.bf16.mxu0 0
    %522 = vmatpush1.bf16.msra.mxu0 0
    %523 = vmatprep.subr.bf16.mxu0 0
    %524 = vmatpush1.bf16.msra.mxu0 0
    %525 = vmatprep.subr.bf16.mxu0 0
    %526 = vmatpush1.bf16.msra.mxu0 0
    %527 = vmatprep.subr.bf16.mxu0 0
    %528 = vmatpush1.bf16.msra.mxu0 0
    %529 = vmatprep.subr.bf16.mxu0 0
    %530 = vmatpush1.bf16.msra.mxu0 0
    %531 = vmatprep.subr.bf16.mxu0 0
    %532 = vmatpush1.bf16.msra.mxu0 0
    %533 = vmatprep.subr.bf16.mxu0 0
    %534 = vmatpush1.bf16.msra.mxu0 0
    %535 = vmatprep.subr.bf16.mxu0 0
    %536 = vmatpush1.bf16.msra.mxu0 0
    %537 = vmatprep.subr.bf16.mxu0 0
    %538 = vmatpush1.bf16.msra.mxu0 0
    %539 = vmatprep.subr.bf16.mxu0 0
    %540 = vmatpush1.bf16.msra.mxu0 0
    %541 = vmatprep.subr.bf16.mxu0 0
    %542 = vmatpush1.bf16.msra.mxu0 0
    %543 = vmatprep.mubr.bf16.mxu0 0
    %544 = vmatmul.mubr.bf16.gmra.mrb[0].mxu0 %v506
    %v545 = vpop.f32.mrb[0].mxu0
    %v546 = vadd.f32 0.0, %v545
    %v547 = vpop.f32.mrb[0].mxu0
    %v548 = vpop.f32.mrb[0].mxu0
    %v549 = vadd.f32 0.0, %v548
    %v550 = vpop.f32.mrb[0].mxu0
    %551 = vdwg.mxu0
    %v552 = vadd.f32 %v463, %v546
    %v553 = vadd.f32 %v464, %v549
    %v554 = vtanh.pop %v552
    %v555 = vtanh.pop %v553
    %556 = vst [vmem:[#allocation2] sm:$0xff] 0.0
    %557 = vst [vmem:[#allocation2 + $0x8] sm:$0xff] 0.0
    %558 = vst [vmem:[#allocation2 + $0x10] sm:$0xf] 0.0
    %559 = vst [vmem:[#allocation2 + $0x2] sm:$0xff] %v554
    %560 = vst [vmem:[#allocation2 + $0xa] sm:$0xff] %v555
    %v561 = vld [vmem:[#allocation13] sm:$0x3]
    %v562 = vld [vmem:[#allocation2] sm:$0xff]
    %v563 = vld [vmem:[#allocation2 + $0x8] sm:$0xff]
    %v564 = vpack.c.bf16 %v563, %v562
    %v565 = vld [vmem:[#allocation11] sm:$0xff]
    %v566 = vld [vmem:[#allocation11 + $0x8] sm:$0xff]
    %v567 = vld [vmem:[#allocation11 + $0x10] sm:$0xff]
    %v568 = vld [vmem:[#allocation11 + $0x18] sm:$0xff]
    %v569 = vld [vmem:[#allocation11 + $0x20] sm:$0xff]
    %v570 = vld [vmem:[#allocation11 + $0x28] sm:$0xff]
    %v571 = vld [vmem:[#allocation11 + $0x30] sm:$0xff]
    %v572 = vld [vmem:[#allocation11 + $0x38] sm:$0xff]
    %v573 = vld [vmem:[#allocation11 + $0x40] sm:$0xff]
    %v574 = vld [vmem:[#allocation11 + $0x48] sm:$0xff]
    %v575 = vld [vmem:[#allocation11 + $0x50] sm:$0xff]
    %v576 = vld [vmem:[#allocation11 + $0x58] sm:$0xff]
    %v577 = vld [vmem:[#allocation11 + $0x60] sm:$0xff]
    %v578 = vld [vmem:[#allocation11 + $0x68] sm:$0xff]
    %v579 = vld [vmem:[#allocation11 + $0x70] sm:$0xff]
    %v580 = vld [vmem:[#allocation11 + $0x78] sm:$0xff]
    %v597 = vunpack.c.l.b16 %v565
    %v598 = vunpack.c.h.b16 %v565
    %v599 = vunpack.c.l.b16 %v566
    %v600 = vunpack.c.h.b16 %v566
    %v601 = vunpack.c.l.b16 %v567
    %v602 = vunpack.c.h.b16 %v567
    %v603 = vunpack.c.l.b16 %v568
    %v604 = vunpack.c.h.b16 %v568
    %v605 = vunpack.c.l.b16 %v569
    %v606 = vunpack.c.h.b16 %v569
    %v607 = vunpack.c.l.b16 %v570
    %v608 = vunpack.c.h.b16 %v570
    %v609 = vunpack.c.l.b16 %v571
    %v610 = vunpack.c.h.b16 %v571
    %v611 = vunpack.c.l.b16 %v572
    %v612 = vunpack.c.h.b16 %v572
    %v613 = vunpack.c.l.b16 %v573
    %v614 = vunpack.c.h.b16 %v573
    %v615 = vunpack.c.l.b16 %v574
    %v616 = vunpack.c.h.b16 %v574
    %v617 = vunpack.c.l.b16 %v575
    %v618 = vunpack.c.h.b16 %v575
    %v619 = vunpack.c.l.b16 %v576
    %v620 = vunpack.c.h.b16 %v576
    %v621 = vunpack.c.l.b16 %v577
    %v622 = vunpack.c.h.b16 %v577
    %v623 = vunpack.c.l.b16 %v578
    %v624 = vunpack.c.h.b16 %v578
    %v625 = vunpack.c.l.b16 %v579
    %v626 = vunpack.c.h.b16 %v579
    %v627 = vunpack.c.l.b16 %v580
    %v628 = vunpack.c.h.b16 %v580
    %v629 = vpack.c.b16 %v599, %v597
    %v630 = vpack.c.b16 %v600, %v598
    %v631 = vpack.c.b16 %v603, %v601
    %v632 = vpack.c.b16 %v604, %v602
    %v633 = vpack.c.b16 %v607, %v605
    %v634 = vpack.c.b16 %v608, %v606
    %v635 = vpack.c.b16 %v611, %v609
    %v636 = vpack.c.b16 %v612, %v610
    %v637 = vpack.c.b16 %v615, %v613
    %v638 = vpack.c.b16 %v616, %v614
    %v639 = vpack.c.b16 %v619, %v617
    %v640 = vpack.c.b16 %v620, %v618
    %v641 = vpack.c.b16 %v623, %v621
    %v642 = vpack.c.b16 %v624, %v622
    %v643 = vpack.c.b16 %v627, %v625
    %v644 = vpack.c.b16 %v628, %v626
    %661 = vmatprep.subr.bf16.mxu0 %v630
    %662 = vmatpush1.bf16.msra.mxu0 %v629
    %663 = vmatprep.subr.bf16.mxu0 %v632
    %664 = vmatpush1.bf16.msra.mxu0 %v631
    %665 = vmatprep.subr.bf16.mxu0 %v634
    %666 = vmatpush1.bf16.msra.mxu0 %v633
    %667 = vmatprep.subr.bf16.mxu0 %v636
    %668 = vmatpush1.bf16.msra.mxu0 %v635
    %669 = vmatprep.subr.bf16.mxu0 %v638
    %670 = vmatpush1.bf16.msra.mxu0 %v637
    %671 = vmatprep.subr.bf16.mxu0 %v640
    %672 = vmatpush1.bf16.msra.mxu0 %v639
    %673 = vmatprep.subr.bf16.mxu0 %v642
    %674 = vmatpush1.bf16.msra.mxu0 %v641
    %675 = vmatprep.subr.bf16.mxu0 %v644
    %676 = vmatpush1.bf16.msra.mxu0 %v643
    %677 = vmatprep.subr.bf16.mxu0 0
    %678 = vmatpush1.bf16.msra.mxu0 0
    %679 = vmatprep.subr.bf16.mxu0 0
    %680 = vmatpush1.bf16.msra.mxu0 0
    %681 = vmatprep.subr.bf16.mxu0 0
    %682 = vmatpush1.bf16.msra.mxu0 0
    %683 = vmatprep.subr.bf16.mxu0 0
    %684 = vmatpush1.bf16.msra.mxu0 0
    %685 = vmatprep.subr.bf16.mxu0 0
    %686 = vmatpush1.bf16.msra.mxu0 0
    %687 = vmatprep.subr.bf16.mxu0 0
    %688 = vmatpush1.bf16.msra.mxu0 0
    %689 = vmatprep.subr.bf16.mxu0 0
    %690 = vmatpush1.bf16.msra.mxu0 0
    %691 = vmatprep.subr.bf16.mxu0 0
    %692 = vmatpush1.bf16.msra.mxu0 0
    %693 = vmatprep.mubr.bf16.mxu0 0
    %694 = vmatmul.mubr.bf16.gmra.mrb[0].mxu0 %v564
    %v695 = vpop.f32.mrb[0].mxu0
    %v696 = vadd.f32 0.0, %v695
    %v697 = vpop.f32.mrb[0].mxu0
    %v698 = vadd.f32 0.0, %v697
    %v699 = vpop.f32.mrb[0].mxu0
    %v700 = vadd.f32 0.0, %v699
    %v701 = vpop.f32.mrb[0].mxu0
    %v702 = vadd.f32 0.0, %v701
    %703 = vdwg.mxu0
    %v705 = vlaneseq
    %v706 = vshrl.u32 %v705, 7
    %v707 = vsub.s32 0, %v706
    %v708 = vrot.slane %v561, %v707
    %v709 = vlaneseq
    %v710 = vshrl.u32 %v709, 7
    %v711 = vsub.s32 1, %v710
    %v712 = vrot.slane %v561, %v711
    %v715 = vadd.f32 %v708, %v696
    %v716 = vadd.f32 %v712, %v698
    %v717 = vadd.f32 %v708, %v700
    %v718 = vadd.f32 %v712, %v702
    %v719 = vld [vmem:[#allocation2 + $0x2] sm:$0xff]
    %v720 = vld [vmem:[#allocation2 + $0xa] sm:$0xff]
    %v721 = vpack.c.bf16 %v720, %v719
    %s722 = scalar_lea.vmem [#allocation11], 128
    %v723 = vld [vmem:[%s722] sm:$0xff]
    %v724 = vld [vmem:[%s722 + $0x8] sm:$0xff]
    %v725 = vld [vmem:[%s722 + $0x10] sm:$0xff]
    %v726 = vld [vmem:[%s722 + $0x18] sm:$0xff]
    %v727 = vld [vmem:[%s722 + $0x20] sm:$0xff]
    %v728 = vld [vmem:[%s722 + $0x28] sm:$0xff]
    %v729 = vld [vmem:[%s722 + $0x30] sm:$0xff]
    %v730 = vld [vmem:[%s722 + $0x38] sm:$0xff]
    %v731 = vld [vmem:[%s722 + $0x40] sm:$0xff]
    %v732 = vld [vmem:[%s722 + $0x48] sm:$0xff]
    %v733 = vld [vmem:[%s722 + $0x50] sm:$0xff]
    %v734 = vld [vmem:[%s722 + $0x58] sm:$0xff]
    %v735 = vld [vmem:[%s722 + $0x60] sm:$0xff]
    %v736 = vld [vmem:[%s722 + $0x68] sm:$0xff]
    %v737 = vld [vmem:[%s722 + $0x70] sm:$0xff]
    %v738 = vld [vmem:[%s722 + $0x78] sm:$0xff]
    %v755 = vunpack.c.l.b16 %v723
    %v756 = vunpack.c.h.b16 %v723
    %v757 = vunpack.c.l.b16 %v724
    %v758 = vunpack.c.h.b16 %v724
    %v759 = vunpack.c.l.b16 %v725
    %v760 = vunpack.c.h.b16 %v725
    %v761 = vunpack.c.l.b16 %v726
    %v762 = vunpack.c.h.b16 %v726
    %v763 = vunpack.c.l.b16 %v727
    %v764 = vunpack.c.h.b16 %v727
    %v765 = vunpack.c.l.b16 %v728
    %v766 = vunpack.c.h.b16 %v728
    %v767 = vunpack.c.l.b16 %v729
    %v768 = vunpack.c.h.b16 %v729
    %v769 = vunpack.c.l.b16 %v730
    %v770 = vunpack.c.h.b16 %v730
    %v771 = vunpack.c.l.b16 %v731
    %v772 = vunpack.c.h.b16 %v731
    %v773 = vunpack.c.l.b16 %v732
    %v774 = vunpack.c.h.b16 %v732
    %v775 = vunpack.c.l.b16 %v733
    %v776 = vunpack.c.h.b16 %v733
    %v777 = vunpack.c.l.b16 %v734
    %v778 = vunpack.c.h.b16 %v734
    %v779 = vunpack.c.l.b16 %v735
    %v780 = vunpack.c.h.b16 %v735
    %v781 = vunpack.c.l.b16 %v736
    %v782 = vunpack.c.h.b16 %v736
    %v783 = vunpack.c.l.b16 %v737
    %v784 = vunpack.c.h.b16 %v737
    %v785 = vunpack.c.l.b16 %v738
    %v786 = vunpack.c.h.b16 %v738
    %v787 = vpack.c.b16 %v757, %v755
    %v788 = vpack.c.b16 %v758, %v756
    %v789 = vpack.c.b16 %v761, %v759
    %v790 = vpack.c.b16 %v762, %v760
    %v791 = vpack.c.b16 %v765, %v763
    %v792 = vpack.c.b16 %v766, %v764
    %v793 = vpack.c.b16 %v769, %v767
    %v794 = vpack.c.b16 %v770, %v768
    %v795 = vpack.c.b16 %v773, %v771
    %v796 = vpack.c.b16 %v774, %v772
    %v797 = vpack.c.b16 %v777, %v775
    %v798 = vpack.c.b16 %v778, %v776
    %v799 = vpack.c.b16 %v781, %v779
    %v800 = vpack.c.b16 %v782, %v780
    %v801 = vpack.c.b16 %v785, %v783
    %v802 = vpack.c.b16 %v786, %v784
    %819 = vmatprep.subr.bf16.mxu0 %v788
    %820 = vmatpush1.bf16.msra.mxu0 %v787
    %821 = vmatprep.subr.bf16.mxu0 %v790
    %822 = vmatpush1.bf16.msra.mxu0 %v789
    %823 = vmatprep.subr.bf16.mxu0 %v792
    %824 = vmatpush1.bf16.msra.mxu0 %v791
    %825 = vmatprep.subr.bf16.mxu0 %v794
    %826 = vmatpush1.bf16.msra.mxu0 %v793
    %827 = vmatprep.subr.bf16.mxu0 %v796
    %828 = vmatpush1.bf16.msra.mxu0 %v795
    %829 = vmatprep.subr.bf16.mxu0 %v798
    %830 = vmatpush1.bf16.msra.mxu0 %v797
    %831 = vmatprep.subr.bf16.mxu0 %v800
    %832 = vmatpush1.bf16.msra.mxu0 %v799
    %833 = vmatprep.subr.bf16.mxu0 %v802
    %834 = vmatpush1.bf16.msra.mxu0 %v801
    %835 = vmatprep.subr.bf16.mxu0 0
    %836 = vmatpush1.bf16.msra.mxu0 0
    %837 = vmatprep.subr.bf16.mxu0 0
    %838 = vmatpush1.bf16.msra.mxu0 0
    %839 = vmatprep.subr.bf16.mxu0 0
    %840 = vmatpush1.bf16.msra.mxu0 0
    %841 = vmatprep.subr.bf16.mxu0 0
    %842 = vmatpush1.bf16.msra.mxu0 0
    %843 = vmatprep.subr.bf16.mxu0 0
    %844 = vmatpush1.bf16.msra.mxu0 0
    %845 = vmatprep.subr.bf16.mxu0 0
    %846 = vmatpush1.bf16.msra.mxu0 0
    %847 = vmatprep.subr.bf16.mxu0 0
    %848 = vmatpush1.bf16.msra.mxu0 0
    %849 = vmatprep.subr.bf16.mxu0 0
    %850 = vmatpush1.bf16.msra.mxu0 0
    %851 = vmatprep.mubr.bf16.mxu0 0
    %852 = vmatmul.mubr.bf16.gmra.mrb[0].mxu0 %v721
    %v853 = vpop.f32.mrb[0].mxu0
    %v854 = vadd.f32 0.0, %v853
    %v855 = vpop.f32.mrb[0].mxu0
    %v856 = vadd.f32 0.0, %v855
    %v857 = vpop.f32.mrb[0].mxu0
    %v858 = vadd.f32 0.0, %v857
    %v859 = vpop.f32.mrb[0].mxu0
    %v860 = vadd.f32 0.0, %v859
    %861 = vdwg.mxu0
    %v862 = vadd.f32 %v715, %v854
    %v863 = vadd.f32 %v716, %v856
    %v864 = vadd.f32 %v717, %v858
    %v865 = vadd.f32 %v718, %v860
    %v866 = vld [vmem:[#allocation2 + $0x4] sm:$0xff]
    %v867 = vld [vmem:[#allocation2 + $0xc] sm:$0xff]
    %v868 = vpack.c.bf16 %v867, %v866
    %s869 = scalar_lea.vmem [#allocation11], 256
    %v870 = vld [vmem:[%s869] sm:$0xff]
    %v871 = vld [vmem:[%s869 + $0x8] sm:$0xff]
    %v872 = vld [vmem:[%s869 + $0x10] sm:$0xff]
    %v873 = vld [vmem:[%s869 + $0x18] sm:$0xff]
    %v874 = vld [vmem:[%s869 + $0x20] sm:$0xff]
    %v875 = vld [vmem:[%s869 + $0x28] sm:$0xff]
    %v876 = vld [vmem:[%s869 + $0x30] sm:$0xff]
    %v877 = vld [vmem:[%s869 + $0x38] sm:$0xff]
    %v878 = vld [vmem:[%s869 + $0x40] sm:$0xff]
    %v879 = vld [vmem:[%s869 + $0x48] sm:$0xff]
    %v880 = vld [vmem:[%s869 + $0x50] sm:$0xff]
    %v881 = vld [vmem:[%s869 + $0x58] sm:$0xff]
    %v882 = vld [vmem:[%s869 + $0x60] sm:$0xff]
    %v883 = vld [vmem:[%s869 + $0x68] sm:$0xff]
    %v884 = vld [vmem:[%s869 + $0x70] sm:$0xff]
    %v885 = vld [vmem:[%s869 + $0x78] sm:$0xff]
    %v902 = vunpack.c.l.b16 %v870
    %v903 = vunpack.c.h.b16 %v870
    %v904 = vunpack.c.l.b16 %v871
    %v905 = vunpack.c.h.b16 %v871
    %v906 = vunpack.c.l.b16 %v872
    %v907 = vunpack.c.h.b16 %v872
    %v908 = vunpack.c.l.b16 %v873
    %v909 = vunpack.c.h.b16 %v873
    %v910 = vunpack.c.l.b16 %v874
    %v911 = vunpack.c.h.b16 %v874
    %v912 = vunpack.c.l.b16 %v875
    %v913 = vunpack.c.h.b16 %v875
    %v914 = vunpack.c.l.b16 %v876
    %v915 = vunpack.c.h.b16 %v876
    %v916 = vunpack.c.l.b16 %v877
    %v917 = vunpack.c.h.b16 %v877
    %v918 = vunpack.c.l.b16 %v878
    %v919 = vunpack.c.h.b16 %v878
    %v920 = vunpack.c.l.b16 %v879
    %v921 = vunpack.c.h.b16 %v879
    %v922 = vunpack.c.l.b16 %v880
    %v923 = vunpack.c.h.b16 %v880
    %v924 = vunpack.c.l.b16 %v881
    %v925 = vunpack.c.h.b16 %v881
    %v926 = vunpack.c.l.b16 %v882
    %v927 = vunpack.c.h.b16 %v882
    %v928 = vunpack.c.l.b16 %v883
    %v929 = vunpack.c.h.b16 %v883
    %v930 = vunpack.c.l.b16 %v884
    %v931 = vunpack.c.h.b16 %v884
    %v932 = vunpack.c.l.b16 %v885
    %v933 = vunpack.c.h.b16 %v885
    %v934 = vpack.c.b16 %v904, %v902
    %v935 = vpack.c.b16 %v905, %v903
    %v936 = vpack.c.b16 %v908, %v906
    %v937 = vpack.c.b16 %v909, %v907
    %v938 = vpack.c.b16 %v912, %v910
    %v939 = vpack.c.b16 %v913, %v911
    %v940 = vpack.c.b16 %v916, %v914
    %v941 = vpack.c.b16 %v917, %v915
    %v942 = vpack.c.b16 %v920, %v918
    %v943 = vpack.c.b16 %v921, %v919
    %v944 = vpack.c.b16 %v924, %v922
    %v945 = vpack.c.b16 %v925, %v923
    %v946 = vpack.c.b16 %v928, %v926
    %v947 = vpack.c.b16 %v929, %v927
    %v948 = vpack.c.b16 %v932, %v930
    %v949 = vpack.c.b16 %v933, %v931
    %966 = vmatprep.subr.bf16.mxu0 %v935
    %967 = vmatpush1.bf16.msra.mxu0 %v934
    %968 = vmatprep.subr.bf16.mxu0 %v937
    %969 = vmatpush1.bf16.msra.mxu0 %v936
    %970 = vmatprep.subr.bf16.mxu0 %v939
    %971 = vmatpush1.bf16.msra.mxu0 %v938
    %972 = vmatprep.subr.bf16.mxu0 %v941
    %973 = vmatpush1.bf16.msra.mxu0 %v940
    %974 = vmatprep.subr.bf16.mxu0 %v943
    %975 = vmatpush1.bf16.msra.mxu0 %v942
    %976 = vmatprep.subr.bf16.mxu0 %v945
    %977 = vmatpush1.bf16.msra.mxu0 %v944
    %978 = vmatprep.subr.bf16.mxu0 %v947
    %979 = vmatpush1.bf16.msra.mxu0 %v946
    %980 = vmatprep.subr.bf16.mxu0 %v949
    %981 = vmatpush1.bf16.msra.mxu0 %v948
    %982 = vmatprep.subr.bf16.mxu0 0
    %983 = vmatpush1.bf16.msra.mxu0 0
    %984 = vmatprep.subr.bf16.mxu0 0
    %985 = vmatpush1.bf16.msra.mxu0 0
    %986 = vmatprep.subr.bf16.mxu0 0
    %987 = vmatpush1.bf16.msra.mxu0 0
    %988 = vmatprep.subr.bf16.mxu0 0
    %989 = vmatpush1.bf16.msra.mxu0 0
    %990 = vmatprep.subr.bf16.mxu0 0
    %991 = vmatpush1.bf16.msra.mxu0 0
    %992 = vmatprep.subr.bf16.mxu0 0
    %993 = vmatpush1.bf16.msra.mxu0 0
    %994 = vmatprep.subr.bf16.mxu0 0
    %995 = vmatpush1.bf16.msra.mxu0 0
    %996 = vmatprep.subr.bf16.mxu0 0
    %997 = vmatpush1.bf16.msra.mxu0 0
    %998 = vmatprep.mubr.bf16.mxu0 0
    %999 = vmatmul.mubr.bf16.gmra.mrb[0].mxu0 %v868
    %v1000 = vpop.f32.mrb[0].mxu0
    %v1001 = vadd.f32 0.0, %v1000
    %v1002 = vpop.f32.mrb[0].mxu0
    %v1003 = vadd.f32 0.0, %v1002
    %v1004 = vpop.f32.mrb[0].mxu0
    %v1005 = vadd.f32 0.0, %v1004
    %v1006 = vpop.f32.mrb[0].mxu0
    %v1007 = vadd.f32 0.0, %v1006
    %1008 = vdwg.mxu0
    %v1009 = vadd.f32 %v862, %v1001
    %v1010 = vadd.f32 %v863, %v1003
    %v1011 = vadd.f32 %v864, %v1005
    %v1012 = vadd.f32 %v865, %v1007
    %v1013 = vtanh.pop %v1009
    %v1014 = vtanh.pop %v1010
    %v1015 = vtanh.pop %v1011
    %v1016 = vtanh.pop %v1012
    %v1017 = vld [vmem:[#allocation31] sm:$0x3]
    %v1018 = vld [vmem:[#allocation31 + $0x8] sm:$0x3]
    %v1019 = vpack.c.bf16 %v1015, %v1013
    %v1020 = vpack.c.bf16 %v1016, %v1014
    %v1021 = vld [vmem:[#allocation14] sm:$0xff]
    %v1022 = vld [vmem:[#allocation14 + $0x8] sm:$0xff]
    %v1023 = vld [vmem:[#allocation14 + $0x10] sm:$0xff]
    %v1024 = vld [vmem:[#allocation14 + $0x18] sm:$0xff]
    %v1025 = vld [vmem:[#allocation14 + $0x20] sm:$0xff]
    %v1026 = vld [vmem:[#allocation14 + $0x28] sm:$0xff]
    %v1027 = vld [vmem:[#allocation14 + $0x30] sm:$0xff]
    %v1028 = vld [vmem:[#allocation14 + $0x38] sm:$0xff]
    %v1029 = vld [vmem:[#allocation14 + $0x40] sm:$0xff]
    %v1030 = vld [vmem:[#allocation14 + $0x48] sm:$0xff]
    %v1031 = vld [vmem:[#allocation14 + $0x50] sm:$0xff]
    %v1032 = vld [vmem:[#allocation14 + $0x58] sm:$0xff]
    %v1033 = vld [vmem:[#allocation14 + $0x60] sm:$0xff]
    %v1034 = vld [vmem:[#allocation14 + $0x68] sm:$0xff]
    %v1035 = vld [vmem:[#allocation14 + $0x70] sm:$0xff]
    %v1036 = vld [vmem:[#allocation14 + $0x78] sm:$0xff]
    %v1037 = vld [vmem:[#allocation14 + $0x80] sm:$0xff]
    %v1038 = vld [vmem:[#allocation14 + $0x88] sm:$0xff]
    %v1039 = vld [vmem:[#allocation14 + $0x90] sm:$0xff]
    %v1040 = vld [vmem:[#allocation14 + $0x98] sm:$0xff]
    %v1041 = vld [vmem:[#allocation14 + $0xa0] sm:$0xff]
    %v1042 = vld [vmem:[#allocation14 + $0xa8] sm:$0xff]
    %v1043 = vld [vmem:[#allocation14 + $0xb0] sm:$0xff]
    %v1044 = vld [vmem:[#allocation14 + $0xb8] sm:$0xff]
    %v1045 = vld [vmem:[#allocation14 + $0xc0] sm:$0xff]
    %v1046 = vld [vmem:[#allocation14 + $0xc8] sm:$0xff]
    %v1047 = vld [vmem:[#allocation14 + $0xd0] sm:$0xff]
    %v1048 = vld [vmem:[#allocation14 + $0xd8] sm:$0xff]
    %v1049 = vld [vmem:[#allocation14 + $0xe0] sm:$0xff]
    %v1050 = vld [vmem:[#allocation14 + $0xe8] sm:$0xff]
    %v1051 = vld [vmem:[#allocation14 + $0xf0] sm:$0xff]
    %v1052 = vld [vmem:[#allocation14 + $0xf8] sm:$0xff]
    %v1053 = vld [vmem:[#allocation14 + $0x100] sm:$0xff]
    %v1054 = vld [vmem:[#allocation14 + $0x108] sm:$0xff]
    %v1055 = vld [vmem:[#allocation14 + $0x110] sm:$0xff]
    %v1056 = vld [vmem:[#allocation14 + $0x118] sm:$0xff]
    %v1057 = vld [vmem:[#allocation14 + $0x120] sm:$0xff]
    %v1058 = vld [vmem:[#allocation14 + $0x128] sm:$0xff]
    %v1059 = vld [vmem:[#allocation14 + $0x130] sm:$0xff]
    %v1060 = vld [vmem:[#allocation14 + $0x138] sm:$0xff]
    %v1061 = vld [vmem:[#allocation14 + $0x140] sm:$0xff]
    %v1062 = vld [vmem:[#allocation14 + $0x148] sm:$0xff]
    %v1063 = vld [vmem:[#allocation14 + $0x150] sm:$0xff]
    %v1064 = vld [vmem:[#allocation14 + $0x158] sm:$0xff]
    %v1065 = vld [vmem:[#allocation14 + $0x160] sm:$0xff]
    %v1066 = vld [vmem:[#allocation14 + $0x168] sm:$0xff]
    %v1067 = vld [vmem:[#allocation14 + $0x170] sm:$0xff]
    %v1068 = vld [vmem:[#allocation14 + $0x178] sm:$0xff]
    %v1069 = vld [vmem:[#allocation14 + $0x180] sm:$0xff]
    %v1070 = vld [vmem:[#allocation14 + $0x188] sm:$0xff]
    %v1071 = vld [vmem:[#allocation14 + $0x190] sm:$0xff]
    %v1072 = vld [vmem:[#allocation14 + $0x198] sm:$0xff]
    %v1073 = vld [vmem:[#allocation14 + $0x1a0] sm:$0xff]
    %v1074 = vld [vmem:[#allocation14 + $0x1a8] sm:$0xff]
    %v1075 = vld [vmem:[#allocation14 + $0x1b0] sm:$0xff]
    %v1076 = vld [vmem:[#allocation14 + $0x1b8] sm:$0xff]
    %v1077 = vld [vmem:[#allocation14 + $0x1c0] sm:$0xff]
    %v1078 = vld [vmem:[#allocation14 + $0x1c8] sm:$0xff]
    %v1079 = vld [vmem:[#allocation14 + $0x1d0] sm:$0xff]
    %v1080 = vld [vmem:[#allocation14 + $0x1d8] sm:$0xff]
    %v1081 = vld [vmem:[#allocation14 + $0x1e0] sm:$0xff]
    %v1082 = vld [vmem:[#allocation14 + $0x1e8] sm:$0xff]
    %v1083 = vld [vmem:[#allocation14 + $0x1f0] sm:$0xff]
    %v1084 = vld [vmem:[#allocation14 + $0x1f8] sm:$0xff]
    %v1085 = vld [vmem:[#allocation14 + $0x200] sm:$0xff]
    %v1086 = vld [vmem:[#allocation14 + $0x208] sm:$0xff]
    %v1087 = vld [vmem:[#allocation14 + $0x210] sm:$0xff]
    %v1088 = vld [vmem:[#allocation14 + $0x218] sm:$0xff]
    %v1089 = vld [vmem:[#allocation14 + $0x220] sm:$0xff]
    %v1090 = vld [vmem:[#allocation14 + $0x228] sm:$0xff]
    %v1091 = vld [vmem:[#allocation14 + $0x230] sm:$0xff]
    %v1092 = vld [vmem:[#allocation14 + $0x238] sm:$0xff]
    %v1093 = vld [vmem:[#allocation14 + $0x240] sm:$0xff]
    %v1094 = vld [vmem:[#allocation14 + $0x248] sm:$0xff]
    %v1095 = vld [vmem:[#allocation14 + $0x250] sm:$0xff]
    %v1096 = vld [vmem:[#allocation14 + $0x258] sm:$0xff]
    %v1097 = vld [vmem:[#allocation14 + $0x260] sm:$0xff]
    %v1098 = vld [vmem:[#allocation14 + $0x268] sm:$0xff]
    %v1099 = vld [vmem:[#allocation14 + $0x270] sm:$0xff]
    %v1100 = vld [vmem:[#allocation14 + $0x278] sm:$0xff]
    %v1101 = vld [vmem:[#allocation14 + $0x280] sm:$0xff]
    %v1102 = vld [vmem:[#allocation14 + $0x288] sm:$0xff]
    %v1103 = vld [vmem:[#allocation14 + $0x290] sm:$0xff]
    %v1104 = vld [vmem:[#allocation14 + $0x298] sm:$0xff]
    %v1105 = vld [vmem:[#allocation14 + $0x2a0] sm:$0xff]
    %v1106 = vld [vmem:[#allocation14 + $0x2a8] sm:$0xff]
    %v1107 = vld [vmem:[#allocation14 + $0x2b0] sm:$0xff]
    %v1108 = vld [vmem:[#allocation14 + $0x2b8] sm:$0xff]
    %v1109 = vld [vmem:[#allocation14 + $0x2c0] sm:$0xff]
    %v1110 = vld [vmem:[#allocation14 + $0x2c8] sm:$0xff]
    %v1111 = vld [vmem:[#allocation14 + $0x2d0] sm:$0xff]
    %v1112 = vld [vmem:[#allocation14 + $0x2d8] sm:$0xff]
    %v1113 = vld [vmem:[#allocation14 + $0x2e0] sm:$0xff]
    %v1114 = vld [vmem:[#allocation14 + $0x2e8] sm:$0xff]
    %v1115 = vld [vmem:[#allocation14 + $0x2f0] sm:$0xff]
    %v1116 = vld [vmem:[#allocation14 + $0x2f8] sm:$0xff]
    %v1117 = vld [vmem:[#allocation17] ss:$2 sm:$0x3f]
    %v1119 = vlaneseq
    %v1120 = vshrl.u32 %v1119, 7
    %v1121 = vsub.s32 0, %v1120
    %v1122 = vrot.slane %v1117, %v1121
    %v1123 = vlaneseq
    %v1124 = vshrl.u32 %v1123, 7
    %v1125 = vsub.s32 1, %v1124
    %v1126 = vrot.slane %v1117, %v1125
    %v1127 = vlaneseq
    %v1128 = vshrl.u32 %v1127, 7
    %v1129 = vsub.s32 2, %v1128
    %v1130 = vrot.slane %v1117, %v1129
    %v1131 = vlaneseq
    %v1132 = vshrl.u32 %v1131, 7
    %v1133 = vsub.s32 3, %v1132
    %v1134 = vrot.slane %v1117, %v1133
    %v1135 = vlaneseq
    %v1136 = vshrl.u32 %v1135, 7
    %v1137 = vsub.s32 4, %v1136
    %v1138 = vrot.slane %v1117, %v1137
    %v1139 = vlaneseq
    %v1140 = vshrl.u32 %v1139, 7
    %v1141 = vsub.s32 5, %v1140
    %v1142 = vrot.slane %v1117, %v1141
    %v1245 = vunpack.c.l.b16 %v1021
    %v1246 = vunpack.c.h.b16 %v1021
    %v1247 = vunpack.c.l.b16 %v1022
    %v1248 = vunpack.c.h.b16 %v1022
    %v1249 = vunpack.c.l.b16 %v1023
    %v1250 = vunpack.c.h.b16 %v1023
    %v1251 = vunpack.c.l.b16 %v1024
    %v1252 = vunpack.c.h.b16 %v1024
    %v1253 = vunpack.c.l.b16 %v1025
    %v1254 = vunpack.c.h.b16 %v1025
    %v1255 = vunpack.c.l.b16 %v1026
    %v1256 = vunpack.c.h.b16 %v1026
    %v1257 = vunpack.c.l.b16 %v1027
    %v1258 = vunpack.c.h.b16 %v1027
    %v1259 = vunpack.c.l.b16 %v1028
    %v1260 = vunpack.c.h.b16 %v1028
    %v1261 = vunpack.c.l.b16 %v1029
    %v1262 = vunpack.c.h.b16 %v1029
    %v1263 = vunpack.c.l.b16 %v1030
    %v1264 = vunpack.c.h.b16 %v1030
    %v1265 = vunpack.c.l.b16 %v1031
    %v1266 = vunpack.c.h.b16 %v1031
    %v1267 = vunpack.c.l.b16 %v1032
    %v1268 = vunpack.c.h.b16 %v1032
    %v1269 = vunpack.c.l.b16 %v1033
    %v1270 = vunpack.c.h.b16 %v1033
    %v1271 = vunpack.c.l.b16 %v1034
    %v1272 = vunpack.c.h.b16 %v1034
    %v1273 = vunpack.c.l.b16 %v1035
    %v1274 = vunpack.c.h.b16 %v1035
    %v1275 = vunpack.c.l.b16 %v1036
    %v1276 = vunpack.c.h.b16 %v1036
    %v1277 = vunpack.c.l.b16 %v1037
    %v1278 = vunpack.c.h.b16 %v1037
    %v1279 = vunpack.c.l.b16 %v1038
    %v1280 = vunpack.c.h.b16 %v1038
    %v1281 = vunpack.c.l.b16 %v1039
    %v1282 = vunpack.c.h.b16 %v1039
    %v1283 = vunpack.c.l.b16 %v1040
    %v1284 = vunpack.c.h.b16 %v1040
    %v1285 = vunpack.c.l.b16 %v1041
    %v1286 = vunpack.c.h.b16 %v1041
    %v1287 = vunpack.c.l.b16 %v1042
    %v1288 = vunpack.c.h.b16 %v1042
    %v1289 = vunpack.c.l.b16 %v1043
    %v1290 = vunpack.c.h.b16 %v1043
    %v1291 = vunpack.c.l.b16 %v1044
    %v1292 = vunpack.c.h.b16 %v1044
    %v1293 = vunpack.c.l.b16 %v1045
    %v1294 = vunpack.c.h.b16 %v1045
    %v1295 = vunpack.c.l.b16 %v1046
    %v1296 = vunpack.c.h.b16 %v1046
    %v1297 = vunpack.c.l.b16 %v1047
    %v1298 = vunpack.c.h.b16 %v1047
    %v1299 = vunpack.c.l.b16 %v1048
    %v1300 = vunpack.c.h.b16 %v1048
    %v1301 = vunpack.c.l.b16 %v1049
    %v1302 = vunpack.c.h.b16 %v1049
    %v1303 = vunpack.c.l.b16 %v1050
    %v1304 = vunpack.c.h.b16 %v1050
    %v1305 = vunpack.c.l.b16 %v1051
    %v1306 = vunpack.c.h.b16 %v1051
    %v1307 = vunpack.c.l.b16 %v1052
    %v1308 = vunpack.c.h.b16 %v1052
    %v1309 = vunpack.c.l.b16 %v1053
    %v1310 = vunpack.c.h.b16 %v1053
    %v1311 = vunpack.c.l.b16 %v1054
    %v1312 = vunpack.c.h.b16 %v1054
    %v1313 = vunpack.c.l.b16 %v1055
    %v1314 = vunpack.c.h.b16 %v1055
    %v1315 = vunpack.c.l.b16 %v1056
    %v1316 = vunpack.c.h.b16 %v1056
    %v1317 = vunpack.c.l.b16 %v1057
    %v1318 = vunpack.c.h.b16 %v1057
    %v1319 = vunpack.c.l.b16 %v1058
    %v1320 = vunpack.c.h.b16 %v1058
    %v1321 = vunpack.c.l.b16 %v1059
    %v1322 = vunpack.c.h.b16 %v1059
    %v1323 = vunpack.c.l.b16 %v1060
    %v1324 = vunpack.c.h.b16 %v1060
    %v1325 = vunpack.c.l.b16 %v1061
    %v1326 = vunpack.c.h.b16 %v1061
    %v1327 = vunpack.c.l.b16 %v1062
    %v1328 = vunpack.c.h.b16 %v1062
    %v1329 = vunpack.c.l.b16 %v1063
    %v1330 = vunpack.c.h.b16 %v1063
    %v1331 = vunpack.c.l.b16 %v1064
    %v1332 = vunpack.c.h.b16 %v1064
    %v1333 = vunpack.c.l.b16 %v1065
    %v1334 = vunpack.c.h.b16 %v1065
    %v1335 = vunpack.c.l.b16 %v1066
    %v1336 = vunpack.c.h.b16 %v1066
    %v1337 = vunpack.c.l.b16 %v1067
    %v1338 = vunpack.c.h.b16 %v1067
    %v1339 = vunpack.c.l.b16 %v1068
    %v1340 = vunpack.c.h.b16 %v1068
    %v1341 = vunpack.c.l.b16 %v1069
    %v1342 = vunpack.c.h.b16 %v1069
    %v1343 = vunpack.c.l.b16 %v1070
    %v1344 = vunpack.c.h.b16 %v1070
    %v1345 = vunpack.c.l.b16 %v1071
    %v1346 = vunpack.c.h.b16 %v1071
    %v1347 = vunpack.c.l.b16 %v1072
    %v1348 = vunpack.c.h.b16 %v1072
    %v1349 = vunpack.c.l.b16 %v1073
    %v1350 = vunpack.c.h.b16 %v1073
    %v1351 = vunpack.c.l.b16 %v1074
    %v1352 = vunpack.c.h.b16 %v1074
    %v1353 = vunpack.c.l.b16 %v1075
    %v1354 = vunpack.c.h.b16 %v1075
    %v1355 = vunpack.c.l.b16 %v1076
    %v1356 = vunpack.c.h.b16 %v1076
    %v1357 = vunpack.c.l.b16 %v1077
    %v1358 = vunpack.c.h.b16 %v1077
    %v1359 = vunpack.c.l.b16 %v1078
    %v1360 = vunpack.c.h.b16 %v1078
    %v1361 = vunpack.c.l.b16 %v1079
    %v1362 = vunpack.c.h.b16 %v1079
    %v1363 = vunpack.c.l.b16 %v1080
    %v1364 = vunpack.c.h.b16 %v1080
    %v1365 = vunpack.c.l.b16 %v1081
    %v1366 = vunpack.c.h.b16 %v1081
    %v1367 = vunpack.c.l.b16 %v1082
    %v1368 = vunpack.c.h.b16 %v1082
    %v1369 = vunpack.c.l.b16 %v1083
    %v1370 = vunpack.c.h.b16 %v1083
    %v1371 = vunpack.c.l.b16 %v1084
    %v1372 = vunpack.c.h.b16 %v1084
    %v1373 = vunpack.c.l.b16 %v1085
    %v1374 = vunpack.c.h.b16 %v1085
    %v1375 = vunpack.c.l.b16 %v1086
    %v1376 = vunpack.c.h.b16 %v1086
    %v1377 = vunpack.c.l.b16 %v1087
    %v1378 = vunpack.c.h.b16 %v1087
    %v1379 = vunpack.c.l.b16 %v1088
    %v1380 = vunpack.c.h.b16 %v1088
    %v1381 = vunpack.c.l.b16 %v1089
    %v1382 = vunpack.c.h.b16 %v1089
    %v1383 = vunpack.c.l.b16 %v1090
    %v1384 = vunpack.c.h.b16 %v1090
    %v1385 = vunpack.c.l.b16 %v1091
    %v1386 = vunpack.c.h.b16 %v1091
    %v1387 = vunpack.c.l.b16 %v1092
    %v1388 = vunpack.c.h.b16 %v1092
    %v1389 = vunpack.c.l.b16 %v1093
    %v1390 = vunpack.c.h.b16 %v1093
    %v1391 = vunpack.c.l.b16 %v1094
    %v1392 = vunpack.c.h.b16 %v1094
    %v1393 = vunpack.c.l.b16 %v1095
    %v1394 = vunpack.c.h.b16 %v1095
    %v1395 = vunpack.c.l.b16 %v1096
    %v1396 = vunpack.c.h.b16 %v1096
    %v1397 = vunpack.c.l.b16 %v1097
    %v1398 = vunpack.c.h.b16 %v1097
    %v1399 = vunpack.c.l.b16 %v1098
    %v1400 = vunpack.c.h.b16 %v1098
    %v1401 = vunpack.c.l.b16 %v1099
    %v1402 = vunpack.c.h.b16 %v1099
    %v1403 = vunpack.c.l.b16 %v1100
    %v1404 = vunpack.c.h.b16 %v1100
    %v1405 = vunpack.c.l.b16 %v1101
    %v1406 = vunpack.c.h.b16 %v1101
    %v1407 = vunpack.c.l.b16 %v1102
    %v1408 = vunpack.c.h.b16 %v1102
    %v1409 = vunpack.c.l.b16 %v1103
    %v1410 = vunpack.c.h.b16 %v1103
    %v1411 = vunpack.c.l.b16 %v1104
    %v1412 = vunpack.c.h.b16 %v1104
    %v1413 = vunpack.c.l.b16 %v1105
    %v1414 = vunpack.c.h.b16 %v1105
    %v1415 = vunpack.c.l.b16 %v1106
    %v1416 = vunpack.c.h.b16 %v1106
    %v1417 = vunpack.c.l.b16 %v1107
    %v1418 = vunpack.c.h.b16 %v1107
    %v1419 = vunpack.c.l.b16 %v1108
    %v1420 = vunpack.c.h.b16 %v1108
    %v1421 = vunpack.c.l.b16 %v1109
    %v1422 = vunpack.c.h.b16 %v1109
    %v1423 = vunpack.c.l.b16 %v1110
    %v1424 = vunpack.c.h.b16 %v1110
    %v1425 = vunpack.c.l.b16 %v1111
    %v1426 = vunpack.c.h.b16 %v1111
    %v1427 = vunpack.c.l.b16 %v1112
    %v1428 = vunpack.c.h.b16 %v1112
    %v1429 = vunpack.c.l.b16 %v1113
    %v1430 = vunpack.c.h.b16 %v1113
    %v1431 = vunpack.c.l.b16 %v1114
    %v1432 = vunpack.c.h.b16 %v1114
    %v1433 = vunpack.c.l.b16 %v1115
    %v1434 = vunpack.c.h.b16 %v1115
    %v1435 = vunpack.c.l.b16 %v1116
    %v1436 = vunpack.c.h.b16 %v1116
    %v1437 = vpack.c.b16 %v1251, %v1245
    %v1438 = vpack.c.b16 %v1252, %v1246
    %v1439 = vpack.c.b16 %v1253, %v1247
    %v1440 = vpack.c.b16 %v1254, %v1248
    %v1441 = vpack.c.b16 %v1255, %v1249
    %v1442 = vpack.c.b16 %v1256, %v1250
    %v1443 = vpack.c.b16 %v1263, %v1257
    %v1444 = vpack.c.b16 %v1264, %v1258
    %v1445 = vpack.c.b16 %v1265, %v1259
    %v1446 = vpack.c.b16 %v1266, %v1260
    %v1447 = vpack.c.b16 %v1267, %v1261
    %v1448 = vpack.c.b16 %v1268, %v1262
    %v1449 = vpack.c.b16 %v1275, %v1269
    %v1450 = vpack.c.b16 %v1276, %v1270
    %v1451 = vpack.c.b16 %v1277, %v1271
    %v1452 = vpack.c.b16 %v1278, %v1272
    %v1453 = vpack.c.b16 %v1279, %v1273
    %v1454 = vpack.c.b16 %v1280, %v1274
    %v1455 = vpack.c.b16 %v1287, %v1281
    %v1456 = vpack.c.b16 %v1288, %v1282
    %v1457 = vpack.c.b16 %v1289, %v1283
    %v1458 = vpack.c.b16 %v1290, %v1284
    %v1459 = vpack.c.b16 %v1291, %v1285
    %v1460 = vpack.c.b16 %v1292, %v1286
    %v1461 = vpack.c.b16 %v1299, %v1293
    %v1462 = vpack.c.b16 %v1300, %v1294
    %v1463 = vpack.c.b16 %v1301, %v1295
    %v1464 = vpack.c.b16 %v1302, %v1296
    %v1465 = vpack.c.b16 %v1303, %v1297
    %v1466 = vpack.c.b16 %v1304, %v1298
    %v1467 = vpack.c.b16 %v1311, %v1305
    %v1468 = vpack.c.b16 %v1312, %v1306
    %v1469 = vpack.c.b16 %v1313, %v1307
    %v1470 = vpack.c.b16 %v1314, %v1308
    %v1471 = vpack.c.b16 %v1315, %v1309
    %v1472 = vpack.c.b16 %v1316, %v1310
    %v1473 = vpack.c.b16 %v1323, %v1317
    %v1474 = vpack.c.b16 %v1324, %v1318
    %v1475 = vpack.c.b16 %v1325, %v1319
    %v1476 = vpack.c.b16 %v1326, %v1320
    %v1477 = vpack.c.b16 %v1327, %v1321
    %v1478 = vpack.c.b16 %v1328, %v1322
    %v1479 = vpack.c.b16 %v1335, %v1329
    %v1480 = vpack.c.b16 %v1336, %v1330
    %v1481 = vpack.c.b16 %v1337, %v1331
    %v1482 = vpack.c.b16 %v1338, %v1332
    %v1483 = vpack.c.b16 %v1339, %v1333
    %v1484 = vpack.c.b16 %v1340, %v1334
    %v1485 = vpack.c.b16 %v1347, %v1341
    %v1486 = vpack.c.b16 %v1348, %v1342
    %v1487 = vpack.c.b16 %v1349, %v1343
    %v1488 = vpack.c.b16 %v1350, %v1344
    %v1489 = vpack.c.b16 %v1351, %v1345
    %v1490 = vpack.c.b16 %v1352, %v1346
    %v1491 = vpack.c.b16 %v1359, %v1353
    %v1492 = vpack.c.b16 %v1360, %v1354
    %v1493 = vpack.c.b16 %v1361, %v1355
    %v1494 = vpack.c.b16 %v1362, %v1356
    %v1495 = vpack.c.b16 %v1363, %v1357
    %v1496 = vpack.c.b16 %v1364, %v1358
    %v1497 = vpack.c.b16 %v1371, %v1365
    %v1498 = vpack.c.b16 %v1372, %v1366
    %v1499 = vpack.c.b16 %v1373, %v1367
    %v1500 = vpack.c.b16 %v1374, %v1368
    %v1501 = vpack.c.b16 %v1375, %v1369
    %v1502 = vpack.c.b16 %v1376, %v1370
    %v1503 = vpack.c.b16 %v1383, %v1377
    %v1504 = vpack.c.b16 %v1384, %v1378
    %v1505 = vpack.c.b16 %v1385, %v1379
    %v1506 = vpack.c.b16 %v1386, %v1380
    %v1507 = vpack.c.b16 %v1387, %v1381
    %v1508 = vpack.c.b16 %v1388, %v1382
    %v1509 = vpack.c.b16 %v1395, %v1389
    %v1510 = vpack.c.b16 %v1396, %v1390
    %v1511 = vpack.c.b16 %v1397, %v1391
    %v1512 = vpack.c.b16 %v1398, %v1392
    %v1513 = vpack.c.b16 %v1399, %v1393
    %v1514 = vpack.c.b16 %v1400, %v1394
    %v1515 = vpack.c.b16 %v1407, %v1401
    %v1516 = vpack.c.b16 %v1408, %v1402
    %v1517 = vpack.c.b16 %v1409, %v1403
    %v1518 = vpack.c.b16 %v1410, %v1404
    %v1519 = vpack.c.b16 %v1411, %v1405
    %v1520 = vpack.c.b16 %v1412, %v1406
    %v1521 = vpack.c.b16 %v1419, %v1413
    %v1522 = vpack.c.b16 %v1420, %v1414
    %v1523 = vpack.c.b16 %v1421, %v1415
    %v1524 = vpack.c.b16 %v1422, %v1416
    %v1525 = vpack.c.b16 %v1423, %v1417
    %v1526 = vpack.c.b16 %v1424, %v1418
    %v1527 = vpack.c.b16 %v1431, %v1425
    %v1528 = vpack.c.b16 %v1432, %v1426
    %v1529 = vpack.c.b16 %v1433, %v1427
    %v1530 = vpack.c.b16 %v1434, %v1428
    %v1531 = vpack.c.b16 %v1435, %v1429
    %v1532 = vpack.c.b16 %v1436, %v1430
    %1629 = vmatprep.subr.bf16.mxu0 %v1438
    %1630 = vmatpush1.bf16.msra.mxu0 %v1437
    %1631 = vmatprep.subr.bf16.mxu0 %v1444
    %1632 = vmatpush1.bf16.msra.mxu0 %v1443
    %1633 = vmatprep.subr.bf16.mxu0 %v1450
    %1634 = vmatpush1.bf16.msra.mxu0 %v1449
    %1635 = vmatprep.subr.bf16.mxu0 %v1456
    %1636 = vmatpush1.bf16.msra.mxu0 %v1455
    %1637 = vmatprep.subr.bf16.mxu0 %v1462
    %1638 = vmatpush1.bf16.msra.mxu0 %v1461
    %1639 = vmatprep.subr.bf16.mxu0 %v1468
    %1640 = vmatpush1.bf16.msra.mxu0 %v1467
    %1641 = vmatprep.subr.bf16.mxu0 %v1474
    %1642 = vmatpush1.bf16.msra.mxu0 %v1473
    %1643 = vmatprep.subr.bf16.mxu0 %v1480
    %1644 = vmatpush1.bf16.msra.mxu0 %v1479
    %1645 = vmatprep.subr.bf16.mxu0 %v1486
    %1646 = vmatpush1.bf16.msra.mxu0 %v1485
    %1647 = vmatprep.subr.bf16.mxu0 %v1492
    %1648 = vmatpush1.bf16.msra.mxu0 %v1491
    %1649 = vmatprep.subr.bf16.mxu0 %v1498
    %1650 = vmatpush1.bf16.msra.mxu0 %v1497
    %1651 = vmatprep.subr.bf16.mxu0 %v1504
    %1652 = vmatpush1.bf16.msra.mxu0 %v1503
    %1653 = vmatprep.subr.bf16.mxu0 %v1510
    %1654 = vmatpush1.bf16.msra.mxu0 %v1509
    %1655 = vmatprep.subr.bf16.mxu0 %v1516
    %1656 = vmatpush1.bf16.msra.mxu0 %v1515
    %1657 = vmatprep.subr.bf16.mxu0 %v1522
    %1658 = vmatpush1.bf16.msra.mxu0 %v1521
    %1659 = vmatprep.subr.bf16.mxu0 %v1528
    %1660 = vmatpush1.bf16.msra.mxu0 %v1527
    %1661 = vmatprep.mubr.bf16.mxu0 %v1020
    %1662 = vmatmul.mubr.bf16.gmra.mrb[0].mxu0 %v1019
    %v1663 = vpop.f32.mrb[0].mxu0
    %v1664 = vadd.f32 %v1122, %v1663
    %v1665 = vpop.f32.mrb[0].mxu0
    %v1666 = vadd.f32 %v1126, %v1665
    %v1667 = vpop.f32.mrb[0].mxu0
    %v1668 = vadd.f32 %v1122, %v1667
    %v1669 = vpop.f32.mrb[0].mxu0
    %v1670 = vadd.f32 %v1126, %v1669
    %1671 = vdwg.mxu0
    %1672 = vmatprep.subr.bf16.mxu0 %v1440
    %1673 = vmatpush1.bf16.msra.mxu0 %v1439
    %1674 = vmatprep.subr.bf16.mxu0 %v1446
    %1675 = vmatpush1.bf16.msra.mxu0 %v1445
    %1676 = vmatprep.subr.bf16.mxu0 %v1452
    %1677 = vmatpush1.bf16.msra.mxu0 %v1451
    %1678 = vmatprep.subr.bf16.mxu0 %v1458
    %1679 = vmatpush1.bf16.msra.mxu0 %v1457
    %1680 = vmatprep.subr.bf16.mxu0 %v1464
    %1681 = vmatpush1.bf16.msra.mxu0 %v1463
    %1682 = vmatprep.subr.bf16.mxu0 %v1470
    %1683 = vmatpush1.bf16.msra.mxu0 %v1469
    %1684 = vmatprep.subr.bf16.mxu0 %v1476
    %1685 = vmatpush1.bf16.msra.mxu0 %v1475
    %1686 = vmatprep.subr.bf16.mxu0 %v1482
    %1687 = vmatpush1.bf16.msra.mxu0 %v1481
    %1688 = vmatprep.subr.bf16.mxu0 %v1488
    %1689 = vmatpush1.bf16.msra.mxu0 %v1487
    %1690 = vmatprep.subr.bf16.mxu0 %v1494
    %1691 = vmatpush1.bf16.msra.mxu0 %v1493
    %1692 = vmatprep.subr.bf16.mxu0 %v1500
    %1693 = vmatpush1.bf16.msra.mxu0 %v1499
    %1694 = vmatprep.subr.bf16.mxu0 %v1506
    %1695 = vmatpush1.bf16.msra.mxu0 %v1505
    %1696 = vmatprep.subr.bf16.mxu0 %v1512
    %1697 = vmatpush1.bf16.msra.mxu0 %v1511
    %1698 = vmatprep.subr.bf16.mxu0 %v1518
    %1699 = vmatpush1.bf16.msra.mxu0 %v1517
    %1700 = vmatprep.subr.bf16.mxu0 %v1524
    %1701 = vmatpush1.bf16.msra.mxu0 %v1523
    %1702 = vmatprep.subr.bf16.mxu0 %v1530
    %1703 = vmatpush1.bf16.msra.mxu0 %v1529
    %1704 = vmatprep.mubr.bf16.mxu0 %v1020
    %1705 = vmatmul.mubr.bf16.gmra.mrb[0].mxu0 %v1019
    %v1706 = vpop.f32.mrb[0].mxu0
    %v1707 = vadd.f32 %v1130, %v1706
    %v1708 = vpop.f32.mrb[0].mxu0
    %v1709 = vadd.f32 %v1134, %v1708
    %v1710 = vpop.f32.mrb[0].mxu0
    %v1711 = vadd.f32 %v1130, %v1710
    %v1712 = vpop.f32.mrb[0].mxu0
    %v1713 = vadd.f32 %v1134, %v1712
    %1714 = vdwg.mxu0
    %1715 = vmatprep.subr.bf16.mxu0 %v1442
    %1716 = vmatpush1.bf16.msra.mxu0 %v1441
    %1717 = vmatprep.subr.bf16.mxu0 %v1448
    %1718 = vmatpush1.bf16.msra.mxu0 %v1447
    %1719 = vmatprep.subr.bf16.mxu0 %v1454
    %1720 = vmatpush1.bf16.msra.mxu0 %v1453
    %1721 = vmatprep.subr.bf16.mxu0 %v1460
    %1722 = vmatpush1.bf16.msra.mxu0 %v1459
    %1723 = vmatprep.subr.bf16.mxu0 %v1466
    %1724 = vmatpush1.bf16.msra.mxu0 %v1465
    %1725 = vmatprep.subr.bf16.mxu0 %v1472
    %1726 = vmatpush1.bf16.msra.mxu0 %v1471
    %1727 = vmatprep.subr.bf16.mxu0 %v1478
    %1728 = vmatpush1.bf16.msra.mxu0 %v1477
    %1729 = vmatprep.subr.bf16.mxu0 %v1484
    %1730 = vmatpush1.bf16.msra.mxu0 %v1483
    %1731 = vmatprep.subr.bf16.mxu0 %v1490
    %1732 = vmatpush1.bf16.msra.mxu0 %v1489
    %1733 = vmatprep.subr.bf16.mxu0 %v1496
    %1734 = vmatpush1.bf16.msra.mxu0 %v1495
    %1735 = vmatprep.subr.bf16.mxu0 %v1502
    %1736 = vmatpush1.bf16.msra.mxu0 %v1501
    %1737 = vmatprep.subr.bf16.mxu0 %v1508
    %1738 = vmatpush1.bf16.msra.mxu0 %v1507
    %1739 = vmatprep.subr.bf16.mxu0 %v1514
    %1740 = vmatpush1.bf16.msra.mxu0 %v1513
    %1741 = vmatprep.subr.bf16.mxu0 %v1520
    %1742 = vmatpush1.bf16.msra.mxu0 %v1519
    %1743 = vmatprep.subr.bf16.mxu0 %v1526
    %1744 = vmatpush1.bf16.msra.mxu0 %v1525
    %1745 = vmatprep.subr.bf16.mxu0 %v1532
    %1746 = vmatpush1.bf16.msra.mxu0 %v1531
    %1747 = vmatprep.mubr.bf16.mxu0 %v1020
    %1748 = vmatmul.mubr.bf16.gmra.mrb[0].mxu0 %v1019
    %v1749 = vpop.f32.mrb[0].mxu0
    %v1750 = vadd.f32 %v1138, %v1749
    %v1751 = vpop.f32.mrb[0].mxu0
    %v1752 = vadd.f32 %v1142, %v1751
    %v1753 = vpop.f32.mrb[0].mxu0
    %v1754 = vadd.f32 %v1138, %v1753
    %v1755 = vpop.f32.mrb[0].mxu0
    %v1756 = vadd.f32 %v1142, %v1755
    %1757 = vdwg.mxu0
    %1758 = vst [vmem:[#allocation3] sm:$0xff] %v1664
    %1759 = vst [vmem:[#allocation3 + $0x8] sm:$0xff] %v1666
    %1760 = vst [vmem:[#allocation3 + $0x10] sm:$0xff] %v1707
    %1761 = vst [vmem:[#allocation3 + $0x18] sm:$0xff] %v1709
    %1762 = vst [vmem:[#allocation3 + $0x20] sm:$0xff] %v1750
    %1763 = vst [vmem:[#allocation3 + $0x28] sm:$0xff] %v1752
    %1764 = vst [vmem:[#allocation3 + $0x30] sm:$0xff] %v1668
    %1765 = vst [vmem:[#allocation3 + $0x38] sm:$0xff] %v1670
    %1766 = vst [vmem:[#allocation3 + $0x40] sm:$0xff] %v1711
    %1767 = vst [vmem:[#allocation3 + $0x48] sm:$0xff] %v1713
    %1768 = vst [vmem:[#allocation3 + $0x50] sm:$0xff] %v1754
    %1769 = vst [vmem:[#allocation3 + $0x58] sm:$0xff] %v1756
    %v1770 = vld [vmem:[#allocation16] sm:$0xff]
    %v1771 = vld [vmem:[#allocation16 + $0x8] sm:$0xff]
    %v1772 = vld [vmem:[#allocation16 + $0x10] sm:$0xff]
    %v1773 = vld [vmem:[#allocation16 + $0x18] sm:$0xff]
    %v1774 = vld [vmem:[#allocation16 + $0x20] sm:$0xff]
    %v1775 = vld [vmem:[#allocation16 + $0x28] sm:$0xff]
    %v1776 = vld [vmem:[#allocation16 + $0x30] sm:$0xff]
    %v1777 = vld [vmem:[#allocation16 + $0x38] sm:$0xff]
    %v1778 = vld [vmem:[#allocation16 + $0x40] sm:$0xff]
    %v1779 = vld [vmem:[#allocation16 + $0x48] sm:$0xff]
    %v1780 = vld [vmem:[#allocation16 + $0x50] sm:$0xff]
    %v1781 = vld [vmem:[#allocation16 + $0x58] sm:$0xff]
    %v1782 = vld [vmem:[#allocation16 + $0x60] sm:$0xff]
    %v1783 = vld [vmem:[#allocation16 + $0x68] sm:$0xff]
    %v1784 = vld [vmem:[#allocation16 + $0x70] sm:$0xff]
    %v1785 = vld [vmem:[#allocation16 + $0x78] sm:$0xff]
    %v1786 = vld [vmem:[#allocation16 + $0x80] sm:$0xff]
    %v1787 = vld [vmem:[#allocation16 + $0x88] sm:$0xff]
    %v1788 = vld [vmem:[#allocation16 + $0x90] sm:$0xff]
    %v1789 = vld [vmem:[#allocation16 + $0x98] sm:$0xff]
    %v1790 = vld [vmem:[#allocation16 + $0xa0] sm:$0xff]
    %v1791 = vld [vmem:[#allocation16 + $0xa8] sm:$0xff]
    %v1792 = vld [vmem:[#allocation16 + $0xb0] sm:$0xff]
    %v1793 = vld [vmem:[#allocation16 + $0xb8] sm:$0xff]
    %v1794 = vld [vmem:[#allocation16 + $0xc0] sm:$0xff]
    %v1795 = vld [vmem:[#allocation16 + $0xc8] sm:$0xff]
    %v1796 = vld [vmem:[#allocation16 + $0xd0] sm:$0xff]
    %v1797 = vld [vmem:[#allocation16 + $0xd8] sm:$0xff]
    %v1798 = vld [vmem:[#allocation16 + $0xe0] sm:$0xff]
    %v1799 = vld [vmem:[#allocation16 + $0xe8] sm:$0xff]
    %v1800 = vld [vmem:[#allocation16 + $0xf0] sm:$0xff]
    %v1801 = vld [vmem:[#allocation16 + $0xf8] sm:$0xff]
    %v1802 = vld [vmem:[#allocation16 + $0x100] sm:$0xff]
    %v1803 = vld [vmem:[#allocation16 + $0x108] sm:$0xff]
    %v1804 = vld [vmem:[#allocation16 + $0x110] sm:$0xff]
    %v1805 = vld [vmem:[#allocation16 + $0x118] sm:$0xff]
    %v1806 = vld [vmem:[#allocation16 + $0x120] sm:$0xff]
    %v1807 = vld [vmem:[#allocation16 + $0x128] sm:$0xff]
    %v1808 = vld [vmem:[#allocation16 + $0x130] sm:$0xff]
    %v1809 = vld [vmem:[#allocation16 + $0x138] sm:$0xff]
    %v1810 = vld [vmem:[#allocation16 + $0x140] sm:$0xff]
    %v1811 = vld [vmem:[#allocation16 + $0x148] sm:$0xff]
    %v1812 = vld [vmem:[#allocation16 + $0x150] sm:$0xff]
    %v1813 = vld [vmem:[#allocation16 + $0x158] sm:$0xff]
    %v1814 = vld [vmem:[#allocation16 + $0x160] sm:$0xff]
    %v1815 = vld [vmem:[#allocation16 + $0x168] sm:$0xff]
    %v1816 = vld [vmem:[#allocation16 + $0x170] sm:$0xff]
    %v1817 = vld [vmem:[#allocation16 + $0x178] sm:$0xff]
    %v1818 = vld [vmem:[#allocation16 + $0x180] sm:$0xff]
    %v1819 = vld [vmem:[#allocation16 + $0x188] sm:$0xff]
    %v1820 = vld [vmem:[#allocation16 + $0x190] sm:$0xff]
    %v1821 = vld [vmem:[#allocation16 + $0x198] sm:$0xff]
    %v1822 = vld [vmem:[#allocation16 + $0x1a0] sm:$0xff]
    %v1823 = vld [vmem:[#allocation16 + $0x1a8] sm:$0xff]
    %v1824 = vld [vmem:[#allocation16 + $0x1b0] sm:$0xff]
    %v1825 = vld [vmem:[#allocation16 + $0x1b8] sm:$0xff]
    %v1826 = vld [vmem:[#allocation16 + $0x1c0] sm:$0xff]
    %v1827 = vld [vmem:[#allocation16 + $0x1c8] sm:$0xff]
    %v1828 = vld [vmem:[#allocation16 + $0x1d0] sm:$0xff]
    %v1829 = vld [vmem:[#allocation16 + $0x1d8] sm:$0xff]
    %v1830 = vld [vmem:[#allocation16 + $0x1e0] sm:$0xff]
    %v1831 = vld [vmem:[#allocation16 + $0x1e8] sm:$0xff]
    %v1832 = vld [vmem:[#allocation16 + $0x1f0] sm:$0xff]
    %v1833 = vld [vmem:[#allocation16 + $0x1f8] sm:$0xff]
    %v1834 = vld [vmem:[#allocation16 + $0x200] sm:$0xff]
    %v1835 = vld [vmem:[#allocation16 + $0x208] sm:$0xff]
    %v1836 = vld [vmem:[#allocation16 + $0x210] sm:$0xff]
    %v1837 = vld [vmem:[#allocation16 + $0x218] sm:$0xff]
    %v1838 = vld [vmem:[#allocation16 + $0x220] sm:$0xff]
    %v1839 = vld [vmem:[#allocation16 + $0x228] sm:$0xff]
    %v1840 = vld [vmem:[#allocation16 + $0x230] sm:$0xff]
    %v1841 = vld [vmem:[#allocation16 + $0x238] sm:$0xff]
    %v1842 = vld [vmem:[#allocation16 + $0x240] sm:$0xff]
    %v1843 = vld [vmem:[#allocation16 + $0x248] sm:$0xff]
    %v1844 = vld [vmem:[#allocation16 + $0x250] sm:$0xff]
    %v1845 = vld [vmem:[#allocation16 + $0x258] sm:$0xff]
    %v1846 = vld [vmem:[#allocation16 + $0x260] sm:$0xff]
    %v1847 = vld [vmem:[#allocation16 + $0x268] sm:$0xff]
    %v1848 = vld [vmem:[#allocation16 + $0x270] sm:$0xff]
    %v1849 = vld [vmem:[#allocation16 + $0x278] sm:$0xff]
    %v1850 = vld [vmem:[#allocation16 + $0x280] sm:$0xff]
    %v1851 = vld [vmem:[#allocation16 + $0x288] sm:$0xff]
    %v1852 = vld [vmem:[#allocation16 + $0x290] sm:$0xff]
    %v1853 = vld [vmem:[#allocation16 + $0x298] sm:$0xff]
    %v1854 = vld [vmem:[#allocation16 + $0x2a0] sm:$0xff]
    %v1855 = vld [vmem:[#allocation16 + $0x2a8] sm:$0xff]
    %v1856 = vld [vmem:[#allocation16 + $0x2b0] sm:$0xff]
    %v1857 = vld [vmem:[#allocation16 + $0x2b8] sm:$0xff]
    %v1858 = vld [vmem:[#allocation16 + $0x2c0] sm:$0xff]
    %v1859 = vld [vmem:[#allocation16 + $0x2c8] sm:$0xff]
    %v1860 = vld [vmem:[#allocation16 + $0x2d0] sm:$0xff]
    %v1861 = vld [vmem:[#allocation16 + $0x2d8] sm:$0xff]
    %v1862 = vld [vmem:[#allocation16 + $0x2e0] sm:$0xff]
    %v1863 = vld [vmem:[#allocation16 + $0x2e8] sm:$0xff]
    %v1864 = vld [vmem:[#allocation16 + $0x2f0] sm:$0xff]
    %v1865 = vld [vmem:[#allocation16 + $0x2f8] sm:$0xff]
    %s1866 = scalar_lea.vmem [#allocation17], 1
    %v1867 = vld [vmem:[%s1866] ss:$2 sm:$0x3f]
    %v1868 = vld [vmem:[#allocation3] sm:$0x3]
    %v1869 = vld [vmem:[#allocation3 + $0x8] sm:$0x3]
    %v1870 = vld [vmem:[#allocation3 + $0x10] sm:$0x3]
    %v1871 = vld [vmem:[#allocation3 + $0x18] sm:$0x3]
    %v1872 = vld [vmem:[#allocation3 + $0x20] sm:$0x3]
    %v1873 = vld [vmem:[#allocation3 + $0x28] sm:$0x3]
    %v1874 = vpack.c.bf16 %v1017, %v1017
    %v1875 = vpack.c.bf16 %v1018, %v1018
    %v1877 = vlaneseq
    %v1878 = vshrl.u32 %v1877, 7
    %v1879 = vsub.s32 0, %v1878
    %v1880 = vrot.slane %v1867, %v1879
    %v1881 = vlaneseq
    %v1882 = vshrl.u32 %v1881, 7
    %v1883 = vsub.s32 1, %v1882
    %v1884 = vrot.slane %v1867, %v1883
    %v1885 = vlaneseq
    %v1886 = vshrl.u32 %v1885, 7
    %v1887 = vsub.s32 2, %v1886
    %v1888 = vrot.slane %v1867, %v1887
    %v1889 = vlaneseq
    %v1890 = vshrl.u32 %v1889, 7
    %v1891 = vsub.s32 3, %v1890
    %v1892 = vrot.slane %v1867, %v1891
    %v1893 = vlaneseq
    %v1894 = vshrl.u32 %v1893, 7
    %v1895 = vsub.s32 4, %v1894
    %v1896 = vrot.slane %v1867, %v1895
    %v1897 = vlaneseq
    %v1898 = vshrl.u32 %v1897, 7
    %v1899 = vsub.s32 5, %v1898
    %v1900 = vrot.slane %v1867, %v1899
    %v2003 = vunpack.c.l.b16 %v1770
    %v2004 = vunpack.c.h.b16 %v1770
    %v2005 = vunpack.c.l.b16 %v1771
    %v2006 = vunpack.c.h.b16 %v1771
    %v2007 = vunpack.c.l.b16 %v1772
    %v2008 = vunpack.c.h.b16 %v1772
    %v2009 = vunpack.c.l.b16 %v1773
    %v2010 = vunpack.c.h.b16 %v1773
    %v2011 = vunpack.c.l.b16 %v1774
    %v2012 = vunpack.c.h.b16 %v1774
    %v2013 = vunpack.c.l.b16 %v1775
    %v2014 = vunpack.c.h.b16 %v1775
    %v2015 = vunpack.c.l.b16 %v1776
    %v2016 = vunpack.c.h.b16 %v1776
    %v2017 = vunpack.c.l.b16 %v1777
    %v2018 = vunpack.c.h.b16 %v1777
    %v2019 = vunpack.c.l.b16 %v1778
    %v2020 = vunpack.c.h.b16 %v1778
    %v2021 = vunpack.c.l.b16 %v1779
    %v2022 = vunpack.c.h.b16 %v1779
    %v2023 = vunpack.c.l.b16 %v1780
    %v2024 = vunpack.c.h.b16 %v1780
    %v2025 = vunpack.c.l.b16 %v1781
    %v2026 = vunpack.c.h.b16 %v1781
    %v2027 = vunpack.c.l.b16 %v1782
    %v2028 = vunpack.c.h.b16 %v1782
    %v2029 = vunpack.c.l.b16 %v1783
    %v2030 = vunpack.c.h.b16 %v1783
    %v2031 = vunpack.c.l.b16 %v1784
    %v2032 = vunpack.c.h.b16 %v1784
    %v2033 = vunpack.c.l.b16 %v1785
    %v2034 = vunpack.c.h.b16 %v1785
    %v2035 = vunpack.c.l.b16 %v1786
    %v2036 = vunpack.c.h.b16 %v1786
    %v2037 = vunpack.c.l.b16 %v1787
    %v2038 = vunpack.c.h.b16 %v1787
    %v2039 = vunpack.c.l.b16 %v1788
    %v2040 = vunpack.c.h.b16 %v1788
    %v2041 = vunpack.c.l.b16 %v1789
    %v2042 = vunpack.c.h.b16 %v1789
    %v2043 = vunpack.c.l.b16 %v1790
    %v2044 = vunpack.c.h.b16 %v1790
    %v2045 = vunpack.c.l.b16 %v1791
    %v2046 = vunpack.c.h.b16 %v1791
    %v2047 = vunpack.c.l.b16 %v1792
    %v2048 = vunpack.c.h.b16 %v1792
    %v2049 = vunpack.c.l.b16 %v1793
    %v2050 = vunpack.c.h.b16 %v1793
    %v2051 = vunpack.c.l.b16 %v1794
    %v2052 = vunpack.c.h.b16 %v1794
    %v2053 = vunpack.c.l.b16 %v1795
    %v2054 = vunpack.c.h.b16 %v1795
    %v2055 = vunpack.c.l.b16 %v1796
    %v2056 = vunpack.c.h.b16 %v1796
    %v2057 = vunpack.c.l.b16 %v1797
    %v2058 = vunpack.c.h.b16 %v1797
    %v2059 = vunpack.c.l.b16 %v1798
    %v2060 = vunpack.c.h.b16 %v1798
    %v2061 = vunpack.c.l.b16 %v1799
    %v2062 = vunpack.c.h.b16 %v1799
    %v2063 = vunpack.c.l.b16 %v1800
    %v2064 = vunpack.c.h.b16 %v1800
    %v2065 = vunpack.c.l.b16 %v1801
    %v2066 = vunpack.c.h.b16 %v1801
    %v2067 = vunpack.c.l.b16 %v1802
    %v2068 = vunpack.c.h.b16 %v1802
    %v2069 = vunpack.c.l.b16 %v1803
    %v2070 = vunpack.c.h.b16 %v1803
    %v2071 = vunpack.c.l.b16 %v1804
    %v2072 = vunpack.c.h.b16 %v1804
    %v2073 = vunpack.c.l.b16 %v1805
    %v2074 = vunpack.c.h.b16 %v1805
    %v2075 = vunpack.c.l.b16 %v1806
    %v2076 = vunpack.c.h.b16 %v1806
    %v2077 = vunpack.c.l.b16 %v1807
    %v2078 = vunpack.c.h.b16 %v1807
    %v2079 = vunpack.c.l.b16 %v1808
    %v2080 = vunpack.c.h.b16 %v1808
    %v2081 = vunpack.c.l.b16 %v1809
    %v2082 = vunpack.c.h.b16 %v1809
    %v2083 = vunpack.c.l.b16 %v1810
    %v2084 = vunpack.c.h.b16 %v1810
    %v2085 = vunpack.c.l.b16 %v1811
    %v2086 = vunpack.c.h.b16 %v1811
    %v2087 = vunpack.c.l.b16 %v1812
    %v2088 = vunpack.c.h.b16 %v1812
    %v2089 = vunpack.c.l.b16 %v1813
    %v2090 = vunpack.c.h.b16 %v1813
    %v2091 = vunpack.c.l.b16 %v1814
    %v2092 = vunpack.c.h.b16 %v1814
    %v2093 = vunpack.c.l.b16 %v1815
    %v2094 = vunpack.c.h.b16 %v1815
    %v2095 = vunpack.c.l.b16 %v1816
    %v2096 = vunpack.c.h.b16 %v1816
    %v2097 = vunpack.c.l.b16 %v1817
    %v2098 = vunpack.c.h.b16 %v1817
    %v2099 = vunpack.c.l.b16 %v1818
    %v2100 = vunpack.c.h.b16 %v1818
    %v2101 = vunpack.c.l.b16 %v1819
    %v2102 = vunpack.c.h.b16 %v1819
    %v2103 = vunpack.c.l.b16 %v1820
    %v2104 = vunpack.c.h.b16 %v1820
    %v2105 = vunpack.c.l.b16 %v1821
    %v2106 = vunpack.c.h.b16 %v1821
    %v2107 = vunpack.c.l.b16 %v1822
    %v2108 = vunpack.c.h.b16 %v1822
    %v2109 = vunpack.c.l.b16 %v1823
    %v2110 = vunpack.c.h.b16 %v1823
    %v2111 = vunpack.c.l.b16 %v1824
    %v2112 = vunpack.c.h.b16 %v1824
    %v2113 = vunpack.c.l.b16 %v1825
    %v2114 = vunpack.c.h.b16 %v1825
    %v2115 = vunpack.c.l.b16 %v1826
    %v2116 = vunpack.c.h.b16 %v1826
    %v2117 = vunpack.c.l.b16 %v1827
    %v2118 = vunpack.c.h.b16 %v1827
    %v2119 = vunpack.c.l.b16 %v1828
    %v2120 = vunpack.c.h.b16 %v1828
    %v2121 = vunpack.c.l.b16 %v1829
    %v2122 = vunpack.c.h.b16 %v1829
    %v2123 = vunpack.c.l.b16 %v1830
    %v2124 = vunpack.c.h.b16 %v1830
    %v2125 = vunpack.c.l.b16 %v1831
    %v2126 = vunpack.c.h.b16 %v1831
    %v2127 = vunpack.c.l.b16 %v1832
    %v2128 = vunpack.c.h.b16 %v1832
    %v2129 = vunpack.c.l.b16 %v1833
    %v2130 = vunpack.c.h.b16 %v1833
    %v2131 = vunpack.c.l.b16 %v1834
    %v2132 = vunpack.c.h.b16 %v1834
    %v2133 = vunpack.c.l.b16 %v1835
    %v2134 = vunpack.c.h.b16 %v1835
    %v2135 = vunpack.c.l.b16 %v1836
    %v2136 = vunpack.c.h.b16 %v1836
    %v2137 = vunpack.c.l.b16 %v1837
    %v2138 = vunpack.c.h.b16 %v1837
    %v2139 = vunpack.c.l.b16 %v1838
    %v2140 = vunpack.c.h.b16 %v1838
    %v2141 = vunpack.c.l.b16 %v1839
    %v2142 = vunpack.c.h.b16 %v1839
    %v2143 = vunpack.c.l.b16 %v1840
    %v2144 = vunpack.c.h.b16 %v1840
    %v2145 = vunpack.c.l.b16 %v1841
    %v2146 = vunpack.c.h.b16 %v1841
    %v2147 = vunpack.c.l.b16 %v1842
    %v2148 = vunpack.c.h.b16 %v1842
    %v2149 = vunpack.c.l.b16 %v1843
    %v2150 = vunpack.c.h.b16 %v1843
    %v2151 = vunpack.c.l.b16 %v1844
    %v2152 = vunpack.c.h.b16 %v1844
    %v2153 = vunpack.c.l.b16 %v1845
    %v2154 = vunpack.c.h.b16 %v1845
    %v2155 = vunpack.c.l.b16 %v1846
    %v2156 = vunpack.c.h.b16 %v1846
    %v2157 = vunpack.c.l.b16 %v1847
    %v2158 = vunpack.c.h.b16 %v1847
    %v2159 = vunpack.c.l.b16 %v1848
    %v2160 = vunpack.c.h.b16 %v1848
    %v2161 = vunpack.c.l.b16 %v1849
    %v2162 = vunpack.c.h.b16 %v1849
    %v2163 = vunpack.c.l.b16 %v1850
    %v2164 = vunpack.c.h.b16 %v1850
    %v2165 = vunpack.c.l.b16 %v1851
    %v2166 = vunpack.c.h.b16 %v1851
    %v2167 = vunpack.c.l.b16 %v1852
    %v2168 = vunpack.c.h.b16 %v1852
    %v2169 = vunpack.c.l.b16 %v1853
    %v2170 = vunpack.c.h.b16 %v1853
    %v2171 = vunpack.c.l.b16 %v1854
    %v2172 = vunpack.c.h.b16 %v1854
    %v2173 = vunpack.c.l.b16 %v1855
    %v2174 = vunpack.c.h.b16 %v1855
    %v2175 = vunpack.c.l.b16 %v1856
    %v2176 = vunpack.c.h.b16 %v1856
    %v2177 = vunpack.c.l.b16 %v1857
    %v2178 = vunpack.c.h.b16 %v1857
    %v2179 = vunpack.c.l.b16 %v1858
    %v2180 = vunpack.c.h.b16 %v1858
    %v2181 = vunpack.c.l.b16 %v1859
    %v2182 = vunpack.c.h.b16 %v1859
    %v2183 = vunpack.c.l.b16 %v1860
    %v2184 = vunpack.c.h.b16 %v1860
    %v2185 = vunpack.c.l.b16 %v1861
    %v2186 = vunpack.c.h.b16 %v1861
    %v2187 = vunpack.c.l.b16 %v1862
    %v2188 = vunpack.c.h.b16 %v1862
    %v2189 = vunpack.c.l.b16 %v1863
    %v2190 = vunpack.c.h.b16 %v1863
    %v2191 = vunpack.c.l.b16 %v1864
    %v2192 = vunpack.c.h.b16 %v1864
    %v2193 = vunpack.c.l.b16 %v1865
    %v2194 = vunpack.c.h.b16 %v1865
    %v2195 = vpack.c.b16 %v2009, %v2003
    %v2196 = vpack.c.b16 %v2010, %v2004
    %v2197 = vpack.c.b16 %v2011, %v2005
    %v2198 = vpack.c.b16 %v2012, %v2006
    %v2199 = vpack.c.b16 %v2013, %v2007
    %v2200 = vpack.c.b16 %v2014, %v2008
    %v2201 = vpack.c.b16 %v2021, %v2015
    %v2202 = vpack.c.b16 %v2022, %v2016
    %v2203 = vpack.c.b16 %v2023, %v2017
    %v2204 = vpack.c.b16 %v2024, %v2018
    %v2205 = vpack.c.b16 %v2025, %v2019
    %v2206 = vpack.c.b16 %v2026, %v2020
    %v2207 = vpack.c.b16 %v2033, %v2027
    %v2208 = vpack.c.b16 %v2034, %v2028
    %v2209 = vpack.c.b16 %v2035, %v2029
    %v2210 = vpack.c.b16 %v2036, %v2030
    %v2211 = vpack.c.b16 %v2037, %v2031
    %v2212 = vpack.c.b16 %v2038, %v2032
    %v2213 = vpack.c.b16 %v2045, %v2039
    %v2214 = vpack.c.b16 %v2046, %v2040
    %v2215 = vpack.c.b16 %v2047, %v2041
    %v2216 = vpack.c.b16 %v2048, %v2042
    %v2217 = vpack.c.b16 %v2049, %v2043
    %v2218 = vpack.c.b16 %v2050, %v2044
    %v2219 = vpack.c.b16 %v2057, %v2051
    %v2220 = vpack.c.b16 %v2058, %v2052
    %v2221 = vpack.c.b16 %v2059, %v2053
    %v2222 = vpack.c.b16 %v2060, %v2054
    %v2223 = vpack.c.b16 %v2061, %v2055
    %v2224 = vpack.c.b16 %v2062, %v2056
    %v2225 = vpack.c.b16 %v2069, %v2063
    %v2226 = vpack.c.b16 %v2070, %v2064
    %v2227 = vpack.c.b16 %v2071, %v2065
    %v2228 = vpack.c.b16 %v2072, %v2066
    %v2229 = vpack.c.b16 %v2073, %v2067
    %v2230 = vpack.c.b16 %v2074, %v2068
    %v2231 = vpack.c.b16 %v2081, %v2075
    %v2232 = vpack.c.b16 %v2082, %v2076
    %v2233 = vpack.c.b16 %v2083, %v2077
    %v2234 = vpack.c.b16 %v2084, %v2078
    %v2235 = vpack.c.b16 %v2085, %v2079
    %v2236 = vpack.c.b16 %v2086, %v2080
    %v2237 = vpack.c.b16 %v2093, %v2087
    %v2238 = vpack.c.b16 %v2094, %v2088
    %v2239 = vpack.c.b16 %v2095, %v2089
    %v2240 = vpack.c.b16 %v2096, %v2090
    %v2241 = vpack.c.b16 %v2097, %v2091
    %v2242 = vpack.c.b16 %v2098, %v2092
    %v2243 = vpack.c.b16 %v2105, %v2099
    %v2244 = vpack.c.b16 %v2106, %v2100
    %v2245 = vpack.c.b16 %v2107, %v2101
    %v2246 = vpack.c.b16 %v2108, %v2102
    %v2247 = vpack.c.b16 %v2109, %v2103
    %v2248 = vpack.c.b16 %v2110, %v2104
    %v2249 = vpack.c.b16 %v2117, %v2111
    %v2250 = vpack.c.b16 %v2118, %v2112
    %v2251 = vpack.c.b16 %v2119, %v2113
    %v2252 = vpack.c.b16 %v2120, %v2114
    %v2253 = vpack.c.b16 %v2121, %v2115
    %v2254 = vpack.c.b16 %v2122, %v2116
    %v2255 = vpack.c.b16 %v2129, %v2123
    %v2256 = vpack.c.b16 %v2130, %v2124
    %v2257 = vpack.c.b16 %v2131, %v2125
    %v2258 = vpack.c.b16 %v2132, %v2126
    %v2259 = vpack.c.b16 %v2133, %v2127
    %v2260 = vpack.c.b16 %v2134, %v2128
    %v2261 = vpack.c.b16 %v2141, %v2135
    %v2262 = vpack.c.b16 %v2142, %v2136
    %v2263 = vpack.c.b16 %v2143, %v2137
    %v2264 = vpack.c.b16 %v2144, %v2138
    %v2265 = vpack.c.b16 %v2145, %v2139
    %v2266 = vpack.c.b16 %v2146, %v2140
    %v2267 = vpack.c.b16 %v2153, %v2147
    %v2268 = vpack.c.b16 %v2154, %v2148
    %v2269 = vpack.c.b16 %v2155, %v2149
    %v2270 = vpack.c.b16 %v2156, %v2150
    %v2271 = vpack.c.b16 %v2157, %v2151
    %v2272 = vpack.c.b16 %v2158, %v2152
    %v2273 = vpack.c.b16 %v2165, %v2159
    %v2274 = vpack.c.b16 %v2166, %v2160
    %v2275 = vpack.c.b16 %v2167, %v2161
    %v2276 = vpack.c.b16 %v2168, %v2162
    %v2277 = vpack.c.b16 %v2169, %v2163
    %v2278 = vpack.c.b16 %v2170, %v2164
    %v2279 = vpack.c.b16 %v2177, %v2171
    %v2280 = vpack.c.b16 %v2178, %v2172
    %v2281 = vpack.c.b16 %v2179, %v2173
    %v2282 = vpack.c.b16 %v2180, %v2174
    %v2283 = vpack.c.b16 %v2181, %v2175
    %v2284 = vpack.c.b16 %v2182, %v2176
    %v2285 = vpack.c.b16 %v2189, %v2183
    %v2286 = vpack.c.b16 %v2190, %v2184
    %v2287 = vpack.c.b16 %v2191, %v2185
    %v2288 = vpack.c.b16 %v2192, %v2186
    %v2289 = vpack.c.b16 %v2193, %v2187
    %v2290 = vpack.c.b16 %v2194, %v2188
    %2387 = vmatprep.subr.bf16.mxu0 %v2196
    %2388 = vmatpush1.bf16.msra.mxu0 %v2195
    %2389 = vmatprep.subr.bf16.mxu0 %v2202
    %2390 = vmatpush1.bf16.msra.mxu0 %v2201
    %2391 = vmatprep.subr.bf16.mxu0 %v2208
    %2392 = vmatpush1.bf16.msra.mxu0 %v2207
    %2393 = vmatprep.subr.bf16.mxu0 %v2214
    %2394 = vmatpush1.bf16.msra.mxu0 %v2213
    %2395 = vmatprep.subr.bf16.mxu0 %v2220
    %2396 = vmatpush1.bf16.msra.mxu0 %v2219
    %2397 = vmatprep.subr.bf16.mxu0 %v2226
    %2398 = vmatpush1.bf16.msra.mxu0 %v2225
    %2399 = vmatprep.subr.bf16.mxu0 %v2232
    %2400 = vmatpush1.bf16.msra.mxu0 %v2231
    %2401 = vmatprep.subr.bf16.mxu0 %v2238
    %2402 = vmatpush1.bf16.msra.mxu0 %v2237
    %2403 = vmatprep.subr.bf16.mxu0 %v2244
    %2404 = vmatpush1.bf16.msra.mxu0 %v2243
    %2405 = vmatprep.subr.bf16.mxu0 %v2250
    %2406 = vmatpush1.bf16.msra.mxu0 %v2249
    %2407 = vmatprep.subr.bf16.mxu0 %v2256
    %2408 = vmatpush1.bf16.msra.mxu0 %v2255
    %2409 = vmatprep.subr.bf16.mxu0 %v2262
    %2410 = vmatpush1.bf16.msra.mxu0 %v2261
    %2411 = vmatprep.subr.bf16.mxu0 %v2268
    %2412 = vmatpush1.bf16.msra.mxu0 %v2267
    %2413 = vmatprep.subr.bf16.mxu0 %v2274
    %2414 = vmatpush1.bf16.msra.mxu0 %v2273
    %2415 = vmatprep.subr.bf16.mxu0 %v2280
    %2416 = vmatpush1.bf16.msra.mxu0 %v2279
    %2417 = vmatprep.subr.bf16.mxu0 %v2286
    %2418 = vmatpush1.bf16.msra.mxu0 %v2285
    %2419 = vmatprep.mubr.bf16.mxu0 %v1875
    %2420 = vmatmul.mubr.bf16.gmra.mrb[0].mxu0 %v1874
    %v2421 = vpop.f32.mrb[0].mxu0
    %v2422 = vadd.f32 %v1880, %v2421
    %v2423 = vpop.f32.mrb[0].mxu0
    %v2424 = vadd.f32 %v1884, %v2423
    %v2425 = vpop.f32.mrb[0].mxu0
    %v2426 = vpop.f32.mrb[0].mxu0
    %2427 = vdwg.mxu0
    %2428 = vmatprep.subr.bf16.mxu0 %v2198
    %2429 = vmatpush1.bf16.msra.mxu0 %v2197
    %2430 = vmatprep.subr.bf16.mxu0 %v2204
    %2431 = vmatpush1.bf16.msra.mxu0 %v2203
    %2432 = vmatprep.subr.bf16.mxu0 %v2210
    %2433 = vmatpush1.bf16.msra.mxu0 %v2209
    %2434 = vmatprep.subr.bf16.mxu0 %v2216
    %2435 = vmatpush1.bf16.msra.mxu0 %v2215
    %2436 = vmatprep.subr.bf16.mxu0 %v2222
    %2437 = vmatpush1.bf16.msra.mxu0 %v2221
    %2438 = vmatprep.subr.bf16.mxu0 %v2228
    %2439 = vmatpush1.bf16.msra.mxu0 %v2227
    %2440 = vmatprep.subr.bf16.mxu0 %v2234
    %2441 = vmatpush1.bf16.msra.mxu0 %v2233
    %2442 = vmatprep.subr.bf16.mxu0 %v2240
    %2443 = vmatpush1.bf16.msra.mxu0 %v2239
    %2444 = vmatprep.subr.bf16.mxu0 %v2246
    %2445 = vmatpush1.bf16.msra.mxu0 %v2245
    %2446 = vmatprep.subr.bf16.mxu0 %v2252
    %2447 = vmatpush1.bf16.msra.mxu0 %v2251
    %2448 = vmatprep.subr.bf16.mxu0 %v2258
    %2449 = vmatpush1.bf16.msra.mxu0 %v2257
    %2450 = vmatprep.subr.bf16.mxu0 %v2264
    %2451 = vmatpush1.bf16.msra.mxu0 %v2263
    %2452 = vmatprep.subr.bf16.mxu0 %v2270
    %2453 = vmatpush1.bf16.msra.mxu0 %v2269
    %2454 = vmatprep.subr.bf16.mxu0 %v2276
    %2455 = vmatpush1.bf16.msra.mxu0 %v2275
    %2456 = vmatprep.subr.bf16.mxu0 %v2282
    %2457 = vmatpush1.bf16.msra.mxu0 %v2281
    %2458 = vmatprep.subr.bf16.mxu0 %v2288
    %2459 = vmatpush1.bf16.msra.mxu0 %v2287
    %2460 = vmatprep.mubr.bf16.mxu0 %v1875
    %2461 = vmatmul.mubr.bf16.gmra.mrb[0].mxu0 %v1874
    %v2462 = vpop.f32.mrb[0].mxu0
    %v2463 = vadd.f32 %v1888, %v2462
    %v2464 = vpop.f32.mrb[0].mxu0
    %v2465 = vadd.f32 %v1892, %v2464
    %v2466 = vpop.f32.mrb[0].mxu0
    %v2467 = vpop.f32.mrb[0].mxu0
    %2468 = vdwg.mxu0
    %2469 = vmatprep.subr.bf16.mxu0 %v2200
    %2470 = vmatpush1.bf16.msra.mxu0 %v2199
    %2471 = vmatprep.subr.bf16.mxu0 %v2206
    %2472 = vmatpush1.bf16.msra.mxu0 %v2205
    %2473 = vmatprep.subr.bf16.mxu0 %v2212
    %2474 = vmatpush1.bf16.msra.mxu0 %v2211
    %2475 = vmatprep.subr.bf16.mxu0 %v2218
    %2476 = vmatpush1.bf16.msra.mxu0 %v2217
    %2477 = vmatprep.subr.bf16.mxu0 %v2224
    %2478 = vmatpush1.bf16.msra.mxu0 %v2223
    %2479 = vmatprep.subr.bf16.mxu0 %v2230
    %2480 = vmatpush1.bf16.msra.mxu0 %v2229
    %2481 = vmatprep.subr.bf16.mxu0 %v2236
    %2482 = vmatpush1.bf16.msra.mxu0 %v2235
    %2483 = vmatprep.subr.bf16.mxu0 %v2242
    %2484 = vmatpush1.bf16.msra.mxu0 %v2241
    %2485 = vmatprep.subr.bf16.mxu0 %v2248
    %2486 = vmatpush1.bf16.msra.mxu0 %v2247
    %2487 = vmatprep.subr.bf16.mxu0 %v2254
    %2488 = vmatpush1.bf16.msra.mxu0 %v2253
    %2489 = vmatprep.subr.bf16.mxu0 %v2260
    %2490 = vmatpush1.bf16.msra.mxu0 %v2259
    %2491 = vmatprep.subr.bf16.mxu0 %v2266
    %2492 = vmatpush1.bf16.msra.mxu0 %v2265
    %2493 = vmatprep.subr.bf16.mxu0 %v2272
    %2494 = vmatpush1.bf16.msra.mxu0 %v2271
    %2495 = vmatprep.subr.bf16.mxu0 %v2278
    %2496 = vmatpush1.bf16.msra.mxu0 %v2277
    %2497 = vmatprep.subr.bf16.mxu0 %v2284
    %2498 = vmatpush1.bf16.msra.mxu0 %v2283
    %2499 = vmatprep.subr.bf16.mxu0 %v2290
    %2500 = vmatpush1.bf16.msra.mxu0 %v2289
    %2501 = vmatprep.mubr.bf16.mxu0 %v1875
    %2502 = vmatmul.mubr.bf16.gmra.mrb[0].mxu0 %v1874
    %v2503 = vpop.f32.mrb[0].mxu0
    %v2504 = vadd.f32 %v1896, %v2503
    %v2505 = vpop.f32.mrb[0].mxu0
    %v2506 = vadd.f32 %v1900, %v2505
    %v2507 = vpop.f32.mrb[0].mxu0
    %v2508 = vpop.f32.mrb[0].mxu0
    %2509 = vdwg.mxu0
    %v2510 = vadd.f32 %v1868, %v2422
    %v2511 = vadd.f32 %v1869, %v2424
    %v2512 = vxor.u32 %v2510, 2147483648
    %v2513 = vxor.u32 %v2511, 2147483648
    %v2514 = vmul.f32 %v2512, 1.442695
    %v2515 = vpow.pop %v2514
    %v2516 = vmul.f32 %v2513, 1.442695
    %v2517 = vpow.pop %v2516
    %v2518 = vadd.f32 %v2515, 1.0
    %v2519 = vadd.f32 %v2517, 1.0
    %v2520 = vrcp.pop %v2518
    %v2521 = vmul.f32 1.0, %v2520
    %v2522 = vrcp.pop %v2519
    %v2523 = vmul.f32 1.0, %v2522
    %v2524 = vadd.f32 %v1870, %v2463
    %v2525 = vadd.f32 %v1871, %v2465
    %v2526 = vxor.u32 %v2524, 2147483648
    %v2527 = vxor.u32 %v2525, 2147483648
    %v2528 = vmul.f32 %v2526, 1.442695
    %v2529 = vpow.pop %v2528
    %v2530 = vmul.f32 %v2527, 1.442695
    %v2531 = vpow.pop %v2530
    %v2532 = vadd.f32 %v2529, 1.0
    %v2533 = vadd.f32 %v2531, 1.0
    %v2534 = vrcp.pop %v2532
    %v2535 = vmul.f32 1.0, %v2534
    %v2536 = vrcp.pop %v2533
    %v2537 = vmul.f32 1.0, %v2536
    %v2538 = vmul.f32 %v2521, %v2504
    %v2539 = vmul.f32 %v2523, %v2506
    %v2540 = vadd.f32 %v1872, %v2538
    %v2541 = vadd.f32 %v1873, %v2539
    %v2542 = vtanh.pop %v2540
    %v2543 = vtanh.pop %v2541
    %v2544 = vsub.f32 1.0, %v2535
    %v2545 = vsub.f32 1.0, %v2537
    %v2546 = vmul.f32 %v2544, %v2542
    %v2547 = vmul.f32 %v2545, %v2543
    %v2548 = vmul.f32 %v2535, %v1017
    %v2549 = vmul.f32 %v2537, %v1018
    %v2550 = vadd.f32 %v2546, %v2548
    %v2551 = vadd.f32 %v2547, %v2549
    %2552 = vst [vmem:[#allocation4] sm:$0x3] %v2550
    %2553 = vst [vmem:[#allocation4 + $0x8] sm:$0x3] %v2551
    %v2554 = vld [vmem:[#allocation3] sm:$0xc]
    %v2555 = vld [vmem:[#allocation3 + $0x8] sm:$0xc]
    %v2556 = vld [vmem:[#allocation3 + $0x10] sm:$0xc]
    %v2557 = vld [vmem:[#allocation3 + $0x18] sm:$0xc]
    %v2558 = vld [vmem:[#allocation3 + $0x20] sm:$0xc]
    %v2559 = vld [vmem:[#allocation3 + $0x28] sm:$0xc]
    %v2560 = vpack.c.bf16 %v2550, %v2550
    %v2561 = vpack.c.bf16 %v2551, %v2551
    %2562 = vmatprep.subr.bf16.mxu0 %v2196
    %2563 = vmatpush1.bf16.msra.mxu0 %v2195
    %2564 = vmatprep.subr.bf16.mxu0 %v2202
    %2565 = vmatpush1.bf16.msra.mxu0 %v2201
    %2566 = vmatprep.subr.bf16.mxu0 %v2208
    %2567 = vmatpush1.bf16.msra.mxu0 %v2207
    %2568 = vmatprep.subr.bf16.mxu0 %v2214
    %2569 = vmatpush1.bf16.msra.mxu0 %v2213
    %2570 = vmatprep.subr.bf16.mxu0 %v2220
    %2571 = vmatpush1.bf16.msra.mxu0 %v2219
    %2572 = vmatprep.subr.bf16.mxu0 %v2226
    %2573 = vmatpush1.bf16.msra.mxu0 %v2225
    %2574 = vmatprep.subr.bf16.mxu0 %v2232
    %2575 = vmatpush1.bf16.msra.mxu0 %v2231
    %2576 = vmatprep.subr.bf16.mxu0 %v2238
    %2577 = vmatpush1.bf16.msra.mxu0 %v2237
    %2578 = vmatprep.subr.bf16.mxu0 %v2244
    %2579 = vmatpush1.bf16.msra.mxu0 %v2243
    %2580 = vmatprep.subr.bf16.mxu0 %v2250
    %2581 = vmatpush1.bf16.msra.mxu0 %v2249
    %2582 = vmatprep.subr.bf16.mxu0 %v2256
    %2583 = vmatpush1.bf16.msra.mxu0 %v2255
    %2584 = vmatprep.subr.bf16.mxu0 %v2262
    %2585 = vmatpush1.bf16.msra.mxu0 %v2261
    %2586 = vmatprep.subr.bf16.mxu0 %v2268
    %2587 = vmatpush1.bf16.msra.mxu0 %v2267
    %2588 = vmatprep.subr.bf16.mxu0 %v2274
    %2589 = vmatpush1.bf16.msra.mxu0 %v2273
    %2590 = vmatprep.subr.bf16.mxu0 %v2280
    %2591 = vmatpush1.bf16.msra.mxu0 %v2279
    %2592 = vmatprep.subr.bf16.mxu0 %v2286
    %2593 = vmatpush1.bf16.msra.mxu0 %v2285
    %2594 = vmatprep.mubr.bf16.mxu0 %v2561
    %2595 = vmatmul.mubr.bf16.gmra.mrb[0].mxu0 %v2560
    %v2596 = vpop.f32.mrb[0].mxu0
    %v2597 = vadd.f32 %v1880, %v2596
    %v2598 = vpop.f32.mrb[0].mxu0
    %v2599 = vadd.f32 %v1884, %v2598
    %v2600 = vpop.f32.mrb[0].mxu0
    %v2601 = vpop.f32.mrb[0].mxu0
    %2602 = vdwg.mxu0
    %2603 = vmatprep.subr.bf16.mxu0 %v2198
    %2604 = vmatpush1.bf16.msra.mxu0 %v2197
    %2605 = vmatprep.subr.bf16.mxu0 %v2204
    %2606 = vmatpush1.bf16.msra.mxu0 %v2203
    %2607 = vmatprep.subr.bf16.mxu0 %v2210
    %2608 = vmatpush1.bf16.msra.mxu0 %v2209
    %2609 = vmatprep.subr.bf16.mxu0 %v2216
    %2610 = vmatpush1.bf16.msra.mxu0 %v2215
    %2611 = vmatprep.subr.bf16.mxu0 %v2222
    %2612 = vmatpush1.bf16.msra.mxu0 %v2221
    %2613 = vmatprep.subr.bf16.mxu0 %v2228
    %2614 = vmatpush1.bf16.msra.mxu0 %v2227
    %2615 = vmatprep.subr.bf16.mxu0 %v2234
    %2616 = vmatpush1.bf16.msra.mxu0 %v2233
    %2617 = vmatprep.subr.bf16.mxu0 %v2240
    %2618 = vmatpush1.bf16.msra.mxu0 %v2239
    %2619 = vmatprep.subr.bf16.mxu0 %v2246
    %2620 = vmatpush1.bf16.msra.mxu0 %v2245
    %2621 = vmatprep.subr.bf16.mxu0 %v2252
    %2622 = vmatpush1.bf16.msra.mxu0 %v2251
    %2623 = vmatprep.subr.bf16.mxu0 %v2258
    %2624 = vmatpush1.bf16.msra.mxu0 %v2257
    %2625 = vmatprep.subr.bf16.mxu0 %v2264
    %2626 = vmatpush1.bf16.msra.mxu0 %v2263
    %2627 = vmatprep.subr.bf16.mxu0 %v2270
    %2628 = vmatpush1.bf16.msra.mxu0 %v2269
    %2629 = vmatprep.subr.bf16.mxu0 %v2276
    %2630 = vmatpush1.bf16.msra.mxu0 %v2275
    %2631 = vmatprep.subr.bf16.mxu0 %v2282
    %2632 = vmatpush1.bf16.msra.mxu0 %v2281
    %2633 = vmatprep.subr.bf16.mxu0 %v2288
    %2634 = vmatpush1.bf16.msra.mxu0 %v2287
    %2635 = vmatprep.mubr.bf16.mxu0 %v2561
    %2636 = vmatmul.mubr.bf16.gmra.mrb[0].mxu0 %v2560
    %v2637 = vpop.f32.mrb[0].mxu0
    %v2638 = vadd.f32 %v1888, %v2637
    %v2639 = vpop.f32.mrb[0].mxu0
    %v2640 = vadd.f32 %v1892, %v2639
    %v2641 = vpop.f32.mrb[0].mxu0
    %v2642 = vpop.f32.mrb[0].mxu0
    %2643 = vdwg.mxu0
    %2644 = vmatprep.subr.bf16.mxu0 %v2200
    %2645 = vmatpush1.bf16.msra.mxu0 %v2199
    %2646 = vmatprep.subr.bf16.mxu0 %v2206
    %2647 = vmatpush1.bf16.msra.mxu0 %v2205
    %2648 = vmatprep.subr.bf16.mxu0 %v2212
    %2649 = vmatpush1.bf16.msra.mxu0 %v2211
    %2650 = vmatprep.subr.bf16.mxu0 %v2218
    %2651 = vmatpush1.bf16.msra.mxu0 %v2217
    %2652 = vmatprep.subr.bf16.mxu0 %v2224
    %2653 = vmatpush1.bf16.msra.mxu0 %v2223
    %2654 = vmatprep.subr.bf16.mxu0 %v2230
    %2655 = vmatpush1.bf16.msra.mxu0 %v2229
    %2656 = vmatprep.subr.bf16.mxu0 %v2236
    %2657 = vmatpush1.bf16.msra.mxu0 %v2235
    %2658 = vmatprep.subr.bf16.mxu0 %v2242
    %2659 = vmatpush1.bf16.msra.mxu0 %v2241
    %2660 = vmatprep.subr.bf16.mxu0 %v2248
    %2661 = vmatpush1.bf16.msra.mxu0 %v2247
    %2662 = vmatprep.subr.bf16.mxu0 %v2254
    %2663 = vmatpush1.bf16.msra.mxu0 %v2253
    %2664 = vmatprep.subr.bf16.mxu0 %v2260
    %2665 = vmatpush1.bf16.msra.mxu0 %v2259
    %2666 = vmatprep.subr.bf16.mxu0 %v2266
    %2667 = vmatpush1.bf16.msra.mxu0 %v2265
    %2668 = vmatprep.subr.bf16.mxu0 %v2272
    %2669 = vmatpush1.bf16.msra.mxu0 %v2271
    %2670 = vmatprep.subr.bf16.mxu0 %v2278
    %2671 = vmatpush1.bf16.msra.mxu0 %v2277
    %2672 = vmatprep.subr.bf16.mxu0 %v2284
    %2673 = vmatpush1.bf16.msra.mxu0 %v2283
    %2674 = vmatprep.subr.bf16.mxu0 %v2290
    %2675 = vmatpush1.bf16.msra.mxu0 %v2289
    %2676 = vmatprep.mubr.bf16.mxu0 %v2561
    %2677 = vmatmul.mubr.bf16.gmra.mrb[0].mxu0 %v2560
    %v2678 = vpop.f32.mrb[0].mxu0
    %v2679 = vadd.f32 %v1896, %v2678
    %v2680 = vpop.f32.mrb[0].mxu0
    %v2681 = vadd.f32 %v1900, %v2680
    %v2682 = vpop.f32.mrb[0].mxu0
    %v2683 = vpop.f32.mrb[0].mxu0
    %2684 = vdwg.mxu0
    %v2687 = vrot.slane %v2597, 6
    %v2688 = vrot.slane %v2599, 6
    %v2691 = vadd.f32 %v2554, %v2687
    %v2692 = vadd.f32 %v2555, %v2688
    %v2693 = vxor.u32 %v2691, 2147483648
    %v2694 = vxor.u32 %v2692, 2147483648
    %v2695 = vmul.f32 %v2693, 1.442695
    %v2696 = vpow.pop %v2695
    %v2697 = vmul.f32 %v2694, 1.442695
    %v2698 = vpow.pop %v2697
    %v2699 = vadd.f32 %v2696, 1.0
    %v2700 = vadd.f32 %v2698, 1.0
    %v2701 = vrcp.pop %v2699
    %v2702 = vmul.f32 1.0, %v2701
    %v2703 = vrcp.pop %v2700
    %v2704 = vmul.f32 1.0, %v2703
    %v2707 = vrot.slane %v2638, 6
    %v2708 = vrot.slane %v2640, 6
    %v2711 = vadd.f32 %v2556, %v2707
    %v2712 = vadd.f32 %v2557, %v2708
    %v2713 = vxor.u32 %v2711, 2147483648
    %v2714 = vxor.u32 %v2712, 2147483648
    %v2715 = vmul.f32 %v2713, 1.442695
    %v2716 = vpow.pop %v2715
    %v2717 = vmul.f32 %v2714, 1.442695
    %v2718 = vpow.pop %v2717
    %v2719 = vadd.f32 %v2716, 1.0
    %v2720 = vadd.f32 %v2718, 1.0
    %v2721 = vrcp.pop %v2719
    %v2722 = vmul.f32 1.0, %v2721
    %v2723 = vrcp.pop %v2720
    %v2724 = vmul.f32 1.0, %v2723
    %v2727 = vrot.slane %v2679, 6
    %v2728 = vrot.slane %v2681, 6
    %v2731 = vmul.f32 %v2702, %v2727
    %v2732 = vmul.f32 %v2704, %v2728
    %v2733 = vadd.f32 %v2558, %v2731
    %v2734 = vadd.f32 %v2559, %v2732
    %v2735 = vtanh.pop %v2733
    %v2736 = vtanh.pop %v2734
    %v2737 = vsub.f32 1.0, %v2722
    %v2738 = vsub.f32 1.0, %v2724
    %v2739 = vmul.f32 %v2737, %v2735
    %v2740 = vmul.f32 %v2738, %v2736
    %v2743 = vrot.slane %v2550, 6
    %v2744 = vrot.slane %v2551, 6
    %v2747 = vmul.f32 %v2722, %v2743
    %v2748 = vmul.f32 %v2724, %v2744
    %v2749 = vadd.f32 %v2739, %v2747
    %v2750 = vadd.f32 %v2740, %v2748
    %2751 = vst [vmem:[#allocation4] sm:$0xc] %v2749
    %2752 = vst [vmem:[#allocation4 + $0x8] sm:$0xc] %v2750
    %v2753 = vld [vmem:[#allocation3] sm:$0x30]
    %v2754 = vld [vmem:[#allocation3 + $0x8] sm:$0x30]
    %v2755 = vld [vmem:[#allocation3 + $0x10] sm:$0x30]
    %v2756 = vld [vmem:[#allocation3 + $0x18] sm:$0x30]
    %v2757 = vld [vmem:[#allocation3 + $0x20] sm:$0x30]
    %v2758 = vld [vmem:[#allocation3 + $0x28] sm:$0x30]
    %v2759 = vpack.c.bf16 %v2749, %v2749
    %v2760 = vpack.c.bf16 %v2750, %v2750
    %v2763 = vrot.slane %v2759, 1
    %v2764 = vrot.slane %v2760, 1
    %2767 = vmatprep.subr.bf16.mxu0 %v2196
    %2768 = vmatpush1.bf16.msra.mxu0 %v2195
    %2769 = vmatprep.subr.bf16.mxu0 %v2202
    %2770 = vmatpush1.bf16.msra.mxu0 %v2201
    %2771 = vmatprep.subr.bf16.mxu0 %v2208
    %2772 = vmatpush1.bf16.msra.mxu0 %v2207
    %2773 = vmatprep.subr.bf16.mxu0 %v2214
    %2774 = vmatpush1.bf16.msra.mxu0 %v2213
    %2775 = vmatprep.subr.bf16.mxu0 %v2220
    %2776 = vmatpush1.bf16.msra.mxu0 %v2219
    %2777 = vmatprep.subr.bf16.mxu0 %v2226
    %2778 = vmatpush1.bf16.msra.mxu0 %v2225
    %2779 = vmatprep.subr.bf16.mxu0 %v2232
    %2780 = vmatpush1.bf16.msra.mxu0 %v2231
    %2781 = vmatprep.subr.bf16.mxu0 %v2238
    %2782 = vmatpush1.bf16.msra.mxu0 %v2237
    %2783 = vmatprep.subr.bf16.mxu0 %v2244
    %2784 = vmatpush1.bf16.msra.mxu0 %v2243
    %2785 = vmatprep.subr.bf16.mxu0 %v2250
    %2786 = vmatpush1.bf16.msra.mxu0 %v2249
    %2787 = vmatprep.subr.bf16.mxu0 %v2256
    %2788 = vmatpush1.bf16.msra.mxu0 %v2255
    %2789 = vmatprep.subr.bf16.mxu0 %v2262
    %2790 = vmatpush1.bf16.msra.mxu0 %v2261
    %2791 = vmatprep.subr.bf16.mxu0 %v2268
    %2792 = vmatpush1.bf16.msra.mxu0 %v2267
    %2793 = vmatprep.subr.bf16.mxu0 %v2274
    %2794 = vmatpush1.bf16.msra.mxu0 %v2273
    %2795 = vmatprep.subr.bf16.mxu0 %v2280
    %2796 = vmatpush1.bf16.msra.mxu0 %v2279
    %2797 = vmatprep.subr.bf16.mxu0 %v2286
    %2798 = vmatpush1.bf16.msra.mxu0 %v2285
    %2799 = vmatprep.mubr.bf16.mxu0 %v2764
    %2800 = vmatmul.mubr.bf16.gmra.mrb[0].mxu0 %v2763
    %v2801 = vpop.f32.mrb[0].mxu0
    %v2802 = vadd.f32 %v1880, %v2801
    %v2803 = vpop.f32.mrb[0].mxu0
    %v2804 = vadd.f32 %v1884, %v2803
    %v2805 = vpop.f32.mrb[0].mxu0
    %v2806 = vpop.f32.mrb[0].mxu0
    %2807 = vdwg.mxu0
    %2808 = vmatprep.subr.bf16.mxu0 %v2198
    %2809 = vmatpush1.bf16.msra.mxu0 %v2197
    %2810 = vmatprep.subr.bf16.mxu0 %v2204
    %2811 = vmatpush1.bf16.msra.mxu0 %v2203
    %2812 = vmatprep.subr.bf16.mxu0 %v2210
    %2813 = vmatpush1.bf16.msra.mxu0 %v2209
    %2814 = vmatprep.subr.bf16.mxu0 %v2216
    %2815 = vmatpush1.bf16.msra.mxu0 %v2215
    %2816 = vmatprep.subr.bf16.mxu0 %v2222
    %2817 = vmatpush1.bf16.msra.mxu0 %v2221
    %2818 = vmatprep.subr.bf16.mxu0 %v2228
    %2819 = vmatpush1.bf16.msra.mxu0 %v2227
    %2820 = vmatprep.subr.bf16.mxu0 %v2234
    %2821 = vmatpush1.bf16.msra.mxu0 %v2233
    %2822 = vmatprep.subr.bf16.mxu0 %v2240
    %2823 = vmatpush1.bf16.msra.mxu0 %v2239
    %2824 = vmatprep.subr.bf16.mxu0 %v2246
    %2825 = vmatpush1.bf16.msra.mxu0 %v2245
    %2826 = vmatprep.subr.bf16.mxu0 %v2252
    %2827 = vmatpush1.bf16.msra.mxu0 %v2251
    %2828 = vmatprep.subr.bf16.mxu0 %v2258
    %2829 = vmatpush1.bf16.msra.mxu0 %v2257
    %2830 = vmatprep.subr.bf16.mxu0 %v2264
    %2831 = vmatpush1.bf16.msra.mxu0 %v2263
    %2832 = vmatprep.subr.bf16.mxu0 %v2270
    %2833 = vmatpush1.bf16.msra.mxu0 %v2269
    %2834 = vmatprep.subr.bf16.mxu0 %v2276
    %2835 = vmatpush1.bf16.msra.mxu0 %v2275
    %2836 = vmatprep.subr.bf16.mxu0 %v2282
    %2837 = vmatpush1.bf16.msra.mxu0 %v2281
    %2838 = vmatprep.subr.bf16.mxu0 %v2288
    %2839 = vmatpush1.bf16.msra.mxu0 %v2287
    %2840 = vmatprep.mubr.bf16.mxu0 %v2764
    %2841 = vmatmul.mubr.bf16.gmra.mrb[0].mxu0 %v2763
    %v2842 = vpop.f32.mrb[0].mxu0
    %v2843 = vadd.f32 %v1888, %v2842
    %v2844 = vpop.f32.mrb[0].mxu0
    %v2845 = vadd.f32 %v1892, %v2844
    %v2846 = vpop.f32.mrb[0].mxu0
    %v2847 = vpop.f32.mrb[0].mxu0
    %2848 = vdwg.mxu0
    %2849 = vmatprep.subr.bf16.mxu0 %v2200
    %2850 = vmatpush1.bf16.msra.mxu0 %v2199
    %2851 = vmatprep.subr.bf16.mxu0 %v2206
    %2852 = vmatpush1.bf16.msra.mxu0 %v2205
    %2853 = vmatprep.subr.bf16.mxu0 %v2212
    %2854 = vmatpush1.bf16.msra.mxu0 %v2211
    %2855 = vmatprep.subr.bf16.mxu0 %v2218
    %2856 = vmatpush1.bf16.msra.mxu0 %v2217
    %2857 = vmatprep.subr.bf16.mxu0 %v2224
    %2858 = vmatpush1.bf16.msra.mxu0 %v2223
    %2859 = vmatprep.subr.bf16.mxu0 %v2230
    %2860 = vmatpush1.bf16.msra.mxu0 %v2229
    %2861 = vmatprep.subr.bf16.mxu0 %v2236
    %2862 = vmatpush1.bf16.msra.mxu0 %v2235
    %2863 = vmatprep.subr.bf16.mxu0 %v2242
    %2864 = vmatpush1.bf16.msra.mxu0 %v2241
    %2865 = vmatprep.subr.bf16.mxu0 %v2248
    %2866 = vmatpush1.bf16.msra.mxu0 %v2247
    %2867 = vmatprep.subr.bf16.mxu0 %v2254
    %2868 = vmatpush1.bf16.msra.mxu0 %v2253
    %2869 = vmatprep.subr.bf16.mxu0 %v2260
    %2870 = vmatpush1.bf16.msra.mxu0 %v2259
    %2871 = vmatprep.subr.bf16.mxu0 %v2266
    %2872 = vmatpush1.bf16.msra.mxu0 %v2265
    %2873 = vmatprep.subr.bf16.mxu0 %v2272
    %2874 = vmatpush1.bf16.msra.mxu0 %v2271
    %2875 = vmatprep.subr.bf16.mxu0 %v2278
    %2876 = vmatpush1.bf16.msra.mxu0 %v2277
    %2877 = vmatprep.subr.bf16.mxu0 %v2284
    %2878 = vmatpush1.bf16.msra.mxu0 %v2283
    %2879 = vmatprep.subr.bf16.mxu0 %v2290
    %2880 = vmatpush1.bf16.msra.mxu0 %v2289
    %2881 = vmatprep.mubr.bf16.mxu0 %v2764
    %2882 = vmatmul.mubr.bf16.gmra.mrb[0].mxu0 %v2763
    %v2883 = vpop.f32.mrb[0].mxu0
    %v2884 = vadd.f32 %v1896, %v2883
    %v2885 = vpop.f32.mrb[0].mxu0
    %v2886 = vadd.f32 %v1900, %v2885
    %v2887 = vpop.f32.mrb[0].mxu0
    %v2888 = vpop.f32.mrb[0].mxu0
    %2889 = vdwg.mxu0
    %v2892 = vrot.slane %v2802, 4
    %v2893 = vrot.slane %v2804, 4
    %v2896 = vadd.f32 %v2753, %v2892
    %v2897 = vadd.f32 %v2754, %v2893
    %v2898 = vxor.u32 %v2896, 2147483648
    %v2899 = vxor.u32 %v2897, 2147483648
    %v2900 = vmul.f32 %v2898, 1.442695
    %v2901 = vpow.pop %v2900
    %v2902 = vmul.f32 %v2899, 1.442695
    %v2903 = vpow.pop %v2902
    %v2904 = vadd.f32 %v2901, 1.0
    %v2905 = vadd.f32 %v2903, 1.0
    %v2906 = vrcp.pop %v2904
    %v2907 = vmul.f32 1.0, %v2906
    %v2908 = vrcp.pop %v2905
    %v2909 = vmul.f32 1.0, %v2908
    %v2912 = vrot.slane %v2843, 4
    %v2913 = vrot.slane %v2845, 4
    %v2916 = vadd.f32 %v2755, %v2912
    %v2917 = vadd.f32 %v2756, %v2913
    %v2918 = vxor.u32 %v2916, 2147483648
    %v2919 = vxor.u32 %v2917, 2147483648
    %v2920 = vmul.f32 %v2918, 1.442695
    %v2921 = vpow.pop %v2920
    %v2922 = vmul.f32 %v2919, 1.442695
    %v2923 = vpow.pop %v2922
    %v2924 = vadd.f32 %v2921, 1.0
    %v2925 = vadd.f32 %v2923, 1.0
    %v2926 = vrcp.pop %v2924
    %v2927 = vmul.f32 1.0, %v2926
    %v2928 = vrcp.pop %v2925
    %v2929 = vmul.f32 1.0, %v2928
    %v2932 = vrot.slane %v2884, 4
    %v2933 = vrot.slane %v2886, 4
    %v2936 = vmul.f32 %v2907, %v2932
    %v2937 = vmul.f32 %v2909, %v2933
    %v2938 = vadd.f32 %v2757, %v2936
    %v2939 = vadd.f32 %v2758, %v2937
    %v2940 = vtanh.pop %v2938
    %v2941 = vtanh.pop %v2939
    %v2942 = vsub.f32 1.0, %v2927
    %v2943 = vsub.f32 1.0, %v2929
    %v2944 = vmul.f32 %v2942, %v2940
    %v2945 = vmul.f32 %v2943, %v2941
    %v2948 = vrot.slane %v2749, 6
    %v2949 = vrot.slane %v2750, 6
    %v2952 = vmul.f32 %v2927, %v2948
    %v2953 = vmul.f32 %v2929, %v2949
    %v2954 = vadd.f32 %v2944, %v2952
    %v2955 = vadd.f32 %v2945, %v2953
    %2956 = vst [vmem:[#allocation4] sm:$0x30] %v2954
    %2957 = vst [vmem:[#allocation4 + $0x8] sm:$0x30] %v2955
    %v2958 = vld [vmem:[#allocation3] sm:$0xc0]
    %v2959 = vld [vmem:[#allocation3 + $0x8] sm:$0xc0]
    %v2960 = vld [vmem:[#allocation3 + $0x10] sm:$0xc0]
    %v2961 = vld [vmem:[#allocation3 + $0x18] sm:$0xc0]
    %v2962 = vld [vmem:[#allocation3 + $0x20] sm:$0xc0]
    %v2963 = vld [vmem:[#allocation3 + $0x28] sm:$0xc0]
    %v2964 = vpack.c.bf16 %v2954, %v2954
    %v2965 = vpack.c.bf16 %v2955, %v2955
    %v2968 = vrot.slane %v2964, 2
    %v2969 = vrot.slane %v2965, 2
    %2972 = vmatprep.subr.bf16.mxu0 %v2196
    %2973 = vmatpush1.bf16.msra.mxu0 %v2195
    %2974 = vmatprep.subr.bf16.mxu0 %v2202
    %2975 = vmatpush1.bf16.msra.mxu0 %v2201
    %2976 = vmatprep.subr.bf16.mxu0 %v2208
    %2977 = vmatpush1.bf16.msra.mxu0 %v2207
    %2978 = vmatprep.subr.bf16.mxu0 %v2214
    %2979 = vmatpush1.bf16.msra.mxu0 %v2213
    %2980 = vmatprep.subr.bf16.mxu0 %v2220
    %2981 = vmatpush1.bf16.msra.mxu0 %v2219
    %2982 = vmatprep.subr.bf16.mxu0 %v2226
    %2983 = vmatpush1.bf16.msra.mxu0 %v2225
    %2984 = vmatprep.subr.bf16.mxu0 %v2232
    %2985 = vmatpush1.bf16.msra.mxu0 %v2231
    %2986 = vmatprep.subr.bf16.mxu0 %v2238
    %2987 = vmatpush1.bf16.msra.mxu0 %v2237
    %2988 = vmatprep.subr.bf16.mxu0 %v2244
    %2989 = vmatpush1.bf16.msra.mxu0 %v2243
    %2990 = vmatprep.subr.bf16.mxu0 %v2250
    %2991 = vmatpush1.bf16.msra.mxu0 %v2249
    %2992 = vmatprep.subr.bf16.mxu0 %v2256
    %2993 = vmatpush1.bf16.msra.mxu0 %v2255
    %2994 = vmatprep.subr.bf16.mxu0 %v2262
    %2995 = vmatpush1.bf16.msra.mxu0 %v2261
    %2996 = vmatprep.subr.bf16.mxu0 %v2268
    %2997 = vmatpush1.bf16.msra.mxu0 %v2267
    %2998 = vmatprep.subr.bf16.mxu0 %v2274
    %2999 = vmatpush1.bf16.msra.mxu0 %v2273
    %3000 = vmatprep.subr.bf16.mxu0 %v2280
    %3001 = vmatpush1.bf16.msra.mxu0 %v2279
    %3002 = vmatprep.subr.bf16.mxu0 %v2286
    %3003 = vmatpush1.bf16.msra.mxu0 %v2285
    %3004 = vmatprep.mubr.bf16.mxu0 %v2969
    %3005 = vmatmul.mubr.bf16.gmra.mrb[0].mxu0 %v2968
    %v3006 = vpop.f32.mrb[0].mxu0
    %v3007 = vadd.f32 %v1880, %v3006
    %v3008 = vpop.f32.mrb[0].mxu0
    %v3009 = vadd.f32 %v1884, %v3008
    %v3010 = vpop.f32.mrb[0].mxu0
    %v3011 = vpop.f32.mrb[0].mxu0
    %3012 = vdwg.mxu0
    %3013 = vmatprep.subr.bf16.mxu0 %v2198
    %3014 = vmatpush1.bf16.msra.mxu0 %v2197
    %3015 = vmatprep.subr.bf16.mxu0 %v2204
    %3016 = vmatpush1.bf16.msra.mxu0 %v2203
    %3017 = vmatprep.subr.bf16.mxu0 %v2210
    %3018 = vmatpush1.bf16.msra.mxu0 %v2209
    %3019 = vmatprep.subr.bf16.mxu0 %v2216
    %3020 = vmatpush1.bf16.msra.mxu0 %v2215
    %3021 = vmatprep.subr.bf16.mxu0 %v2222
    %3022 = vmatpush1.bf16.msra.mxu0 %v2221
    %3023 = vmatprep.subr.bf16.mxu0 %v2228
    %3024 = vmatpush1.bf16.msra.mxu0 %v2227
    %3025 = vmatprep.subr.bf16.mxu0 %v2234
    %3026 = vmatpush1.bf16.msra.mxu0 %v2233
    %3027 = vmatprep.subr.bf16.mxu0 %v2240
    %3028 = vmatpush1.bf16.msra.mxu0 %v2239
    %3029 = vmatprep.subr.bf16.mxu0 %v2246
    %3030 = vmatpush1.bf16.msra.mxu0 %v2245
    %3031 = vmatprep.subr.bf16.mxu0 %v2252
    %3032 = vmatpush1.bf16.msra.mxu0 %v2251
    %3033 = vmatprep.subr.bf16.mxu0 %v2258
    %3034 = vmatpush1.bf16.msra.mxu0 %v2257
    %3035 = vmatprep.subr.bf16.mxu0 %v2264
    %3036 = vmatpush1.bf16.msra.mxu0 %v2263
    %3037 = vmatprep.subr.bf16.mxu0 %v2270
    %3038 = vmatpush1.bf16.msra.mxu0 %v2269
    %3039 = vmatprep.subr.bf16.mxu0 %v2276
    %3040 = vmatpush1.bf16.msra.mxu0 %v2275
    %3041 = vmatprep.subr.bf16.mxu0 %v2282
    %3042 = vmatpush1.bf16.msra.mxu0 %v2281
    %3043 = vmatprep.subr.bf16.mxu0 %v2288
    %3044 = vmatpush1.bf16.msra.mxu0 %v2287
    %3045 = vmatprep.mubr.bf16.mxu0 %v2969
    %3046 = vmatmul.mubr.bf16.gmra.mrb[0].mxu0 %v2968
    %v3047 = vpop.f32.mrb[0].mxu0
    %v3048 = vadd.f32 %v1888, %v3047
    %v3049 = vpop.f32.mrb[0].mxu0
    %v3050 = vadd.f32 %v1892, %v3049
    %v3051 = vpop.f32.mrb[0].mxu0
    %v3052 = vpop.f32.mrb[0].mxu0
    %3053 = vdwg.mxu0
    %3054 = vmatprep.subr.bf16.mxu0 %v2200
    %3055 = vmatpush1.bf16.msra.mxu0 %v2199
    %3056 = vmatprep.subr.bf16.mxu0 %v2206
    %3057 = vmatpush1.bf16.msra.mxu0 %v2205
    %3058 = vmatprep.subr.bf16.mxu0 %v2212
    %3059 = vmatpush1.bf16.msra.mxu0 %v2211
    %3060 = vmatprep.subr.bf16.mxu0 %v2218
    %3061 = vmatpush1.bf16.msra.mxu0 %v2217
    %3062 = vmatprep.subr.bf16.mxu0 %v2224
    %3063 = vmatpush1.bf16.msra.mxu0 %v2223
    %3064 = vmatprep.subr.bf16.mxu0 %v2230
    %3065 = vmatpush1.bf16.msra.mxu0 %v2229
    %3066 = vmatprep.subr.bf16.mxu0 %v2236
    %3067 = vmatpush1.bf16.msra.mxu0 %v2235
    %3068 = vmatprep.subr.bf16.mxu0 %v2242
    %3069 = vmatpush1.bf16.msra.mxu0 %v2241
    %3070 = vmatprep.subr.bf16.mxu0 %v2248
    %3071 = vmatpush1.bf16.msra.mxu0 %v2247
    %3072 = vmatprep.subr.bf16.mxu0 %v2254
    %3073 = vmatpush1.bf16.msra.mxu0 %v2253
    %3074 = vmatprep.subr.bf16.mxu0 %v2260
    %3075 = vmatpush1.bf16.msra.mxu0 %v2259
    %3076 = vmatprep.subr.bf16.mxu0 %v2266
    %3077 = vmatpush1.bf16.msra.mxu0 %v2265
    %3078 = vmatprep.subr.bf16.mxu0 %v2272
    %3079 = vmatpush1.bf16.msra.mxu0 %v2271
    %3080 = vmatprep.subr.bf16.mxu0 %v2278
    %3081 = vmatpush1.bf16.msra.mxu0 %v2277
    %3082 = vmatprep.subr.bf16.mxu0 %v2284
    %3083 = vmatpush1.bf16.msra.mxu0 %v2283
    %3084 = vmatprep.subr.bf16.mxu0 %v2290
    %3085 = vmatpush1.bf16.msra.mxu0 %v2289
    %3086 = vmatprep.mubr.bf16.mxu0 %v2969
    %3087 = vmatmul.mubr.bf16.gmra.mrb[0].mxu0 %v2968
    %v3088 = vpop.f32.mrb[0].mxu0
    %v3089 = vadd.f32 %v1896, %v3088
    %v3090 = vpop.f32.mrb[0].mxu0
    %v3091 = vadd.f32 %v1900, %v3090
    %v3092 = vpop.f32.mrb[0].mxu0
    %v3093 = vpop.f32.mrb[0].mxu0
    %3094 = vdwg.mxu0
    %v3097 = vrot.slane %v3007, 2
    %v3098 = vrot.slane %v3009, 2
    %v3101 = vadd.f32 %v2958, %v3097
    %v3102 = vadd.f32 %v2959, %v3098
    %v3103 = vxor.u32 %v3101, 2147483648
    %v3104 = vxor.u32 %v3102, 2147483648
    %v3105 = vmul.f32 %v3103, 1.442695
    %v3106 = vpow.pop %v3105
    %v3107 = vmul.f32 %v3104, 1.442695
    %v3108 = vpow.pop %v3107
    %v3109 = vadd.f32 %v3106, 1.0
    %v3110 = vadd.f32 %v3108, 1.0
    %v3111 = vrcp.pop %v3109
    %v3112 = vmul.f32 1.0, %v3111
    %v3113 = vrcp.pop %v3110
    %v3114 = vmul.f32 1.0, %v3113
    %v3117 = vrot.slane %v3048, 2
    %v3118 = vrot.slane %v3050, 2
    %v3121 = vadd.f32 %v2960, %v3117
    %v3122 = vadd.f32 %v2961, %v3118
    %v3123 = vxor.u32 %v3121, 2147483648
    %v3124 = vxor.u32 %v3122, 2147483648
    %v3125 = vmul.f32 %v3123, 1.442695
    %v3126 = vpow.pop %v3125
    %v3127 = vmul.f32 %v3124, 1.442695
    %v3128 = vpow.pop %v3127
    %v3129 = vadd.f32 %v3126, 1.0
    %v3130 = vadd.f32 %v3128, 1.0
    %v3131 = vrcp.pop %v3129
    %v3132 = vmul.f32 1.0, %v3131
    %v3133 = vrcp.pop %v3130
    %v3134 = vmul.f32 1.0, %v3133
    %v3137 = vrot.slane %v3089, 2
    %v3138 = vrot.slane %v3091, 2
    %v3141 = vmul.f32 %v3112, %v3137
    %v3142 = vmul.f32 %v3114, %v3138
    %v3143 = vadd.f32 %v2962, %v3141
    %v3144 = vadd.f32 %v2963, %v3142
    %v3145 = vtanh.pop %v3143
    %v3146 = vtanh.pop %v3144
    %v3147 = vsub.f32 1.0, %v3132
    %v3148 = vsub.f32 1.0, %v3134
    %v3149 = vmul.f32 %v3147, %v3145
    %v3150 = vmul.f32 %v3148, %v3146
    %v3153 = vrot.slane %v2954, 6
    %v3154 = vrot.slane %v2955, 6
    %v3157 = vmul.f32 %v3132, %v3153
    %v3158 = vmul.f32 %v3134, %v3154
    %v3159 = vadd.f32 %v3149, %v3157
    %v3160 = vadd.f32 %v3150, %v3158
    %3161 = vst [vmem:[#allocation4] sm:$0xc0] %v3159
    %3162 = vst [vmem:[#allocation4 + $0x8] sm:$0xc0] %v3160
    %v3163 = vld [vmem:[#allocation3 + $0x30] sm:$0x3]
    %v3164 = vld [vmem:[#allocation3 + $0x38] sm:$0x3]
    %v3165 = vld [vmem:[#allocation3 + $0x40] sm:$0x3]
    %v3166 = vld [vmem:[#allocation3 + $0x48] sm:$0x3]
    %v3167 = vld [vmem:[#allocation3 + $0x50] sm:$0x3]
    %v3168 = vld [vmem:[#allocation3 + $0x58] sm:$0x3]
    %v3169 = vpack.c.bf16 %v3159, %v3159
    %v3170 = vpack.c.bf16 %v3160, %v3160
    %v3173 = vrot.slane %v3169, 3
    %v3174 = vrot.slane %v3170, 3
    %3177 = vmatprep.subr.bf16.mxu0 %v2196
    %3178 = vmatpush1.bf16.msra.mxu0 %v2195
    %3179 = vmatprep.subr.bf16.mxu0 %v2202
    %3180 = vmatpush1.bf16.msra.mxu0 %v2201
    %3181 = vmatprep.subr.bf16.mxu0 %v2208
    %3182 = vmatpush1.bf16.msra.mxu0 %v2207
    %3183 = vmatprep.subr.bf16.mxu0 %v2214
    %3184 = vmatpush1.bf16.msra.mxu0 %v2213
    %3185 = vmatprep.subr.bf16.mxu0 %v2220
    %3186 = vmatpush1.bf16.msra.mxu0 %v2219
    %3187 = vmatprep.subr.bf16.mxu0 %v2226
    %3188 = vmatpush1.bf16.msra.mxu0 %v2225
    %3189 = vmatprep.subr.bf16.mxu0 %v2232
    %3190 = vmatpush1.bf16.msra.mxu0 %v2231
    %3191 = vmatprep.subr.bf16.mxu0 %v2238
    %3192 = vmatpush1.bf16.msra.mxu0 %v2237
    %3193 = vmatprep.subr.bf16.mxu0 %v2244
    %3194 = vmatpush1.bf16.msra.mxu0 %v2243
    %3195 = vmatprep.subr.bf16.mxu0 %v2250
    %3196 = vmatpush1.bf16.msra.mxu0 %v2249
    %3197 = vmatprep.subr.bf16.mxu0 %v2256
    %3198 = vmatpush1.bf16.msra.mxu0 %v2255
    %3199 = vmatprep.subr.bf16.mxu0 %v2262
    %3200 = vmatpush1.bf16.msra.mxu0 %v2261
    %3201 = vmatprep.subr.bf16.mxu0 %v2268
    %3202 = vmatpush1.bf16.msra.mxu0 %v2267
    %3203 = vmatprep.subr.bf16.mxu0 %v2274
    %3204 = vmatpush1.bf16.msra.mxu0 %v2273
    %3205 = vmatprep.subr.bf16.mxu0 %v2280
    %3206 = vmatpush1.bf16.msra.mxu0 %v2279
    %3207 = vmatprep.subr.bf16.mxu0 %v2286
    %3208 = vmatpush1.bf16.msra.mxu0 %v2285
    %3209 = vmatprep.mubr.bf16.mxu0 %v3174
    %3210 = vmatmul.mubr.bf16.gmra.mrb[0].mxu0 %v3173
    %v3211 = vpop.f32.mrb[0].mxu0
    %v3212 = vadd.f32 %v1880, %v3211
    %v3213 = vpop.f32.mrb[0].mxu0
    %v3214 = vadd.f32 %v1884, %v3213
    %v3215 = vpop.f32.mrb[0].mxu0
    %v3216 = vpop.f32.mrb[0].mxu0
    %3217 = vdwg.mxu0
    %3218 = vmatprep.subr.bf16.mxu0 %v2198
    %3219 = vmatpush1.bf16.msra.mxu0 %v2197
    %3220 = vmatprep.subr.bf16.mxu0 %v2204
    %3221 = vmatpush1.bf16.msra.mxu0 %v2203
    %3222 = vmatprep.subr.bf16.mxu0 %v2210
    %3223 = vmatpush1.bf16.msra.mxu0 %v2209
    %3224 = vmatprep.subr.bf16.mxu0 %v2216
    %3225 = vmatpush1.bf16.msra.mxu0 %v2215
    %3226 = vmatprep.subr.bf16.mxu0 %v2222
    %3227 = vmatpush1.bf16.msra.mxu0 %v2221
    %3228 = vmatprep.subr.bf16.mxu0 %v2228
    %3229 = vmatpush1.bf16.msra.mxu0 %v2227
    %3230 = vmatprep.subr.bf16.mxu0 %v2234
    %3231 = vmatpush1.bf16.msra.mxu0 %v2233
    %3232 = vmatprep.subr.bf16.mxu0 %v2240
    %3233 = vmatpush1.bf16.msra.mxu0 %v2239
    %3234 = vmatprep.subr.bf16.mxu0 %v2246
    %3235 = vmatpush1.bf16.msra.mxu0 %v2245
    %3236 = vmatprep.subr.bf16.mxu0 %v2252
    %3237 = vmatpush1.bf16.msra.mxu0 %v2251
    %3238 = vmatprep.subr.bf16.mxu0 %v2258
    %3239 = vmatpush1.bf16.msra.mxu0 %v2257
    %3240 = vmatprep.subr.bf16.mxu0 %v2264
    %3241 = vmatpush1.bf16.msra.mxu0 %v2263
    %3242 = vmatprep.subr.bf16.mxu0 %v2270
    %3243 = vmatpush1.bf16.msra.mxu0 %v2269
    %3244 = vmatprep.subr.bf16.mxu0 %v2276
    %3245 = vmatpush1.bf16.msra.mxu0 %v2275
    %3246 = vmatprep.subr.bf16.mxu0 %v2282
    %3247 = vmatpush1.bf16.msra.mxu0 %v2281
    %3248 = vmatprep.subr.bf16.mxu0 %v2288
    %3249 = vmatpush1.bf16.msra.mxu0 %v2287
    %3250 = vmatprep.mubr.bf16.mxu0 %v3174
    %3251 = vmatmul.mubr.bf16.gmra.mrb[0].mxu0 %v3173
    %v3252 = vpop.f32.mrb[0].mxu0
    %v3253 = vadd.f32 %v1888, %v3252
    %v3254 = vpop.f32.mrb[0].mxu0
    %v3255 = vadd.f32 %v1892, %v3254
    %v3256 = vpop.f32.mrb[0].mxu0
    %v3257 = vpop.f32.mrb[0].mxu0
    %3258 = vdwg.mxu0
    %3259 = vmatprep.subr.bf16.mxu0 %v2200
    %3260 = vmatpush1.bf16.msra.mxu0 %v2199
    %3261 = vmatprep.subr.bf16.mxu0 %v2206
    %3262 = vmatpush1.bf16.msra.mxu0 %v2205
    %3263 = vmatprep.subr.bf16.mxu0 %v2212
    %3264 = vmatpush1.bf16.msra.mxu0 %v2211
    %3265 = vmatprep.subr.bf16.mxu0 %v2218
    %3266 = vmatpush1.bf16.msra.mxu0 %v2217
    %3267 = vmatprep.subr.bf16.mxu0 %v2224
    %3268 = vmatpush1.bf16.msra.mxu0 %v2223
    %3269 = vmatprep.subr.bf16.mxu0 %v2230
    %3270 = vmatpush1.bf16.msra.mxu0 %v2229
    %3271 = vmatprep.subr.bf16.mxu0 %v2236
    %3272 = vmatpush1.bf16.msra.mxu0 %v2235
    %3273 = vmatprep.subr.bf16.mxu0 %v2242
    %3274 = vmatpush1.bf16.msra.mxu0 %v2241
    %3275 = vmatprep.subr.bf16.mxu0 %v2248
    %3276 = vmatpush1.bf16.msra.mxu0 %v2247
    %3277 = vmatprep.subr.bf16.mxu0 %v2254
    %3278 = vmatpush1.bf16.msra.mxu0 %v2253
    %3279 = vmatprep.subr.bf16.mxu0 %v2260
    %3280 = vmatpush1.bf16.msra.mxu0 %v2259
    %3281 = vmatprep.subr.bf16.mxu0 %v2266
    %3282 = vmatpush1.bf16.msra.mxu0 %v2265
    %3283 = vmatprep.subr.bf16.mxu0 %v2272
    %3284 = vmatpush1.bf16.msra.mxu0 %v2271
    %3285 = vmatprep.subr.bf16.mxu0 %v2278
    %3286 = vmatpush1.bf16.msra.mxu0 %v2277
    %3287 = vmatprep.subr.bf16.mxu0 %v2284
    %3288 = vmatpush1.bf16.msra.mxu0 %v2283
    %3289 = vmatprep.subr.bf16.mxu0 %v2290
    %3290 = vmatpush1.bf16.msra.mxu0 %v2289
    %3291 = vmatprep.mubr.bf16.mxu0 %v3174
    %3292 = vmatmul.mubr.bf16.gmra.mrb[0].mxu0 %v3173
    %v3293 = vpop.f32.mrb[0].mxu0
    %v3294 = vadd.f32 %v1896, %v3293
    %v3295 = vpop.f32.mrb[0].mxu0
    %v3296 = vadd.f32 %v1900, %v3295
    %v3297 = vpop.f32.mrb[0].mxu0
    %v3298 = vpop.f32.mrb[0].mxu0
    %3299 = vdwg.mxu0
    %v3300 = vadd.f32 %v3163, %v3212
    %v3301 = vadd.f32 %v3164, %v3214
    %v3302 = vxor.u32 %v3300, 2147483648
    %v3303 = vxor.u32 %v3301, 2147483648
    %v3304 = vmul.f32 %v3302, 1.442695
    %v3305 = vpow.pop %v3304
    %v3306 = vmul.f32 %v3303, 1.442695
    %v3307 = vpow.pop %v3306
    %v3308 = vadd.f32 %v3305, 1.0
    %v3309 = vadd.f32 %v3307, 1.0
    %v3310 = vrcp.pop %v3308
    %v3311 = vmul.f32 1.0, %v3310
    %v3312 = vrcp.pop %v3309
    %v3313 = vmul.f32 1.0, %v3312
    %v3314 = vadd.f32 %v3165, %v3253
    %v3315 = vadd.f32 %v3166, %v3255
    %v3316 = vxor.u32 %v3314, 2147483648
    %v3317 = vxor.u32 %v3315, 2147483648
    %v3318 = vmul.f32 %v3316, 1.442695
    %v3319 = vpow.pop %v3318
    %v3320 = vmul.f32 %v3317, 1.442695
    %v3321 = vpow.pop %v3320
    %v3322 = vadd.f32 %v3319, 1.0
    %v3323 = vadd.f32 %v3321, 1.0
    %v3324 = vrcp.pop %v3322
    %v3325 = vmul.f32 1.0, %v3324
    %v3326 = vrcp.pop %v3323
    %v3327 = vmul.f32 1.0, %v3326
    %v3328 = vmul.f32 %v3311, %v3294
    %v3329 = vmul.f32 %v3313, %v3296
    %v3330 = vadd.f32 %v3167, %v3328
    %v3331 = vadd.f32 %v3168, %v3329
    %v3332 = vtanh.pop %v3330
    %v3333 = vtanh.pop %v3331
    %v3334 = vsub.f32 1.0, %v3325
    %v3335 = vsub.f32 1.0, %v3327
    %v3336 = vmul.f32 %v3334, %v3332
    %v3337 = vmul.f32 %v3335, %v3333
    %v3340 = vrot.slane %v3159, 6
    %v3341 = vrot.slane %v3160, 6
    %v3344 = vmul.f32 %v3325, %v3340
    %v3345 = vmul.f32 %v3327, %v3341
    %v3346 = vadd.f32 %v3336, %v3344
    %v3347 = vadd.f32 %v3337, %v3345
    %3348 = vst [vmem:[#allocation4 + $0x10] sm:$0x3] %v3346
    %3349 = vst [vmem:[#allocation4 + $0x18] sm:$0x3] %v3347
    %v3350 = vld [vmem:[#allocation3 + $0x30] sm:$0xc]
    %v3351 = vld [vmem:[#allocation3 + $0x38] sm:$0xc]
    %v3352 = vld [vmem:[#allocation3 + $0x40] sm:$0xc]
    %v3353 = vld [vmem:[#allocation3 + $0x48] sm:$0xc]
    %v3354 = vld [vmem:[#allocation3 + $0x50] sm:$0xc]
    %v3355 = vld [vmem:[#allocation3 + $0x58] sm:$0xc]
    %v3356 = vpack.c.bf16 %v3346, %v3346
    %v3357 = vpack.c.bf16 %v3347, %v3347
    %3358 = vmatprep.subr.bf16.mxu0 %v2196
    %3359 = vmatpush1.bf16.msra.mxu0 %v2195
    %3360 = vmatprep.subr.bf16.mxu0 %v2202
    %3361 = vmatpush1.bf16.msra.mxu0 %v2201
    %3362 = vmatprep.subr.bf16.mxu0 %v2208
    %3363 = vmatpush1.bf16.msra.mxu0 %v2207
    %3364 = vmatprep.subr.bf16.mxu0 %v2214
    %3365 = vmatpush1.bf16.msra.mxu0 %v2213
    %3366 = vmatprep.subr.bf16.mxu0 %v2220
    %3367 = vmatpush1.bf16.msra.mxu0 %v2219
    %3368 = vmatprep.subr.bf16.mxu0 %v2226
    %3369 = vmatpush1.bf16.msra.mxu0 %v2225
    %3370 = vmatprep.subr.bf16.mxu0 %v2232
    %3371 = vmatpush1.bf16.msra.mxu0 %v2231
    %3372 = vmatprep.subr.bf16.mxu0 %v2238
    %3373 = vmatpush1.bf16.msra.mxu0 %v2237
    %3374 = vmatprep.subr.bf16.mxu0 %v2244
    %3375 = vmatpush1.bf16.msra.mxu0 %v2243
    %3376 = vmatprep.subr.bf16.mxu0 %v2250
    %3377 = vmatpush1.bf16.msra.mxu0 %v2249
    %3378 = vmatprep.subr.bf16.mxu0 %v2256
    %3379 = vmatpush1.bf16.msra.mxu0 %v2255
    %3380 = vmatprep.subr.bf16.mxu0 %v2262
    %3381 = vmatpush1.bf16.msra.mxu0 %v2261
    %3382 = vmatprep.subr.bf16.mxu0 %v2268
    %3383 = vmatpush1.bf16.msra.mxu0 %v2267
    %3384 = vmatprep.subr.bf16.mxu0 %v2274
    %3385 = vmatpush1.bf16.msra.mxu0 %v2273
    %3386 = vmatprep.subr.bf16.mxu0 %v2280
    %3387 = vmatpush1.bf16.msra.mxu0 %v2279
    %3388 = vmatprep.subr.bf16.mxu0 %v2286
    %3389 = vmatpush1.bf16.msra.mxu0 %v2285
    %3390 = vmatprep.mubr.bf16.mxu0 %v3357
    %3391 = vmatmul.mubr.bf16.gmra.mrb[0].mxu0 %v3356
    %v3392 = vpop.f32.mrb[0].mxu0
    %v3393 = vadd.f32 %v1880, %v3392
    %v3394 = vpop.f32.mrb[0].mxu0
    %v3395 = vadd.f32 %v1884, %v3394
    %v3396 = vpop.f32.mrb[0].mxu0
    %v3397 = vpop.f32.mrb[0].mxu0
    %3398 = vdwg.mxu0
    %3399 = vmatprep.subr.bf16.mxu0 %v2198
    %3400 = vmatpush1.bf16.msra.mxu0 %v2197
    %3401 = vmatprep.subr.bf16.mxu0 %v2204
    %3402 = vmatpush1.bf16.msra.mxu0 %v2203
    %3403 = vmatprep.subr.bf16.mxu0 %v2210
    %3404 = vmatpush1.bf16.msra.mxu0 %v2209
    %3405 = vmatprep.subr.bf16.mxu0 %v2216
    %3406 = vmatpush1.bf16.msra.mxu0 %v2215
    %3407 = vmatprep.subr.bf16.mxu0 %v2222
    %3408 = vmatpush1.bf16.msra.mxu0 %v2221
    %3409 = vmatprep.subr.bf16.mxu0 %v2228
    %3410 = vmatpush1.bf16.msra.mxu0 %v2227
    %3411 = vmatprep.subr.bf16.mxu0 %v2234
    %3412 = vmatpush1.bf16.msra.mxu0 %v2233
    %3413 = vmatprep.subr.bf16.mxu0 %v2240
    %3414 = vmatpush1.bf16.msra.mxu0 %v2239
    %3415 = vmatprep.subr.bf16.mxu0 %v2246
    %3416 = vmatpush1.bf16.msra.mxu0 %v2245
    %3417 = vmatprep.subr.bf16.mxu0 %v2252
    %3418 = vmatpush1.bf16.msra.mxu0 %v2251
    %3419 = vmatprep.subr.bf16.mxu0 %v2258
    %3420 = vmatpush1.bf16.msra.mxu0 %v2257
    %3421 = vmatprep.subr.bf16.mxu0 %v2264
    %3422 = vmatpush1.bf16.msra.mxu0 %v2263
    %3423 = vmatprep.subr.bf16.mxu0 %v2270
    %3424 = vmatpush1.bf16.msra.mxu0 %v2269
    %3425 = vmatprep.subr.bf16.mxu0 %v2276
    %3426 = vmatpush1.bf16.msra.mxu0 %v2275
    %3427 = vmatprep.subr.bf16.mxu0 %v2282
    %3428 = vmatpush1.bf16.msra.mxu0 %v2281
    %3429 = vmatprep.subr.bf16.mxu0 %v2288
    %3430 = vmatpush1.bf16.msra.mxu0 %v2287
    %3431 = vmatprep.mubr.bf16.mxu0 %v3357
    %3432 = vmatmul.mubr.bf16.gmra.mrb[0].mxu0 %v3356
    %v3433 = vpop.f32.mrb[0].mxu0
    %v3434 = vadd.f32 %v1888, %v3433
    %v3435 = vpop.f32.mrb[0].mxu0
    %v3436 = vadd.f32 %v1892, %v3435
    %v3437 = vpop.f32.mrb[0].mxu0
    %v3438 = vpop.f32.mrb[0].mxu0
    %3439 = vdwg.mxu0
    %3440 = vmatprep.subr.bf16.mxu0 %v2200
    %3441 = vmatpush1.bf16.msra.mxu0 %v2199
    %3442 = vmatprep.subr.bf16.mxu0 %v2206
    %3443 = vmatpush1.bf16.msra.mxu0 %v2205
    %3444 = vmatprep.subr.bf16.mxu0 %v2212
    %3445 = vmatpush1.bf16.msra.mxu0 %v2211
    %3446 = vmatprep.subr.bf16.mxu0 %v2218
    %3447 = vmatpush1.bf16.msra.mxu0 %v2217
    %3448 = vmatprep.subr.bf16.mxu0 %v2224
    %3449 = vmatpush1.bf16.msra.mxu0 %v2223
    %3450 = vmatprep.subr.bf16.mxu0 %v2230
    %3451 = vmatpush1.bf16.msra.mxu0 %v2229
    %3452 = vmatprep.subr.bf16.mxu0 %v2236
    %3453 = vmatpush1.bf16.msra.mxu0 %v2235
    %3454 = vmatprep.subr.bf16.mxu0 %v2242
    %3455 = vmatpush1.bf16.msra.mxu0 %v2241
    %3456 = vmatprep.subr.bf16.mxu0 %v2248
    %3457 = vmatpush1.bf16.msra.mxu0 %v2247
    %3458 = vmatprep.subr.bf16.mxu0 %v2254
    %3459 = vmatpush1.bf16.msra.mxu0 %v2253
    %3460 = vmatprep.subr.bf16.mxu0 %v2260
    %3461 = vmatpush1.bf16.msra.mxu0 %v2259
    %3462 = vmatprep.subr.bf16.mxu0 %v2266
    %3463 = vmatpush1.bf16.msra.mxu0 %v2265
    %3464 = vmatprep.subr.bf16.mxu0 %v2272
    %3465 = vmatpush1.bf16.msra.mxu0 %v2271
    %3466 = vmatprep.subr.bf16.mxu0 %v2278
    %3467 = vmatpush1.bf16.msra.mxu0 %v2277
    %3468 = vmatprep.subr.bf16.mxu0 %v2284
    %3469 = vmatpush1.bf16.msra.mxu0 %v2283
    %3470 = vmatprep.subr.bf16.mxu0 %v2290
    %3471 = vmatpush1.bf16.msra.mxu0 %v2289
    %3472 = vmatprep.mubr.bf16.mxu0 %v3357
    %3473 = vmatmul.mubr.bf16.gmra.mrb[0].mxu0 %v3356
    %v3474 = vpop.f32.mrb[0].mxu0
    %v3475 = vadd.f32 %v1896, %v3474
    %v3476 = vpop.f32.mrb[0].mxu0
    %v3477 = vadd.f32 %v1900, %v3476
    %v3478 = vpop.f32.mrb[0].mxu0
    %v3479 = vpop.f32.mrb[0].mxu0
    %3480 = vdwg.mxu0
    %v3483 = vrot.slane %v3393, 6
    %v3484 = vrot.slane %v3395, 6
    %v3487 = vadd.f32 %v3350, %v3483
    %v3488 = vadd.f32 %v3351, %v3484
    %v3489 = vxor.u32 %v3487, 2147483648
    %v3490 = vxor.u32 %v3488, 2147483648
    %v3491 = vmul.f32 %v3489, 1.442695
    %v3492 = vpow.pop %v3491
    %v3493 = vmul.f32 %v3490, 1.442695
    %v3494 = vpow.pop %v3493
    %v3495 = vadd.f32 %v3492, 1.0
    %v3496 = vadd.f32 %v3494, 1.0
    %v3497 = vrcp.pop %v3495
    %v3498 = vmul.f32 1.0, %v3497
    %v3499 = vrcp.pop %v3496
    %v3500 = vmul.f32 1.0, %v3499
    %v3503 = vrot.slane %v3434, 6
    %v3504 = vrot.slane %v3436, 6
    %v3507 = vadd.f32 %v3352, %v3503
    %v3508 = vadd.f32 %v3353, %v3504
    %v3509 = vxor.u32 %v3507, 2147483648
    %v3510 = vxor.u32 %v3508, 2147483648
    %v3511 = vmul.f32 %v3509, 1.442695
    %v3512 = vpow.pop %v3511
    %v3513 = vmul.f32 %v3510, 1.442695
    %v3514 = vpow.pop %v3513
    %v3515 = vadd.f32 %v3512, 1.0
    %v3516 = vadd.f32 %v3514, 1.0
    %v3517 = vrcp.pop %v3515
    %v3518 = vmul.f32 1.0, %v3517
    %v3519 = vrcp.pop %v3516
    %v3520 = vmul.f32 1.0, %v3519
    %v3523 = vrot.slane %v3475, 6
    %v3524 = vrot.slane %v3477, 6
    %v3527 = vmul.f32 %v3498, %v3523
    %v3528 = vmul.f32 %v3500, %v3524
    %v3529 = vadd.f32 %v3354, %v3527
    %v3530 = vadd.f32 %v3355, %v3528
    %v3531 = vtanh.pop %v3529
    %v3532 = vtanh.pop %v3530
    %v3533 = vsub.f32 1.0, %v3518
    %v3534 = vsub.f32 1.0, %v3520
    %v3535 = vmul.f32 %v3533, %v3531
    %v3536 = vmul.f32 %v3534, %v3532
    %v3539 = vrot.slane %v3346, 6
    %v3540 = vrot.slane %v3347, 6
    %v3543 = vmul.f32 %v3518, %v3539
    %v3544 = vmul.f32 %v3520, %v3540
    %v3545 = vadd.f32 %v3535, %v3543
    %v3546 = vadd.f32 %v3536, %v3544
    %3547 = vst [vmem:[#allocation4 + $0x10] sm:$0xc] %v3545
    %3548 = vst [vmem:[#allocation4 + $0x18] sm:$0xc] %v3546
    %v3549 = vld [vmem:[#allocation3 + $0x30] sm:$0x30]
    %v3550 = vld [vmem:[#allocation3 + $0x38] sm:$0x30]
    %v3551 = vld [vmem:[#allocation3 + $0x40] sm:$0x30]
    %v3552 = vld [vmem:[#allocation3 + $0x48] sm:$0x30]
    %v3553 = vld [vmem:[#allocation3 + $0x50] sm:$0x30]
    %v3554 = vld [vmem:[#allocation3 + $0x58] sm:$0x30]
    %v3555 = vpack.c.bf16 %v3545, %v3545
    %v3556 = vpack.c.bf16 %v3546, %v3546
    %v3559 = vrot.slane %v3555, 1
    %v3560 = vrot.slane %v3556, 1
    %3563 = vmatprep.subr.bf16.mxu0 %v2196
    %3564 = vmatpush1.bf16.msra.mxu0 %v2195
    %3565 = vmatprep.subr.bf16.mxu0 %v2202
    %3566 = vmatpush1.bf16.msra.mxu0 %v2201
    %3567 = vmatprep.subr.bf16.mxu0 %v2208
    %3568 = vmatpush1.bf16.msra.mxu0 %v2207
    %3569 = vmatprep.subr.bf16.mxu0 %v2214
    %3570 = vmatpush1.bf16.msra.mxu0 %v2213
    %3571 = vmatprep.subr.bf16.mxu0 %v2220
    %3572 = vmatpush1.bf16.msra.mxu0 %v2219
    %3573 = vmatprep.subr.bf16.mxu0 %v2226
    %3574 = vmatpush1.bf16.msra.mxu0 %v2225
    %3575 = vmatprep.subr.bf16.mxu0 %v2232
    %3576 = vmatpush1.bf16.msra.mxu0 %v2231
    %3577 = vmatprep.subr.bf16.mxu0 %v2238
    %3578 = vmatpush1.bf16.msra.mxu0 %v2237
    %3579 = vmatprep.subr.bf16.mxu0 %v2244
    %3580 = vmatpush1.bf16.msra.mxu0 %v2243
    %3581 = vmatprep.subr.bf16.mxu0 %v2250
    %3582 = vmatpush1.bf16.msra.mxu0 %v2249
    %3583 = vmatprep.subr.bf16.mxu0 %v2256
    %3584 = vmatpush1.bf16.msra.mxu0 %v2255
    %3585 = vmatprep.subr.bf16.mxu0 %v2262
    %3586 = vmatpush1.bf16.msra.mxu0 %v2261
    %3587 = vmatprep.subr.bf16.mxu0 %v2268
    %3588 = vmatpush1.bf16.msra.mxu0 %v2267
    %3589 = vmatprep.subr.bf16.mxu0 %v2274
    %3590 = vmatpush1.bf16.msra.mxu0 %v2273
    %3591 = vmatprep.subr.bf16.mxu0 %v2280
    %3592 = vmatpush1.bf16.msra.mxu0 %v2279
    %3593 = vmatprep.subr.bf16.mxu0 %v2286
    %3594 = vmatpush1.bf16.msra.mxu0 %v2285
    %3595 = vmatprep.mubr.bf16.mxu0 %v3560
    %3596 = vmatmul.mubr.bf16.gmra.mrb[0].mxu0 %v3559
    %v3597 = vpop.f32.mrb[0].mxu0
    %v3598 = vadd.f32 %v1880, %v3597
    %v3599 = vpop.f32.mrb[0].mxu0
    %v3600 = vadd.f32 %v1884, %v3599
    %v3601 = vpop.f32.mrb[0].mxu0
    %v3602 = vpop.f32.mrb[0].mxu0
    %3603 = vdwg.mxu0
    %3604 = vmatprep.subr.bf16.mxu0 %v2198
    %3605 = vmatpush1.bf16.msra.mxu0 %v2197
    %3606 = vmatprep.subr.bf16.mxu0 %v2204
    %3607 = vmatpush1.bf16.msra.mxu0 %v2203
    %3608 = vmatprep.subr.bf16.mxu0 %v2210
    %3609 = vmatpush1.bf16.msra.mxu0 %v2209
    %3610 = vmatprep.subr.bf16.mxu0 %v2216
    %3611 = vmatpush1.bf16.msra.mxu0 %v2215
    %3612 = vmatprep.subr.bf16.mxu0 %v2222
    %3613 = vmatpush1.bf16.msra.mxu0 %v2221
    %3614 = vmatprep.subr.bf16.mxu0 %v2228
    %3615 = vmatpush1.bf16.msra.mxu0 %v2227
    %3616 = vmatprep.subr.bf16.mxu0 %v2234
    %3617 = vmatpush1.bf16.msra.mxu0 %v2233
    %3618 = vmatprep.subr.bf16.mxu0 %v2240
    %3619 = vmatpush1.bf16.msra.mxu0 %v2239
    %3620 = vmatprep.subr.bf16.mxu0 %v2246
    %3621 = vmatpush1.bf16.msra.mxu0 %v2245
    %3622 = vmatprep.subr.bf16.mxu0 %v2252
    %3623 = vmatpush1.bf16.msra.mxu0 %v2251
    %3624 = vmatprep.subr.bf16.mxu0 %v2258
    %3625 = vmatpush1.bf16.msra.mxu0 %v2257
    %3626 = vmatprep.subr.bf16.mxu0 %v2264
    %3627 = vmatpush1.bf16.msra.mxu0 %v2263
    %3628 = vmatprep.subr.bf16.mxu0 %v2270
    %3629 = vmatpush1.bf16.msra.mxu0 %v2269
    %3630 = vmatprep.subr.bf16.mxu0 %v2276
    %3631 = vmatpush1.bf16.msra.mxu0 %v2275
    %3632 = vmatprep.subr.bf16.mxu0 %v2282
    %3633 = vmatpush1.bf16.msra.mxu0 %v2281
    %3634 = vmatprep.subr.bf16.mxu0 %v2288
    %3635 = vmatpush1.bf16.msra.mxu0 %v2287
    %3636 = vmatprep.mubr.bf16.mxu0 %v3560
    %3637 = vmatmul.mubr.bf16.gmra.mrb[0].mxu0 %v3559
    %v3638 = vpop.f32.mrb[0].mxu0
    %v3639 = vadd.f32 %v1888, %v3638
    %v3640 = vpop.f32.mrb[0].mxu0
    %v3641 = vadd.f32 %v1892, %v3640
    %v3642 = vpop.f32.mrb[0].mxu0
    %v3643 = vpop.f32.mrb[0].mxu0
    %3644 = vdwg.mxu0
    %3645 = vmatprep.subr.bf16.mxu0 %v2200
    %3646 = vmatpush1.bf16.msra.mxu0 %v2199
    %3647 = vmatprep.subr.bf16.mxu0 %v2206
    %3648 = vmatpush1.bf16.msra.mxu0 %v2205
    %3649 = vmatprep.subr.bf16.mxu0 %v2212
    %3650 = vmatpush1.bf16.msra.mxu0 %v2211
    %3651 = vmatprep.subr.bf16.mxu0 %v2218
    %3652 = vmatpush1.bf16.msra.mxu0 %v2217
    %3653 = vmatprep.subr.bf16.mxu0 %v2224
    %3654 = vmatpush1.bf16.msra.mxu0 %v2223
    %3655 = vmatprep.subr.bf16.mxu0 %v2230
    %3656 = vmatpush1.bf16.msra.mxu0 %v2229
    %3657 = vmatprep.subr.bf16.mxu0 %v2236
    %3658 = vmatpush1.bf16.msra.mxu0 %v2235
    %3659 = vmatprep.subr.bf16.mxu0 %v2242
    %3660 = vmatpush1.bf16.msra.mxu0 %v2241
    %3661 = vmatprep.subr.bf16.mxu0 %v2248
    %3662 = vmatpush1.bf16.msra.mxu0 %v2247
    %3663 = vmatprep.subr.bf16.mxu0 %v2254
    %3664 = vmatpush1.bf16.msra.mxu0 %v2253
    %3665 = vmatprep.subr.bf16.mxu0 %v2260
    %3666 = vmatpush1.bf16.msra.mxu0 %v2259
    %3667 = vmatprep.subr.bf16.mxu0 %v2266
    %3668 = vmatpush1.bf16.msra.mxu0 %v2265
    %3669 = vmatprep.subr.bf16.mxu0 %v2272
    %3670 = vmatpush1.bf16.msra.mxu0 %v2271
    %3671 = vmatprep.subr.bf16.mxu0 %v2278
    %3672 = vmatpush1.bf16.msra.mxu0 %v2277
    %3673 = vmatprep.subr.bf16.mxu0 %v2284
    %3674 = vmatpush1.bf16.msra.mxu0 %v2283
    %3675 = vmatprep.subr.bf16.mxu0 %v2290
    %3676 = vmatpush1.bf16.msra.mxu0 %v2289
    %3677 = vmatprep.mubr.bf16.mxu0 %v3560
    %3678 = vmatmul.mubr.bf16.gmra.mrb[0].mxu0 %v3559
    %v3679 = vpop.f32.mrb[0].mxu0
    %v3680 = vadd.f32 %v1896, %v3679
    %v3681 = vpop.f32.mrb[0].mxu0
    %v3682 = vadd.f32 %v1900, %v3681
    %v3683 = vpop.f32.mrb[0].mxu0
    %v3684 = vpop.f32.mrb[0].mxu0
    %3685 = vdwg.mxu0
    %v3688 = vrot.slane %v3598, 4
    %v3689 = vrot.slane %v3600, 4
    %v3692 = vadd.f32 %v3549, %v3688
    %v3693 = vadd.f32 %v3550, %v3689
    %v3694 = vxor.u32 %v3692, 2147483648
    %v3695 = vxor.u32 %v3693, 2147483648
    %v3696 = vmul.f32 %v3694, 1.442695
    %v3697 = vpow.pop %v3696
    %v3698 = vmul.f32 %v3695, 1.442695
    %v3699 = vpow.pop %v3698
    %v3700 = vadd.f32 %v3697, 1.0
    %v3701 = vadd.f32 %v3699, 1.0
    %v3702 = vrcp.pop %v3700
    %v3703 = vmul.f32 1.0, %v3702
    %v3704 = vrcp.pop %v3701
    %v3705 = vmul.f32 1.0, %v3704
    %v3708 = vrot.slane %v3639, 4
    %v3709 = vrot.slane %v3641, 4
    %v3712 = vadd.f32 %v3551, %v3708
    %v3713 = vadd.f32 %v3552, %v3709
    %v3714 = vxor.u32 %v3712, 2147483648
    %v3715 = vxor.u32 %v3713, 2147483648
    %v3716 = vmul.f32 %v3714, 1.442695
    %v3717 = vpow.pop %v3716
    %v3718 = vmul.f32 %v3715, 1.442695
    %v3719 = vpow.pop %v3718
    %v3720 = vadd.f32 %v3717, 1.0
    %v3721 = vadd.f32 %v3719, 1.0
    %v3722 = vrcp.pop %v3720
    %v3723 = vmul.f32 1.0, %v3722
    %v3724 = vrcp.pop %v3721
    %v3725 = vmul.f32 1.0, %v3724
    %v3728 = vrot.slane %v3680, 4
    %v3729 = vrot.slane %v3682, 4
    %v3732 = vmul.f32 %v3703, %v3728
    %v3733 = vmul.f32 %v3705, %v3729
    %v3734 = vadd.f32 %v3553, %v3732
    %v3735 = vadd.f32 %v3554, %v3733
    %v3736 = vtanh.pop %v3734
    %v3737 = vtanh.pop %v3735
    %v3738 = vsub.f32 1.0, %v3723
    %v3739 = vsub.f32 1.0, %v3725
    %v3740 = vmul.f32 %v3738, %v3736
    %v3741 = vmul.f32 %v3739, %v3737
    %v3744 = vrot.slane %v3545, 6
    %v3745 = vrot.slane %v3546, 6
    %v3748 = vmul.f32 %v3723, %v3744
    %v3749 = vmul.f32 %v3725, %v3745
    %v3750 = vadd.f32 %v3740, %v3748
    %v3751 = vadd.f32 %v3741, %v3749
    %3752 = vst [vmem:[#allocation4 + $0x10] sm:$0x30] %v3750
    %3753 = vst [vmem:[#allocation4 + $0x18] sm:$0x30] %v3751
    %v3754 = vld [vmem:[#allocation3 + $0x30] sm:$0xc0]
    %v3755 = vld [vmem:[#allocation3 + $0x38] sm:$0xc0]
    %v3756 = vld [vmem:[#allocation3 + $0x40] sm:$0xc0]
    %v3757 = vld [vmem:[#allocation3 + $0x48] sm:$0xc0]
    %v3758 = vld [vmem:[#allocation3 + $0x50] sm:$0xc0]
    %v3759 = vld [vmem:[#allocation3 + $0x58] sm:$0xc0]
    %v3760 = vpack.c.bf16 %v3750, %v3750
    %v3761 = vpack.c.bf16 %v3751, %v3751
    %v3764 = vrot.slane %v3760, 2
    %v3765 = vrot.slane %v3761, 2
    %3768 = vmatprep.subr.bf16.mxu0 %v2196
    %3769 = vmatpush1.bf16.msra.mxu0 %v2195
    %3770 = vmatprep.subr.bf16.mxu0 %v2202
    %3771 = vmatpush1.bf16.msra.mxu0 %v2201
    %3772 = vmatprep.subr.bf16.mxu0 %v2208
    %3773 = vmatpush1.bf16.msra.mxu0 %v2207
    %3774 = vmatprep.subr.bf16.mxu0 %v2214
    %3775 = vmatpush1.bf16.msra.mxu0 %v2213
    %3776 = vmatprep.subr.bf16.mxu0 %v2220
    %3777 = vmatpush1.bf16.msra.mxu0 %v2219
    %3778 = vmatprep.subr.bf16.mxu0 %v2226
    %3779 = vmatpush1.bf16.msra.mxu0 %v2225
    %3780 = vmatprep.subr.bf16.mxu0 %v2232
    %3781 = vmatpush1.bf16.msra.mxu0 %v2231
    %3782 = vmatprep.subr.bf16.mxu0 %v2238
    %3783 = vmatpush1.bf16.msra.mxu0 %v2237
    %3784 = vmatprep.subr.bf16.mxu0 %v2244
    %3785 = vmatpush1.bf16.msra.mxu0 %v2243
    %3786 = vmatprep.subr.bf16.mxu0 %v2250
    %3787 = vmatpush1.bf16.msra.mxu0 %v2249
    %3788 = vmatprep.subr.bf16.mxu0 %v2256
    %3789 = vmatpush1.bf16.msra.mxu0 %v2255
    %3790 = vmatprep.subr.bf16.mxu0 %v2262
    %3791 = vmatpush1.bf16.msra.mxu0 %v2261
    %3792 = vmatprep.subr.bf16.mxu0 %v2268
    %3793 = vmatpush1.bf16.msra.mxu0 %v2267
    %3794 = vmatprep.subr.bf16.mxu0 %v2274
    %3795 = vmatpush1.bf16.msra.mxu0 %v2273
    %3796 = vmatprep.subr.bf16.mxu0 %v2280
    %3797 = vmatpush1.bf16.msra.mxu0 %v2279
    %3798 = vmatprep.subr.bf16.mxu0 %v2286
    %3799 = vmatpush1.bf16.msra.mxu0 %v2285
    %3800 = vmatprep.mubr.bf16.mxu0 %v3765
    %3801 = vmatmul.mubr.bf16.gmra.mrb[0].mxu0 %v3764
    %v3802 = vpop.f32.mrb[0].mxu0
    %v3803 = vadd.f32 %v1880, %v3802
    %v3804 = vpop.f32.mrb[0].mxu0
    %v3805 = vadd.f32 %v1884, %v3804
    %v3806 = vpop.f32.mrb[0].mxu0
    %v3807 = vpop.f32.mrb[0].mxu0
    %3808 = vdwg.mxu0
    %3809 = vmatprep.subr.bf16.mxu0 %v2198
    %3810 = vmatpush1.bf16.msra.mxu0 %v2197
    %3811 = vmatprep.subr.bf16.mxu0 %v2204
    %3812 = vmatpush1.bf16.msra.mxu0 %v2203
    %3813 = vmatprep.subr.bf16.mxu0 %v2210
    %3814 = vmatpush1.bf16.msra.mxu0 %v2209
    %3815 = vmatprep.subr.bf16.mxu0 %v2216
    %3816 = vmatpush1.bf16.msra.mxu0 %v2215
    %3817 = vmatprep.subr.bf16.mxu0 %v2222
    %3818 = vmatpush1.bf16.msra.mxu0 %v2221
    %3819 = vmatprep.subr.bf16.mxu0 %v2228
    %3820 = vmatpush1.bf16.msra.mxu0 %v2227
    %3821 = vmatprep.subr.bf16.mxu0 %v2234
    %3822 = vmatpush1.bf16.msra.mxu0 %v2233
    %3823 = vmatprep.subr.bf16.mxu0 %v2240
    %3824 = vmatpush1.bf16.msra.mxu0 %v2239
    %3825 = vmatprep.subr.bf16.mxu0 %v2246
    %3826 = vmatpush1.bf16.msra.mxu0 %v2245
    %3827 = vmatprep.subr.bf16.mxu0 %v2252
    %3828 = vmatpush1.bf16.msra.mxu0 %v2251
    %3829 = vmatprep.subr.bf16.mxu0 %v2258
    %3830 = vmatpush1.bf16.msra.mxu0 %v2257
    %3831 = vmatprep.subr.bf16.mxu0 %v2264
    %3832 = vmatpush1.bf16.msra.mxu0 %v2263
    %3833 = vmatprep.subr.bf16.mxu0 %v2270
    %3834 = vmatpush1.bf16.msra.mxu0 %v2269
    %3835 = vmatprep.subr.bf16.mxu0 %v2276
    %3836 = vmatpush1.bf16.msra.mxu0 %v2275
    %3837 = vmatprep.subr.bf16.mxu0 %v2282
    %3838 = vmatpush1.bf16.msra.mxu0 %v2281
    %3839 = vmatprep.subr.bf16.mxu0 %v2288
    %3840 = vmatpush1.bf16.msra.mxu0 %v2287
    %3841 = vmatprep.mubr.bf16.mxu0 %v3765
    %3842 = vmatmul.mubr.bf16.gmra.mrb[0].mxu0 %v3764
    %v3843 = vpop.f32.mrb[0].mxu0
    %v3844 = vadd.f32 %v1888, %v3843
    %v3845 = vpop.f32.mrb[0].mxu0
    %v3846 = vadd.f32 %v1892, %v3845
    %v3847 = vpop.f32.mrb[0].mxu0
    %v3848 = vpop.f32.mrb[0].mxu0
    %3849 = vdwg.mxu0
    %3850 = vmatprep.subr.bf16.mxu0 %v2200
    %3851 = vmatpush1.bf16.msra.mxu0 %v2199
    %3852 = vmatprep.subr.bf16.mxu0 %v2206
    %3853 = vmatpush1.bf16.msra.mxu0 %v2205
    %3854 = vmatprep.subr.bf16.mxu0 %v2212
    %3855 = vmatpush1.bf16.msra.mxu0 %v2211
    %3856 = vmatprep.subr.bf16.mxu0 %v2218
    %3857 = vmatpush1.bf16.msra.mxu0 %v2217
    %3858 = vmatprep.subr.bf16.mxu0 %v2224
    %3859 = vmatpush1.bf16.msra.mxu0 %v2223
    %3860 = vmatprep.subr.bf16.mxu0 %v2230
    %3861 = vmatpush1.bf16.msra.mxu0 %v2229
    %3862 = vmatprep.subr.bf16.mxu0 %v2236
    %3863 = vmatpush1.bf16.msra.mxu0 %v2235
    %3864 = vmatprep.subr.bf16.mxu0 %v2242
    %3865 = vmatpush1.bf16.msra.mxu0 %v2241
    %3866 = vmatprep.subr.bf16.mxu0 %v2248
    %3867 = vmatpush1.bf16.msra.mxu0 %v2247
    %3868 = vmatprep.subr.bf16.mxu0 %v2254
    %3869 = vmatpush1.bf16.msra.mxu0 %v2253
    %3870 = vmatprep.subr.bf16.mxu0 %v2260
    %3871 = vmatpush1.bf16.msra.mxu0 %v2259
    %3872 = vmatprep.subr.bf16.mxu0 %v2266
    %3873 = vmatpush1.bf16.msra.mxu0 %v2265
    %3874 = vmatprep.subr.bf16.mxu0 %v2272
    %3875 = vmatpush1.bf16.msra.mxu0 %v2271
    %3876 = vmatprep.subr.bf16.mxu0 %v2278
    %3877 = vmatpush1.bf16.msra.mxu0 %v2277
    %3878 = vmatprep.subr.bf16.mxu0 %v2284
    %3879 = vmatpush1.bf16.msra.mxu0 %v2283
    %3880 = vmatprep.subr.bf16.mxu0 %v2290
    %3881 = vmatpush1.bf16.msra.mxu0 %v2289
    %3882 = vmatprep.mubr.bf16.mxu0 %v3765
    %3883 = vmatmul.mubr.bf16.gmra.mrb[0].mxu0 %v3764
    %v3884 = vpop.f32.mrb[0].mxu0
    %v3885 = vadd.f32 %v1896, %v3884
    %v3886 = vpop.f32.mrb[0].mxu0
    %v3887 = vadd.f32 %v1900, %v3886
    %v3888 = vpop.f32.mrb[0].mxu0
    %v3889 = vpop.f32.mrb[0].mxu0
    %3890 = vdwg.mxu0
    %v3893 = vrot.slane %v3803, 2
    %v3894 = vrot.slane %v3805, 2
    %v3897 = vadd.f32 %v3754, %v3893
    %v3898 = vadd.f32 %v3755, %v3894
    %v3899 = vxor.u32 %v3897, 2147483648
    %v3900 = vxor.u32 %v3898, 2147483648
    %v3901 = vmul.f32 %v3899, 1.442695
    %v3902 = vpow.pop %v3901
    %v3903 = vmul.f32 %v3900, 1.442695
    %v3904 = vpow.pop %v3903
    %v3905 = vadd.f32 %v3902, 1.0
    %v3906 = vadd.f32 %v3904, 1.0
    %v3907 = vrcp.pop %v3905
    %v3908 = vmul.f32 1.0, %v3907
    %v3909 = vrcp.pop %v3906
    %v3910 = vmul.f32 1.0, %v3909
    %v3913 = vrot.slane %v3844, 2
    %v3914 = vrot.slane %v3846, 2
    %v3917 = vadd.f32 %v3756, %v3913
    %v3918 = vadd.f32 %v3757, %v3914
    %v3919 = vxor.u32 %v3917, 2147483648
    %v3920 = vxor.u32 %v3918, 2147483648
    %v3921 = vmul.f32 %v3919, 1.442695
    %v3922 = vpow.pop %v3921
    %v3923 = vmul.f32 %v3920, 1.442695
    %v3924 = vpow.pop %v3923
    %v3925 = vadd.f32 %v3922, 1.0
    %v3926 = vadd.f32 %v3924, 1.0
    %v3927 = vrcp.pop %v3925
    %v3928 = vmul.f32 1.0, %v3927
    %v3929 = vrcp.pop %v3926
    %v3930 = vmul.f32 1.0, %v3929
    %v3933 = vrot.slane %v3885, 2
    %v3934 = vrot.slane %v3887, 2
    %v3937 = vmul.f32 %v3908, %v3933
    %v3938 = vmul.f32 %v3910, %v3934
    %v3939 = vadd.f32 %v3758, %v3937
    %v3940 = vadd.f32 %v3759, %v3938
    %v3941 = vtanh.pop %v3939
    %v3942 = vtanh.pop %v3940
    %v3943 = vsub.f32 1.0, %v3928
    %v3944 = vsub.f32 1.0, %v3930
    %v3945 = vmul.f32 %v3943, %v3941
    %v3946 = vmul.f32 %v3944, %v3942
    %v3949 = vrot.slane %v3750, 6
    %v3950 = vrot.slane %v3751, 6
    %v3953 = vmul.f32 %v3928, %v3949
    %v3954 = vmul.f32 %v3930, %v3950
    %v3955 = vadd.f32 %v3945, %v3953
    %v3956 = vadd.f32 %v3946, %v3954
    %3957 = vst [vmem:[#allocation4 + $0x10] sm:$0xc0] %v3955
    %3958 = vst [vmem:[#allocation4 + $0x18] sm:$0xc0] %v3956
    %v3959 = vld [vmem:[#allocation4] sm:$0xff]
    %v3960 = vld [vmem:[#allocation4 + $0x8] sm:$0xff]
    %v3961 = vld [vmem:[#allocation4 + $0x10] sm:$0xff]
    %v3962 = vld [vmem:[#allocation4 + $0x18] sm:$0xff]
    %v3963 = vld [vmem:[#allocation31] sm:$0xc]
    %v3964 = vld [vmem:[#allocation31 + $0x8] sm:$0xc]
    %v3965 = vpack.c.bf16 %v3961, %v3959
    %v3966 = vpack.c.bf16 %v3962, %v3960
    %v3967 = vld [vmem:[#allocation19] sm:$0xff]
    %v3968 = vld [vmem:[#allocation19 + $0x8] sm:$0xff]
    %v3969 = vld [vmem:[#allocation19 + $0x10] sm:$0xff]
    %v3970 = vld [vmem:[#allocation19 + $0x18] sm:$0xff]
    %v3971 = vld [vmem:[#allocation19 + $0x20] sm:$0xff]
    %v3972 = vld [vmem:[#allocation19 + $0x28] sm:$0xff]
    %v3973 = vld [vmem:[#allocation19 + $0x30] sm:$0xff]
    %v3974 = vld [vmem:[#allocation19 + $0x38] sm:$0xff]
    %v3975 = vld [vmem:[#allocation19 + $0x40] sm:$0xff]
    %v3976 = vld [vmem:[#allocation19 + $0x48] sm:$0xff]
    %v3977 = vld [vmem:[#allocation19 + $0x50] sm:$0xff]
    %v3978 = vld [vmem:[#allocation19 + $0x58] sm:$0xff]
    %v3979 = vld [vmem:[#allocation19 + $0x60] sm:$0xff]
    %v3980 = vld [vmem:[#allocation19 + $0x68] sm:$0xff]
    %v3981 = vld [vmem:[#allocation19 + $0x70] sm:$0xff]
    %v3982 = vld [vmem:[#allocation19 + $0x78] sm:$0xff]
    %v3983 = vld [vmem:[#allocation19 + $0x80] sm:$0xff]
    %v3984 = vld [vmem:[#allocation19 + $0x88] sm:$0xff]
    %v3985 = vld [vmem:[#allocation19 + $0x90] sm:$0xff]
    %v3986 = vld [vmem:[#allocation19 + $0x98] sm:$0xff]
    %v3987 = vld [vmem:[#allocation19 + $0xa0] sm:$0xff]
    %v3988 = vld [vmem:[#allocation19 + $0xa8] sm:$0xff]
    %v3989 = vld [vmem:[#allocation19 + $0xb0] sm:$0xff]
    %v3990 = vld [vmem:[#allocation19 + $0xb8] sm:$0xff]
    %v3991 = vld [vmem:[#allocation19 + $0xc0] sm:$0xff]
    %v3992 = vld [vmem:[#allocation19 + $0xc8] sm:$0xff]
    %v3993 = vld [vmem:[#allocation19 + $0xd0] sm:$0xff]
    %v3994 = vld [vmem:[#allocation19 + $0xd8] sm:$0xff]
    %v3995 = vld [vmem:[#allocation19 + $0xe0] sm:$0xff]
    %v3996 = vld [vmem:[#allocation19 + $0xe8] sm:$0xff]
    %v3997 = vld [vmem:[#allocation19 + $0xf0] sm:$0xff]
    %v3998 = vld [vmem:[#allocation19 + $0xf8] sm:$0xff]
    %v3999 = vld [vmem:[#allocation19 + $0x100] sm:$0xff]
    %v4000 = vld [vmem:[#allocation19 + $0x108] sm:$0xff]
    %v4001 = vld [vmem:[#allocation19 + $0x110] sm:$0xff]
    %v4002 = vld [vmem:[#allocation19 + $0x118] sm:$0xff]
    %v4003 = vld [vmem:[#allocation19 + $0x120] sm:$0xff]
    %v4004 = vld [vmem:[#allocation19 + $0x128] sm:$0xff]
    %v4005 = vld [vmem:[#allocation19 + $0x130] sm:$0xff]
    %v4006 = vld [vmem:[#allocation19 + $0x138] sm:$0xff]
    %v4007 = vld [vmem:[#allocation19 + $0x140] sm:$0xff]
    %v4008 = vld [vmem:[#allocation19 + $0x148] sm:$0xff]
    %v4009 = vld [vmem:[#allocation19 + $0x150] sm:$0xff]
    %v4010 = vld [vmem:[#allocation19 + $0x158] sm:$0xff]
    %v4011 = vld [vmem:[#allocation19 + $0x160] sm:$0xff]
    %v4012 = vld [vmem:[#allocation19 + $0x168] sm:$0xff]
    %v4013 = vld [vmem:[#allocation19 + $0x170] sm:$0xff]
    %v4014 = vld [vmem:[#allocation19 + $0x178] sm:$0xff]
    %v4015 = vld [vmem:[#allocation19 + $0x180] sm:$0xff]
    %v4016 = vld [vmem:[#allocation19 + $0x188] sm:$0xff]
    %v4017 = vld [vmem:[#allocation19 + $0x190] sm:$0xff]
    %v4018 = vld [vmem:[#allocation19 + $0x198] sm:$0xff]
    %v4019 = vld [vmem:[#allocation19 + $0x1a0] sm:$0xff]
    %v4020 = vld [vmem:[#allocation19 + $0x1a8] sm:$0xff]
    %v4021 = vld [vmem:[#allocation19 + $0x1b0] sm:$0xff]
    %v4022 = vld [vmem:[#allocation19 + $0x1b8] sm:$0xff]
    %v4023 = vld [vmem:[#allocation19 + $0x1c0] sm:$0xff]
    %v4024 = vld [vmem:[#allocation19 + $0x1c8] sm:$0xff]
    %v4025 = vld [vmem:[#allocation19 + $0x1d0] sm:$0xff]
    %v4026 = vld [vmem:[#allocation19 + $0x1d8] sm:$0xff]
    %v4027 = vld [vmem:[#allocation19 + $0x1e0] sm:$0xff]
    %v4028 = vld [vmem:[#allocation19 + $0x1e8] sm:$0xff]
    %v4029 = vld [vmem:[#allocation19 + $0x1f0] sm:$0xff]
    %v4030 = vld [vmem:[#allocation19 + $0x1f8] sm:$0xff]
    %v4031 = vld [vmem:[#allocation19 + $0x200] sm:$0xff]
    %v4032 = vld [vmem:[#allocation19 + $0x208] sm:$0xff]
    %v4033 = vld [vmem:[#allocation19 + $0x210] sm:$0xff]
    %v4034 = vld [vmem:[#allocation19 + $0x218] sm:$0xff]
    %v4035 = vld [vmem:[#allocation19 + $0x220] sm:$0xff]
    %v4036 = vld [vmem:[#allocation19 + $0x228] sm:$0xff]
    %v4037 = vld [vmem:[#allocation19 + $0x230] sm:$0xff]
    %v4038 = vld [vmem:[#allocation19 + $0x238] sm:$0xff]
    %v4039 = vld [vmem:[#allocation19 + $0x240] sm:$0xff]
    %v4040 = vld [vmem:[#allocation19 + $0x248] sm:$0xff]
    %v4041 = vld [vmem:[#allocation19 + $0x250] sm:$0xff]
    %v4042 = vld [vmem:[#allocation19 + $0x258] sm:$0xff]
    %v4043 = vld [vmem:[#allocation19 + $0x260] sm:$0xff]
    %v4044 = vld [vmem:[#allocation19 + $0x268] sm:$0xff]
    %v4045 = vld [vmem:[#allocation19 + $0x270] sm:$0xff]
    %v4046 = vld [vmem:[#allocation19 + $0x278] sm:$0xff]
    %v4047 = vld [vmem:[#allocation19 + $0x280] sm:$0xff]
    %v4048 = vld [vmem:[#allocation19 + $0x288] sm:$0xff]
    %v4049 = vld [vmem:[#allocation19 + $0x290] sm:$0xff]
    %v4050 = vld [vmem:[#allocation19 + $0x298] sm:$0xff]
    %v4051 = vld [vmem:[#allocation19 + $0x2a0] sm:$0xff]
    %v4052 = vld [vmem:[#allocation19 + $0x2a8] sm:$0xff]
    %v4053 = vld [vmem:[#allocation19 + $0x2b0] sm:$0xff]
    %v4054 = vld [vmem:[#allocation19 + $0x2b8] sm:$0xff]
    %v4055 = vld [vmem:[#allocation19 + $0x2c0] sm:$0xff]
    %v4056 = vld [vmem:[#allocation19 + $0x2c8] sm:$0xff]
    %v4057 = vld [vmem:[#allocation19 + $0x2d0] sm:$0xff]
    %v4058 = vld [vmem:[#allocation19 + $0x2d8] sm:$0xff]
    %v4059 = vld [vmem:[#allocation19 + $0x2e0] sm:$0xff]
    %v4060 = vld [vmem:[#allocation19 + $0x2e8] sm:$0xff]
    %v4061 = vld [vmem:[#allocation19 + $0x2f0] sm:$0xff]
    %v4062 = vld [vmem:[#allocation19 + $0x2f8] sm:$0xff]
    %v4063 = vld [vmem:[#allocation22] ss:$2 sm:$0x3f]
    %v4065 = vlaneseq
    %v4066 = vshrl.u32 %v4065, 7
    %v4067 = vsub.s32 0, %v4066
    %v4068 = vrot.slane %v4063, %v4067
    %v4069 = vlaneseq
    %v4070 = vshrl.u32 %v4069, 7
    %v4071 = vsub.s32 1, %v4070
    %v4072 = vrot.slane %v4063, %v4071
    %v4073 = vlaneseq
    %v4074 = vshrl.u32 %v4073, 7
    %v4075 = vsub.s32 2, %v4074
    %v4076 = vrot.slane %v4063, %v4075
    %v4077 = vlaneseq
    %v4078 = vshrl.u32 %v4077, 7
    %v4079 = vsub.s32 3, %v4078
    %v4080 = vrot.slane %v4063, %v4079
    %v4081 = vlaneseq
    %v4082 = vshrl.u32 %v4081, 7
    %v4083 = vsub.s32 4, %v4082
    %v4084 = vrot.slane %v4063, %v4083
    %v4085 = vlaneseq
    %v4086 = vshrl.u32 %v4085, 7
    %v4087 = vsub.s32 5, %v4086
    %v4088 = vrot.slane %v4063, %v4087
    %v4191 = vunpack.c.l.b16 %v3967
    %v4192 = vunpack.c.h.b16 %v3967
    %v4193 = vunpack.c.l.b16 %v3968
    %v4194 = vunpack.c.h.b16 %v3968
    %v4195 = vunpack.c.l.b16 %v3969
    %v4196 = vunpack.c.h.b16 %v3969
    %v4197 = vunpack.c.l.b16 %v3970
    %v4198 = vunpack.c.h.b16 %v3970
    %v4199 = vunpack.c.l.b16 %v3971
    %v4200 = vunpack.c.h.b16 %v3971
    %v4201 = vunpack.c.l.b16 %v3972
    %v4202 = vunpack.c.h.b16 %v3972
    %v4203 = vunpack.c.l.b16 %v3973
    %v4204 = vunpack.c.h.b16 %v3973
    %v4205 = vunpack.c.l.b16 %v3974
    %v4206 = vunpack.c.h.b16 %v3974
    %v4207 = vunpack.c.l.b16 %v3975
    %v4208 = vunpack.c.h.b16 %v3975
    %v4209 = vunpack.c.l.b16 %v3976
    %v4210 = vunpack.c.h.b16 %v3976
    %v4211 = vunpack.c.l.b16 %v3977
    %v4212 = vunpack.c.h.b16 %v3977
    %v4213 = vunpack.c.l.b16 %v3978
    %v4214 = vunpack.c.h.b16 %v3978
    %v4215 = vunpack.c.l.b16 %v3979
    %v4216 = vunpack.c.h.b16 %v3979
    %v4217 = vunpack.c.l.b16 %v3980
    %v4218 = vunpack.c.h.b16 %v3980
    %v4219 = vunpack.c.l.b16 %v3981
    %v4220 = vunpack.c.h.b16 %v3981
    %v4221 = vunpack.c.l.b16 %v3982
    %v4222 = vunpack.c.h.b16 %v3982
    %v4223 = vunpack.c.l.b16 %v3983
    %v4224 = vunpack.c.h.b16 %v3983
    %v4225 = vunpack.c.l.b16 %v3984
    %v4226 = vunpack.c.h.b16 %v3984
    %v4227 = vunpack.c.l.b16 %v3985
    %v4228 = vunpack.c.h.b16 %v3985
    %v4229 = vunpack.c.l.b16 %v3986
    %v4230 = vunpack.c.h.b16 %v3986
    %v4231 = vunpack.c.l.b16 %v3987
    %v4232 = vunpack.c.h.b16 %v3987
    %v4233 = vunpack.c.l.b16 %v3988
    %v4234 = vunpack.c.h.b16 %v3988
    %v4235 = vunpack.c.l.b16 %v3989
    %v4236 = vunpack.c.h.b16 %v3989
    %v4237 = vunpack.c.l.b16 %v3990
    %v4238 = vunpack.c.h.b16 %v3990
    %v4239 = vunpack.c.l.b16 %v3991
    %v4240 = vunpack.c.h.b16 %v3991
    %v4241 = vunpack.c.l.b16 %v3992
    %v4242 = vunpack.c.h.b16 %v3992
    %v4243 = vunpack.c.l.b16 %v3993
    %v4244 = vunpack.c.h.b16 %v3993
    %v4245 = vunpack.c.l.b16 %v3994
    %v4246 = vunpack.c.h.b16 %v3994
    %v4247 = vunpack.c.l.b16 %v3995
    %v4248 = vunpack.c.h.b16 %v3995
    %v4249 = vunpack.c.l.b16 %v3996
    %v4250 = vunpack.c.h.b16 %v3996
    %v4251 = vunpack.c.l.b16 %v3997
    %v4252 = vunpack.c.h.b16 %v3997
    %v4253 = vunpack.c.l.b16 %v3998
    %v4254 = vunpack.c.h.b16 %v3998
    %v4255 = vunpack.c.l.b16 %v3999
    %v4256 = vunpack.c.h.b16 %v3999
    %v4257 = vunpack.c.l.b16 %v4000
    %v4258 = vunpack.c.h.b16 %v4000
    %v4259 = vunpack.c.l.b16 %v4001
    %v4260 = vunpack.c.h.b16 %v4001
    %v4261 = vunpack.c.l.b16 %v4002
    %v4262 = vunpack.c.h.b16 %v4002
    %v4263 = vunpack.c.l.b16 %v4003
    %v4264 = vunpack.c.h.b16 %v4003
    %v4265 = vunpack.c.l.b16 %v4004
    %v4266 = vunpack.c.h.b16 %v4004
    %v4267 = vunpack.c.l.b16 %v4005
    %v4268 = vunpack.c.h.b16 %v4005
    %v4269 = vunpack.c.l.b16 %v4006
    %v4270 = vunpack.c.h.b16 %v4006
    %v4271 = vunpack.c.l.b16 %v4007
    %v4272 = vunpack.c.h.b16 %v4007
    %v4273 = vunpack.c.l.b16 %v4008
    %v4274 = vunpack.c.h.b16 %v4008
    %v4275 = vunpack.c.l.b16 %v4009
    %v4276 = vunpack.c.h.b16 %v4009
    %v4277 = vunpack.c.l.b16 %v4010
    %v4278 = vunpack.c.h.b16 %v4010
    %v4279 = vunpack.c.l.b16 %v4011
    %v4280 = vunpack.c.h.b16 %v4011
    %v4281 = vunpack.c.l.b16 %v4012
    %v4282 = vunpack.c.h.b16 %v4012
    %v4283 = vunpack.c.l.b16 %v4013
    %v4284 = vunpack.c.h.b16 %v4013
    %v4285 = vunpack.c.l.b16 %v4014
    %v4286 = vunpack.c.h.b16 %v4014
    %v4287 = vunpack.c.l.b16 %v4015
    %v4288 = vunpack.c.h.b16 %v4015
    %v4289 = vunpack.c.l.b16 %v4016
    %v4290 = vunpack.c.h.b16 %v4016
    %v4291 = vunpack.c.l.b16 %v4017
    %v4292 = vunpack.c.h.b16 %v4017
    %v4293 = vunpack.c.l.b16 %v4018
    %v4294 = vunpack.c.h.b16 %v4018
    %v4295 = vunpack.c.l.b16 %v4019
    %v4296 = vunpack.c.h.b16 %v4019
    %v4297 = vunpack.c.l.b16 %v4020
    %v4298 = vunpack.c.h.b16 %v4020
    %v4299 = vunpack.c.l.b16 %v4021
    %v4300 = vunpack.c.h.b16 %v4021
    %v4301 = vunpack.c.l.b16 %v4022
    %v4302 = vunpack.c.h.b16 %v4022
    %v4303 = vunpack.c.l.b16 %v4023
    %v4304 = vunpack.c.h.b16 %v4023
    %v4305 = vunpack.c.l.b16 %v4024
    %v4306 = vunpack.c.h.b16 %v4024
    %v4307 = vunpack.c.l.b16 %v4025
    %v4308 = vunpack.c.h.b16 %v4025
    %v4309 = vunpack.c.l.b16 %v4026
    %v4310 = vunpack.c.h.b16 %v4026
    %v4311 = vunpack.c.l.b16 %v4027
    %v4312 = vunpack.c.h.b16 %v4027
    %v4313 = vunpack.c.l.b16 %v4028
    %v4314 = vunpack.c.h.b16 %v4028
    %v4315 = vunpack.c.l.b16 %v4029
    %v4316 = vunpack.c.h.b16 %v4029
    %v4317 = vunpack.c.l.b16 %v4030
    %v4318 = vunpack.c.h.b16 %v4030
    %v4319 = vunpack.c.l.b16 %v4031
    %v4320 = vunpack.c.h.b16 %v4031
    %v4321 = vunpack.c.l.b16 %v4032
    %v4322 = vunpack.c.h.b16 %v4032
    %v4323 = vunpack.c.l.b16 %v4033
    %v4324 = vunpack.c.h.b16 %v4033
    %v4325 = vunpack.c.l.b16 %v4034
    %v4326 = vunpack.c.h.b16 %v4034
    %v4327 = vunpack.c.l.b16 %v4035
    %v4328 = vunpack.c.h.b16 %v4035
    %v4329 = vunpack.c.l.b16 %v4036
    %v4330 = vunpack.c.h.b16 %v4036
    %v4331 = vunpack.c.l.b16 %v4037
    %v4332 = vunpack.c.h.b16 %v4037
    %v4333 = vunpack.c.l.b16 %v4038
    %v4334 = vunpack.c.h.b16 %v4038
    %v4335 = vunpack.c.l.b16 %v4039
    %v4336 = vunpack.c.h.b16 %v4039
    %v4337 = vunpack.c.l.b16 %v4040
    %v4338 = vunpack.c.h.b16 %v4040
    %v4339 = vunpack.c.l.b16 %v4041
    %v4340 = vunpack.c.h.b16 %v4041
    %v4341 = vunpack.c.l.b16 %v4042
    %v4342 = vunpack.c.h.b16 %v4042
    %v4343 = vunpack.c.l.b16 %v4043
    %v4344 = vunpack.c.h.b16 %v4043
    %v4345 = vunpack.c.l.b16 %v4044
    %v4346 = vunpack.c.h.b16 %v4044
    %v4347 = vunpack.c.l.b16 %v4045
    %v4348 = vunpack.c.h.b16 %v4045
    %v4349 = vunpack.c.l.b16 %v4046
    %v4350 = vunpack.c.h.b16 %v4046
    %v4351 = vunpack.c.l.b16 %v4047
    %v4352 = vunpack.c.h.b16 %v4047
    %v4353 = vunpack.c.l.b16 %v4048
    %v4354 = vunpack.c.h.b16 %v4048
    %v4355 = vunpack.c.l.b16 %v4049
    %v4356 = vunpack.c.h.b16 %v4049
    %v4357 = vunpack.c.l.b16 %v4050
    %v4358 = vunpack.c.h.b16 %v4050
    %v4359 = vunpack.c.l.b16 %v4051
    %v4360 = vunpack.c.h.b16 %v4051
    %v4361 = vunpack.c.l.b16 %v4052
    %v4362 = vunpack.c.h.b16 %v4052
    %v4363 = vunpack.c.l.b16 %v4053
    %v4364 = vunpack.c.h.b16 %v4053
    %v4365 = vunpack.c.l.b16 %v4054
    %v4366 = vunpack.c.h.b16 %v4054
    %v4367 = vunpack.c.l.b16 %v4055
    %v4368 = vunpack.c.h.b16 %v4055
    %v4369 = vunpack.c.l.b16 %v4056
    %v4370 = vunpack.c.h.b16 %v4056
    %v4371 = vunpack.c.l.b16 %v4057
    %v4372 = vunpack.c.h.b16 %v4057
    %v4373 = vunpack.c.l.b16 %v4058
    %v4374 = vunpack.c.h.b16 %v4058
    %v4375 = vunpack.c.l.b16 %v4059
    %v4376 = vunpack.c.h.b16 %v4059
    %v4377 = vunpack.c.l.b16 %v4060
    %v4378 = vunpack.c.h.b16 %v4060
    %v4379 = vunpack.c.l.b16 %v4061
    %v4380 = vunpack.c.h.b16 %v4061
    %v4381 = vunpack.c.l.b16 %v4062
    %v4382 = vunpack.c.h.b16 %v4062
    %v4383 = vpack.c.b16 %v4197, %v4191
    %v4384 = vpack.c.b16 %v4198, %v4192
    %v4385 = vpack.c.b16 %v4199, %v4193
    %v4386 = vpack.c.b16 %v4200, %v4194
    %v4387 = vpack.c.b16 %v4201, %v4195
    %v4388 = vpack.c.b16 %v4202, %v4196
    %v4389 = vpack.c.b16 %v4209, %v4203
    %v4390 = vpack.c.b16 %v4210, %v4204
    %v4391 = vpack.c.b16 %v4211, %v4205
    %v4392 = vpack.c.b16 %v4212, %v4206
    %v4393 = vpack.c.b16 %v4213, %v4207
    %v4394 = vpack.c.b16 %v4214, %v4208
    %v4395 = vpack.c.b16 %v4221, %v4215
    %v4396 = vpack.c.b16 %v4222, %v4216
    %v4397 = vpack.c.b16 %v4223, %v4217
    %v4398 = vpack.c.b16 %v4224, %v4218
    %v4399 = vpack.c.b16 %v4225, %v4219
    %v4400 = vpack.c.b16 %v4226, %v4220
    %v4401 = vpack.c.b16 %v4233, %v4227
    %v4402 = vpack.c.b16 %v4234, %v4228
    %v4403 = vpack.c.b16 %v4235, %v4229
    %v4404 = vpack.c.b16 %v4236, %v4230
    %v4405 = vpack.c.b16 %v4237, %v4231
    %v4406 = vpack.c.b16 %v4238, %v4232
    %v4407 = vpack.c.b16 %v4245, %v4239
    %v4408 = vpack.c.b16 %v4246, %v4240
    %v4409 = vpack.c.b16 %v4247, %v4241
    %v4410 = vpack.c.b16 %v4248, %v4242
    %v4411 = vpack.c.b16 %v4249, %v4243
    %v4412 = vpack.c.b16 %v4250, %v4244
    %v4413 = vpack.c.b16 %v4257, %v4251
    %v4414 = vpack.c.b16 %v4258, %v4252
    %v4415 = vpack.c.b16 %v4259, %v4253
    %v4416 = vpack.c.b16 %v4260, %v4254
    %v4417 = vpack.c.b16 %v4261, %v4255
    %v4418 = vpack.c.b16 %v4262, %v4256
    %v4419 = vpack.c.b16 %v4269, %v4263
    %v4420 = vpack.c.b16 %v4270, %v4264
    %v4421 = vpack.c.b16 %v4271, %v4265
    %v4422 = vpack.c.b16 %v4272, %v4266
    %v4423 = vpack.c.b16 %v4273, %v4267
    %v4424 = vpack.c.b16 %v4274, %v4268
    %v4425 = vpack.c.b16 %v4281, %v4275
    %v4426 = vpack.c.b16 %v4282, %v4276
    %v4427 = vpack.c.b16 %v4283, %v4277
    %v4428 = vpack.c.b16 %v4284, %v4278
    %v4429 = vpack.c.b16 %v4285, %v4279
    %v4430 = vpack.c.b16 %v4286, %v4280
    %v4431 = vpack.c.b16 %v4293, %v4287
    %v4432 = vpack.c.b16 %v4294, %v4288
    %v4433 = vpack.c.b16 %v4295, %v4289
    %v4434 = vpack.c.b16 %v4296, %v4290
    %v4435 = vpack.c.b16 %v4297, %v4291
    %v4436 = vpack.c.b16 %v4298, %v4292
    %v4437 = vpack.c.b16 %v4305, %v4299
    %v4438 = vpack.c.b16 %v4306, %v4300
    %v4439 = vpack.c.b16 %v4307, %v4301
    %v4440 = vpack.c.b16 %v4308, %v4302
    %v4441 = vpack.c.b16 %v4309, %v4303
    %v4442 = vpack.c.b16 %v4310, %v4304
    %v4443 = vpack.c.b16 %v4317, %v4311
    %v4444 = vpack.c.b16 %v4318, %v4312
    %v4445 = vpack.c.b16 %v4319, %v4313
    %v4446 = vpack.c.b16 %v4320, %v4314
    %v4447 = vpack.c.b16 %v4321, %v4315
    %v4448 = vpack.c.b16 %v4322, %v4316
    %v4449 = vpack.c.b16 %v4329, %v4323
    %v4450 = vpack.c.b16 %v4330, %v4324
    %v4451 = vpack.c.b16 %v4331, %v4325
    %v4452 = vpack.c.b16 %v4332, %v4326
    %v4453 = vpack.c.b16 %v4333, %v4327
    %v4454 = vpack.c.b16 %v4334, %v4328
    %v4455 = vpack.c.b16 %v4341, %v4335
    %v4456 = vpack.c.b16 %v4342, %v4336
    %v4457 = vpack.c.b16 %v4343, %v4337
    %v4458 = vpack.c.b16 %v4344, %v4338
    %v4459 = vpack.c.b16 %v4345, %v4339
    %v4460 = vpack.c.b16 %v4346, %v4340
    %v4461 = vpack.c.b16 %v4353, %v4347
    %v4462 = vpack.c.b16 %v4354, %v4348
    %v4463 = vpack.c.b16 %v4355, %v4349
    %v4464 = vpack.c.b16 %v4356, %v4350
    %v4465 = vpack.c.b16 %v4357, %v4351
    %v4466 = vpack.c.b16 %v4358, %v4352
    %v4467 = vpack.c.b16 %v4365, %v4359
    %v4468 = vpack.c.b16 %v4366, %v4360
    %v4469 = vpack.c.b16 %v4367, %v4361
    %v4470 = vpack.c.b16 %v4368, %v4362
    %v4471 = vpack.c.b16 %v4369, %v4363
    %v4472 = vpack.c.b16 %v4370, %v4364
    %v4473 = vpack.c.b16 %v4377, %v4371
    %v4474 = vpack.c.b16 %v4378, %v4372
    %v4475 = vpack.c.b16 %v4379, %v4373
    %v4476 = vpack.c.b16 %v4380, %v4374
    %v4477 = vpack.c.b16 %v4381, %v4375
    %v4478 = vpack.c.b16 %v4382, %v4376
    %4575 = vmatprep.subr.bf16.mxu0 %v4384
    %4576 = vmatpush1.bf16.msra.mxu0 %v4383
    %4577 = vmatprep.subr.bf16.mxu0 %v4390
    %4578 = vmatpush1.bf16.msra.mxu0 %v4389
    %4579 = vmatprep.subr.bf16.mxu0 %v4396
    %4580 = vmatpush1.bf16.msra.mxu0 %v4395
    %4581 = vmatprep.subr.bf16.mxu0 %v4402
    %4582 = vmatpush1.bf16.msra.mxu0 %v4401
    %4583 = vmatprep.subr.bf16.mxu0 %v4408
    %4584 = vmatpush1.bf16.msra.mxu0 %v4407
    %4585 = vmatprep.subr.bf16.mxu0 %v4414
    %4586 = vmatpush1.bf16.msra.mxu0 %v4413
    %4587 = vmatprep.subr.bf16.mxu0 %v4420
    %4588 = vmatpush1.bf16.msra.mxu0 %v4419
    %4589 = vmatprep.subr.bf16.mxu0 %v4426
    %4590 = vmatpush1.bf16.msra.mxu0 %v4425
    %4591 = vmatprep.subr.bf16.mxu0 %v4432
    %4592 = vmatpush1.bf16.msra.mxu0 %v4431
    %4593 = vmatprep.subr.bf16.mxu0 %v4438
    %4594 = vmatpush1.bf16.msra.mxu0 %v4437
    %4595 = vmatprep.subr.bf16.mxu0 %v4444
    %4596 = vmatpush1.bf16.msra.mxu0 %v4443
    %4597 = vmatprep.subr.bf16.mxu0 %v4450
    %4598 = vmatpush1.bf16.msra.mxu0 %v4449
    %4599 = vmatprep.subr.bf16.mxu0 %v4456
    %4600 = vmatpush1.bf16.msra.mxu0 %v4455
    %4601 = vmatprep.subr.bf16.mxu0 %v4462
    %4602 = vmatpush1.bf16.msra.mxu0 %v4461
    %4603 = vmatprep.subr.bf16.mxu0 %v4468
    %4604 = vmatpush1.bf16.msra.mxu0 %v4467
    %4605 = vmatprep.subr.bf16.mxu0 %v4474
    %4606 = vmatpush1.bf16.msra.mxu0 %v4473
    %4607 = vmatprep.mubr.bf16.mxu0 %v3966
    %4608 = vmatmul.mubr.bf16.gmra.mrb[0].mxu0 %v3965
    %v4609 = vpop.f32.mrb[0].mxu0
    %v4610 = vadd.f32 %v4068, %v4609
    %v4611 = vpop.f32.mrb[0].mxu0
    %v4612 = vadd.f32 %v4072, %v4611
    %v4613 = vpop.f32.mrb[0].mxu0
    %v4614 = vadd.f32 %v4068, %v4613
    %v4615 = vpop.f32.mrb[0].mxu0
    %v4616 = vadd.f32 %v4072, %v4615
    %4617 = vdwg.mxu0
    %4618 = vmatprep.subr.bf16.mxu0 %v4386
    %4619 = vmatpush1.bf16.msra.mxu0 %v4385
    %4620 = vmatprep.subr.bf16.mxu0 %v4392
    %4621 = vmatpush1.bf16.msra.mxu0 %v4391
    %4622 = vmatprep.subr.bf16.mxu0 %v4398
    %4623 = vmatpush1.bf16.msra.mxu0 %v4397
    %4624 = vmatprep.subr.bf16.mxu0 %v4404
    %4625 = vmatpush1.bf16.msra.mxu0 %v4403
    %4626 = vmatprep.subr.bf16.mxu0 %v4410
    %4627 = vmatpush1.bf16.msra.mxu0 %v4409
    %4628 = vmatprep.subr.bf16.mxu0 %v4416
    %4629 = vmatpush1.bf16.msra.mxu0 %v4415
    %4630 = vmatprep.subr.bf16.mxu0 %v4422
    %4631 = vmatpush1.bf16.msra.mxu0 %v4421
    %4632 = vmatprep.subr.bf16.mxu0 %v4428
    %4633 = vmatpush1.bf16.msra.mxu0 %v4427
    %4634 = vmatprep.subr.bf16.mxu0 %v4434
    %4635 = vmatpush1.bf16.msra.mxu0 %v4433
    %4636 = vmatprep.subr.bf16.mxu0 %v4440
    %4637 = vmatpush1.bf16.msra.mxu0 %v4439
    %4638 = vmatprep.subr.bf16.mxu0 %v4446
    %4639 = vmatpush1.bf16.msra.mxu0 %v4445
    %4640 = vmatprep.subr.bf16.mxu0 %v4452
    %4641 = vmatpush1.bf16.msra.mxu0 %v4451
    %4642 = vmatprep.subr.bf16.mxu0 %v4458
    %4643 = vmatpush1.bf16.msra.mxu0 %v4457
    %4644 = vmatprep.subr.bf16.mxu0 %v4464
    %4645 = vmatpush1.bf16.msra.mxu0 %v4463
    %4646 = vmatprep.subr.bf16.mxu0 %v4470
    %4647 = vmatpush1.bf16.msra.mxu0 %v4469
    %4648 = vmatprep.subr.bf16.mxu0 %v4476
    %4649 = vmatpush1.bf16.msra.mxu0 %v4475
    %4650 = vmatprep.mubr.bf16.mxu0 %v3966
    %4651 = vmatmul.mubr.bf16.gmra.mrb[0].mxu0 %v3965
    %v4652 = vpop.f32.mrb[0].mxu0
    %v4653 = vadd.f32 %v4076, %v4652
    %v4654 = vpop.f32.mrb[0].mxu0
    %v4655 = vadd.f32 %v4080, %v4654
    %v4656 = vpop.f32.mrb[0].mxu0
    %v4657 = vadd.f32 %v4076, %v4656
    %v4658 = vpop.f32.mrb[0].mxu0
    %v4659 = vadd.f32 %v4080, %v4658
    %4660 = vdwg.mxu0
    %4661 = vmatprep.subr.bf16.mxu0 %v4388
    %4662 = vmatpush1.bf16.msra.mxu0 %v4387
    %4663 = vmatprep.subr.bf16.mxu0 %v4394
    %4664 = vmatpush1.bf16.msra.mxu0 %v4393
    %4665 = vmatprep.subr.bf16.mxu0 %v4400
    %4666 = vmatpush1.bf16.msra.mxu0 %v4399
    %4667 = vmatprep.subr.bf16.mxu0 %v4406
    %4668 = vmatpush1.bf16.msra.mxu0 %v4405
    %4669 = vmatprep.subr.bf16.mxu0 %v4412
    %4670 = vmatpush1.bf16.msra.mxu0 %v4411
    %4671 = vmatprep.subr.bf16.mxu0 %v4418
    %4672 = vmatpush1.bf16.msra.mxu0 %v4417
    %4673 = vmatprep.subr.bf16.mxu0 %v4424
    %4674 = vmatpush1.bf16.msra.mxu0 %v4423
    %4675 = vmatprep.subr.bf16.mxu0 %v4430
    %4676 = vmatpush1.bf16.msra.mxu0 %v4429
    %4677 = vmatprep.subr.bf16.mxu0 %v4436
    %4678 = vmatpush1.bf16.msra.mxu0 %v4435
    %4679 = vmatprep.subr.bf16.mxu0 %v4442
    %4680 = vmatpush1.bf16.msra.mxu0 %v4441
    %4681 = vmatprep.subr.bf16.mxu0 %v4448
    %4682 = vmatpush1.bf16.msra.mxu0 %v4447
    %4683 = vmatprep.subr.bf16.mxu0 %v4454
    %4684 = vmatpush1.bf16.msra.mxu0 %v4453
    %4685 = vmatprep.subr.bf16.mxu0 %v4460
    %4686 = vmatpush1.bf16.msra.mxu0 %v4459
    %4687 = vmatprep.subr.bf16.mxu0 %v4466
    %4688 = vmatpush1.bf16.msra.mxu0 %v4465
    %4689 = vmatprep.subr.bf16.mxu0 %v4472
    %4690 = vmatpush1.bf16.msra.mxu0 %v4471
    %4691 = vmatprep.subr.bf16.mxu0 %v4478
    %4692 = vmatpush1.bf16.msra.mxu0 %v4477
    %4693 = vmatprep.mubr.bf16.mxu0 %v3966
    %4694 = vmatmul.mubr.bf16.gmra.mrb[0].mxu0 %v3965
    %v4695 = vpop.f32.mrb[0].mxu0
    %v4696 = vadd.f32 %v4084, %v4695
    %v4697 = vpop.f32.mrb[0].mxu0
    %v4698 = vadd.f32 %v4088, %v4697
    %v4699 = vpop.f32.mrb[0].mxu0
    %v4700 = vadd.f32 %v4084, %v4699
    %v4701 = vpop.f32.mrb[0].mxu0
    %v4702 = vadd.f32 %v4088, %v4701
    %4703 = vdwg.mxu0
    %4704 = vst [vmem:[#allocation3] sm:$0xff] %v4610
    %4705 = vst [vmem:[#allocation3 + $0x8] sm:$0xff] %v4612
    %4706 = vst [vmem:[#allocation3 + $0x10] sm:$0xff] %v4653
    %4707 = vst [vmem:[#allocation3 + $0x18] sm:$0xff] %v4655
    %4708 = vst [vmem:[#allocation3 + $0x20] sm:$0xff] %v4696
    %4709 = vst [vmem:[#allocation3 + $0x28] sm:$0xff] %v4698
    %4710 = vst [vmem:[#allocation3 + $0x30] sm:$0xff] %v4614
    %4711 = vst [vmem:[#allocation3 + $0x38] sm:$0xff] %v4616
    %4712 = vst [vmem:[#allocation3 + $0x40] sm:$0xff] %v4657
    %4713 = vst [vmem:[#allocation3 + $0x48] sm:$0xff] %v4659
    %4714 = vst [vmem:[#allocation3 + $0x50] sm:$0xff] %v4700
    %4715 = vst [vmem:[#allocation3 + $0x58] sm:$0xff] %v4702
    %v4716 = vld [vmem:[#allocation20] sm:$0xff]
    %v4717 = vld [vmem:[#allocation20 + $0x8] sm:$0xff]
    %v4718 = vld [vmem:[#allocation20 + $0x10] sm:$0xff]
    %v4719 = vld [vmem:[#allocation20 + $0x18] sm:$0xff]
    %v4720 = vld [vmem:[#allocation20 + $0x20] sm:$0xff]
    %v4721 = vld [vmem:[#allocation20 + $0x28] sm:$0xff]
    %v4722 = vld [vmem:[#allocation20 + $0x30] sm:$0xff]
    %v4723 = vld [vmem:[#allocation20 + $0x38] sm:$0xff]
    %v4724 = vld [vmem:[#allocation20 + $0x40] sm:$0xff]
    %v4725 = vld [vmem:[#allocation20 + $0x48] sm:$0xff]
    %v4726 = vld [vmem:[#allocation20 + $0x50] sm:$0xff]
    %v4727 = vld [vmem:[#allocation20 + $0x58] sm:$0xff]
    %v4728 = vld [vmem:[#allocation20 + $0x60] sm:$0xff]
    %v4729 = vld [vmem:[#allocation20 + $0x68] sm:$0xff]
    %v4730 = vld [vmem:[#allocation20 + $0x70] sm:$0xff]
    %v4731 = vld [vmem:[#allocation20 + $0x78] sm:$0xff]
    %v4732 = vld [vmem:[#allocation20 + $0x80] sm:$0xff]
    %v4733 = vld [vmem:[#allocation20 + $0x88] sm:$0xff]
    %v4734 = vld [vmem:[#allocation20 + $0x90] sm:$0xff]
    %v4735 = vld [vmem:[#allocation20 + $0x98] sm:$0xff]
    %v4736 = vld [vmem:[#allocation20 + $0xa0] sm:$0xff]
    %v4737 = vld [vmem:[#allocation20 + $0xa8] sm:$0xff]
    %v4738 = vld [vmem:[#allocation20 + $0xb0] sm:$0xff]
    %v4739 = vld [vmem:[#allocation20 + $0xb8] sm:$0xff]
    %v4740 = vld [vmem:[#allocation20 + $0xc0] sm:$0xff]
    %v4741 = vld [vmem:[#allocation20 + $0xc8] sm:$0xff]
    %v4742 = vld [vmem:[#allocation20 + $0xd0] sm:$0xff]
    %v4743 = vld [vmem:[#allocation20 + $0xd8] sm:$0xff]
    %v4744 = vld [vmem:[#allocation20 + $0xe0] sm:$0xff]
    %v4745 = vld [vmem:[#allocation20 + $0xe8] sm:$0xff]
    %v4746 = vld [vmem:[#allocation20 + $0xf0] sm:$0xff]
    %v4747 = vld [vmem:[#allocation20 + $0xf8] sm:$0xff]
    %v4748 = vld [vmem:[#allocation20 + $0x100] sm:$0xff]
    %v4749 = vld [vmem:[#allocation20 + $0x108] sm:$0xff]
    %v4750 = vld [vmem:[#allocation20 + $0x110] sm:$0xff]
    %v4751 = vld [vmem:[#allocation20 + $0x118] sm:$0xff]
    %v4752 = vld [vmem:[#allocation20 + $0x120] sm:$0xff]
    %v4753 = vld [vmem:[#allocation20 + $0x128] sm:$0xff]
    %v4754 = vld [vmem:[#allocation20 + $0x130] sm:$0xff]
    %v4755 = vld [vmem:[#allocation20 + $0x138] sm:$0xff]
    %v4756 = vld [vmem:[#allocation20 + $0x140] sm:$0xff]
    %v4757 = vld [vmem:[#allocation20 + $0x148] sm:$0xff]
    %v4758 = vld [vmem:[#allocation20 + $0x150] sm:$0xff]
    %v4759 = vld [vmem:[#allocation20 + $0x158] sm:$0xff]
    %v4760 = vld [vmem:[#allocation20 + $0x160] sm:$0xff]
    %v4761 = vld [vmem:[#allocation20 + $0x168] sm:$0xff]
    %v4762 = vld [vmem:[#allocation20 + $0x170] sm:$0xff]
    %v4763 = vld [vmem:[#allocation20 + $0x178] sm:$0xff]
    %v4764 = vld [vmem:[#allocation20 + $0x180] sm:$0xff]
    %v4765 = vld [vmem:[#allocation20 + $0x188] sm:$0xff]
    %v4766 = vld [vmem:[#allocation20 + $0x190] sm:$0xff]
    %v4767 = vld [vmem:[#allocation20 + $0x198] sm:$0xff]
    %v4768 = vld [vmem:[#allocation20 + $0x1a0] sm:$0xff]
    %v4769 = vld [vmem:[#allocation20 + $0x1a8] sm:$0xff]
    %v4770 = vld [vmem:[#allocation20 + $0x1b0] sm:$0xff]
    %v4771 = vld [vmem:[#allocation20 + $0x1b8] sm:$0xff]
    %v4772 = vld [vmem:[#allocation20 + $0x1c0] sm:$0xff]
    %v4773 = vld [vmem:[#allocation20 + $0x1c8] sm:$0xff]
    %v4774 = vld [vmem:[#allocation20 + $0x1d0] sm:$0xff]
    %v4775 = vld [vmem:[#allocation20 + $0x1d8] sm:$0xff]
    %v4776 = vld [vmem:[#allocation20 + $0x1e0] sm:$0xff]
    %v4777 = vld [vmem:[#allocation20 + $0x1e8] sm:$0xff]
    %v4778 = vld [vmem:[#allocation20 + $0x1f0] sm:$0xff]
    %v4779 = vld [vmem:[#allocation20 + $0x1f8] sm:$0xff]
    %v4780 = vld [vmem:[#allocation20 + $0x200] sm:$0xff]
    %v4781 = vld [vmem:[#allocation20 + $0x208] sm:$0xff]
    %v4782 = vld [vmem:[#allocation20 + $0x210] sm:$0xff]
    %v4783 = vld [vmem:[#allocation20 + $0x218] sm:$0xff]
    %v4784 = vld [vmem:[#allocation20 + $0x220] sm:$0xff]
    %v4785 = vld [vmem:[#allocation20 + $0x228] sm:$0xff]
    %v4786 = vld [vmem:[#allocation20 + $0x230] sm:$0xff]
    %v4787 = vld [vmem:[#allocation20 + $0x238] sm:$0xff]
    %v4788 = vld [vmem:[#allocation20 + $0x240] sm:$0xff]
    %v4789 = vld [vmem:[#allocation20 + $0x248] sm:$0xff]
    %v4790 = vld [vmem:[#allocation20 + $0x250] sm:$0xff]
    %v4791 = vld [vmem:[#allocation20 + $0x258] sm:$0xff]
    %v4792 = vld [vmem:[#allocation20 + $0x260] sm:$0xff]
    %v4793 = vld [vmem:[#allocation20 + $0x268] sm:$0xff]
    %v4794 = vld [vmem:[#allocation20 + $0x270] sm:$0xff]
    %v4795 = vld [vmem:[#allocation20 + $0x278] sm:$0xff]
    %v4796 = vld [vmem:[#allocation20 + $0x280] sm:$0xff]
    %v4797 = vld [vmem:[#allocation20 + $0x288] sm:$0xff]
    %v4798 = vld [vmem:[#allocation20 + $0x290] sm:$0xff]
    %v4799 = vld [vmem:[#allocation20 + $0x298] sm:$0xff]
    %v4800 = vld [vmem:[#allocation20 + $0x2a0] sm:$0xff]
    %v4801 = vld [vmem:[#allocation20 + $0x2a8] sm:$0xff]
    %v4802 = vld [vmem:[#allocation20 + $0x2b0] sm:$0xff]
    %v4803 = vld [vmem:[#allocation20 + $0x2b8] sm:$0xff]
    %v4804 = vld [vmem:[#allocation20 + $0x2c0] sm:$0xff]
    %v4805 = vld [vmem:[#allocation20 + $0x2c8] sm:$0xff]
    %v4806 = vld [vmem:[#allocation20 + $0x2d0] sm:$0xff]
    %v4807 = vld [vmem:[#allocation20 + $0x2d8] sm:$0xff]
    %v4808 = vld [vmem:[#allocation20 + $0x2e0] sm:$0xff]
    %v4809 = vld [vmem:[#allocation20 + $0x2e8] sm:$0xff]
    %v4810 = vld [vmem:[#allocation20 + $0x2f0] sm:$0xff]
    %v4811 = vld [vmem:[#allocation20 + $0x2f8] sm:$0xff]
    %s4812 = scalar_lea.vmem [#allocation22], 1
    %v4813 = vld [vmem:[%s4812] ss:$2 sm:$0x3f]
    %v4814 = vld [vmem:[#allocation3] sm:$0x3]
    %v4815 = vld [vmem:[#allocation3 + $0x8] sm:$0x3]
    %v4816 = vld [vmem:[#allocation3 + $0x10] sm:$0x3]
    %v4817 = vld [vmem:[#allocation3 + $0x18] sm:$0x3]
    %v4818 = vld [vmem:[#allocation3 + $0x20] sm:$0x3]
    %v4819 = vld [vmem:[#allocation3 + $0x28] sm:$0x3]
    %v4820 = vpack.c.bf16 %v3963, %v3963
    %v4821 = vpack.c.bf16 %v3964, %v3964
    %v4823 = vlaneseq
    %v4824 = vshrl.u32 %v4823, 7
    %v4825 = vsub.s32 0, %v4824
    %v4826 = vrot.slane %v4813, %v4825
    %v4827 = vlaneseq
    %v4828 = vshrl.u32 %v4827, 7
    %v4829 = vsub.s32 1, %v4828
    %v4830 = vrot.slane %v4813, %v4829
    %v4831 = vlaneseq
    %v4832 = vshrl.u32 %v4831, 7
    %v4833 = vsub.s32 2, %v4832
    %v4834 = vrot.slane %v4813, %v4833
    %v4835 = vlaneseq
    %v4836 = vshrl.u32 %v4835, 7
    %v4837 = vsub.s32 3, %v4836
    %v4838 = vrot.slane %v4813, %v4837
    %v4839 = vlaneseq
    %v4840 = vshrl.u32 %v4839, 7
    %v4841 = vsub.s32 4, %v4840
    %v4842 = vrot.slane %v4813, %v4841
    %v4843 = vlaneseq
    %v4844 = vshrl.u32 %v4843, 7
    %v4845 = vsub.s32 5, %v4844
    %v4846 = vrot.slane %v4813, %v4845
    %v4855 = vrot.slane %v4820, 1
    %v4856 = vrot.slane %v4821, 1
    %v4955 = vunpack.c.l.b16 %v4716
    %v4956 = vunpack.c.h.b16 %v4716
    %v4957 = vunpack.c.l.b16 %v4717
    %v4958 = vunpack.c.h.b16 %v4717
    %v4959 = vunpack.c.l.b16 %v4718
    %v4960 = vunpack.c.h.b16 %v4718
    %v4961 = vunpack.c.l.b16 %v4719
    %v4962 = vunpack.c.h.b16 %v4719
    %v4963 = vunpack.c.l.b16 %v4720
    %v4964 = vunpack.c.h.b16 %v4720
    %v4965 = vunpack.c.l.b16 %v4721
    %v4966 = vunpack.c.h.b16 %v4721
    %v4967 = vunpack.c.l.b16 %v4722
    %v4968 = vunpack.c.h.b16 %v4722
    %v4969 = vunpack.c.l.b16 %v4723
    %v4970 = vunpack.c.h.b16 %v4723
    %v4971 = vunpack.c.l.b16 %v4724
    %v4972 = vunpack.c.h.b16 %v4724
    %v4973 = vunpack.c.l.b16 %v4725
    %v4974 = vunpack.c.h.b16 %v4725
    %v4975 = vunpack.c.l.b16 %v4726
    %v4976 = vunpack.c.h.b16 %v4726
    %v4977 = vunpack.c.l.b16 %v4727
    %v4978 = vunpack.c.h.b16 %v4727
    %v4979 = vunpack.c.l.b16 %v4728
    %v4980 = vunpack.c.h.b16 %v4728
    %v4981 = vunpack.c.l.b16 %v4729
    %v4982 = vunpack.c.h.b16 %v4729
    %v4983 = vunpack.c.l.b16 %v4730
    %v4984 = vunpack.c.h.b16 %v4730
    %v4985 = vunpack.c.l.b16 %v4731
    %v4986 = vunpack.c.h.b16 %v4731
    %v4987 = vunpack.c.l.b16 %v4732
    %v4988 = vunpack.c.h.b16 %v4732
    %v4989 = vunpack.c.l.b16 %v4733
    %v4990 = vunpack.c.h.b16 %v4733
    %v4991 = vunpack.c.l.b16 %v4734
    %v4992 = vunpack.c.h.b16 %v4734
    %v4993 = vunpack.c.l.b16 %v4735
    %v4994 = vunpack.c.h.b16 %v4735
    %v4995 = vunpack.c.l.b16 %v4736
    %v4996 = vunpack.c.h.b16 %v4736
    %v4997 = vunpack.c.l.b16 %v4737
    %v4998 = vunpack.c.h.b16 %v4737
    %v4999 = vunpack.c.l.b16 %v4738
    %v5000 = vunpack.c.h.b16 %v4738
    %v5001 = vunpack.c.l.b16 %v4739
    %v5002 = vunpack.c.h.b16 %v4739
    %v5003 = vunpack.c.l.b16 %v4740
    %v5004 = vunpack.c.h.b16 %v4740
    %v5005 = vunpack.c.l.b16 %v4741
    %v5006 = vunpack.c.h.b16 %v4741
    %v5007 = vunpack.c.l.b16 %v4742
    %v5008 = vunpack.c.h.b16 %v4742
    %v5009 = vunpack.c.l.b16 %v4743
    %v5010 = vunpack.c.h.b16 %v4743
    %v5011 = vunpack.c.l.b16 %v4744
    %v5012 = vunpack.c.h.b16 %v4744
    %v5013 = vunpack.c.l.b16 %v4745
    %v5014 = vunpack.c.h.b16 %v4745
    %v5015 = vunpack.c.l.b16 %v4746
    %v5016 = vunpack.c.h.b16 %v4746
    %v5017 = vunpack.c.l.b16 %v4747
    %v5018 = vunpack.c.h.b16 %v4747
    %v5019 = vunpack.c.l.b16 %v4748
    %v5020 = vunpack.c.h.b16 %v4748
    %v5021 = vunpack.c.l.b16 %v4749
    %v5022 = vunpack.c.h.b16 %v4749
    %v5023 = vunpack.c.l.b16 %v4750
    %v5024 = vunpack.c.h.b16 %v4750
    %v5025 = vunpack.c.l.b16 %v4751
    %v5026 = vunpack.c.h.b16 %v4751
    %v5027 = vunpack.c.l.b16 %v4752
    %v5028 = vunpack.c.h.b16 %v4752
    %v5029 = vunpack.c.l.b16 %v4753
    %v5030 = vunpack.c.h.b16 %v4753
    %v5031 = vunpack.c.l.b16 %v4754
    %v5032 = vunpack.c.h.b16 %v4754
    %v5033 = vunpack.c.l.b16 %v4755
    %v5034 = vunpack.c.h.b16 %v4755
    %v5035 = vunpack.c.l.b16 %v4756
    %v5036 = vunpack.c.h.b16 %v4756
    %v5037 = vunpack.c.l.b16 %v4757
    %v5038 = vunpack.c.h.b16 %v4757
    %v5039 = vunpack.c.l.b16 %v4758
    %v5040 = vunpack.c.h.b16 %v4758
    %v5041 = vunpack.c.l.b16 %v4759
    %v5042 = vunpack.c.h.b16 %v4759
    %v5043 = vunpack.c.l.b16 %v4760
    %v5044 = vunpack.c.h.b16 %v4760
    %v5045 = vunpack.c.l.b16 %v4761
    %v5046 = vunpack.c.h.b16 %v4761
    %v5047 = vunpack.c.l.b16 %v4762
    %v5048 = vunpack.c.h.b16 %v4762
    %v5049 = vunpack.c.l.b16 %v4763
    %v5050 = vunpack.c.h.b16 %v4763
    %v5051 = vunpack.c.l.b16 %v4764
    %v5052 = vunpack.c.h.b16 %v4764
    %v5053 = vunpack.c.l.b16 %v4765
    %v5054 = vunpack.c.h.b16 %v4765
    %v5055 = vunpack.c.l.b16 %v4766
    %v5056 = vunpack.c.h.b16 %v4766
    %v5057 = vunpack.c.l.b16 %v4767
    %v5058 = vunpack.c.h.b16 %v4767
    %v5059 = vunpack.c.l.b16 %v4768
    %v5060 = vunpack.c.h.b16 %v4768
    %v5061 = vunpack.c.l.b16 %v4769
    %v5062 = vunpack.c.h.b16 %v4769
    %v5063 = vunpack.c.l.b16 %v4770
    %v5064 = vunpack.c.h.b16 %v4770
    %v5065 = vunpack.c.l.b16 %v4771
    %v5066 = vunpack.c.h.b16 %v4771
    %v5067 = vunpack.c.l.b16 %v4772
    %v5068 = vunpack.c.h.b16 %v4772
    %v5069 = vunpack.c.l.b16 %v4773
    %v5070 = vunpack.c.h.b16 %v4773
    %v5071 = vunpack.c.l.b16 %v4774
    %v5072 = vunpack.c.h.b16 %v4774
    %v5073 = vunpack.c.l.b16 %v4775
    %v5074 = vunpack.c.h.b16 %v4775
    %v5075 = vunpack.c.l.b16 %v4776
    %v5076 = vunpack.c.h.b16 %v4776
    %v5077 = vunpack.c.l.b16 %v4777
    %v5078 = vunpack.c.h.b16 %v4777
    %v5079 = vunpack.c.l.b16 %v4778
    %v5080 = vunpack.c.h.b16 %v4778
    %v5081 = vunpack.c.l.b16 %v4779
    %v5082 = vunpack.c.h.b16 %v4779
    %v5083 = vunpack.c.l.b16 %v4780
    %v5084 = vunpack.c.h.b16 %v4780
    %v5085 = vunpack.c.l.b16 %v4781
    %v5086 = vunpack.c.h.b16 %v4781
    %v5087 = vunpack.c.l.b16 %v4782
    %v5088 = vunpack.c.h.b16 %v4782
    %v5089 = vunpack.c.l.b16 %v4783
    %v5090 = vunpack.c.h.b16 %v4783
    %v5091 = vunpack.c.l.b16 %v4784
    %v5092 = vunpack.c.h.b16 %v4784
    %v5093 = vunpack.c.l.b16 %v4785
    %v5094 = vunpack.c.h.b16 %v4785
    %v5095 = vunpack.c.l.b16 %v4786
    %v5096 = vunpack.c.h.b16 %v4786
    %v5097 = vunpack.c.l.b16 %v4787
    %v5098 = vunpack.c.h.b16 %v4787
    %v5099 = vunpack.c.l.b16 %v4788
    %v5100 = vunpack.c.h.b16 %v4788
    %v5101 = vunpack.c.l.b16 %v4789
    %v5102 = vunpack.c.h.b16 %v4789
    %v5103 = vunpack.c.l.b16 %v4790
    %v5104 = vunpack.c.h.b16 %v4790
    %v5105 = vunpack.c.l.b16 %v4791
    %v5106 = vunpack.c.h.b16 %v4791
    %v5107 = vunpack.c.l.b16 %v4792
    %v5108 = vunpack.c.h.b16 %v4792
    %v5109 = vunpack.c.l.b16 %v4793
    %v5110 = vunpack.c.h.b16 %v4793
    %v5111 = vunpack.c.l.b16 %v4794
    %v5112 = vunpack.c.h.b16 %v4794
    %v5113 = vunpack.c.l.b16 %v4795
    %v5114 = vunpack.c.h.b16 %v4795
    %v5115 = vunpack.c.l.b16 %v4796
    %v5116 = vunpack.c.h.b16 %v4796
    %v5117 = vunpack.c.l.b16 %v4797
    %v5118 = vunpack.c.h.b16 %v4797
    %v5119 = vunpack.c.l.b16 %v4798
    %v5120 = vunpack.c.h.b16 %v4798
    %v5121 = vunpack.c.l.b16 %v4799
    %v5122 = vunpack.c.h.b16 %v4799
    %v5123 = vunpack.c.l.b16 %v4800
    %v5124 = vunpack.c.h.b16 %v4800
    %v5125 = vunpack.c.l.b16 %v4801
    %v5126 = vunpack.c.h.b16 %v4801
    %v5127 = vunpack.c.l.b16 %v4802
    %v5128 = vunpack.c.h.b16 %v4802
    %v5129 = vunpack.c.l.b16 %v4803
    %v5130 = vunpack.c.h.b16 %v4803
    %v5131 = vunpack.c.l.b16 %v4804
    %v5132 = vunpack.c.h.b16 %v4804
    %v5133 = vunpack.c.l.b16 %v4805
    %v5134 = vunpack.c.h.b16 %v4805
    %v5135 = vunpack.c.l.b16 %v4806
    %v5136 = vunpack.c.h.b16 %v4806
    %v5137 = vunpack.c.l.b16 %v4807
    %v5138 = vunpack.c.h.b16 %v4807
    %v5139 = vunpack.c.l.b16 %v4808
    %v5140 = vunpack.c.h.b16 %v4808
    %v5141 = vunpack.c.l.b16 %v4809
    %v5142 = vunpack.c.h.b16 %v4809
    %v5143 = vunpack.c.l.b16 %v4810
    %v5144 = vunpack.c.h.b16 %v4810
    %v5145 = vunpack.c.l.b16 %v4811
    %v5146 = vunpack.c.h.b16 %v4811
    %v5147 = vpack.c.b16 %v4961, %v4955
    %v5148 = vpack.c.b16 %v4962, %v4956
    %v5149 = vpack.c.b16 %v4963, %v4957
    %v5150 = vpack.c.b16 %v4964, %v4958
    %v5151 = vpack.c.b16 %v4965, %v4959
    %v5152 = vpack.c.b16 %v4966, %v4960
    %v5153 = vpack.c.b16 %v4973, %v4967
    %v5154 = vpack.c.b16 %v4974, %v4968
    %v5155 = vpack.c.b16 %v4975, %v4969
    %v5156 = vpack.c.b16 %v4976, %v4970
    %v5157 = vpack.c.b16 %v4977, %v4971
    %v5158 = vpack.c.b16 %v4978, %v4972
    %v5159 = vpack.c.b16 %v4985, %v4979
    %v5160 = vpack.c.b16 %v4986, %v4980
    %v5161 = vpack.c.b16 %v4987, %v4981
    %v5162 = vpack.c.b16 %v4988, %v4982
    %v5163 = vpack.c.b16 %v4989, %v4983
    %v5164 = vpack.c.b16 %v4990, %v4984
    %v5165 = vpack.c.b16 %v4997, %v4991
    %v5166 = vpack.c.b16 %v4998, %v4992
    %v5167 = vpack.c.b16 %v4999, %v4993
    %v5168 = vpack.c.b16 %v5000, %v4994
    %v5169 = vpack.c.b16 %v5001, %v4995
    %v5170 = vpack.c.b16 %v5002, %v4996
    %v5171 = vpack.c.b16 %v5009, %v5003
    %v5172 = vpack.c.b16 %v5010, %v5004
    %v5173 = vpack.c.b16 %v5011, %v5005
    %v5174 = vpack.c.b16 %v5012, %v5006
    %v5175 = vpack.c.b16 %v5013, %v5007
    %v5176 = vpack.c.b16 %v5014, %v5008
    %v5177 = vpack.c.b16 %v5021, %v5015
    %v5178 = vpack.c.b16 %v5022, %v5016
    %v5179 = vpack.c.b16 %v5023, %v5017
    %v5180 = vpack.c.b16 %v5024, %v5018
    %v5181 = vpack.c.b16 %v5025, %v5019
    %v5182 = vpack.c.b16 %v5026, %v5020
    %v5183 = vpack.c.b16 %v5033, %v5027
    %v5184 = vpack.c.b16 %v5034, %v5028
    %v5185 = vpack.c.b16 %v5035, %v5029
    %v5186 = vpack.c.b16 %v5036, %v5030
    %v5187 = vpack.c.b16 %v5037, %v5031
    %v5188 = vpack.c.b16 %v5038, %v5032
    %v5189 = vpack.c.b16 %v5045, %v5039
    %v5190 = vpack.c.b16 %v5046, %v5040
    %v5191 = vpack.c.b16 %v5047, %v5041
    %v5192 = vpack.c.b16 %v5048, %v5042
    %v5193 = vpack.c.b16 %v5049, %v5043
    %v5194 = vpack.c.b16 %v5050, %v5044
    %v5195 = vpack.c.b16 %v5057, %v5051
    %v5196 = vpack.c.b16 %v5058, %v5052
    %v5197 = vpack.c.b16 %v5059, %v5053
    %v5198 = vpack.c.b16 %v5060, %v5054
    %v5199 = vpack.c.b16 %v5061, %v5055
    %v5200 = vpack.c.b16 %v5062, %v5056
    %v5201 = vpack.c.b16 %v5069, %v5063
    %v5202 = vpack.c.b16 %v5070, %v5064
    %v5203 = vpack.c.b16 %v5071, %v5065
    %v5204 = vpack.c.b16 %v5072, %v5066
    %v5205 = vpack.c.b16 %v5073, %v5067
    %v5206 = vpack.c.b16 %v5074, %v5068
    %v5207 = vpack.c.b16 %v5081, %v5075
    %v5208 = vpack.c.b16 %v5082, %v5076
    %v5209 = vpack.c.b16 %v5083, %v5077
    %v5210 = vpack.c.b16 %v5084, %v5078
    %v5211 = vpack.c.b16 %v5085, %v5079
    %v5212 = vpack.c.b16 %v5086, %v5080
    %v5213 = vpack.c.b16 %v5093, %v5087
    %v5214 = vpack.c.b16 %v5094, %v5088
    %v5215 = vpack.c.b16 %v5095, %v5089
    %v5216 = vpack.c.b16 %v5096, %v5090
    %v5217 = vpack.c.b16 %v5097, %v5091
    %v5218 = vpack.c.b16 %v5098, %v5092
    %v5219 = vpack.c.b16 %v5105, %v5099
    %v5220 = vpack.c.b16 %v5106, %v5100
    %v5221 = vpack.c.b16 %v5107, %v5101
    %v5222 = vpack.c.b16 %v5108, %v5102
    %v5223 = vpack.c.b16 %v5109, %v5103
    %v5224 = vpack.c.b16 %v5110, %v5104
    %v5225 = vpack.c.b16 %v5117, %v5111
    %v5226 = vpack.c.b16 %v5118, %v5112
    %v5227 = vpack.c.b16 %v5119, %v5113
    %v5228 = vpack.c.b16 %v5120, %v5114
    %v5229 = vpack.c.b16 %v5121, %v5115
    %v5230 = vpack.c.b16 %v5122, %v5116
    %v5231 = vpack.c.b16 %v5129, %v5123
    %v5232 = vpack.c.b16 %v5130, %v5124
    %v5233 = vpack.c.b16 %v5131, %v5125
    %v5234 = vpack.c.b16 %v5132, %v5126
    %v5235 = vpack.c.b16 %v5133, %v5127
    %v5236 = vpack.c.b16 %v5134, %v5128
    %v5237 = vpack.c.b16 %v5141, %v5135
    %v5238 = vpack.c.b16 %v5142, %v5136
    %v5239 = vpack.c.b16 %v5143, %v5137
    %v5240 = vpack.c.b16 %v5144, %v5138
    %v5241 = vpack.c.b16 %v5145, %v5139
    %v5242 = vpack.c.b16 %v5146, %v5140
    %5339 = vmatprep.subr.bf16.mxu0 %v5148
    %5340 = vmatpush1.bf16.msra.mxu0 %v5147
    %5341 = vmatprep.subr.bf16.mxu0 %v5154
    %5342 = vmatpush1.bf16.msra.mxu0 %v5153
    %5343 = vmatprep.subr.bf16.mxu0 %v5160
    %5344 = vmatpush1.bf16.msra.mxu0 %v5159
    %5345 = vmatprep.subr.bf16.mxu0 %v5166
    %5346 = vmatpush1.bf16.msra.mxu0 %v5165
    %5347 = vmatprep.subr.bf16.mxu0 %v5172
    %5348 = vmatpush1.bf16.msra.mxu0 %v5171
    %5349 = vmatprep.subr.bf16.mxu0 %v5178
    %5350 = vmatpush1.bf16.msra.mxu0 %v5177
    %5351 = vmatprep.subr.bf16.mxu0 %v5184
    %5352 = vmatpush1.bf16.msra.mxu0 %v5183
    %5353 = vmatprep.subr.bf16.mxu0 %v5190
    %5354 = vmatpush1.bf16.msra.mxu0 %v5189
    %5355 = vmatprep.subr.bf16.mxu0 %v5196
    %5356 = vmatpush1.bf16.msra.mxu0 %v5195
    %5357 = vmatprep.subr.bf16.mxu0 %v5202
    %5358 = vmatpush1.bf16.msra.mxu0 %v5201
    %5359 = vmatprep.subr.bf16.mxu0 %v5208
    %5360 = vmatpush1.bf16.msra.mxu0 %v5207
    %5361 = vmatprep.subr.bf16.mxu0 %v5214
    %5362 = vmatpush1.bf16.msra.mxu0 %v5213
    %5363 = vmatprep.subr.bf16.mxu0 %v5220
    %5364 = vmatpush1.bf16.msra.mxu0 %v5219
    %5365 = vmatprep.subr.bf16.mxu0 %v5226
    %5366 = vmatpush1.bf16.msra.mxu0 %v5225
    %5367 = vmatprep.subr.bf16.mxu0 %v5232
    %5368 = vmatpush1.bf16.msra.mxu0 %v5231
    %5369 = vmatprep.subr.bf16.mxu0 %v5238
    %5370 = vmatpush1.bf16.msra.mxu0 %v5237
    %5371 = vmatprep.mubr.bf16.mxu0 %v4856
    %5372 = vmatmul.mubr.bf16.gmra.mrb[0].mxu0 %v4855
    %v5373 = vpop.f32.mrb[0].mxu0
    %v5374 = vadd.f32 %v4826, %v5373
    %v5375 = vpop.f32.mrb[0].mxu0
    %v5376 = vadd.f32 %v4830, %v5375
    %v5377 = vpop.f32.mrb[0].mxu0
    %v5378 = vpop.f32.mrb[0].mxu0
    %5379 = vdwg.mxu0
    %5380 = vmatprep.subr.bf16.mxu0 %v5150
    %5381 = vmatpush1.bf16.msra.mxu0 %v5149
    %5382 = vmatprep.subr.bf16.mxu0 %v5156
    %5383 = vmatpush1.bf16.msra.mxu0 %v5155
    %5384 = vmatprep.subr.bf16.mxu0 %v5162
    %5385 = vmatpush1.bf16.msra.mxu0 %v5161
    %5386 = vmatprep.subr.bf16.mxu0 %v5168
    %5387 = vmatpush1.bf16.msra.mxu0 %v5167
    %5388 = vmatprep.subr.bf16.mxu0 %v5174
    %5389 = vmatpush1.bf16.msra.mxu0 %v5173
    %5390 = vmatprep.subr.bf16.mxu0 %v5180
    %5391 = vmatpush1.bf16.msra.mxu0 %v5179
    %5392 = vmatprep.subr.bf16.mxu0 %v5186
    %5393 = vmatpush1.bf16.msra.mxu0 %v5185
    %5394 = vmatprep.subr.bf16.mxu0 %v5192
    %5395 = vmatpush1.bf16.msra.mxu0 %v5191
    %5396 = vmatprep.subr.bf16.mxu0 %v5198
    %5397 = vmatpush1.bf16.msra.mxu0 %v5197
    %5398 = vmatprep.subr.bf16.mxu0 %v5204
    %5399 = vmatpush1.bf16.msra.mxu0 %v5203
    %5400 = vmatprep.subr.bf16.mxu0 %v5210
    %5401 = vmatpush1.bf16.msra.mxu0 %v5209
    %5402 = vmatprep.subr.bf16.mxu0 %v5216
    %5403 = vmatpush1.bf16.msra.mxu0 %v5215
    %5404 = vmatprep.subr.bf16.mxu0 %v5222
    %5405 = vmatpush1.bf16.msra.mxu0 %v5221
    %5406 = vmatprep.subr.bf16.mxu0 %v5228
    %5407 = vmatpush1.bf16.msra.mxu0 %v5227
    %5408 = vmatprep.subr.bf16.mxu0 %v5234
    %5409 = vmatpush1.bf16.msra.mxu0 %v5233
    %5410 = vmatprep.subr.bf16.mxu0 %v5240
    %5411 = vmatpush1.bf16.msra.mxu0 %v5239
    %5412 = vmatprep.mubr.bf16.mxu0 %v4856
    %5413 = vmatmul.mubr.bf16.gmra.mrb[0].mxu0 %v4855
    %v5414 = vpop.f32.mrb[0].mxu0
    %v5415 = vadd.f32 %v4834, %v5414
    %v5416 = vpop.f32.mrb[0].mxu0
    %v5417 = vadd.f32 %v4838, %v5416
    %v5418 = vpop.f32.mrb[0].mxu0
    %v5419 = vpop.f32.mrb[0].mxu0
    %5420 = vdwg.mxu0
    %5421 = vmatprep.subr.bf16.mxu0 %v5152
    %5422 = vmatpush1.bf16.msra.mxu0 %v5151
    %5423 = vmatprep.subr.bf16.mxu0 %v5158
    %5424 = vmatpush1.bf16.msra.mxu0 %v5157
    %5425 = vmatprep.subr.bf16.mxu0 %v5164
    %5426 = vmatpush1.bf16.msra.mxu0 %v5163
    %5427 = vmatprep.subr.bf16.mxu0 %v5170
    %5428 = vmatpush1.bf16.msra.mxu0 %v5169
    %5429 = vmatprep.subr.bf16.mxu0 %v5176
    %5430 = vmatpush1.bf16.msra.mxu0 %v5175
    %5431 = vmatprep.subr.bf16.mxu0 %v5182
    %5432 = vmatpush1.bf16.msra.mxu0 %v5181
    %5433 = vmatprep.subr.bf16.mxu0 %v5188
    %5434 = vmatpush1.bf16.msra.mxu0 %v5187
    %5435 = vmatprep.subr.bf16.mxu0 %v5194
    %5436 = vmatpush1.bf16.msra.mxu0 %v5193
    %5437 = vmatprep.subr.bf16.mxu0 %v5200
    %5438 = vmatpush1.bf16.msra.mxu0 %v5199
    %5439 = vmatprep.subr.bf16.mxu0 %v5206
    %5440 = vmatpush1.bf16.msra.mxu0 %v5205
    %5441 = vmatprep.subr.bf16.mxu0 %v5212
    %5442 = vmatpush1.bf16.msra.mxu0 %v5211
    %5443 = vmatprep.subr.bf16.mxu0 %v5218
    %5444 = vmatpush1.bf16.msra.mxu0 %v5217
    %5445 = vmatprep.subr.bf16.mxu0 %v5224
    %5446 = vmatpush1.bf16.msra.mxu0 %v5223
    %5447 = vmatprep.subr.bf16.mxu0 %v5230
    %5448 = vmatpush1.bf16.msra.mxu0 %v5229
    %5449 = vmatprep.subr.bf16.mxu0 %v5236
    %5450 = vmatpush1.bf16.msra.mxu0 %v5235
    %5451 = vmatprep.subr.bf16.mxu0 %v5242
    %5452 = vmatpush1.bf16.msra.mxu0 %v5241
    %5453 = vmatprep.mubr.bf16.mxu0 %v4856
    %5454 = vmatmul.mubr.bf16.gmra.mrb[0].mxu0 %v4855
    %v5455 = vpop.f32.mrb[0].mxu0
    %v5456 = vadd.f32 %v4842, %v5455
    %v5457 = vpop.f32.mrb[0].mxu0
    %v5458 = vadd.f32 %v4846, %v5457
    %v5459 = vpop.f32.mrb[0].mxu0
    %v5460 = vpop.f32.mrb[0].mxu0
    %5461 = vdwg.mxu0
    %v5462 = vadd.f32 %v4814, %v5374
    %v5463 = vadd.f32 %v4815, %v5376
    %v5464 = vxor.u32 %v5462, 2147483648
    %v5465 = vxor.u32 %v5463, 2147483648
    %v5466 = vmul.f32 %v5464, 1.442695
    %v5467 = vpow.pop %v5466
    %v5468 = vmul.f32 %v5465, 1.442695
    %v5469 = vpow.pop %v5468
    %v5470 = vadd.f32 %v5467, 1.0
    %v5471 = vadd.f32 %v5469, 1.0
    %v5472 = vrcp.pop %v5470
    %v5473 = vmul.f32 1.0, %v5472
    %v5474 = vrcp.pop %v5471
    %v5475 = vmul.f32 1.0, %v5474
    %v5476 = vadd.f32 %v4816, %v5415
    %v5477 = vadd.f32 %v4817, %v5417
    %v5478 = vxor.u32 %v5476, 2147483648
    %v5479 = vxor.u32 %v5477, 2147483648
    %v5480 = vmul.f32 %v5478, 1.442695
    %v5481 = vpow.pop %v5480
    %v5482 = vmul.f32 %v5479, 1.442695
    %v5483 = vpow.pop %v5482
    %v5484 = vadd.f32 %v5481, 1.0
    %v5485 = vadd.f32 %v5483, 1.0
    %v5486 = vrcp.pop %v5484
    %v5487 = vmul.f32 1.0, %v5486
    %v5488 = vrcp.pop %v5485
    %v5489 = vmul.f32 1.0, %v5488
    %v5490 = vmul.f32 %v5473, %v5456
    %v5491 = vmul.f32 %v5475, %v5458
    %v5492 = vadd.f32 %v4818, %v5490
    %v5493 = vadd.f32 %v4819, %v5491
    %v5494 = vtanh.pop %v5492
    %v5495 = vtanh.pop %v5493
    %v5496 = vsub.f32 1.0, %v5487
    %v5497 = vsub.f32 1.0, %v5489
    %v5498 = vmul.f32 %v5496, %v5494
    %v5499 = vmul.f32 %v5497, %v5495
    %v5502 = vrot.slane %v3963, 2
    %v5503 = vrot.slane %v3964, 2
    %v5506 = vmul.f32 %v5487, %v5502
    %v5507 = vmul.f32 %v5489, %v5503
    %v5508 = vadd.f32 %v5498, %v5506
    %v5509 = vadd.f32 %v5499, %v5507
    %5510 = vst [vmem:[#allocation4] sm:$0x3] %v5508
    %5511 = vst [vmem:[#allocation4 + $0x8] sm:$0x3] %v5509
    %v5512 = vld [vmem:[#allocation3] sm:$0xc]
    %v5513 = vld [vmem:[#allocation3 + $0x8] sm:$0xc]
    %v5514 = vld [vmem:[#allocation3 + $0x10] sm:$0xc]
    %v5515 = vld [vmem:[#allocation3 + $0x18] sm:$0xc]
    %v5516 = vld [vmem:[#allocation3 + $0x20] sm:$0xc]
    %v5517 = vld [vmem:[#allocation3 + $0x28] sm:$0xc]
    %v5518 = vpack.c.bf16 %v5508, %v5508
    %v5519 = vpack.c.bf16 %v5509, %v5509
    %5520 = vmatprep.subr.bf16.mxu0 %v5148
    %5521 = vmatpush1.bf16.msra.mxu0 %v5147
    %5522 = vmatprep.subr.bf16.mxu0 %v5154
    %5523 = vmatpush1.bf16.msra.mxu0 %v5153
    %5524 = vmatprep.subr.bf16.mxu0 %v5160
    %5525 = vmatpush1.bf16.msra.mxu0 %v5159
    %5526 = vmatprep.subr.bf16.mxu0 %v5166
    %5527 = vmatpush1.bf16.msra.mxu0 %v5165
    %5528 = vmatprep.subr.bf16.mxu0 %v5172
    %5529 = vmatpush1.bf16.msra.mxu0 %v5171
    %5530 = vmatprep.subr.bf16.mxu0 %v5178
    %5531 = vmatpush1.bf16.msra.mxu0 %v5177
    %5532 = vmatprep.subr.bf16.mxu0 %v5184
    %5533 = vmatpush1.bf16.msra.mxu0 %v5183
    %5534 = vmatprep.subr.bf16.mxu0 %v5190
    %5535 = vmatpush1.bf16.msra.mxu0 %v5189
    %5536 = vmatprep.subr.bf16.mxu0 %v5196
    %5537 = vmatpush1.bf16.msra.mxu0 %v5195
    %5538 = vmatprep.subr.bf16.mxu0 %v5202
    %5539 = vmatpush1.bf16.msra.mxu0 %v5201
    %5540 = vmatprep.subr.bf16.mxu0 %v5208
    %5541 = vmatpush1.bf16.msra.mxu0 %v5207
    %5542 = vmatprep.subr.bf16.mxu0 %v5214
    %5543 = vmatpush1.bf16.msra.mxu0 %v5213
    %5544 = vmatprep.subr.bf16.mxu0 %v5220
    %5545 = vmatpush1.bf16.msra.mxu0 %v5219
    %5546 = vmatprep.subr.bf16.mxu0 %v5226
    %5547 = vmatpush1.bf16.msra.mxu0 %v5225
    %5548 = vmatprep.subr.bf16.mxu0 %v5232
    %5549 = vmatpush1.bf16.msra.mxu0 %v5231
    %5550 = vmatprep.subr.bf16.mxu0 %v5238
    %5551 = vmatpush1.bf16.msra.mxu0 %v5237
    %5552 = vmatprep.mubr.bf16.mxu0 %v5519
    %5553 = vmatmul.mubr.bf16.gmra.mrb[0].mxu0 %v5518
    %v5554 = vpop.f32.mrb[0].mxu0
    %v5555 = vadd.f32 %v4826, %v5554
    %v5556 = vpop.f32.mrb[0].mxu0
    %v5557 = vadd.f32 %v4830, %v5556
    %v5558 = vpop.f32.mrb[0].mxu0
    %v5559 = vpop.f32.mrb[0].mxu0
    %5560 = vdwg.mxu0
    %5561 = vmatprep.subr.bf16.mxu0 %v5150
    %5562 = vmatpush1.bf16.msra.mxu0 %v5149
    %5563 = vmatprep.subr.bf16.mxu0 %v5156
    %5564 = vmatpush1.bf16.msra.mxu0 %v5155
    %5565 = vmatprep.subr.bf16.mxu0 %v5162
    %5566 = vmatpush1.bf16.msra.mxu0 %v5161
    %5567 = vmatprep.subr.bf16.mxu0 %v5168
    %5568 = vmatpush1.bf16.msra.mxu0 %v5167
    %5569 = vmatprep.subr.bf16.mxu0 %v5174
    %5570 = vmatpush1.bf16.msra.mxu0 %v5173
    %5571 = vmatprep.subr.bf16.mxu0 %v5180
    %5572 = vmatpush1.bf16.msra.mxu0 %v5179
    %5573 = vmatprep.subr.bf16.mxu0 %v5186
    %5574 = vmatpush1.bf16.msra.mxu0 %v5185
    %5575 = vmatprep.subr.bf16.mxu0 %v5192
    %5576 = vmatpush1.bf16.msra.mxu0 %v5191
    %5577 = vmatprep.subr.bf16.mxu0 %v5198
    %5578 = vmatpush1.bf16.msra.mxu0 %v5197
    %5579 = vmatprep.subr.bf16.mxu0 %v5204
    %5580 = vmatpush1.bf16.msra.mxu0 %v5203
    %5581 = vmatprep.subr.bf16.mxu0 %v5210
    %5582 = vmatpush1.bf16.msra.mxu0 %v5209
    %5583 = vmatprep.subr.bf16.mxu0 %v5216
    %5584 = vmatpush1.bf16.msra.mxu0 %v5215
    %5585 = vmatprep.subr.bf16.mxu0 %v5222
    %5586 = vmatpush1.bf16.msra.mxu0 %v5221
    %5587 = vmatprep.subr.bf16.mxu0 %v5228
    %5588 = vmatpush1.bf16.msra.mxu0 %v5227
    %5589 = vmatprep.subr.bf16.mxu0 %v5234
    %5590 = vmatpush1.bf16.msra.mxu0 %v5233
    %5591 = vmatprep.subr.bf16.mxu0 %v5240
    %5592 = vmatpush1.bf16.msra.mxu0 %v5239
    %5593 = vmatprep.mubr.bf16.mxu0 %v5519
    %5594 = vmatmul.mubr.bf16.gmra.mrb[0].mxu0 %v5518
    %v5595 = vpop.f32.mrb[0].mxu0
    %v5596 = vadd.f32 %v4834, %v5595
    %v5597 = vpop.f32.mrb[0].mxu0
    %v5598 = vadd.f32 %v4838, %v5597
    %v5599 = vpop.f32.mrb[0].mxu0
    %v5600 = vpop.f32.mrb[0].mxu0
    %5601 = vdwg.mxu0
    %5602 = vmatprep.subr.bf16.mxu0 %v5152
    %5603 = vmatpush1.bf16.msra.mxu0 %v5151
    %5604 = vmatprep.subr.bf16.mxu0 %v5158
    %5605 = vmatpush1.bf16.msra.mxu0 %v5157
    %5606 = vmatprep.subr.bf16.mxu0 %v5164
    %5607 = vmatpush1.bf16.msra.mxu0 %v5163
    %5608 = vmatprep.subr.bf16.mxu0 %v5170
    %5609 = vmatpush1.bf16.msra.mxu0 %v5169
    %5610 = vmatprep.subr.bf16.mxu0 %v5176
    %5611 = vmatpush1.bf16.msra.mxu0 %v5175
    %5612 = vmatprep.subr.bf16.mxu0 %v5182
    %5613 = vmatpush1.bf16.msra.mxu0 %v5181
    %5614 = vmatprep.subr.bf16.mxu0 %v5188
    %5615 = vmatpush1.bf16.msra.mxu0 %v5187
    %5616 = vmatprep.subr.bf16.mxu0 %v5194
    %5617 = vmatpush1.bf16.msra.mxu0 %v5193
    %5618 = vmatprep.subr.bf16.mxu0 %v5200
    %5619 = vmatpush1.bf16.msra.mxu0 %v5199
    %5620 = vmatprep.subr.bf16.mxu0 %v5206
    %5621 = vmatpush1.bf16.msra.mxu0 %v5205
    %5622 = vmatprep.subr.bf16.mxu0 %v5212
    %5623 = vmatpush1.bf16.msra.mxu0 %v5211
    %5624 = vmatprep.subr.bf16.mxu0 %v5218
    %5625 = vmatpush1.bf16.msra.mxu0 %v5217
    %5626 = vmatprep.subr.bf16.mxu0 %v5224
    %5627 = vmatpush1.bf16.msra.mxu0 %v5223
    %5628 = vmatprep.subr.bf16.mxu0 %v5230
    %5629 = vmatpush1.bf16.msra.mxu0 %v5229
    %5630 = vmatprep.subr.bf16.mxu0 %v5236
    %5631 = vmatpush1.bf16.msra.mxu0 %v5235
    %5632 = vmatprep.subr.bf16.mxu0 %v5242
    %5633 = vmatpush1.bf16.msra.mxu0 %v5241
    %5634 = vmatprep.mubr.bf16.mxu0 %v5519
    %5635 = vmatmul.mubr.bf16.gmra.mrb[0].mxu0 %v5518
    %v5636 = vpop.f32.mrb[0].mxu0
    %v5637 = vadd.f32 %v4842, %v5636
    %v5638 = vpop.f32.mrb[0].mxu0
    %v5639 = vadd.f32 %v4846, %v5638
    %v5640 = vpop.f32.mrb[0].mxu0
    %v5641 = vpop.f32.mrb[0].mxu0
    %5642 = vdwg.mxu0
    %v5645 = vrot.slane %v5555, 6
    %v5646 = vrot.slane %v5557, 6
    %v5649 = vadd.f32 %v5512, %v5645
    %v5650 = vadd.f32 %v5513, %v5646
    %v5651 = vxor.u32 %v5649, 2147483648
    %v5652 = vxor.u32 %v5650, 2147483648
    %v5653 = vmul.f32 %v5651, 1.442695
    %v5654 = vpow.pop %v5653
    %v5655 = vmul.f32 %v5652, 1.442695
    %v5656 = vpow.pop %v5655
    %v5657 = vadd.f32 %v5654, 1.0
    %v5658 = vadd.f32 %v5656, 1.0
    %v5659 = vrcp.pop %v5657
    %v5660 = vmul.f32 1.0, %v5659
    %v5661 = vrcp.pop %v5658
    %v5662 = vmul.f32 1.0, %v5661
    %v5665 = vrot.slane %v5596, 6
    %v5666 = vrot.slane %v5598, 6
    %v5669 = vadd.f32 %v5514, %v5665
    %v5670 = vadd.f32 %v5515, %v5666
    %v5671 = vxor.u32 %v5669, 2147483648
    %v5672 = vxor.u32 %v5670, 2147483648
    %v5673 = vmul.f32 %v5671, 1.442695
    %v5674 = vpow.pop %v5673
    %v5675 = vmul.f32 %v5672, 1.442695
    %v5676 = vpow.pop %v5675
    %v5677 = vadd.f32 %v5674, 1.0
    %v5678 = vadd.f32 %v5676, 1.0
    %v5679 = vrcp.pop %v5677
    %v5680 = vmul.f32 1.0, %v5679
    %v5681 = vrcp.pop %v5678
    %v5682 = vmul.f32 1.0, %v5681
    %v5685 = vrot.slane %v5637, 6
    %v5686 = vrot.slane %v5639, 6
    %v5689 = vmul.f32 %v5660, %v5685
    %v5690 = vmul.f32 %v5662, %v5686
    %v5691 = vadd.f32 %v5516, %v5689
    %v5692 = vadd.f32 %v5517, %v5690
    %v5693 = vtanh.pop %v5691
    %v5694 = vtanh.pop %v5692
    %v5695 = vsub.f32 1.0, %v5680
    %v5696 = vsub.f32 1.0, %v5682
    %v5697 = vmul.f32 %v5695, %v5693
    %v5698 = vmul.f32 %v5696, %v5694
    %v5701 = vrot.slane %v5508, 6
    %v5702 = vrot.slane %v5509, 6
    %v5705 = vmul.f32 %v5680, %v5701
    %v5706 = vmul.f32 %v5682, %v5702
    %v5707 = vadd.f32 %v5697, %v5705
    %v5708 = vadd.f32 %v5698, %v5706
    %5709 = vst [vmem:[#allocation4] sm:$0xc] %v5707
    %5710 = vst [vmem:[#allocation4 + $0x8] sm:$0xc] %v5708
    %v5711 = vld [vmem:[#allocation3] sm:$0x30]
    %v5712 = vld [vmem:[#allocation3 + $0x8] sm:$0x30]
    %v5713 = vld [vmem:[#allocation3 + $0x10] sm:$0x30]
    %v5714 = vld [vmem:[#allocation3 + $0x18] sm:$0x30]
    %v5715 = vld [vmem:[#allocation3 + $0x20] sm:$0x30]
    %v5716 = vld [vmem:[#allocation3 + $0x28] sm:$0x30]
    %v5717 = vpack.c.bf16 %v5707, %v5707
    %v5718 = vpack.c.bf16 %v5708, %v5708
    %v5721 = vrot.slane %v5717, 1
    %v5722 = vrot.slane %v5718, 1
    %5725 = vmatprep.subr.bf16.mxu0 %v5148
    %5726 = vmatpush1.bf16.msra.mxu0 %v5147
    %5727 = vmatprep.subr.bf16.mxu0 %v5154
    %5728 = vmatpush1.bf16.msra.mxu0 %v5153
    %5729 = vmatprep.subr.bf16.mxu0 %v5160
    %5730 = vmatpush1.bf16.msra.mxu0 %v5159
    %5731 = vmatprep.subr.bf16.mxu0 %v5166
    %5732 = vmatpush1.bf16.msra.mxu0 %v5165
    %5733 = vmatprep.subr.bf16.mxu0 %v5172
    %5734 = vmatpush1.bf16.msra.mxu0 %v5171
    %5735 = vmatprep.subr.bf16.mxu0 %v5178
    %5736 = vmatpush1.bf16.msra.mxu0 %v5177
    %5737 = vmatprep.subr.bf16.mxu0 %v5184
    %5738 = vmatpush1.bf16.msra.mxu0 %v5183
    %5739 = vmatprep.subr.bf16.mxu0 %v5190
    %5740 = vmatpush1.bf16.msra.mxu0 %v5189
    %5741 = vmatprep.subr.bf16.mxu0 %v5196
    %5742 = vmatpush1.bf16.msra.mxu0 %v5195
    %5743 = vmatprep.subr.bf16.mxu0 %v5202
    %5744 = vmatpush1.bf16.msra.mxu0 %v5201
    %5745 = vmatprep.subr.bf16.mxu0 %v5208
    %5746 = vmatpush1.bf16.msra.mxu0 %v5207
    %5747 = vmatprep.subr.bf16.mxu0 %v5214
    %5748 = vmatpush1.bf16.msra.mxu0 %v5213
    %5749 = vmatprep.subr.bf16.mxu0 %v5220
    %5750 = vmatpush1.bf16.msra.mxu0 %v5219
    %5751 = vmatprep.subr.bf16.mxu0 %v5226
    %5752 = vmatpush1.bf16.msra.mxu0 %v5225
    %5753 = vmatprep.subr.bf16.mxu0 %v5232
    %5754 = vmatpush1.bf16.msra.mxu0 %v5231
    %5755 = vmatprep.subr.bf16.mxu0 %v5238
    %5756 = vmatpush1.bf16.msra.mxu0 %v5237
    %5757 = vmatprep.mubr.bf16.mxu0 %v5722
    %5758 = vmatmul.mubr.bf16.gmra.mrb[0].mxu0 %v5721
    %v5759 = vpop.f32.mrb[0].mxu0
    %v5760 = vadd.f32 %v4826, %v5759
    %v5761 = vpop.f32.mrb[0].mxu0
    %v5762 = vadd.f32 %v4830, %v5761
    %v5763 = vpop.f32.mrb[0].mxu0
    %v5764 = vpop.f32.mrb[0].mxu0
    %5765 = vdwg.mxu0
    %5766 = vmatprep.subr.bf16.mxu0 %v5150
    %5767 = vmatpush1.bf16.msra.mxu0 %v5149
    %5768 = vmatprep.subr.bf16.mxu0 %v5156
    %5769 = vmatpush1.bf16.msra.mxu0 %v5155
    %5770 = vmatprep.subr.bf16.mxu0 %v5162
    %5771 = vmatpush1.bf16.msra.mxu0 %v5161
    %5772 = vmatprep.subr.bf16.mxu0 %v5168
    %5773 = vmatpush1.bf16.msra.mxu0 %v5167
    %5774 = vmatprep.subr.bf16.mxu0 %v5174
    %5775 = vmatpush1.bf16.msra.mxu0 %v5173
    %5776 = vmatprep.subr.bf16.mxu0 %v5180
    %5777 = vmatpush1.bf16.msra.mxu0 %v5179
    %5778 = vmatprep.subr.bf16.mxu0 %v5186
    %5779 = vmatpush1.bf16.msra.mxu0 %v5185
    %5780 = vmatprep.subr.bf16.mxu0 %v5192
    %5781 = vmatpush1.bf16.msra.mxu0 %v5191
    %5782 = vmatprep.subr.bf16.mxu0 %v5198
    %5783 = vmatpush1.bf16.msra.mxu0 %v5197
    %5784 = vmatprep.subr.bf16.mxu0 %v5204
    %5785 = vmatpush1.bf16.msra.mxu0 %v5203
    %5786 = vmatprep.subr.bf16.mxu0 %v5210
    %5787 = vmatpush1.bf16.msra.mxu0 %v5209
    %5788 = vmatprep.subr.bf16.mxu0 %v5216
    %5789 = vmatpush1.bf16.msra.mxu0 %v5215
    %5790 = vmatprep.subr.bf16.mxu0 %v5222
    %5791 = vmatpush1.bf16.msra.mxu0 %v5221
    %5792 = vmatprep.subr.bf16.mxu0 %v5228
    %5793 = vmatpush1.bf16.msra.mxu0 %v5227
    %5794 = vmatprep.subr.bf16.mxu0 %v5234
    %5795 = vmatpush1.bf16.msra.mxu0 %v5233
    %5796 = vmatprep.subr.bf16.mxu0 %v5240
    %5797 = vmatpush1.bf16.msra.mxu0 %v5239
    %5798 = vmatprep.mubr.bf16.mxu0 %v5722
    %5799 = vmatmul.mubr.bf16.gmra.mrb[0].mxu0 %v5721
    %v5800 = vpop.f32.mrb[0].mxu0
    %v5801 = vadd.f32 %v4834, %v5800
    %v5802 = vpop.f32.mrb[0].mxu0
    %v5803 = vadd.f32 %v4838, %v5802
    %v5804 = vpop.f32.mrb[0].mxu0
    %v5805 = vpop.f32.mrb[0].mxu0
    %5806 = vdwg.mxu0
    %5807 = vmatprep.subr.bf16.mxu0 %v5152
    %5808 = vmatpush1.bf16.msra.mxu0 %v5151
    %5809 = vmatprep.subr.bf16.mxu0 %v5158
    %5810 = vmatpush1.bf16.msra.mxu0 %v5157
    %5811 = vmatprep.subr.bf16.mxu0 %v5164
    %5812 = vmatpush1.bf16.msra.mxu0 %v5163
    %5813 = vmatprep.subr.bf16.mxu0 %v5170
    %5814 = vmatpush1.bf16.msra.mxu0 %v5169
    %5815 = vmatprep.subr.bf16.mxu0 %v5176
    %5816 = vmatpush1.bf16.msra.mxu0 %v5175
    %5817 = vmatprep.subr.bf16.mxu0 %v5182
    %5818 = vmatpush1.bf16.msra.mxu0 %v5181
    %5819 = vmatprep.subr.bf16.mxu0 %v5188
    %5820 = vmatpush1.bf16.msra.mxu0 %v5187
    %5821 = vmatprep.subr.bf16.mxu0 %v5194
    %5822 = vmatpush1.bf16.msra.mxu0 %v5193
    %5823 = vmatprep.subr.bf16.mxu0 %v5200
    %5824 = vmatpush1.bf16.msra.mxu0 %v5199
    %5825 = vmatprep.subr.bf16.mxu0 %v5206
    %5826 = vmatpush1.bf16.msra.mxu0 %v5205
    %5827 = vmatprep.subr.bf16.mxu0 %v5212
    %5828 = vmatpush1.bf16.msra.mxu0 %v5211
    %5829 = vmatprep.subr.bf16.mxu0 %v5218
    %5830 = vmatpush1.bf16.msra.mxu0 %v5217
    %5831 = vmatprep.subr.bf16.mxu0 %v5224
    %5832 = vmatpush1.bf16.msra.mxu0 %v5223
    %5833 = vmatprep.subr.bf16.mxu0 %v5230
    %5834 = vmatpush1.bf16.msra.mxu0 %v5229
    %5835 = vmatprep.subr.bf16.mxu0 %v5236
    %5836 = vmatpush1.bf16.msra.mxu0 %v5235
    %5837 = vmatprep.subr.bf16.mxu0 %v5242
    %5838 = vmatpush1.bf16.msra.mxu0 %v5241
    %5839 = vmatprep.mubr.bf16.mxu0 %v5722
    %5840 = vmatmul.mubr.bf16.gmra.mrb[0].mxu0 %v5721
    %v5841 = vpop.f32.mrb[0].mxu0
    %v5842 = vadd.f32 %v4842, %v5841
    %v5843 = vpop.f32.mrb[0].mxu0
    %v5844 = vadd.f32 %v4846, %v5843
    %v5845 = vpop.f32.mrb[0].mxu0
    %v5846 = vpop.f32.mrb[0].mxu0
    %5847 = vdwg.mxu0
    %v5850 = vrot.slane %v5760, 4
    %v5851 = vrot.slane %v5762, 4
    %v5854 = vadd.f32 %v5711, %v5850
    %v5855 = vadd.f32 %v5712, %v5851
    %v5856 = vxor.u32 %v5854, 2147483648
    %v5857 = vxor.u32 %v5855, 2147483648
    %v5858 = vmul.f32 %v5856, 1.442695
    %v5859 = vpow.pop %v5858
    %v5860 = vmul.f32 %v5857, 1.442695
    %v5861 = vpow.pop %v5860
    %v5862 = vadd.f32 %v5859, 1.0
    %v5863 = vadd.f32 %v5861, 1.0
    %v5864 = vrcp.pop %v5862
    %v5865 = vmul.f32 1.0, %v5864
    %v5866 = vrcp.pop %v5863
    %v5867 = vmul.f32 1.0, %v5866
    %v5870 = vrot.slane %v5801, 4
    %v5871 = vrot.slane %v5803, 4
    %v5874 = vadd.f32 %v5713, %v5870
    %v5875 = vadd.f32 %v5714, %v5871
    %v5876 = vxor.u32 %v5874, 2147483648
    %v5877 = vxor.u32 %v5875, 2147483648
    %v5878 = vmul.f32 %v5876, 1.442695
    %v5879 = vpow.pop %v5878
    %v5880 = vmul.f32 %v5877, 1.442695
    %v5881 = vpow.pop %v5880
    %v5882 = vadd.f32 %v5879, 1.0
    %v5883 = vadd.f32 %v5881, 1.0
    %v5884 = vrcp.pop %v5882
    %v5885 = vmul.f32 1.0, %v5884
    %v5886 = vrcp.pop %v5883
    %v5887 = vmul.f32 1.0, %v5886
    %v5890 = vrot.slane %v5842, 4
    %v5891 = vrot.slane %v5844, 4
    %v5894 = vmul.f32 %v5865, %v5890
    %v5895 = vmul.f32 %v5867, %v5891
    %v5896 = vadd.f32 %v5715, %v5894
    %v5897 = vadd.f32 %v5716, %v5895
    %v5898 = vtanh.pop %v5896
    %v5899 = vtanh.pop %v5897
    %v5900 = vsub.f32 1.0, %v5885
    %v5901 = vsub.f32 1.0, %v5887
    %v5902 = vmul.f32 %v5900, %v5898
    %v5903 = vmul.f32 %v5901, %v5899
    %v5906 = vrot.slane %v5707, 6
    %v5907 = vrot.slane %v5708, 6
    %v5910 = vmul.f32 %v5885, %v5906
    %v5911 = vmul.f32 %v5887, %v5907
    %v5912 = vadd.f32 %v5902, %v5910
    %v5913 = vadd.f32 %v5903, %v5911
    %5914 = vst [vmem:[#allocation4] sm:$0x30] %v5912
    %5915 = vst [vmem:[#allocation4 + $0x8] sm:$0x30] %v5913
    %v5916 = vld [vmem:[#allocation3] sm:$0xc0]
    %v5917 = vld [vmem:[#allocation3 + $0x8] sm:$0xc0]
    %v5918 = vld [vmem:[#allocation3 + $0x10] sm:$0xc0]
    %v5919 = vld [vmem:[#allocation3 + $0x18] sm:$0xc0]
    %v5920 = vld [vmem:[#allocation3 + $0x20] sm:$0xc0]
    %v5921 = vld [vmem:[#allocation3 + $0x28] sm:$0xc0]
    %v5922 = vpack.c.bf16 %v5912, %v5912
    %v5923 = vpack.c.bf16 %v5913, %v5913
    %v5926 = vrot.slane %v5922, 2
    %v5927 = vrot.slane %v5923, 2
    %5930 = vmatprep.subr.bf16.mxu0 %v5148
    %5931 = vmatpush1.bf16.msra.mxu0 %v5147
    %5932 = vmatprep.subr.bf16.mxu0 %v5154
    %5933 = vmatpush1.bf16.msra.mxu0 %v5153
    %5934 = vmatprep.subr.bf16.mxu0 %v5160
    %5935 = vmatpush1.bf16.msra.mxu0 %v5159
    %5936 = vmatprep.subr.bf16.mxu0 %v5166
    %5937 = vmatpush1.bf16.msra.mxu0 %v5165
    %5938 = vmatprep.subr.bf16.mxu0 %v5172
    %5939 = vmatpush1.bf16.msra.mxu0 %v5171
    %5940 = vmatprep.subr.bf16.mxu0 %v5178
    %5941 = vmatpush1.bf16.msra.mxu0 %v5177
    %5942 = vmatprep.subr.bf16.mxu0 %v5184
    %5943 = vmatpush1.bf16.msra.mxu0 %v5183
    %5944 = vmatprep.subr.bf16.mxu0 %v5190
    %5945 = vmatpush1.bf16.msra.mxu0 %v5189
    %5946 = vmatprep.subr.bf16.mxu0 %v5196
    %5947 = vmatpush1.bf16.msra.mxu0 %v5195
    %5948 = vmatprep.subr.bf16.mxu0 %v5202
    %5949 = vmatpush1.bf16.msra.mxu0 %v5201
    %5950 = vmatprep.subr.bf16.mxu0 %v5208
    %5951 = vmatpush1.bf16.msra.mxu0 %v5207
    %5952 = vmatprep.subr.bf16.mxu0 %v5214
    %5953 = vmatpush1.bf16.msra.mxu0 %v5213
    %5954 = vmatprep.subr.bf16.mxu0 %v5220
    %5955 = vmatpush1.bf16.msra.mxu0 %v5219
    %5956 = vmatprep.subr.bf16.mxu0 %v5226
    %5957 = vmatpush1.bf16.msra.mxu0 %v5225
    %5958 = vmatprep.subr.bf16.mxu0 %v5232
    %5959 = vmatpush1.bf16.msra.mxu0 %v5231
    %5960 = vmatprep.subr.bf16.mxu0 %v5238
    %5961 = vmatpush1.bf16.msra.mxu0 %v5237
    %5962 = vmatprep.mubr.bf16.mxu0 %v5927
    %5963 = vmatmul.mubr.bf16.gmra.mrb[0].mxu0 %v5926
    %v5964 = vpop.f32.mrb[0].mxu0
    %v5965 = vadd.f32 %v4826, %v5964
    %v5966 = vpop.f32.mrb[0].mxu0
    %v5967 = vadd.f32 %v4830, %v5966
    %v5968 = vpop.f32.mrb[0].mxu0
    %v5969 = vpop.f32.mrb[0].mxu0
    %5970 = vdwg.mxu0
    %5971 = vmatprep.subr.bf16.mxu0 %v5150
    %5972 = vmatpush1.bf16.msra.mxu0 %v5149
    %5973 = vmatprep.subr.bf16.mxu0 %v5156
    %5974 = vmatpush1.bf16.msra.mxu0 %v5155
    %5975 = vmatprep.subr.bf16.mxu0 %v5162
    %5976 = vmatpush1.bf16.msra.mxu0 %v5161
    %5977 = vmatprep.subr.bf16.mxu0 %v5168
    %5978 = vmatpush1.bf16.msra.mxu0 %v5167
    %5979 = vmatprep.subr.bf16.mxu0 %v5174
    %5980 = vmatpush1.bf16.msra.mxu0 %v5173
    %5981 = vmatprep.subr.bf16.mxu0 %v5180
    %5982 = vmatpush1.bf16.msra.mxu0 %v5179
    %5983 = vmatprep.subr.bf16.mxu0 %v5186
    %5984 = vmatpush1.bf16.msra.mxu0 %v5185
    %5985 = vmatprep.subr.bf16.mxu0 %v5192
    %5986 = vmatpush1.bf16.msra.mxu0 %v5191
    %5987 = vmatprep.subr.bf16.mxu0 %v5198
    %5988 = vmatpush1.bf16.msra.mxu0 %v5197
    %5989 = vmatprep.subr.bf16.mxu0 %v5204
    %5990 = vmatpush1.bf16.msra.mxu0 %v5203
    %5991 = vmatprep.subr.bf16.mxu0 %v5210
    %5992 = vmatpush1.bf16.msra.mxu0 %v5209
    %5993 = vmatprep.subr.bf16.mxu0 %v5216
    %5994 = vmatpush1.bf16.msra.mxu0 %v5215
    %5995 = vmatprep.subr.bf16.mxu0 %v5222
    %5996 = vmatpush1.bf16.msra.mxu0 %v5221
    %5997 = vmatprep.subr.bf16.mxu0 %v5228
    %5998 = vmatpush1.bf16.msra.mxu0 %v5227
    %5999 = vmatprep.subr.bf16.mxu0 %v5234
    %6000 = vmatpush1.bf16.msra.mxu0 %v5233
    %6001 = vmatprep.subr.bf16.mxu0 %v5240
    %6002 = vmatpush1.bf16.msra.mxu0 %v5239
    %6003 = vmatprep.mubr.bf16.mxu0 %v5927
    %6004 = vmatmul.mubr.bf16.gmra.mrb[0].mxu0 %v5926
    %v6005 = vpop.f32.mrb[0].mxu0
    %v6006 = vadd.f32 %v4834, %v6005
    %v6007 = vpop.f32.mrb[0].mxu0
    %v6008 = vadd.f32 %v4838, %v6007
    %v6009 = vpop.f32.mrb[0].mxu0
    %v6010 = vpop.f32.mrb[0].mxu0
    %6011 = vdwg.mxu0
    %6012 = vmatprep.subr.bf16.mxu0 %v5152
    %6013 = vmatpush1.bf16.msra.mxu0 %v5151
    %6014 = vmatprep.subr.bf16.mxu0 %v5158
    %6015 = vmatpush1.bf16.msra.mxu0 %v5157
    %6016 = vmatprep.subr.bf16.mxu0 %v5164
    %6017 = vmatpush1.bf16.msra.mxu0 %v5163
    %6018 = vmatprep.subr.bf16.mxu0 %v5170
    %6019 = vmatpush1.bf16.msra.mxu0 %v5169
    %6020 = vmatprep.subr.bf16.mxu0 %v5176
    %6021 = vmatpush1.bf16.msra.mxu0 %v5175
    %6022 = vmatprep.subr.bf16.mxu0 %v5182
    %6023 = vmatpush1.bf16.msra.mxu0 %v5181
    %6024 = vmatprep.subr.bf16.mxu0 %v5188
    %6025 = vmatpush1.bf16.msra.mxu0 %v5187
    %6026 = vmatprep.subr.bf16.mxu0 %v5194
    %6027 = vmatpush1.bf16.msra.mxu0 %v5193
    %6028 = vmatprep.subr.bf16.mxu0 %v5200
    %6029 = vmatpush1.bf16.msra.mxu0 %v5199
    %6030 = vmatprep.subr.bf16.mxu0 %v5206
    %6031 = vmatpush1.bf16.msra.mxu0 %v5205
    %6032 = vmatprep.subr.bf16.mxu0 %v5212
    %6033 = vmatpush1.bf16.msra.mxu0 %v5211
    %6034 = vmatprep.subr.bf16.mxu0 %v5218
    %6035 = vmatpush1.bf16.msra.mxu0 %v5217
    %6036 = vmatprep.subr.bf16.mxu0 %v5224
    %6037 = vmatpush1.bf16.msra.mxu0 %v5223
    %6038 = vmatprep.subr.bf16.mxu0 %v5230
    %6039 = vmatpush1.bf16.msra.mxu0 %v5229
    %6040 = vmatprep.subr.bf16.mxu0 %v5236
    %6041 = vmatpush1.bf16.msra.mxu0 %v5235
    %6042 = vmatprep.subr.bf16.mxu0 %v5242
    %6043 = vmatpush1.bf16.msra.mxu0 %v5241
    %6044 = vmatprep.mubr.bf16.mxu0 %v5927
    %6045 = vmatmul.mubr.bf16.gmra.mrb[0].mxu0 %v5926
    %v6046 = vpop.f32.mrb[0].mxu0
    %v6047 = vadd.f32 %v4842, %v6046
    %v6048 = vpop.f32.mrb[0].mxu0
    %v6049 = vadd.f32 %v4846, %v6048
    %v6050 = vpop.f32.mrb[0].mxu0
    %v6051 = vpop.f32.mrb[0].mxu0
    %6052 = vdwg.mxu0
    %v6055 = vrot.slane %v5965, 2
    %v6056 = vrot.slane %v5967, 2
    %v6059 = vadd.f32 %v5916, %v6055
    %v6060 = vadd.f32 %v5917, %v6056
    %v6061 = vxor.u32 %v6059, 2147483648
    %v6062 = vxor.u32 %v6060, 2147483648
    %v6063 = vmul.f32 %v6061, 1.442695
    %v6064 = vpow.pop %v6063
    %v6065 = vmul.f32 %v6062, 1.442695
    %v6066 = vpow.pop %v6065
    %v6067 = vadd.f32 %v6064, 1.0
    %v6068 = vadd.f32 %v6066, 1.0
    %v6069 = vrcp.pop %v6067
    %v6070 = vmul.f32 1.0, %v6069
    %v6071 = vrcp.pop %v6068
    %v6072 = vmul.f32 1.0, %v6071
    %v6075 = vrot.slane %v6006, 2
    %v6076 = vrot.slane %v6008, 2
    %v6079 = vadd.f32 %v5918, %v6075
    %v6080 = vadd.f32 %v5919, %v6076
    %v6081 = vxor.u32 %v6079, 2147483648
    %v6082 = vxor.u32 %v6080, 2147483648
    %v6083 = vmul.f32 %v6081, 1.442695
    %v6084 = vpow.pop %v6083
    %v6085 = vmul.f32 %v6082, 1.442695
    %v6086 = vpow.pop %v6085
    %v6087 = vadd.f32 %v6084, 1.0
    %v6088 = vadd.f32 %v6086, 1.0
    %v6089 = vrcp.pop %v6087
    %v6090 = vmul.f32 1.0, %v6089
    %v6091 = vrcp.pop %v6088
    %v6092 = vmul.f32 1.0, %v6091
    %v6095 = vrot.slane %v6047, 2
    %v6096 = vrot.slane %v6049, 2
    %v6099 = vmul.f32 %v6070, %v6095
    %v6100 = vmul.f32 %v6072, %v6096
    %v6101 = vadd.f32 %v5920, %v6099
    %v6102 = vadd.f32 %v5921, %v6100
    %v6103 = vtanh.pop %v6101
    %v6104 = vtanh.pop %v6102
    %v6105 = vsub.f32 1.0, %v6090
    %v6106 = vsub.f32 1.0, %v6092
    %v6107 = vmul.f32 %v6105, %v6103
    %v6108 = vmul.f32 %v6106, %v6104
    %v6111 = vrot.slane %v5912, 6
    %v6112 = vrot.slane %v5913, 6
    %v6115 = vmul.f32 %v6090, %v6111
    %v6116 = vmul.f32 %v6092, %v6112
    %v6117 = vadd.f32 %v6107, %v6115
    %v6118 = vadd.f32 %v6108, %v6116
    %6119 = vst [vmem:[#allocation4] sm:$0xc0] %v6117
    %6120 = vst [vmem:[#allocation4 + $0x8] sm:$0xc0] %v6118
    %v6121 = vld [vmem:[#allocation3 + $0x30] sm:$0x3]
    %v6122 = vld [vmem:[#allocation3 + $0x38] sm:$0x3]
    %v6123 = vld [vmem:[#allocation3 + $0x40] sm:$0x3]
    %v6124 = vld [vmem:[#allocation3 + $0x48] sm:$0x3]
    %v6125 = vld [vmem:[#allocation3 + $0x50] sm:$0x3]
    %v6126 = vld [vmem:[#allocation3 + $0x58] sm:$0x3]
    %v6127 = vpack.c.bf16 %v6117, %v6117
    %v6128 = vpack.c.bf16 %v6118, %v6118
    %v6131 = vrot.slane %v6127, 3
    %v6132 = vrot.slane %v6128, 3
    %6135 = vmatprep.subr.bf16.mxu0 %v5148
    %6136 = vmatpush1.bf16.msra.mxu0 %v5147
    %6137 = vmatprep.subr.bf16.mxu0 %v5154
    %6138 = vmatpush1.bf16.msra.mxu0 %v5153
    %6139 = vmatprep.subr.bf16.mxu0 %v5160
    %6140 = vmatpush1.bf16.msra.mxu0 %v5159
    %6141 = vmatprep.subr.bf16.mxu0 %v5166
    %6142 = vmatpush1.bf16.msra.mxu0 %v5165
    %6143 = vmatprep.subr.bf16.mxu0 %v5172
    %6144 = vmatpush1.bf16.msra.mxu0 %v5171
    %6145 = vmatprep.subr.bf16.mxu0 %v5178
    %6146 = vmatpush1.bf16.msra.mxu0 %v5177
    %6147 = vmatprep.subr.bf16.mxu0 %v5184
    %6148 = vmatpush1.bf16.msra.mxu0 %v5183
    %6149 = vmatprep.subr.bf16.mxu0 %v5190
    %6150 = vmatpush1.bf16.msra.mxu0 %v5189
    %6151 = vmatprep.subr.bf16.mxu0 %v5196
    %6152 = vmatpush1.bf16.msra.mxu0 %v5195
    %6153 = vmatprep.subr.bf16.mxu0 %v5202
    %6154 = vmatpush1.bf16.msra.mxu0 %v5201
    %6155 = vmatprep.subr.bf16.mxu0 %v5208
    %6156 = vmatpush1.bf16.msra.mxu0 %v5207
    %6157 = vmatprep.subr.bf16.mxu0 %v5214
    %6158 = vmatpush1.bf16.msra.mxu0 %v5213
    %6159 = vmatprep.subr.bf16.mxu0 %v5220
    %6160 = vmatpush1.bf16.msra.mxu0 %v5219
    %6161 = vmatprep.subr.bf16.mxu0 %v5226
    %6162 = vmatpush1.bf16.msra.mxu0 %v5225
    %6163 = vmatprep.subr.bf16.mxu0 %v5232
    %6164 = vmatpush1.bf16.msra.mxu0 %v5231
    %6165 = vmatprep.subr.bf16.mxu0 %v5238
    %6166 = vmatpush1.bf16.msra.mxu0 %v5237
    %6167 = vmatprep.mubr.bf16.mxu0 %v6132
    %6168 = vmatmul.mubr.bf16.gmra.mrb[0].mxu0 %v6131
    %v6169 = vpop.f32.mrb[0].mxu0
    %v6170 = vadd.f32 %v4826, %v6169
    %v6171 = vpop.f32.mrb[0].mxu0
    %v6172 = vadd.f32 %v4830, %v6171
    %v6173 = vpop.f32.mrb[0].mxu0
    %v6174 = vpop.f32.mrb[0].mxu0
    %6175 = vdwg.mxu0
    %6176 = vmatprep.subr.bf16.mxu0 %v5150
    %6177 = vmatpush1.bf16.msra.mxu0 %v5149
    %6178 = vmatprep.subr.bf16.mxu0 %v5156
    %6179 = vmatpush1.bf16.msra.mxu0 %v5155
    %6180 = vmatprep.subr.bf16.mxu0 %v5162
    %6181 = vmatpush1.bf16.msra.mxu0 %v5161
    %6182 = vmatprep.subr.bf16.mxu0 %v5168
    %6183 = vmatpush1.bf16.msra.mxu0 %v5167
    %6184 = vmatprep.subr.bf16.mxu0 %v5174
    %6185 = vmatpush1.bf16.msra.mxu0 %v5173
    %6186 = vmatprep.subr.bf16.mxu0 %v5180
    %6187 = vmatpush1.bf16.msra.mxu0 %v5179
    %6188 = vmatprep.subr.bf16.mxu0 %v5186
    %6189 = vmatpush1.bf16.msra.mxu0 %v5185
    %6190 = vmatprep.subr.bf16.mxu0 %v5192
    %6191 = vmatpush1.bf16.msra.mxu0 %v5191
    %6192 = vmatprep.subr.bf16.mxu0 %v5198
    %6193 = vmatpush1.bf16.msra.mxu0 %v5197
    %6194 = vmatprep.subr.bf16.mxu0 %v5204
    %6195 = vmatpush1.bf16.msra.mxu0 %v5203
    %6196 = vmatprep.subr.bf16.mxu0 %v5210
    %6197 = vmatpush1.bf16.msra.mxu0 %v5209
    %6198 = vmatprep.subr.bf16.mxu0 %v5216
    %6199 = vmatpush1.bf16.msra.mxu0 %v5215
    %6200 = vmatprep.subr.bf16.mxu0 %v5222
    %6201 = vmatpush1.bf16.msra.mxu0 %v5221
    %6202 = vmatprep.subr.bf16.mxu0 %v5228
    %6203 = vmatpush1.bf16.msra.mxu0 %v5227
    %6204 = vmatprep.subr.bf16.mxu0 %v5234
    %6205 = vmatpush1.bf16.msra.mxu0 %v5233
    %6206 = vmatprep.subr.bf16.mxu0 %v5240
    %6207 = vmatpush1.bf16.msra.mxu0 %v5239
    %6208 = vmatprep.mubr.bf16.mxu0 %v6132
    %6209 = vmatmul.mubr.bf16.gmra.mrb[0].mxu0 %v6131
    %v6210 = vpop.f32.mrb[0].mxu0
    %v6211 = vadd.f32 %v4834, %v6210
    %v6212 = vpop.f32.mrb[0].mxu0
    %v6213 = vadd.f32 %v4838, %v6212
    %v6214 = vpop.f32.mrb[0].mxu0
    %v6215 = vpop.f32.mrb[0].mxu0
    %6216 = vdwg.mxu0
    %6217 = vmatprep.subr.bf16.mxu0 %v5152
    %6218 = vmatpush1.bf16.msra.mxu0 %v5151
    %6219 = vmatprep.subr.bf16.mxu0 %v5158
    %6220 = vmatpush1.bf16.msra.mxu0 %v5157
    %6221 = vmatprep.subr.bf16.mxu0 %v5164
    %6222 = vmatpush1.bf16.msra.mxu0 %v5163
    %6223 = vmatprep.subr.bf16.mxu0 %v5170
    %6224 = vmatpush1.bf16.msra.mxu0 %v5169
    %6225 = vmatprep.subr.bf16.mxu0 %v5176
    %6226 = vmatpush1.bf16.msra.mxu0 %v5175
    %6227 = vmatprep.subr.bf16.mxu0 %v5182
    %6228 = vmatpush1.bf16.msra.mxu0 %v5181
    %6229 = vmatprep.subr.bf16.mxu0 %v5188
    %6230 = vmatpush1.bf16.msra.mxu0 %v5187
    %6231 = vmatprep.subr.bf16.mxu0 %v5194
    %6232 = vmatpush1.bf16.msra.mxu0 %v5193
    %6233 = vmatprep.subr.bf16.mxu0 %v5200
    %6234 = vmatpush1.bf16.msra.mxu0 %v5199
    %6235 = vmatprep.subr.bf16.mxu0 %v5206
    %6236 = vmatpush1.bf16.msra.mxu0 %v5205
    %6237 = vmatprep.subr.bf16.mxu0 %v5212
    %6238 = vmatpush1.bf16.msra.mxu0 %v5211
    %6239 = vmatprep.subr.bf16.mxu0 %v5218
    %6240 = vmatpush1.bf16.msra.mxu0 %v5217
    %6241 = vmatprep.subr.bf16.mxu0 %v5224
    %6242 = vmatpush1.bf16.msra.mxu0 %v5223
    %6243 = vmatprep.subr.bf16.mxu0 %v5230
    %6244 = vmatpush1.bf16.msra.mxu0 %v5229
    %6245 = vmatprep.subr.bf16.mxu0 %v5236
    %6246 = vmatpush1.bf16.msra.mxu0 %v5235
    %6247 = vmatprep.subr.bf16.mxu0 %v5242
    %6248 = vmatpush1.bf16.msra.mxu0 %v5241
    %6249 = vmatprep.mubr.bf16.mxu0 %v6132
    %6250 = vmatmul.mubr.bf16.gmra.mrb[0].mxu0 %v6131
    %v6251 = vpop.f32.mrb[0].mxu0
    %v6252 = vadd.f32 %v4842, %v6251
    %v6253 = vpop.f32.mrb[0].mxu0
    %v6254 = vadd.f32 %v4846, %v6253
    %v6255 = vpop.f32.mrb[0].mxu0
    %v6256 = vpop.f32.mrb[0].mxu0
    %6257 = vdwg.mxu0
    %v6258 = vadd.f32 %v6121, %v6170
    %v6259 = vadd.f32 %v6122, %v6172
    %v6260 = vxor.u32 %v6258, 2147483648
    %v6261 = vxor.u32 %v6259, 2147483648
    %v6262 = vmul.f32 %v6260, 1.442695
    %v6263 = vpow.pop %v6262
    %v6264 = vmul.f32 %v6261, 1.442695
    %v6265 = vpow.pop %v6264
    %v6266 = vadd.f32 %v6263, 1.0
    %v6267 = vadd.f32 %v6265, 1.0
    %v6268 = vrcp.pop %v6266
    %v6269 = vmul.f32 1.0, %v6268
    %v6270 = vrcp.pop %v6267
    %v6271 = vmul.f32 1.0, %v6270
    %v6272 = vadd.f32 %v6123, %v6211
    %v6273 = vadd.f32 %v6124, %v6213
    %v6274 = vxor.u32 %v6272, 2147483648
    %v6275 = vxor.u32 %v6273, 2147483648
    %v6276 = vmul.f32 %v6274, 1.442695
    %v6277 = vpow.pop %v6276
    %v6278 = vmul.f32 %v6275, 1.442695
    %v6279 = vpow.pop %v6278
    %v6280 = vadd.f32 %v6277, 1.0
    %v6281 = vadd.f32 %v6279, 1.0
    %v6282 = vrcp.pop %v6280
    %v6283 = vmul.f32 1.0, %v6282
    %v6284 = vrcp.pop %v6281
    %v6285 = vmul.f32 1.0, %v6284
    %v6286 = vmul.f32 %v6269, %v6252
    %v6287 = vmul.f32 %v6271, %v6254
    %v6288 = vadd.f32 %v6125, %v6286
    %v6289 = vadd.f32 %v6126, %v6287
    %v6290 = vtanh.pop %v6288
    %v6291 = vtanh.pop %v6289
    %v6292 = vsub.f32 1.0, %v6283
    %v6293 = vsub.f32 1.0, %v6285
    %v6294 = vmul.f32 %v6292, %v6290
    %v6295 = vmul.f32 %v6293, %v6291
    %v6298 = vrot.slane %v6117, 6
    %v6299 = vrot.slane %v6118, 6
    %v6302 = vmul.f32 %v6283, %v6298
    %v6303 = vmul.f32 %v6285, %v6299
    %v6304 = vadd.f32 %v6294, %v6302
    %v6305 = vadd.f32 %v6295, %v6303
    %6306 = vst [vmem:[#allocation4 + $0x10] sm:$0x3] %v6304
    %6307 = vst [vmem:[#allocation4 + $0x18] sm:$0x3] %v6305
    %v6308 = vld [vmem:[#allocation3 + $0x30] sm:$0xc]
    %v6309 = vld [vmem:[#allocation3 + $0x38] sm:$0xc]
    %v6310 = vld [vmem:[#allocation3 + $0x40] sm:$0xc]
    %v6311 = vld [vmem:[#allocation3 + $0x48] sm:$0xc]
    %v6312 = vld [vmem:[#allocation3 + $0x50] sm:$0xc]
    %v6313 = vld [vmem:[#allocation3 + $0x58] sm:$0xc]
    %v6314 = vpack.c.bf16 %v6304, %v6304
    %v6315 = vpack.c.bf16 %v6305, %v6305
    %6316 = vmatprep.subr.bf16.mxu0 %v5148
    %6317 = vmatpush1.bf16.msra.mxu0 %v5147
    %6318 = vmatprep.subr.bf16.mxu0 %v5154
    %6319 = vmatpush1.bf16.msra.mxu0 %v5153
    %6320 = vmatprep.subr.bf16.mxu0 %v5160
    %6321 = vmatpush1.bf16.msra.mxu0 %v5159
    %6322 = vmatprep.subr.bf16.mxu0 %v5166
    %6323 = vmatpush1.bf16.msra.mxu0 %v5165
    %6324 = vmatprep.subr.bf16.mxu0 %v5172
    %6325 = vmatpush1.bf16.msra.mxu0 %v5171
    %6326 = vmatprep.subr.bf16.mxu0 %v5178
    %6327 = vmatpush1.bf16.msra.mxu0 %v5177
    %6328 = vmatprep.subr.bf16.mxu0 %v5184
    %6329 = vmatpush1.bf16.msra.mxu0 %v5183
    %6330 = vmatprep.subr.bf16.mxu0 %v5190
    %6331 = vmatpush1.bf16.msra.mxu0 %v5189
    %6332 = vmatprep.subr.bf16.mxu0 %v5196
    %6333 = vmatpush1.bf16.msra.mxu0 %v5195
    %6334 = vmatprep.subr.bf16.mxu0 %v5202
    %6335 = vmatpush1.bf16.msra.mxu0 %v5201
    %6336 = vmatprep.subr.bf16.mxu0 %v5208
    %6337 = vmatpush1.bf16.msra.mxu0 %v5207
    %6338 = vmatprep.subr.bf16.mxu0 %v5214
    %6339 = vmatpush1.bf16.msra.mxu0 %v5213
    %6340 = vmatprep.subr.bf16.mxu0 %v5220
    %6341 = vmatpush1.bf16.msra.mxu0 %v5219
    %6342 = vmatprep.subr.bf16.mxu0 %v5226
    %6343 = vmatpush1.bf16.msra.mxu0 %v5225
    %6344 = vmatprep.subr.bf16.mxu0 %v5232
    %6345 = vmatpush1.bf16.msra.mxu0 %v5231
    %6346 = vmatprep.subr.bf16.mxu0 %v5238
    %6347 = vmatpush1.bf16.msra.mxu0 %v5237
    %6348 = vmatprep.mubr.bf16.mxu0 %v6315
    %6349 = vmatmul.mubr.bf16.gmra.mrb[0].mxu0 %v6314
    %v6350 = vpop.f32.mrb[0].mxu0
    %v6351 = vadd.f32 %v4826, %v6350
    %v6352 = vpop.f32.mrb[0].mxu0
    %v6353 = vadd.f32 %v4830, %v6352
    %v6354 = vpop.f32.mrb[0].mxu0
    %v6355 = vpop.f32.mrb[0].mxu0
    %6356 = vdwg.mxu0
    %6357 = vmatprep.subr.bf16.mxu0 %v5150
    %6358 = vmatpush1.bf16.msra.mxu0 %v5149
    %6359 = vmatprep.subr.bf16.mxu0 %v5156
    %6360 = vmatpush1.bf16.msra.mxu0 %v5155
    %6361 = vmatprep.subr.bf16.mxu0 %v5162
    %6362 = vmatpush1.bf16.msra.mxu0 %v5161
    %6363 = vmatprep.subr.bf16.mxu0 %v5168
    %6364 = vmatpush1.bf16.msra.mxu0 %v5167
    %6365 = vmatprep.subr.bf16.mxu0 %v5174
    %6366 = vmatpush1.bf16.msra.mxu0 %v5173
    %6367 = vmatprep.subr.bf16.mxu0 %v5180
    %6368 = vmatpush1.bf16.msra.mxu0 %v5179
    %6369 = vmatprep.subr.bf16.mxu0 %v5186
    %6370 = vmatpush1.bf16.msra.mxu0 %v5185
    %6371 = vmatprep.subr.bf16.mxu0 %v5192
    %6372 = vmatpush1.bf16.msra.mxu0 %v5191
    %6373 = vmatprep.subr.bf16.mxu0 %v5198
    %6374 = vmatpush1.bf16.msra.mxu0 %v5197
    %6375 = vmatprep.subr.bf16.mxu0 %v5204
    %6376 = vmatpush1.bf16.msra.mxu0 %v5203
    %6377 = vmatprep.subr.bf16.mxu0 %v5210
    %6378 = vmatpush1.bf16.msra.mxu0 %v5209
    %6379 = vmatprep.subr.bf16.mxu0 %v5216
    %6380 = vmatpush1.bf16.msra.mxu0 %v5215
    %6381 = vmatprep.subr.bf16.mxu0 %v5222
    %6382 = vmatpush1.bf16.msra.mxu0 %v5221
    %6383 = vmatprep.subr.bf16.mxu0 %v5228
    %6384 = vmatpush1.bf16.msra.mxu0 %v5227
    %6385 = vmatprep.subr.bf16.mxu0 %v5234
    %6386 = vmatpush1.bf16.msra.mxu0 %v5233
    %6387 = vmatprep.subr.bf16.mxu0 %v5240
    %6388 = vmatpush1.bf16.msra.mxu0 %v5239
    %6389 = vmatprep.mubr.bf16.mxu0 %v6315
    %6390 = vmatmul.mubr.bf16.gmra.mrb[0].mxu0 %v6314
    %v6391 = vpop.f32.mrb[0].mxu0
    %v6392 = vadd.f32 %v4834, %v6391
    %v6393 = vpop.f32.mrb[0].mxu0
    %v6394 = vadd.f32 %v4838, %v6393
    %v6395 = vpop.f32.mrb[0].mxu0
    %v6396 = vpop.f32.mrb[0].mxu0
    %6397 = vdwg.mxu0
    %6398 = vmatprep.subr.bf16.mxu0 %v5152
    %6399 = vmatpush1.bf16.msra.mxu0 %v5151
    %6400 = vmatprep.subr.bf16.mxu0 %v5158
    %6401 = vmatpush1.bf16.msra.mxu0 %v5157
    %6402 = vmatprep.subr.bf16.mxu0 %v5164
    %6403 = vmatpush1.bf16.msra.mxu0 %v5163
    %6404 = vmatprep.subr.bf16.mxu0 %v5170
    %6405 = vmatpush1.bf16.msra.mxu0 %v5169
    %6406 = vmatprep.subr.bf16.mxu0 %v5176
    %6407 = vmatpush1.bf16.msra.mxu0 %v5175
    %6408 = vmatprep.subr.bf16.mxu0 %v5182
    %6409 = vmatpush1.bf16.msra.mxu0 %v5181
    %6410 = vmatprep.subr.bf16.mxu0 %v5188
    %6411 = vmatpush1.bf16.msra.mxu0 %v5187
    %6412 = vmatprep.subr.bf16.mxu0 %v5194
    %6413 = vmatpush1.bf16.msra.mxu0 %v5193
    %6414 = vmatprep.subr.bf16.mxu0 %v5200
    %6415 = vmatpush1.bf16.msra.mxu0 %v5199
    %6416 = vmatprep.subr.bf16.mxu0 %v5206
    %6417 = vmatpush1.bf16.msra.mxu0 %v5205
    %6418 = vmatprep.subr.bf16.mxu0 %v5212
    %6419 = vmatpush1.bf16.msra.mxu0 %v5211
    %6420 = vmatprep.subr.bf16.mxu0 %v5218
    %6421 = vmatpush1.bf16.msra.mxu0 %v5217
    %6422 = vmatprep.subr.bf16.mxu0 %v5224
    %6423 = vmatpush1.bf16.msra.mxu0 %v5223
    %6424 = vmatprep.subr.bf16.mxu0 %v5230
    %6425 = vmatpush1.bf16.msra.mxu0 %v5229
    %6426 = vmatprep.subr.bf16.mxu0 %v5236
    %6427 = vmatpush1.bf16.msra.mxu0 %v5235
    %6428 = vmatprep.subr.bf16.mxu0 %v5242
    %6429 = vmatpush1.bf16.msra.mxu0 %v5241
    %6430 = vmatprep.mubr.bf16.mxu0 %v6315
    %6431 = vmatmul.mubr.bf16.gmra.mrb[0].mxu0 %v6314
    %v6432 = vpop.f32.mrb[0].mxu0
    %v6433 = vadd.f32 %v4842, %v6432
    %v6434 = vpop.f32.mrb[0].mxu0
    %v6435 = vadd.f32 %v4846, %v6434
    %v6436 = vpop.f32.mrb[0].mxu0
    %v6437 = vpop.f32.mrb[0].mxu0
    %6438 = vdwg.mxu0
    %v6441 = vrot.slane %v6351, 6
    %v6442 = vrot.slane %v6353, 6
    %v6445 = vadd.f32 %v6308, %v6441
    %v6446 = vadd.f32 %v6309, %v6442
    %v6447 = vxor.u32 %v6445, 2147483648
    %v6448 = vxor.u32 %v6446, 2147483648
    %v6449 = vmul.f32 %v6447, 1.442695
    %v6450 = vpow.pop %v6449
    %v6451 = vmul.f32 %v6448, 1.442695
    %v6452 = vpow.pop %v6451
    %v6453 = vadd.f32 %v6450, 1.0
    %v6454 = vadd.f32 %v6452, 1.0
    %v6455 = vrcp.pop %v6453
    %v6456 = vmul.f32 1.0, %v6455
    %v6457 = vrcp.pop %v6454
    %v6458 = vmul.f32 1.0, %v6457
    %v6461 = vrot.slane %v6392, 6
    %v6462 = vrot.slane %v6394, 6
    %v6465 = vadd.f32 %v6310, %v6461
    %v6466 = vadd.f32 %v6311, %v6462
    %v6467 = vxor.u32 %v6465, 2147483648
    %v6468 = vxor.u32 %v6466, 2147483648
    %v6469 = vmul.f32 %v6467, 1.442695
    %v6470 = vpow.pop %v6469
    %v6471 = vmul.f32 %v6468, 1.442695
    %v6472 = vpow.pop %v6471
    %v6473 = vadd.f32 %v6470, 1.0
    %v6474 = vadd.f32 %v6472, 1.0
    %v6475 = vrcp.pop %v6473
    %v6476 = vmul.f32 1.0, %v6475
    %v6477 = vrcp.pop %v6474
    %v6478 = vmul.f32 1.0, %v6477
    %v6481 = vrot.slane %v6433, 6
    %v6482 = vrot.slane %v6435, 6
    %v6485 = vmul.f32 %v6456, %v6481
    %v6486 = vmul.f32 %v6458, %v6482
    %v6487 = vadd.f32 %v6312, %v6485
    %v6488 = vadd.f32 %v6313, %v6486
    %v6489 = vtanh.pop %v6487
    %v6490 = vtanh.pop %v6488
    %v6491 = vsub.f32 1.0, %v6476
    %v6492 = vsub.f32 1.0, %v6478
    %v6493 = vmul.f32 %v6491, %v6489
    %v6494 = vmul.f32 %v6492, %v6490
    %v6497 = vrot.slane %v6304, 6
    %v6498 = vrot.slane %v6305, 6
    %v6501 = vmul.f32 %v6476, %v6497
    %v6502 = vmul.f32 %v6478, %v6498
    %v6503 = vadd.f32 %v6493, %v6501
    %v6504 = vadd.f32 %v6494, %v6502
    %6505 = vst [vmem:[#allocation4 + $0x10] sm:$0xc] %v6503
    %6506 = vst [vmem:[#allocation4 + $0x18] sm:$0xc] %v6504
    %v6507 = vld [vmem:[#allocation3 + $0x30] sm:$0x30]
    %v6508 = vld [vmem:[#allocation3 + $0x38] sm:$0x30]
    %v6509 = vld [vmem:[#allocation3 + $0x40] sm:$0x30]
    %v6510 = vld [vmem:[#allocation3 + $0x48] sm:$0x30]
    %v6511 = vld [vmem:[#allocation3 + $0x50] sm:$0x30]
    %v6512 = vld [vmem:[#allocation3 + $0x58] sm:$0x30]
    %v6513 = vpack.c.bf16 %v6503, %v6503
    %v6514 = vpack.c.bf16 %v6504, %v6504
    %v6517 = vrot.slane %v6513, 1
    %v6518 = vrot.slane %v6514, 1
    %6521 = vmatprep.subr.bf16.mxu0 %v5148
    %6522 = vmatpush1.bf16.msra.mxu0 %v5147
    %6523 = vmatprep.subr.bf16.mxu0 %v5154
    %6524 = vmatpush1.bf16.msra.mxu0 %v5153
    %6525 = vmatprep.subr.bf16.mxu0 %v5160
    %6526 = vmatpush1.bf16.msra.mxu0 %v5159
    %6527 = vmatprep.subr.bf16.mxu0 %v5166
    %6528 = vmatpush1.bf16.msra.mxu0 %v5165
    %6529 = vmatprep.subr.bf16.mxu0 %v5172
    %6530 = vmatpush1.bf16.msra.mxu0 %v5171
    %6531 = vmatprep.subr.bf16.mxu0 %v5178
    %6532 = vmatpush1.bf16.msra.mxu0 %v5177
    %6533 = vmatprep.subr.bf16.mxu0 %v5184
    %6534 = vmatpush1.bf16.msra.mxu0 %v5183
    %6535 = vmatprep.subr.bf16.mxu0 %v5190
    %6536 = vmatpush1.bf16.msra.mxu0 %v5189
    %6537 = vmatprep.subr.bf16.mxu0 %v5196
    %6538 = vmatpush1.bf16.msra.mxu0 %v5195
    %6539 = vmatprep.subr.bf16.mxu0 %v5202
    %6540 = vmatpush1.bf16.msra.mxu0 %v5201
    %6541 = vmatprep.subr.bf16.mxu0 %v5208
    %6542 = vmatpush1.bf16.msra.mxu0 %v5207
    %6543 = vmatprep.subr.bf16.mxu0 %v5214
    %6544 = vmatpush1.bf16.msra.mxu0 %v5213
    %6545 = vmatprep.subr.bf16.mxu0 %v5220
    %6546 = vmatpush1.bf16.msra.mxu0 %v5219
    %6547 = vmatprep.subr.bf16.mxu0 %v5226
    %6548 = vmatpush1.bf16.msra.mxu0 %v5225
    %6549 = vmatprep.subr.bf16.mxu0 %v5232
    %6550 = vmatpush1.bf16.msra.mxu0 %v5231
    %6551 = vmatprep.subr.bf16.mxu0 %v5238
    %6552 = vmatpush1.bf16.msra.mxu0 %v5237
    %6553 = vmatprep.mubr.bf16.mxu0 %v6518
    %6554 = vmatmul.mubr.bf16.gmra.mrb[0].mxu0 %v6517
    %v6555 = vpop.f32.mrb[0].mxu0
    %v6556 = vadd.f32 %v4826, %v6555
    %v6557 = vpop.f32.mrb[0].mxu0
    %v6558 = vadd.f32 %v4830, %v6557
    %v6559 = vpop.f32.mrb[0].mxu0
    %v6560 = vpop.f32.mrb[0].mxu0
    %6561 = vdwg.mxu0
    %6562 = vmatprep.subr.bf16.mxu0 %v5150
    %6563 = vmatpush1.bf16.msra.mxu0 %v5149
    %6564 = vmatprep.subr.bf16.mxu0 %v5156
    %6565 = vmatpush1.bf16.msra.mxu0 %v5155
    %6566 = vmatprep.subr.bf16.mxu0 %v5162
    %6567 = vmatpush1.bf16.msra.mxu0 %v5161
    %6568 = vmatprep.subr.bf16.mxu0 %v5168
    %6569 = vmatpush1.bf16.msra.mxu0 %v5167
    %6570 = vmatprep.subr.bf16.mxu0 %v5174
    %6571 = vmatpush1.bf16.msra.mxu0 %v5173
    %6572 = vmatprep.subr.bf16.mxu0 %v5180
    %6573 = vmatpush1.bf16.msra.mxu0 %v5179
    %6574 = vmatprep.subr.bf16.mxu0 %v5186
    %6575 = vmatpush1.bf16.msra.mxu0 %v5185
    %6576 = vmatprep.subr.bf16.mxu0 %v5192
    %6577 = vmatpush1.bf16.msra.mxu0 %v5191
    %6578 = vmatprep.subr.bf16.mxu0 %v5198
    %6579 = vmatpush1.bf16.msra.mxu0 %v5197
    %6580 = vmatprep.subr.bf16.mxu0 %v5204
    %6581 = vmatpush1.bf16.msra.mxu0 %v5203
    %6582 = vmatprep.subr.bf16.mxu0 %v5210
    %6583 = vmatpush1.bf16.msra.mxu0 %v5209
    %6584 = vmatprep.subr.bf16.mxu0 %v5216
    %6585 = vmatpush1.bf16.msra.mxu0 %v5215
    %6586 = vmatprep.subr.bf16.mxu0 %v5222
    %6587 = vmatpush1.bf16.msra.mxu0 %v5221
    %6588 = vmatprep.subr.bf16.mxu0 %v5228
    %6589 = vmatpush1.bf16.msra.mxu0 %v5227
    %6590 = vmatprep.subr.bf16.mxu0 %v5234
    %6591 = vmatpush1.bf16.msra.mxu0 %v5233
    %6592 = vmatprep.subr.bf16.mxu0 %v5240
    %6593 = vmatpush1.bf16.msra.mxu0 %v5239
    %6594 = vmatprep.mubr.bf16.mxu0 %v6518
    %6595 = vmatmul.mubr.bf16.gmra.mrb[0].mxu0 %v6517
    %v6596 = vpop.f32.mrb[0].mxu0
    %v6597 = vadd.f32 %v4834, %v6596
    %v6598 = vpop.f32.mrb[0].mxu0
    %v6599 = vadd.f32 %v4838, %v6598
    %v6600 = vpop.f32.mrb[0].mxu0
    %v6601 = vpop.f32.mrb[0].mxu0
    %6602 = vdwg.mxu0
    %6603 = vmatprep.subr.bf16.mxu0 %v5152
    %6604 = vmatpush1.bf16.msra.mxu0 %v5151
    %6605 = vmatprep.subr.bf16.mxu0 %v5158
    %6606 = vmatpush1.bf16.msra.mxu0 %v5157
    %6607 = vmatprep.subr.bf16.mxu0 %v5164
    %6608 = vmatpush1.bf16.msra.mxu0 %v5163
    %6609 = vmatprep.subr.bf16.mxu0 %v5170
    %6610 = vmatpush1.bf16.msra.mxu0 %v5169
    %6611 = vmatprep.subr.bf16.mxu0 %v5176
    %6612 = vmatpush1.bf16.msra.mxu0 %v5175
    %6613 = vmatprep.subr.bf16.mxu0 %v5182
    %6614 = vmatpush1.bf16.msra.mxu0 %v5181
    %6615 = vmatprep.subr.bf16.mxu0 %v5188
    %6616 = vmatpush1.bf16.msra.mxu0 %v5187
    %6617 = vmatprep.subr.bf16.mxu0 %v5194
    %6618 = vmatpush1.bf16.msra.mxu0 %v5193
    %6619 = vmatprep.subr.bf16.mxu0 %v5200
    %6620 = vmatpush1.bf16.msra.mxu0 %v5199
    %6621 = vmatprep.subr.bf16.mxu0 %v5206
    %6622 = vmatpush1.bf16.msra.mxu0 %v5205
    %6623 = vmatprep.subr.bf16.mxu0 %v5212
    %6624 = vmatpush1.bf16.msra.mxu0 %v5211
    %6625 = vmatprep.subr.bf16.mxu0 %v5218
    %6626 = vmatpush1.bf16.msra.mxu0 %v5217
    %6627 = vmatprep.subr.bf16.mxu0 %v5224
    %6628 = vmatpush1.bf16.msra.mxu0 %v5223
    %6629 = vmatprep.subr.bf16.mxu0 %v5230
    %6630 = vmatpush1.bf16.msra.mxu0 %v5229
    %6631 = vmatprep.subr.bf16.mxu0 %v5236
    %6632 = vmatpush1.bf16.msra.mxu0 %v5235
    %6633 = vmatprep.subr.bf16.mxu0 %v5242
    %6634 = vmatpush1.bf16.msra.mxu0 %v5241
    %6635 = vmatprep.mubr.bf16.mxu0 %v6518
    %6636 = vmatmul.mubr.bf16.gmra.mrb[0].mxu0 %v6517
    %v6637 = vpop.f32.mrb[0].mxu0
    %v6638 = vadd.f32 %v4842, %v6637
    %v6639 = vpop.f32.mrb[0].mxu0
    %v6640 = vadd.f32 %v4846, %v6639
    %v6641 = vpop.f32.mrb[0].mxu0
    %v6642 = vpop.f32.mrb[0].mxu0
    %6643 = vdwg.mxu0
    %v6646 = vrot.slane %v6556, 4
    %v6647 = vrot.slane %v6558, 4
    %v6650 = vadd.f32 %v6507, %v6646
    %v6651 = vadd.f32 %v6508, %v6647
    %v6652 = vxor.u32 %v6650, 2147483648
    %v6653 = vxor.u32 %v6651, 2147483648
    %v6654 = vmul.f32 %v6652, 1.442695
    %v6655 = vpow.pop %v6654
    %v6656 = vmul.f32 %v6653, 1.442695
    %v6657 = vpow.pop %v6656
    %v6658 = vadd.f32 %v6655, 1.0
    %v6659 = vadd.f32 %v6657, 1.0
    %v6660 = vrcp.pop %v6658
    %v6661 = vmul.f32 1.0, %v6660
    %v6662 = vrcp.pop %v6659
    %v6663 = vmul.f32 1.0, %v6662
    %v6666 = vrot.slane %v6597, 4
    %v6667 = vrot.slane %v6599, 4
    %v6670 = vadd.f32 %v6509, %v6666
    %v6671 = vadd.f32 %v6510, %v6667
    %v6672 = vxor.u32 %v6670, 2147483648
    %v6673 = vxor.u32 %v6671, 2147483648
    %v6674 = vmul.f32 %v6672, 1.442695
    %v6675 = vpow.pop %v6674
    %v6676 = vmul.f32 %v6673, 1.442695
    %v6677 = vpow.pop %v6676
    %v6678 = vadd.f32 %v6675, 1.0
    %v6679 = vadd.f32 %v6677, 1.0
    %v6680 = vrcp.pop %v6678
    %v6681 = vmul.f32 1.0, %v6680
    %v6682 = vrcp.pop %v6679
    %v6683 = vmul.f32 1.0, %v6682
    %v6686 = vrot.slane %v6638, 4
    %v6687 = vrot.slane %v6640, 4
    %v6690 = vmul.f32 %v6661, %v6686
    %v6691 = vmul.f32 %v6663, %v6687
    %v6692 = vadd.f32 %v6511, %v6690
    %v6693 = vadd.f32 %v6512, %v6691
    %v6694 = vtanh.pop %v6692
    %v6695 = vtanh.pop %v6693
    %v6696 = vsub.f32 1.0, %v6681
    %v6697 = vsub.f32 1.0, %v6683
    %v6698 = vmul.f32 %v6696, %v6694
    %v6699 = vmul.f32 %v6697, %v6695
    %v6702 = vrot.slane %v6503, 6
    %v6703 = vrot.slane %v6504, 6
    %v6706 = vmul.f32 %v6681, %v6702
    %v6707 = vmul.f32 %v6683, %v6703
    %v6708 = vadd.f32 %v6698, %v6706
    %v6709 = vadd.f32 %v6699, %v6707
    %6710 = vst [vmem:[#allocation4 + $0x10] sm:$0x30] %v6708
    %6711 = vst [vmem:[#allocation4 + $0x18] sm:$0x30] %v6709
    %v6712 = vld [vmem:[#allocation3 + $0x30] sm:$0xc0]
    %v6713 = vld [vmem:[#allocation3 + $0x38] sm:$0xc0]
    %v6714 = vld [vmem:[#allocation3 + $0x40] sm:$0xc0]
    %v6715 = vld [vmem:[#allocation3 + $0x48] sm:$0xc0]
    %v6716 = vld [vmem:[#allocation3 + $0x50] sm:$0xc0]
    %v6717 = vld [vmem:[#allocation3 + $0x58] sm:$0xc0]
    %v6718 = vpack.c.bf16 %v6708, %v6708
    %v6719 = vpack.c.bf16 %v6709, %v6709
    %v6722 = vrot.slane %v6718, 2
    %v6723 = vrot.slane %v6719, 2
    %6726 = vmatprep.subr.bf16.mxu0 %v5148
    %6727 = vmatpush1.bf16.msra.mxu0 %v5147
    %6728 = vmatprep.subr.bf16.mxu0 %v5154
    %6729 = vmatpush1.bf16.msra.mxu0 %v5153
    %6730 = vmatprep.subr.bf16.mxu0 %v5160
    %6731 = vmatpush1.bf16.msra.mxu0 %v5159
    %6732 = vmatprep.subr.bf16.mxu0 %v5166
    %6733 = vmatpush1.bf16.msra.mxu0 %v5165
    %6734 = vmatprep.subr.bf16.mxu0 %v5172
    %6735 = vmatpush1.bf16.msra.mxu0 %v5171
    %6736 = vmatprep.subr.bf16.mxu0 %v5178
    %6737 = vmatpush1.bf16.msra.mxu0 %v5177
    %6738 = vmatprep.subr.bf16.mxu0 %v5184
    %6739 = vmatpush1.bf16.msra.mxu0 %v5183
    %6740 = vmatprep.subr.bf16.mxu0 %v5190
    %6741 = vmatpush1.bf16.msra.mxu0 %v5189
    %6742 = vmatprep.subr.bf16.mxu0 %v5196
    %6743 = vmatpush1.bf16.msra.mxu0 %v5195
    %6744 = vmatprep.subr.bf16.mxu0 %v5202
    %6745 = vmatpush1.bf16.msra.mxu0 %v5201
    %6746 = vmatprep.subr.bf16.mxu0 %v5208
    %6747 = vmatpush1.bf16.msra.mxu0 %v5207
    %6748 = vmatprep.subr.bf16.mxu0 %v5214
    %6749 = vmatpush1.bf16.msra.mxu0 %v5213
    %6750 = vmatprep.subr.bf16.mxu0 %v5220
    %6751 = vmatpush1.bf16.msra.mxu0 %v5219
    %6752 = vmatprep.subr.bf16.mxu0 %v5226
    %6753 = vmatpush1.bf16.msra.mxu0 %v5225
    %6754 = vmatprep.subr.bf16.mxu0 %v5232
    %6755 = vmatpush1.bf16.msra.mxu0 %v5231
    %6756 = vmatprep.subr.bf16.mxu0 %v5238
    %6757 = vmatpush1.bf16.msra.mxu0 %v5237
    %6758 = vmatprep.mubr.bf16.mxu0 %v6723
    %6759 = vmatmul.mubr.bf16.gmra.mrb[0].mxu0 %v6722
    %v6760 = vpop.f32.mrb[0].mxu0
    %v6761 = vadd.f32 %v4826, %v6760
    %v6762 = vpop.f32.mrb[0].mxu0
    %v6763 = vadd.f32 %v4830, %v6762
    %v6764 = vpop.f32.mrb[0].mxu0
    %v6765 = vpop.f32.mrb[0].mxu0
    %6766 = vdwg.mxu0
    %6767 = vmatprep.subr.bf16.mxu0 %v5150
    %6768 = vmatpush1.bf16.msra.mxu0 %v5149
    %6769 = vmatprep.subr.bf16.mxu0 %v5156
    %6770 = vmatpush1.bf16.msra.mxu0 %v5155
    %6771 = vmatprep.subr.bf16.mxu0 %v5162
    %6772 = vmatpush1.bf16.msra.mxu0 %v5161
    %6773 = vmatprep.subr.bf16.mxu0 %v5168
    %6774 = vmatpush1.bf16.msra.mxu0 %v5167
    %6775 = vmatprep.subr.bf16.mxu0 %v5174
    %6776 = vmatpush1.bf16.msra.mxu0 %v5173
    %6777 = vmatprep.subr.bf16.mxu0 %v5180
    %6778 = vmatpush1.bf16.msra.mxu0 %v5179
    %6779 = vmatprep.subr.bf16.mxu0 %v5186
    %6780 = vmatpush1.bf16.msra.mxu0 %v5185
    %6781 = vmatprep.subr.bf16.mxu0 %v5192
    %6782 = vmatpush1.bf16.msra.mxu0 %v5191
    %6783 = vmatprep.subr.bf16.mxu0 %v5198
    %6784 = vmatpush1.bf16.msra.mxu0 %v5197
    %6785 = vmatprep.subr.bf16.mxu0 %v5204
    %6786 = vmatpush1.bf16.msra.mxu0 %v5203
    %6787 = vmatprep.subr.bf16.mxu0 %v5210
    %6788 = vmatpush1.bf16.msra.mxu0 %v5209
    %6789 = vmatprep.subr.bf16.mxu0 %v5216
    %6790 = vmatpush1.bf16.msra.mxu0 %v5215
    %6791 = vmatprep.subr.bf16.mxu0 %v5222
    %6792 = vmatpush1.bf16.msra.mxu0 %v5221
    %6793 = vmatprep.subr.bf16.mxu0 %v5228
    %6794 = vmatpush1.bf16.msra.mxu0 %v5227
    %6795 = vmatprep.subr.bf16.mxu0 %v5234
    %6796 = vmatpush1.bf16.msra.mxu0 %v5233
    %6797 = vmatprep.subr.bf16.mxu0 %v5240
    %6798 = vmatpush1.bf16.msra.mxu0 %v5239
    %6799 = vmatprep.mubr.bf16.mxu0 %v6723
    %6800 = vmatmul.mubr.bf16.gmra.mrb[0].mxu0 %v6722
    %v6801 = vpop.f32.mrb[0].mxu0
    %v6802 = vadd.f32 %v4834, %v6801
    %v6803 = vpop.f32.mrb[0].mxu0
    %v6804 = vadd.f32 %v4838, %v6803
    %v6805 = vpop.f32.mrb[0].mxu0
    %v6806 = vpop.f32.mrb[0].mxu0
    %6807 = vdwg.mxu0
    %6808 = vmatprep.subr.bf16.mxu0 %v5152
    %6809 = vmatpush1.bf16.msra.mxu0 %v5151
    %6810 = vmatprep.subr.bf16.mxu0 %v5158
    %6811 = vmatpush1.bf16.msra.mxu0 %v5157
    %6812 = vmatprep.subr.bf16.mxu0 %v5164
    %6813 = vmatpush1.bf16.msra.mxu0 %v5163
    %6814 = vmatprep.subr.bf16.mxu0 %v5170
    %6815 = vmatpush1.bf16.msra.mxu0 %v5169
    %6816 = vmatprep.subr.bf16.mxu0 %v5176
    %6817 = vmatpush1.bf16.msra.mxu0 %v5175
    %6818 = vmatprep.subr.bf16.mxu0 %v5182
    %6819 = vmatpush1.bf16.msra.mxu0 %v5181
    %6820 = vmatprep.subr.bf16.mxu0 %v5188
    %6821 = vmatpush1.bf16.msra.mxu0 %v5187
    %6822 = vmatprep.subr.bf16.mxu0 %v5194
    %6823 = vmatpush1.bf16.msra.mxu0 %v5193
    %6824 = vmatprep.subr.bf16.mxu0 %v5200
    %6825 = vmatpush1.bf16.msra.mxu0 %v5199
    %6826 = vmatprep.subr.bf16.mxu0 %v5206
    %6827 = vmatpush1.bf16.msra.mxu0 %v5205
    %6828 = vmatprep.subr.bf16.mxu0 %v5212
    %6829 = vmatpush1.bf16.msra.mxu0 %v5211
    %6830 = vmatprep.subr.bf16.mxu0 %v5218
    %6831 = vmatpush1.bf16.msra.mxu0 %v5217
    %6832 = vmatprep.subr.bf16.mxu0 %v5224
    %6833 = vmatpush1.bf16.msra.mxu0 %v5223
    %6834 = vmatprep.subr.bf16.mxu0 %v5230
    %6835 = vmatpush1.bf16.msra.mxu0 %v5229
    %6836 = vmatprep.subr.bf16.mxu0 %v5236
    %6837 = vmatpush1.bf16.msra.mxu0 %v5235
    %6838 = vmatprep.subr.bf16.mxu0 %v5242
    %6839 = vmatpush1.bf16.msra.mxu0 %v5241
    %6840 = vmatprep.mubr.bf16.mxu0 %v6723
    %6841 = vmatmul.mubr.bf16.gmra.mrb[0].mxu0 %v6722
    %v6842 = vpop.f32.mrb[0].mxu0
    %v6843 = vadd.f32 %v4842, %v6842
    %v6844 = vpop.f32.mrb[0].mxu0
    %v6845 = vadd.f32 %v4846, %v6844
    %v6846 = vpop.f32.mrb[0].mxu0
    %v6847 = vpop.f32.mrb[0].mxu0
    %6848 = vdwg.mxu0
    %v6851 = vrot.slane %v6761, 2
    %v6852 = vrot.slane %v6763, 2
    %v6855 = vadd.f32 %v6712, %v6851
    %v6856 = vadd.f32 %v6713, %v6852
    %v6857 = vxor.u32 %v6855, 2147483648
    %v6858 = vxor.u32 %v6856, 2147483648
    %v6859 = vmul.f32 %v6857, 1.442695
    %v6860 = vpow.pop %v6859
    %v6861 = vmul.f32 %v6858, 1.442695
    %v6862 = vpow.pop %v6861
    %v6863 = vadd.f32 %v6860, 1.0
    %v6864 = vadd.f32 %v6862, 1.0
    %v6865 = vrcp.pop %v6863
    %v6866 = vmul.f32 1.0, %v6865
    %v6867 = vrcp.pop %v6864
    %v6868 = vmul.f32 1.0, %v6867
    %v6871 = vrot.slane %v6802, 2
    %v6872 = vrot.slane %v6804, 2
    %v6875 = vadd.f32 %v6714, %v6871
    %v6876 = vadd.f32 %v6715, %v6872
    %v6877 = vxor.u32 %v6875, 2147483648
    %v6878 = vxor.u32 %v6876, 2147483648
    %v6879 = vmul.f32 %v6877, 1.442695
    %v6880 = vpow.pop %v6879
    %v6881 = vmul.f32 %v6878, 1.442695
    %v6882 = vpow.pop %v6881
    %v6883 = vadd.f32 %v6880, 1.0
    %v6884 = vadd.f32 %v6882, 1.0
    %v6885 = vrcp.pop %v6883
    %v6886 = vmul.f32 1.0, %v6885
    %v6887 = vrcp.pop %v6884
    %v6888 = vmul.f32 1.0, %v6887
    %v6891 = vrot.slane %v6843, 2
    %v6892 = vrot.slane %v6845, 2
    %v6895 = vmul.f32 %v6866, %v6891
    %v6896 = vmul.f32 %v6868, %v6892
    %v6897 = vadd.f32 %v6716, %v6895
    %v6898 = vadd.f32 %v6717, %v6896
    %v6899 = vtanh.pop %v6897
    %v6900 = vtanh.pop %v6898
    %v6901 = vsub.f32 1.0, %v6886
    %v6902 = vsub.f32 1.0, %v6888
    %v6903 = vmul.f32 %v6901, %v6899
    %v6904 = vmul.f32 %v6902, %v6900
    %v6907 = vrot.slane %v6708, 6
    %v6908 = vrot.slane %v6709, 6
    %v6911 = vmul.f32 %v6886, %v6907
    %v6912 = vmul.f32 %v6888, %v6908
    %v6913 = vadd.f32 %v6903, %v6911
    %v6914 = vadd.f32 %v6904, %v6912
    %6915 = vst [vmem:[#allocation4 + $0x10] sm:$0xc0] %v6913
    %6916 = vst [vmem:[#allocation4 + $0x18] sm:$0xc0] %v6914
    %v6917 = vld [vmem:[#allocation4] sm:$0xff]
    %v6918 = vld [vmem:[#allocation4 + $0x8] sm:$0xff]
    %v6919 = vld [vmem:[#allocation4 + $0x10] sm:$0xff]
    %v6920 = vld [vmem:[#allocation4 + $0x18] sm:$0xff]
    %v6921 = vld [vmem:[#allocation31] sm:$0x30]
    %v6922 = vld [vmem:[#allocation31 + $0x8] sm:$0x30]
    %v6923 = vpack.c.bf16 %v6919, %v6917
    %v6924 = vpack.c.bf16 %v6920, %v6918
    %v6925 = vld [vmem:[#allocation23] sm:$0xff]
    %v6926 = vld [vmem:[#allocation23 + $0x8] sm:$0xff]
    %v6927 = vld [vmem:[#allocation23 + $0x10] sm:$0xff]
    %v6928 = vld [vmem:[#allocation23 + $0x18] sm:$0xff]
    %v6929 = vld [vmem:[#allocation23 + $0x20] sm:$0xff]
    %v6930 = vld [vmem:[#allocation23 + $0x28] sm:$0xff]
    %v6931 = vld [vmem:[#allocation23 + $0x30] sm:$0xff]
    %v6932 = vld [vmem:[#allocation23 + $0x38] sm:$0xff]
    %v6933 = vld [vmem:[#allocation23 + $0x40] sm:$0xff]
    %v6934 = vld [vmem:[#allocation23 + $0x48] sm:$0xff]
    %v6935 = vld [vmem:[#allocation23 + $0x50] sm:$0xff]
    %v6936 = vld [vmem:[#allocation23 + $0x58] sm:$0xff]
    %v6937 = vld [vmem:[#allocation23 + $0x60] sm:$0xff]
    %v6938 = vld [vmem:[#allocation23 + $0x68] sm:$0xff]
    %v6939 = vld [vmem:[#allocation23 + $0x70] sm:$0xff]
    %v6940 = vld [vmem:[#allocation23 + $0x78] sm:$0xff]
    %v6941 = vld [vmem:[#allocation23 + $0x80] sm:$0xff]
    %v6942 = vld [vmem:[#allocation23 + $0x88] sm:$0xff]
    %v6943 = vld [vmem:[#allocation23 + $0x90] sm:$0xff]
    %v6944 = vld [vmem:[#allocation23 + $0x98] sm:$0xff]
    %v6945 = vld [vmem:[#allocation23 + $0xa0] sm:$0xff]
    %v6946 = vld [vmem:[#allocation23 + $0xa8] sm:$0xff]
    %v6947 = vld [vmem:[#allocation23 + $0xb0] sm:$0xff]
    %v6948 = vld [vmem:[#allocation23 + $0xb8] sm:$0xff]
    %v6949 = vld [vmem:[#allocation23 + $0xc0] sm:$0xff]
    %v6950 = vld [vmem:[#allocation23 + $0xc8] sm:$0xff]
    %v6951 = vld [vmem:[#allocation23 + $0xd0] sm:$0xff]
    %v6952 = vld [vmem:[#allocation23 + $0xd8] sm:$0xff]
    %v6953 = vld [vmem:[#allocation23 + $0xe0] sm:$0xff]
    %v6954 = vld [vmem:[#allocation23 + $0xe8] sm:$0xff]
    %v6955 = vld [vmem:[#allocation23 + $0xf0] sm:$0xff]
    %v6956 = vld [vmem:[#allocation23 + $0xf8] sm:$0xff]
    %v6957 = vld [vmem:[#allocation23 + $0x100] sm:$0xff]
    %v6958 = vld [vmem:[#allocation23 + $0x108] sm:$0xff]
    %v6959 = vld [vmem:[#allocation23 + $0x110] sm:$0xff]
    %v6960 = vld [vmem:[#allocation23 + $0x118] sm:$0xff]
    %v6961 = vld [vmem:[#allocation23 + $0x120] sm:$0xff]
    %v6962 = vld [vmem:[#allocation23 + $0x128] sm:$0xff]
    %v6963 = vld [vmem:[#allocation23 + $0x130] sm:$0xff]
    %v6964 = vld [vmem:[#allocation23 + $0x138] sm:$0xff]
    %v6965 = vld [vmem:[#allocation23 + $0x140] sm:$0xff]
    %v6966 = vld [vmem:[#allocation23 + $0x148] sm:$0xff]
    %v6967 = vld [vmem:[#allocation23 + $0x150] sm:$0xff]
    %v6968 = vld [vmem:[#allocation23 + $0x158] sm:$0xff]
    %v6969 = vld [vmem:[#allocation23 + $0x160] sm:$0xff]
    %v6970 = vld [vmem:[#allocation23 + $0x168] sm:$0xff]
    %v6971 = vld [vmem:[#allocation23 + $0x170] sm:$0xff]
    %v6972 = vld [vmem:[#allocation23 + $0x178] sm:$0xff]
    %v6973 = vld [vmem:[#allocation23 + $0x180] sm:$0xff]
    %v6974 = vld [vmem:[#allocation23 + $0x188] sm:$0xff]
    %v6975 = vld [vmem:[#allocation23 + $0x190] sm:$0xff]
    %v6976 = vld [vmem:[#allocation23 + $0x198] sm:$0xff]
    %v6977 = vld [vmem:[#allocation23 + $0x1a0] sm:$0xff]
    %v6978 = vld [vmem:[#allocation23 + $0x1a8] sm:$0xff]
    %v6979 = vld [vmem:[#allocation23 + $0x1b0] sm:$0xff]
    %v6980 = vld [vmem:[#allocation23 + $0x1b8] sm:$0xff]
    %v6981 = vld [vmem:[#allocation23 + $0x1c0] sm:$0xff]
    %v6982 = vld [vmem:[#allocation23 + $0x1c8] sm:$0xff]
    %v6983 = vld [vmem:[#allocation23 + $0x1d0] sm:$0xff]
    %v6984 = vld [vmem:[#allocation23 + $0x1d8] sm:$0xff]
    %v6985 = vld [vmem:[#allocation23 + $0x1e0] sm:$0xff]
    %v6986 = vld [vmem:[#allocation23 + $0x1e8] sm:$0xff]
    %v6987 = vld [vmem:[#allocation23 + $0x1f0] sm:$0xff]
    %v6988 = vld [vmem:[#allocation23 + $0x1f8] sm:$0xff]
    %v6989 = vld [vmem:[#allocation23 + $0x200] sm:$0xff]
    %v6990 = vld [vmem:[#allocation23 + $0x208] sm:$0xff]
    %v6991 = vld [vmem:[#allocation23 + $0x210] sm:$0xff]
    %v6992 = vld [vmem:[#allocation23 + $0x218] sm:$0xff]
    %v6993 = vld [vmem:[#allocation23 + $0x220] sm:$0xff]
    %v6994 = vld [vmem:[#allocation23 + $0x228] sm:$0xff]
    %v6995 = vld [vmem:[#allocation23 + $0x230] sm:$0xff]
    %v6996 = vld [vmem:[#allocation23 + $0x238] sm:$0xff]
    %v6997 = vld [vmem:[#allocation23 + $0x240] sm:$0xff]
    %v6998 = vld [vmem:[#allocation23 + $0x248] sm:$0xff]
    %v6999 = vld [vmem:[#allocation23 + $0x250] sm:$0xff]
    %v7000 = vld [vmem:[#allocation23 + $0x258] sm:$0xff]
    %v7001 = vld [vmem:[#allocation23 + $0x260] sm:$0xff]
    %v7002 = vld [vmem:[#allocation23 + $0x268] sm:$0xff]
    %v7003 = vld [vmem:[#allocation23 + $0x270] sm:$0xff]
    %v7004 = vld [vmem:[#allocation23 + $0x278] sm:$0xff]
    %v7005 = vld [vmem:[#allocation23 + $0x280] sm:$0xff]
    %v7006 = vld [vmem:[#allocation23 + $0x288] sm:$0xff]
    %v7007 = vld [vmem:[#allocation23 + $0x290] sm:$0xff]
    %v7008 = vld [vmem:[#allocation23 + $0x298] sm:$0xff]
    %v7009 = vld [vmem:[#allocation23 + $0x2a0] sm:$0xff]
    %v7010 = vld [vmem:[#allocation23 + $0x2a8] sm:$0xff]
    %v7011 = vld [vmem:[#allocation23 + $0x2b0] sm:$0xff]
    %v7012 = vld [vmem:[#allocation23 + $0x2b8] sm:$0xff]
    %v7013 = vld [vmem:[#allocation23 + $0x2c0] sm:$0xff]
    %v7014 = vld [vmem:[#allocation23 + $0x2c8] sm:$0xff]
    %v7015 = vld [vmem:[#allocation23 + $0x2d0] sm:$0xff]
    %v7016 = vld [vmem:[#allocation23 + $0x2d8] sm:$0xff]
    %v7017 = vld [vmem:[#allocation23 + $0x2e0] sm:$0xff]
    %v7018 = vld [vmem:[#allocation23 + $0x2e8] sm:$0xff]
    %v7019 = vld [vmem:[#allocation23 + $0x2f0] sm:$0xff]
    %v7020 = vld [vmem:[#allocation23 + $0x2f8] sm:$0xff]
    %v7021 = vld [vmem:[#allocation26] ss:$2 sm:$0x3f]
    %v7023 = vlaneseq
    %v7024 = vshrl.u32 %v7023, 7
    %v7025 = vsub.s32 0, %v7024
    %v7026 = vrot.slane %v7021, %v7025
    %v7027 = vlaneseq
    %v7028 = vshrl.u32 %v7027, 7
    %v7029 = vsub.s32 1, %v7028
    %v7030 = vrot.slane %v7021, %v7029
    %v7031 = vlaneseq
    %v7032 = vshrl.u32 %v7031, 7
    %v7033 = vsub.s32 2, %v7032
    %v7034 = vrot.slane %v7021, %v7033
    %v7035 = vlaneseq
    %v7036 = vshrl.u32 %v7035, 7
    %v7037 = vsub.s32 3, %v7036
    %v7038 = vrot.slane %v7021, %v7037
    %v7039 = vlaneseq
    %v7040 = vshrl.u32 %v7039, 7
    %v7041 = vsub.s32 4, %v7040
    %v7042 = vrot.slane %v7021, %v7041
    %v7043 = vlaneseq
    %v7044 = vshrl.u32 %v7043, 7
    %v7045 = vsub.s32 5, %v7044
    %v7046 = vrot.slane %v7021, %v7045
    %v7149 = vunpack.c.l.b16 %v6925
    %v7150 = vunpack.c.h.b16 %v6925
    %v7151 = vunpack.c.l.b16 %v6926
    %v7152 = vunpack.c.h.b16 %v6926
    %v7153 = vunpack.c.l.b16 %v6927
    %v7154 = vunpack.c.h.b16 %v6927
    %v7155 = vunpack.c.l.b16 %v6928
    %v7156 = vunpack.c.h.b16 %v6928
    %v7157 = vunpack.c.l.b16 %v6929
    %v7158 = vunpack.c.h.b16 %v6929
    %v7159 = vunpack.c.l.b16 %v6930
    %v7160 = vunpack.c.h.b16 %v6930
    %v7161 = vunpack.c.l.b16 %v6931
    %v7162 = vunpack.c.h.b16 %v6931
    %v7163 = vunpack.c.l.b16 %v6932
    %v7164 = vunpack.c.h.b16 %v6932
    %v7165 = vunpack.c.l.b16 %v6933
    %v7166 = vunpack.c.h.b16 %v6933
    %v7167 = vunpack.c.l.b16 %v6934
    %v7168 = vunpack.c.h.b16 %v6934
    %v7169 = vunpack.c.l.b16 %v6935
    %v7170 = vunpack.c.h.b16 %v6935
    %v7171 = vunpack.c.l.b16 %v6936
    %v7172 = vunpack.c.h.b16 %v6936
    %v7173 = vunpack.c.l.b16 %v6937
    %v7174 = vunpack.c.h.b16 %v6937
    %v7175 = vunpack.c.l.b16 %v6938
    %v7176 = vunpack.c.h.b16 %v6938
    %v7177 = vunpack.c.l.b16 %v6939
    %v7178 = vunpack.c.h.b16 %v6939
    %v7179 = vunpack.c.l.b16 %v6940
    %v7180 = vunpack.c.h.b16 %v6940
    %v7181 = vunpack.c.l.b16 %v6941
    %v7182 = vunpack.c.h.b16 %v6941
    %v7183 = vunpack.c.l.b16 %v6942
    %v7184 = vunpack.c.h.b16 %v6942
    %v7185 = vunpack.c.l.b16 %v6943
    %v7186 = vunpack.c.h.b16 %v6943
    %v7187 = vunpack.c.l.b16 %v6944
    %v7188 = vunpack.c.h.b16 %v6944
    %v7189 = vunpack.c.l.b16 %v6945
    %v7190 = vunpack.c.h.b16 %v6945
    %v7191 = vunpack.c.l.b16 %v6946
    %v7192 = vunpack.c.h.b16 %v6946
    %v7193 = vunpack.c.l.b16 %v6947
    %v7194 = vunpack.c.h.b16 %v6947
    %v7195 = vunpack.c.l.b16 %v6948
    %v7196 = vunpack.c.h.b16 %v6948
    %v7197 = vunpack.c.l.b16 %v6949
    %v7198 = vunpack.c.h.b16 %v6949
    %v7199 = vunpack.c.l.b16 %v6950
    %v7200 = vunpack.c.h.b16 %v6950
    %v7201 = vunpack.c.l.b16 %v6951
    %v7202 = vunpack.c.h.b16 %v6951
    %v7203 = vunpack.c.l.b16 %v6952
    %v7204 = vunpack.c.h.b16 %v6952
    %v7205 = vunpack.c.l.b16 %v6953
    %v7206 = vunpack.c.h.b16 %v6953
    %v7207 = vunpack.c.l.b16 %v6954
    %v7208 = vunpack.c.h.b16 %v6954
    %v7209 = vunpack.c.l.b16 %v6955
    %v7210 = vunpack.c.h.b16 %v6955
    %v7211 = vunpack.c.l.b16 %v6956
    %v7212 = vunpack.c.h.b16 %v6956
    %v7213 = vunpack.c.l.b16 %v6957
    %v7214 = vunpack.c.h.b16 %v6957
    %v7215 = vunpack.c.l.b16 %v6958
    %v7216 = vunpack.c.h.b16 %v6958
    %v7217 = vunpack.c.l.b16 %v6959
    %v7218 = vunpack.c.h.b16 %v6959
    %v7219 = vunpack.c.l.b16 %v6960
    %v7220 = vunpack.c.h.b16 %v6960
    %v7221 = vunpack.c.l.b16 %v6961
    %v7222 = vunpack.c.h.b16 %v6961
    %v7223 = vunpack.c.l.b16 %v6962
    %v7224 = vunpack.c.h.b16 %v6962
    %v7225 = vunpack.c.l.b16 %v6963
    %v7226 = vunpack.c.h.b16 %v6963
    %v7227 = vunpack.c.l.b16 %v6964
    %v7228 = vunpack.c.h.b16 %v6964
    %v7229 = vunpack.c.l.b16 %v6965
    %v7230 = vunpack.c.h.b16 %v6965
    %v7231 = vunpack.c.l.b16 %v6966
    %v7232 = vunpack.c.h.b16 %v6966
    %v7233 = vunpack.c.l.b16 %v6967
    %v7234 = vunpack.c.h.b16 %v6967
    %v7235 = vunpack.c.l.b16 %v6968
    %v7236 = vunpack.c.h.b16 %v6968
    %v7237 = vunpack.c.l.b16 %v6969
    %v7238 = vunpack.c.h.b16 %v6969
    %v7239 = vunpack.c.l.b16 %v6970
    %v7240 = vunpack.c.h.b16 %v6970
    %v7241 = vunpack.c.l.b16 %v6971
    %v7242 = vunpack.c.h.b16 %v6971
    %v7243 = vunpack.c.l.b16 %v6972
    %v7244 = vunpack.c.h.b16 %v6972
    %v7245 = vunpack.c.l.b16 %v6973
    %v7246 = vunpack.c.h.b16 %v6973
    %v7247 = vunpack.c.l.b16 %v6974
    %v7248 = vunpack.c.h.b16 %v6974
    %v7249 = vunpack.c.l.b16 %v6975
    %v7250 = vunpack.c.h.b16 %v6975
    %v7251 = vunpack.c.l.b16 %v6976
    %v7252 = vunpack.c.h.b16 %v6976
    %v7253 = vunpack.c.l.b16 %v6977
    %v7254 = vunpack.c.h.b16 %v6977
    %v7255 = vunpack.c.l.b16 %v6978
    %v7256 = vunpack.c.h.b16 %v6978
    %v7257 = vunpack.c.l.b16 %v6979
    %v7258 = vunpack.c.h.b16 %v6979
    %v7259 = vunpack.c.l.b16 %v6980
    %v7260 = vunpack.c.h.b16 %v6980
    %v7261 = vunpack.c.l.b16 %v6981
    %v7262 = vunpack.c.h.b16 %v6981
    %v7263 = vunpack.c.l.b16 %v6982
    %v7264 = vunpack.c.h.b16 %v6982
    %v7265 = vunpack.c.l.b16 %v6983
    %v7266 = vunpack.c.h.b16 %v6983
    %v7267 = vunpack.c.l.b16 %v6984
    %v7268 = vunpack.c.h.b16 %v6984
    %v7269 = vunpack.c.l.b16 %v6985
    %v7270 = vunpack.c.h.b16 %v6985
    %v7271 = vunpack.c.l.b16 %v6986
    %v7272 = vunpack.c.h.b16 %v6986
    %v7273 = vunpack.c.l.b16 %v6987
    %v7274 = vunpack.c.h.b16 %v6987
    %v7275 = vunpack.c.l.b16 %v6988
    %v7276 = vunpack.c.h.b16 %v6988
    %v7277 = vunpack.c.l.b16 %v6989
    %v7278 = vunpack.c.h.b16 %v6989
    %v7279 = vunpack.c.l.b16 %v6990
    %v7280 = vunpack.c.h.b16 %v6990
    %v7281 = vunpack.c.l.b16 %v6991
    %v7282 = vunpack.c.h.b16 %v6991
    %v7283 = vunpack.c.l.b16 %v6992
    %v7284 = vunpack.c.h.b16 %v6992
    %v7285 = vunpack.c.l.b16 %v6993
    %v7286 = vunpack.c.h.b16 %v6993
    %v7287 = vunpack.c.l.b16 %v6994
    %v7288 = vunpack.c.h.b16 %v6994
    %v7289 = vunpack.c.l.b16 %v6995
    %v7290 = vunpack.c.h.b16 %v6995
    %v7291 = vunpack.c.l.b16 %v6996
    %v7292 = vunpack.c.h.b16 %v6996
    %v7293 = vunpack.c.l.b16 %v6997
    %v7294 = vunpack.c.h.b16 %v6997
    %v7295 = vunpack.c.l.b16 %v6998
    %v7296 = vunpack.c.h.b16 %v6998
    %v7297 = vunpack.c.l.b16 %v6999
    %v7298 = vunpack.c.h.b16 %v6999
    %v7299 = vunpack.c.l.b16 %v7000
    %v7300 = vunpack.c.h.b16 %v7000
    %v7301 = vunpack.c.l.b16 %v7001
    %v7302 = vunpack.c.h.b16 %v7001
    %v7303 = vunpack.c.l.b16 %v7002
    %v7304 = vunpack.c.h.b16 %v7002
    %v7305 = vunpack.c.l.b16 %v7003
    %v7306 = vunpack.c.h.b16 %v7003
    %v7307 = vunpack.c.l.b16 %v7004
    %v7308 = vunpack.c.h.b16 %v7004
    %v7309 = vunpack.c.l.b16 %v7005
    %v7310 = vunpack.c.h.b16 %v7005
    %v7311 = vunpack.c.l.b16 %v7006
    %v7312 = vunpack.c.h.b16 %v7006
    %v7313 = vunpack.c.l.b16 %v7007
    %v7314 = vunpack.c.h.b16 %v7007
    %v7315 = vunpack.c.l.b16 %v7008
    %v7316 = vunpack.c.h.b16 %v7008
    %v7317 = vunpack.c.l.b16 %v7009
    %v7318 = vunpack.c.h.b16 %v7009
    %v7319 = vunpack.c.l.b16 %v7010
    %v7320 = vunpack.c.h.b16 %v7010
    %v7321 = vunpack.c.l.b16 %v7011
    %v7322 = vunpack.c.h.b16 %v7011
    %v7323 = vunpack.c.l.b16 %v7012
    %v7324 = vunpack.c.h.b16 %v7012
    %v7325 = vunpack.c.l.b16 %v7013
    %v7326 = vunpack.c.h.b16 %v7013
    %v7327 = vunpack.c.l.b16 %v7014
    %v7328 = vunpack.c.h.b16 %v7014
    %v7329 = vunpack.c.l.b16 %v7015
    %v7330 = vunpack.c.h.b16 %v7015
    %v7331 = vunpack.c.l.b16 %v7016
    %v7332 = vunpack.c.h.b16 %v7016
    %v7333 = vunpack.c.l.b16 %v7017
    %v7334 = vunpack.c.h.b16 %v7017
    %v7335 = vunpack.c.l.b16 %v7018
    %v7336 = vunpack.c.h.b16 %v7018
    %v7337 = vunpack.c.l.b16 %v7019
    %v7338 = vunpack.c.h.b16 %v7019
    %v7339 = vunpack.c.l.b16 %v7020
    %v7340 = vunpack.c.h.b16 %v7020
    %v7341 = vpack.c.b16 %v7155, %v7149
    %v7342 = vpack.c.b16 %v7156, %v7150
    %v7343 = vpack.c.b16 %v7157, %v7151
    %v7344 = vpack.c.b16 %v7158, %v7152
    %v7345 = vpack.c.b16 %v7159, %v7153
    %v7346 = vpack.c.b16 %v7160, %v7154
    %v7347 = vpack.c.b16 %v7167, %v7161
    %v7348 = vpack.c.b16 %v7168, %v7162
    %v7349 = vpack.c.b16 %v7169, %v7163
    %v7350 = vpack.c.b16 %v7170, %v7164
    %v7351 = vpack.c.b16 %v7171, %v7165
    %v7352 = vpack.c.b16 %v7172, %v7166
    %v7353 = vpack.c.b16 %v7179, %v7173
    %v7354 = vpack.c.b16 %v7180, %v7174
    %v7355 = vpack.c.b16 %v7181, %v7175
    %v7356 = vpack.c.b16 %v7182, %v7176
    %v7357 = vpack.c.b16 %v7183, %v7177
    %v7358 = vpack.c.b16 %v7184, %v7178
    %v7359 = vpack.c.b16 %v7191, %v7185
    %v7360 = vpack.c.b16 %v7192, %v7186
    %v7361 = vpack.c.b16 %v7193, %v7187
    %v7362 = vpack.c.b16 %v7194, %v7188
    %v7363 = vpack.c.b16 %v7195, %v7189
    %v7364 = vpack.c.b16 %v7196, %v7190
    %v7365 = vpack.c.b16 %v7203, %v7197
    %v7366 = vpack.c.b16 %v7204, %v7198
    %v7367 = vpack.c.b16 %v7205, %v7199
    %v7368 = vpack.c.b16 %v7206, %v7200
    %v7369 = vpack.c.b16 %v7207, %v7201
    %v7370 = vpack.c.b16 %v7208, %v7202
    %v7371 = vpack.c.b16 %v7215, %v7209
    %v7372 = vpack.c.b16 %v7216, %v7210
    %v7373 = vpack.c.b16 %v7217, %v7211
    %v7374 = vpack.c.b16 %v7218, %v7212
    %v7375 = vpack.c.b16 %v7219, %v7213
    %v7376 = vpack.c.b16 %v7220, %v7214
    %v7377 = vpack.c.b16 %v7227, %v7221
    %v7378 = vpack.c.b16 %v7228, %v7222
    %v7379 = vpack.c.b16 %v7229, %v7223
    %v7380 = vpack.c.b16 %v7230, %v7224
    %v7381 = vpack.c.b16 %v7231, %v7225
    %v7382 = vpack.c.b16 %v7232, %v7226
    %v7383 = vpack.c.b16 %v7239, %v7233
    %v7384 = vpack.c.b16 %v7240, %v7234
    %v7385 = vpack.c.b16 %v7241, %v7235
    %v7386 = vpack.c.b16 %v7242, %v7236
    %v7387 = vpack.c.b16 %v7243, %v7237
    %v7388 = vpack.c.b16 %v7244, %v7238
    %v7389 = vpack.c.b16 %v7251, %v7245
    %v7390 = vpack.c.b16 %v7252, %v7246
    %v7391 = vpack.c.b16 %v7253, %v7247
    %v7392 = vpack.c.b16 %v7254, %v7248
    %v7393 = vpack.c.b16 %v7255, %v7249
    %v7394 = vpack.c.b16 %v7256, %v7250
    %v7395 = vpack.c.b16 %v7263, %v7257
    %v7396 = vpack.c.b16 %v7264, %v7258
    %v7397 = vpack.c.b16 %v7265, %v7259
    %v7398 = vpack.c.b16 %v7266, %v7260
    %v7399 = vpack.c.b16 %v7267, %v7261
    %v7400 = vpack.c.b16 %v7268, %v7262
    %v7401 = vpack.c.b16 %v7275, %v7269
    %v7402 = vpack.c.b16 %v7276, %v7270
    %v7403 = vpack.c.b16 %v7277, %v7271
    %v7404 = vpack.c.b16 %v7278, %v7272
    %v7405 = vpack.c.b16 %v7279, %v7273
    %v7406 = vpack.c.b16 %v7280, %v7274
    %v7407 = vpack.c.b16 %v7287, %v7281
    %v7408 = vpack.c.b16 %v7288, %v7282
    %v7409 = vpack.c.b16 %v7289, %v7283
    %v7410 = vpack.c.b16 %v7290, %v7284
    %v7411 = vpack.c.b16 %v7291, %v7285
    %v7412 = vpack.c.b16 %v7292, %v7286
    %v7413 = vpack.c.b16 %v7299, %v7293
    %v7414 = vpack.c.b16 %v7300, %v7294
    %v7415 = vpack.c.b16 %v7301, %v7295
    %v7416 = vpack.c.b16 %v7302, %v7296
    %v7417 = vpack.c.b16 %v7303, %v7297
    %v7418 = vpack.c.b16 %v7304, %v7298
    %v7419 = vpack.c.b16 %v7311, %v7305
    %v7420 = vpack.c.b16 %v7312, %v7306
    %v7421 = vpack.c.b16 %v7313, %v7307
    %v7422 = vpack.c.b16 %v7314, %v7308
    %v7423 = vpack.c.b16 %v7315, %v7309
    %v7424 = vpack.c.b16 %v7316, %v7310
    %v7425 = vpack.c.b16 %v7323, %v7317
    %v7426 = vpack.c.b16 %v7324, %v7318
    %v7427 = vpack.c.b16 %v7325, %v7319
    %v7428 = vpack.c.b16 %v7326, %v7320
    %v7429 = vpack.c.b16 %v7327, %v7321
    %v7430 = vpack.c.b16 %v7328, %v7322
    %v7431 = vpack.c.b16 %v7335, %v7329
    %v7432 = vpack.c.b16 %v7336, %v7330
    %v7433 = vpack.c.b16 %v7337, %v7331
    %v7434 = vpack.c.b16 %v7338, %v7332
    %v7435 = vpack.c.b16 %v7339, %v7333
    %v7436 = vpack.c.b16 %v7340, %v7334
    %7533 = vmatprep.subr.bf16.mxu0 %v7342
    %7534 = vmatpush1.bf16.msra.mxu0 %v7341
    %7535 = vmatprep.subr.bf16.mxu0 %v7348
    %7536 = vmatpush1.bf16.msra.mxu0 %v7347
    %7537 = vmatprep.subr.bf16.mxu0 %v7354
    %7538 = vmatpush1.bf16.msra.mxu0 %v7353
    %7539 = vmatprep.subr.bf16.mxu0 %v7360
    %7540 = vmatpush1.bf16.msra.mxu0 %v7359
    %7541 = vmatprep.subr.bf16.mxu0 %v7366
    %7542 = vmatpush1.bf16.msra.mxu0 %v7365
    %7543 = vmatprep.subr.bf16.mxu0 %v7372
    %7544 = vmatpush1.bf16.msra.mxu0 %v7371
    %7545 = vmatprep.subr.bf16.mxu0 %v7378
    %7546 = vmatpush1.bf16.msra.mxu0 %v7377
    %7547 = vmatprep.subr.bf16.mxu0 %v7384
    %7548 = vmatpush1.bf16.msra.mxu0 %v7383
    %7549 = vmatprep.subr.bf16.mxu0 %v7390
    %7550 = vmatpush1.bf16.msra.mxu0 %v7389
    %7551 = vmatprep.subr.bf16.mxu0 %v7396
    %7552 = vmatpush1.bf16.msra.mxu0 %v7395
    %7553 = vmatprep.subr.bf16.mxu0 %v7402
    %7554 = vmatpush1.bf16.msra.mxu0 %v7401
    %7555 = vmatprep.subr.bf16.mxu0 %v7408
    %7556 = vmatpush1.bf16.msra.mxu0 %v7407
    %7557 = vmatprep.subr.bf16.mxu0 %v7414
    %7558 = vmatpush1.bf16.msra.mxu0 %v7413
    %7559 = vmatprep.subr.bf16.mxu0 %v7420
    %7560 = vmatpush1.bf16.msra.mxu0 %v7419
    %7561 = vmatprep.subr.bf16.mxu0 %v7426
    %7562 = vmatpush1.bf16.msra.mxu0 %v7425
    %7563 = vmatprep.subr.bf16.mxu0 %v7432
    %7564 = vmatpush1.bf16.msra.mxu0 %v7431
    %7565 = vmatprep.mubr.bf16.mxu0 %v6924
    %7566 = vmatmul.mubr.bf16.gmra.mrb[0].mxu0 %v6923
    %v7567 = vpop.f32.mrb[0].mxu0
    %v7568 = vadd.f32 %v7026, %v7567
    %v7569 = vpop.f32.mrb[0].mxu0
    %v7570 = vadd.f32 %v7030, %v7569
    %v7571 = vpop.f32.mrb[0].mxu0
    %v7572 = vadd.f32 %v7026, %v7571
    %v7573 = vpop.f32.mrb[0].mxu0
    %v7574 = vadd.f32 %v7030, %v7573
    %7575 = vdwg.mxu0
    %7576 = vmatprep.subr.bf16.mxu0 %v7344
    %7577 = vmatpush1.bf16.msra.mxu0 %v7343
    %7578 = vmatprep.subr.bf16.mxu0 %v7350
    %7579 = vmatpush1.bf16.msra.mxu0 %v7349
    %7580 = vmatprep.subr.bf16.mxu0 %v7356
    %7581 = vmatpush1.bf16.msra.mxu0 %v7355
    %7582 = vmatprep.subr.bf16.mxu0 %v7362
    %7583 = vmatpush1.bf16.msra.mxu0 %v7361
    %7584 = vmatprep.subr.bf16.mxu0 %v7368
    %7585 = vmatpush1.bf16.msra.mxu0 %v7367
    %7586 = vmatprep.subr.bf16.mxu0 %v7374
    %7587 = vmatpush1.bf16.msra.mxu0 %v7373
    %7588 = vmatprep.subr.bf16.mxu0 %v7380
    %7589 = vmatpush1.bf16.msra.mxu0 %v7379
    %7590 = vmatprep.subr.bf16.mxu0 %v7386
    %7591 = vmatpush1.bf16.msra.mxu0 %v7385
    %7592 = vmatprep.subr.bf16.mxu0 %v7392
    %7593 = vmatpush1.bf16.msra.mxu0 %v7391
    %7594 = vmatprep.subr.bf16.mxu0 %v7398
    %7595 = vmatpush1.bf16.msra.mxu0 %v7397
    %7596 = vmatprep.subr.bf16.mxu0 %v7404
    %7597 = vmatpush1.bf16.msra.mxu0 %v7403
    %7598 = vmatprep.subr.bf16.mxu0 %v7410
    %7599 = vmatpush1.bf16.msra.mxu0 %v7409
    %7600 = vmatprep.subr.bf16.mxu0 %v7416
    %7601 = vmatpush1.bf16.msra.mxu0 %v7415
    %7602 = vmatprep.subr.bf16.mxu0 %v7422
    %7603 = vmatpush1.bf16.msra.mxu0 %v7421
    %7604 = vmatprep.subr.bf16.mxu0 %v7428
    %7605 = vmatpush1.bf16.msra.mxu0 %v7427
    %7606 = vmatprep.subr.bf16.mxu0 %v7434
    %7607 = vmatpush1.bf16.msra.mxu0 %v7433
    %7608 = vmatprep.mubr.bf16.mxu0 %v6924
    %7609 = vmatmul.mubr.bf16.gmra.mrb[0].mxu0 %v6923
    %v7610 = vpop.f32.mrb[0].mxu0
    %v7611 = vadd.f32 %v7034, %v7610
    %v7612 = vpop.f32.mrb[0].mxu0
    %v7613 = vadd.f32 %v7038, %v7612
    %v7614 = vpop.f32.mrb[0].mxu0
    %v7615 = vadd.f32 %v7034, %v7614
    %v7616 = vpop.f32.mrb[0].mxu0
    %v7617 = vadd.f32 %v7038, %v7616
    %7618 = vdwg.mxu0
    %7619 = vmatprep.subr.bf16.mxu0 %v7346
    %7620 = vmatpush1.bf16.msra.mxu0 %v7345
    %7621 = vmatprep.subr.bf16.mxu0 %v7352
    %7622 = vmatpush1.bf16.msra.mxu0 %v7351
    %7623 = vmatprep.subr.bf16.mxu0 %v7358
    %7624 = vmatpush1.bf16.msra.mxu0 %v7357
    %7625 = vmatprep.subr.bf16.mxu0 %v7364
    %7626 = vmatpush1.bf16.msra.mxu0 %v7363
    %7627 = vmatprep.subr.bf16.mxu0 %v7370
    %7628 = vmatpush1.bf16.msra.mxu0 %v7369
    %7629 = vmatprep.subr.bf16.mxu0 %v7376
    %7630 = vmatpush1.bf16.msra.mxu0 %v7375
    %7631 = vmatprep.subr.bf16.mxu0 %v7382
    %7632 = vmatpush1.bf16.msra.mxu0 %v7381
    %7633 = vmatprep.subr.bf16.mxu0 %v7388
    %7634 = vmatpush1.bf16.msra.mxu0 %v7387
    %7635 = vmatprep.subr.bf16.mxu0 %v7394
    %7636 = vmatpush1.bf16.msra.mxu0 %v7393
    %7637 = vmatprep.subr.bf16.mxu0 %v7400
    %7638 = vmatpush1.bf16.msra.mxu0 %v7399
    %7639 = vmatprep.subr.bf16.mxu0 %v7406
    %7640 = vmatpush1.bf16.msra.mxu0 %v7405
    %7641 = vmatprep.subr.bf16.mxu0 %v7412
    %7642 = vmatpush1.bf16.msra.mxu0 %v7411
    %7643 = vmatprep.subr.bf16.mxu0 %v7418
    %7644 = vmatpush1.bf16.msra.mxu0 %v7417
    %7645 = vmatprep.subr.bf16.mxu0 %v7424
    %7646 = vmatpush1.bf16.msra.mxu0 %v7423
    %7647 = vmatprep.subr.bf16.mxu0 %v7430
    %7648 = vmatpush1.bf16.msra.mxu0 %v7429
    %7649 = vmatprep.subr.bf16.mxu0 %v7436
    %7650 = vmatpush1.bf16.msra.mxu0 %v7435
    %7651 = vmatprep.mubr.bf16.mxu0 %v6924
    %7652 = vmatmul.mubr.bf16.gmra.mrb[0].mxu0 %v6923
    %v7653 = vpop.f32.mrb[0].mxu0
    %v7654 = vadd.f32 %v7042, %v7653
    %v7655 = vpop.f32.mrb[0].mxu0
    %v7656 = vadd.f32 %v7046, %v7655
    %v7657 = vpop.f32.mrb[0].mxu0
    %v7658 = vadd.f32 %v7042, %v7657
    %v7659 = vpop.f32.mrb[0].mxu0
    %v7660 = vadd.f32 %v7046, %v7659
    %7661 = vdwg.mxu0
    %7662 = vst [vmem:[#allocation3] sm:$0xff] %v7568
    %7663 = vst [vmem:[#allocation3 + $0x8] sm:$0xff] %v7570
    %7664 = vst [vmem:[#allocation3 + $0x10] sm:$0xff] %v7611
    %7665 = vst [vmem:[#allocation3 + $0x18] sm:$0xff] %v7613
    %7666 = vst [vmem:[#allocation3 + $0x20] sm:$0xff] %v7654
    %7667 = vst [vmem:[#allocation3 + $0x28] sm:$0xff] %v7656
    %7668 = vst [vmem:[#allocation3 + $0x30] sm:$0xff] %v7572
    %7669 = vst [vmem:[#allocation3 + $0x38] sm:$0xff] %v7574
    %7670 = vst [vmem:[#allocation3 + $0x40] sm:$0xff] %v7615
    %7671 = vst [vmem:[#allocation3 + $0x48] sm:$0xff] %v7617
    %7672 = vst [vmem:[#allocation3 + $0x50] sm:$0xff] %v7658
    %7673 = vst [vmem:[#allocation3 + $0x58] sm:$0xff] %v7660
    %v7674 = vld [vmem:[#allocation25] sm:$0xff]
    %v7675 = vld [vmem:[#allocation25 + $0x8] sm:$0xff]
    %v7676 = vld [vmem:[#allocation25 + $0x10] sm:$0xff]
    %v7677 = vld [vmem:[#allocation25 + $0x18] sm:$0xff]
    %v7678 = vld [vmem:[#allocation25 + $0x20] sm:$0xff]
    %v7679 = vld [vmem:[#allocation25 + $0x28] sm:$0xff]
    %v7680 = vld [vmem:[#allocation25 + $0x30] sm:$0xff]
    %v7681 = vld [vmem:[#allocation25 + $0x38] sm:$0xff]
    %v7682 = vld [vmem:[#allocation25 + $0x40] sm:$0xff]
    %v7683 = vld [vmem:[#allocation25 + $0x48] sm:$0xff]
    %v7684 = vld [vmem:[#allocation25 + $0x50] sm:$0xff]
    %v7685 = vld [vmem:[#allocation25 + $0x58] sm:$0xff]
    %v7686 = vld [vmem:[#allocation25 + $0x60] sm:$0xff]
    %v7687 = vld [vmem:[#allocation25 + $0x68] sm:$0xff]
    %v7688 = vld [vmem:[#allocation25 + $0x70] sm:$0xff]
    %v7689 = vld [vmem:[#allocation25 + $0x78] sm:$0xff]
    %v7690 = vld [vmem:[#allocation25 + $0x80] sm:$0xff]
    %v7691 = vld [vmem:[#allocation25 + $0x88] sm:$0xff]
    %v7692 = vld [vmem:[#allocation25 + $0x90] sm:$0xff]
    %v7693 = vld [vmem:[#allocation25 + $0x98] sm:$0xff]
    %v7694 = vld [vmem:[#allocation25 + $0xa0] sm:$0xff]
    %v7695 = vld [vmem:[#allocation25 + $0xa8] sm:$0xff]
    %v7696 = vld [vmem:[#allocation25 + $0xb0] sm:$0xff]
    %v7697 = vld [vmem:[#allocation25 + $0xb8] sm:$0xff]
    %v7698 = vld [vmem:[#allocation25 + $0xc0] sm:$0xff]
    %v7699 = vld [vmem:[#allocation25 + $0xc8] sm:$0xff]
    %v7700 = vld [vmem:[#allocation25 + $0xd0] sm:$0xff]
    %v7701 = vld [vmem:[#allocation25 + $0xd8] sm:$0xff]
    %v7702 = vld [vmem:[#allocation25 + $0xe0] sm:$0xff]
    %v7703 = vld [vmem:[#allocation25 + $0xe8] sm:$0xff]
    %v7704 = vld [vmem:[#allocation25 + $0xf0] sm:$0xff]
    %v7705 = vld [vmem:[#allocation25 + $0xf8] sm:$0xff]
    %v7706 = vld [vmem:[#allocation25 + $0x100] sm:$0xff]
    %v7707 = vld [vmem:[#allocation25 + $0x108] sm:$0xff]
    %v7708 = vld [vmem:[#allocation25 + $0x110] sm:$0xff]
    %v7709 = vld [vmem:[#allocation25 + $0x118] sm:$0xff]
    %v7710 = vld [vmem:[#allocation25 + $0x120] sm:$0xff]
    %v7711 = vld [vmem:[#allocation25 + $0x128] sm:$0xff]
    %v7712 = vld [vmem:[#allocation25 + $0x130] sm:$0xff]
    %v7713 = vld [vmem:[#allocation25 + $0x138] sm:$0xff]
    %v7714 = vld [vmem:[#allocation25 + $0x140] sm:$0xff]
    %v7715 = vld [vmem:[#allocation25 + $0x148] sm:$0xff]
    %v7716 = vld [vmem:[#allocation25 + $0x150] sm:$0xff]
    %v7717 = vld [vmem:[#allocation25 + $0x158] sm:$0xff]
    %v7718 = vld [vmem:[#allocation25 + $0x160] sm:$0xff]
    %v7719 = vld [vmem:[#allocation25 + $0x168] sm:$0xff]
    %v7720 = vld [vmem:[#allocation25 + $0x170] sm:$0xff]
    %v7721 = vld [vmem:[#allocation25 + $0x178] sm:$0xff]
    %v7722 = vld [vmem:[#allocation25 + $0x180] sm:$0xff]
    %v7723 = vld [vmem:[#allocation25 + $0x188] sm:$0xff]
    %v7724 = vld [vmem:[#allocation25 + $0x190] sm:$0xff]
    %v7725 = vld [vmem:[#allocation25 + $0x198] sm:$0xff]
    %v7726 = vld [vmem:[#allocation25 + $0x1a0] sm:$0xff]
    %v7727 = vld [vmem:[#allocation25 + $0x1a8] sm:$0xff]
    %v7728 = vld [vmem:[#allocation25 + $0x1b0] sm:$0xff]
    %v7729 = vld [vmem:[#allocation25 + $0x1b8] sm:$0xff]
    %v7730 = vld [vmem:[#allocation25 + $0x1c0] sm:$0xff]
    %v7731 = vld [vmem:[#allocation25 + $0x1c8] sm:$0xff]
    %v7732 = vld [vmem:[#allocation25 + $0x1d0] sm:$0xff]
    %v7733 = vld [vmem:[#allocation25 + $0x1d8] sm:$0xff]
    %v7734 = vld [vmem:[#allocation25 + $0x1e0] sm:$0xff]
    %v7735 = vld [vmem:[#allocation25 + $0x1e8] sm:$0xff]
    %v7736 = vld [vmem:[#allocation25 + $0x1f0] sm:$0xff]
    %v7737 = vld [vmem:[#allocation25 + $0x1f8] sm:$0xff]
    %v7738 = vld [vmem:[#allocation25 + $0x200] sm:$0xff]
    %v7739 = vld [vmem:[#allocation25 + $0x208] sm:$0xff]
    %v7740 = vld [vmem:[#allocation25 + $0x210] sm:$0xff]
    %v7741 = vld [vmem:[#allocation25 + $0x218] sm:$0xff]
    %v7742 = vld [vmem:[#allocation25 + $0x220] sm:$0xff]
    %v7743 = vld [vmem:[#allocation25 + $0x228] sm:$0xff]
    %v7744 = vld [vmem:[#allocation25 + $0x230] sm:$0xff]
    %v7745 = vld [vmem:[#allocation25 + $0x238] sm:$0xff]
    %v7746 = vld [vmem:[#allocation25 + $0x240] sm:$0xff]
    %v7747 = vld [vmem:[#allocation25 + $0x248] sm:$0xff]
    %v7748 = vld [vmem:[#allocation25 + $0x250] sm:$0xff]
    %v7749 = vld [vmem:[#allocation25 + $0x258] sm:$0xff]
    %v7750 = vld [vmem:[#allocation25 + $0x260] sm:$0xff]
    %v7751 = vld [vmem:[#allocation25 + $0x268] sm:$0xff]
    %v7752 = vld [vmem:[#allocation25 + $0x270] sm:$0xff]
    %v7753 = vld [vmem:[#allocation25 + $0x278] sm:$0xff]
    %v7754 = vld [vmem:[#allocation25 + $0x280] sm:$0xff]
    %v7755 = vld [vmem:[#allocation25 + $0x288] sm:$0xff]
    %v7756 = vld [vmem:[#allocation25 + $0x290] sm:$0xff]
    %v7757 = vld [vmem:[#allocation25 + $0x298] sm:$0xff]
    %v7758 = vld [vmem:[#allocation25 + $0x2a0] sm:$0xff]
    %v7759 = vld [vmem:[#allocation25 + $0x2a8] sm:$0xff]
    %v7760 = vld [vmem:[#allocation25 + $0x2b0] sm:$0xff]
    %v7761 = vld [vmem:[#allocation25 + $0x2b8] sm:$0xff]
    %v7762 = vld [vmem:[#allocation25 + $0x2c0] sm:$0xff]
    %v7763 = vld [vmem:[#allocation25 + $0x2c8] sm:$0xff]
    %v7764 = vld [vmem:[#allocation25 + $0x2d0] sm:$0xff]
    %v7765 = vld [vmem:[#allocation25 + $0x2d8] sm:$0xff]
    %v7766 = vld [vmem:[#allocation25 + $0x2e0] sm:$0xff]
    %v7767 = vld [vmem:[#allocation25 + $0x2e8] sm:$0xff]
    %v7768 = vld [vmem:[#allocation25 + $0x2f0] sm:$0xff]
    %v7769 = vld [vmem:[#allocation25 + $0x2f8] sm:$0xff]
    %s7770 = scalar_lea.vmem [#allocation26], 1
    %v7771 = vld [vmem:[%s7770] ss:$2 sm:$0x3f]
    %v7772 = vld [vmem:[#allocation3] sm:$0x3]
    %v7773 = vld [vmem:[#allocation3 + $0x8] sm:$0x3]
    %v7774 = vld [vmem:[#allocation3 + $0x10] sm:$0x3]
    %v7775 = vld [vmem:[#allocation3 + $0x18] sm:$0x3]
    %v7776 = vld [vmem:[#allocation3 + $0x20] sm:$0x3]
    %v7777 = vld [vmem:[#allocation3 + $0x28] sm:$0x3]
    %v7778 = vpack.c.bf16 %v6921, %v6921
    %v7779 = vpack.c.bf16 %v6922, %v6922
    %v7781 = vlaneseq
    %v7782 = vshrl.u32 %v7781, 7
    %v7783 = vsub.s32 0, %v7782
    %v7784 = vrot.slane %v7771, %v7783
    %v7785 = vlaneseq
    %v7786 = vshrl.u32 %v7785, 7
    %v7787 = vsub.s32 1, %v7786
    %v7788 = vrot.slane %v7771, %v7787
    %v7789 = vlaneseq
    %v7790 = vshrl.u32 %v7789, 7
    %v7791 = vsub.s32 2, %v7790
    %v7792 = vrot.slane %v7771, %v7791
    %v7793 = vlaneseq
    %v7794 = vshrl.u32 %v7793, 7
    %v7795 = vsub.s32 3, %v7794
    %v7796 = vrot.slane %v7771, %v7795
    %v7797 = vlaneseq
    %v7798 = vshrl.u32 %v7797, 7
    %v7799 = vsub.s32 4, %v7798
    %v7800 = vrot.slane %v7771, %v7799
    %v7801 = vlaneseq
    %v7802 = vshrl.u32 %v7801, 7
    %v7803 = vsub.s32 5, %v7802
    %v7804 = vrot.slane %v7771, %v7803
    %v7813 = vrot.slane %v7778, 2
    %v7814 = vrot.slane %v7779, 2
    %v7913 = vunpack.c.l.b16 %v7674
    %v7914 = vunpack.c.h.b16 %v7674
    %v7915 = vunpack.c.l.b16 %v7675
    %v7916 = vunpack.c.h.b16 %v7675
    %v7917 = vunpack.c.l.b16 %v7676
    %v7918 = vunpack.c.h.b16 %v7676
    %v7919 = vunpack.c.l.b16 %v7677
    %v7920 = vunpack.c.h.b16 %v7677
    %v7921 = vunpack.c.l.b16 %v7678
    %v7922 = vunpack.c.h.b16 %v7678
    %v7923 = vunpack.c.l.b16 %v7679
    %v7924 = vunpack.c.h.b16 %v7679
    %v7925 = vunpack.c.l.b16 %v7680
    %v7926 = vunpack.c.h.b16 %v7680
    %v7927 = vunpack.c.l.b16 %v7681
    %v7928 = vunpack.c.h.b16 %v7681
    %v7929 = vunpack.c.l.b16 %v7682
    %v7930 = vunpack.c.h.b16 %v7682
    %v7931 = vunpack.c.l.b16 %v7683
    %v7932 = vunpack.c.h.b16 %v7683
    %v7933 = vunpack.c.l.b16 %v7684
    %v7934 = vunpack.c.h.b16 %v7684
    %v7935 = vunpack.c.l.b16 %v7685
    %v7936 = vunpack.c.h.b16 %v7685
    %v7937 = vunpack.c.l.b16 %v7686
    %v7938 = vunpack.c.h.b16 %v7686
    %v7939 = vunpack.c.l.b16 %v7687
    %v7940 = vunpack.c.h.b16 %v7687
    %v7941 = vunpack.c.l.b16 %v7688
    %v7942 = vunpack.c.h.b16 %v7688
    %v7943 = vunpack.c.l.b16 %v7689
    %v7944 = vunpack.c.h.b16 %v7689
    %v7945 = vunpack.c.l.b16 %v7690
    %v7946 = vunpack.c.h.b16 %v7690
    %v7947 = vunpack.c.l.b16 %v7691
    %v7948 = vunpack.c.h.b16 %v7691
    %v7949 = vunpack.c.l.b16 %v7692
    %v7950 = vunpack.c.h.b16 %v7692
    %v7951 = vunpack.c.l.b16 %v7693
    %v7952 = vunpack.c.h.b16 %v7693
    %v7953 = vunpack.c.l.b16 %v7694
    %v7954 = vunpack.c.h.b16 %v7694
    %v7955 = vunpack.c.l.b16 %v7695
    %v7956 = vunpack.c.h.b16 %v7695
    %v7957 = vunpack.c.l.b16 %v7696
    %v7958 = vunpack.c.h.b16 %v7696
    %v7959 = vunpack.c.l.b16 %v7697
    %v7960 = vunpack.c.h.b16 %v7697
    %v7961 = vunpack.c.l.b16 %v7698
    %v7962 = vunpack.c.h.b16 %v7698
    %v7963 = vunpack.c.l.b16 %v7699
    %v7964 = vunpack.c.h.b16 %v7699
    %v7965 = vunpack.c.l.b16 %v7700
    %v7966 = vunpack.c.h.b16 %v7700
    %v7967 = vunpack.c.l.b16 %v7701
    %v7968 = vunpack.c.h.b16 %v7701
    %v7969 = vunpack.c.l.b16 %v7702
    %v7970 = vunpack.c.h.b16 %v7702
    %v7971 = vunpack.c.l.b16 %v7703
    %v7972 = vunpack.c.h.b16 %v7703
    %v7973 = vunpack.c.l.b16 %v7704
    %v7974 = vunpack.c.h.b16 %v7704
    %v7975 = vunpack.c.l.b16 %v7705
    %v7976 = vunpack.c.h.b16 %v7705
    %v7977 = vunpack.c.l.b16 %v7706
    %v7978 = vunpack.c.h.b16 %v7706
    %v7979 = vunpack.c.l.b16 %v7707
    %v7980 = vunpack.c.h.b16 %v7707
    %v7981 = vunpack.c.l.b16 %v7708
    %v7982 = vunpack.c.h.b16 %v7708
    %v7983 = vunpack.c.l.b16 %v7709
    %v7984 = vunpack.c.h.b16 %v7709
    %v7985 = vunpack.c.l.b16 %v7710
    %v7986 = vunpack.c.h.b16 %v7710
    %v7987 = vunpack.c.l.b16 %v7711
    %v7988 = vunpack.c.h.b16 %v7711
    %v7989 = vunpack.c.l.b16 %v7712
    %v7990 = vunpack.c.h.b16 %v7712
    %v7991 = vunpack.c.l.b16 %v7713
    %v7992 = vunpack.c.h.b16 %v7713
    %v7993 = vunpack.c.l.b16 %v7714
    %v7994 = vunpack.c.h.b16 %v7714
    %v7995 = vunpack.c.l.b16 %v7715
    %v7996 = vunpack.c.h.b16 %v7715
    %v7997 = vunpack.c.l.b16 %v7716
    %v7998 = vunpack.c.h.b16 %v7716
    %v7999 = vunpack.c.l.b16 %v7717
    %v8000 = vunpack.c.h.b16 %v7717
    %v8001 = vunpack.c.l.b16 %v7718
    %v8002 = vunpack.c.h.b16 %v7718
    %v8003 = vunpack.c.l.b16 %v7719
    %v8004 = vunpack.c.h.b16 %v7719
    %v8005 = vunpack.c.l.b16 %v7720
    %v8006 = vunpack.c.h.b16 %v7720
    %v8007 = vunpack.c.l.b16 %v7721
    %v8008 = vunpack.c.h.b16 %v7721
    %v8009 = vunpack.c.l.b16 %v7722
    %v8010 = vunpack.c.h.b16 %v7722
    %v8011 = vunpack.c.l.b16 %v7723
    %v8012 = vunpack.c.h.b16 %v7723
    %v8013 = vunpack.c.l.b16 %v7724
    %v8014 = vunpack.c.h.b16 %v7724
    %v8015 = vunpack.c.l.b16 %v7725
    %v8016 = vunpack.c.h.b16 %v7725
    %v8017 = vunpack.c.l.b16 %v7726
    %v8018 = vunpack.c.h.b16 %v7726
    %v8019 = vunpack.c.l.b16 %v7727
    %v8020 = vunpack.c.h.b16 %v7727
    %v8021 = vunpack.c.l.b16 %v7728
    %v8022 = vunpack.c.h.b16 %v7728
    %v8023 = vunpack.c.l.b16 %v7729
    %v8024 = vunpack.c.h.b16 %v7729
    %v8025 = vunpack.c.l.b16 %v7730
    %v8026 = vunpack.c.h.b16 %v7730
    %v8027 = vunpack.c.l.b16 %v7731
    %v8028 = vunpack.c.h.b16 %v7731
    %v8029 = vunpack.c.l.b16 %v7732
    %v8030 = vunpack.c.h.b16 %v7732
    %v8031 = vunpack.c.l.b16 %v7733
    %v8032 = vunpack.c.h.b16 %v7733
    %v8033 = vunpack.c.l.b16 %v7734
    %v8034 = vunpack.c.h.b16 %v7734
    %v8035 = vunpack.c.l.b16 %v7735
    %v8036 = vunpack.c.h.b16 %v7735
    %v8037 = vunpack.c.l.b16 %v7736
    %v8038 = vunpack.c.h.b16 %v7736
    %v8039 = vunpack.c.l.b16 %v7737
    %v8040 = vunpack.c.h.b16 %v7737
    %v8041 = vunpack.c.l.b16 %v7738
    %v8042 = vunpack.c.h.b16 %v7738
    %v8043 = vunpack.c.l.b16 %v7739
    %v8044 = vunpack.c.h.b16 %v7739
    %v8045 = vunpack.c.l.b16 %v7740
    %v8046 = vunpack.c.h.b16 %v7740
    %v8047 = vunpack.c.l.b16 %v7741
    %v8048 = vunpack.c.h.b16 %v7741
    %v8049 = vunpack.c.l.b16 %v7742
    %v8050 = vunpack.c.h.b16 %v7742
    %v8051 = vunpack.c.l.b16 %v7743
    %v8052 = vunpack.c.h.b16 %v7743
    %v8053 = vunpack.c.l.b16 %v7744
    %v8054 = vunpack.c.h.b16 %v7744
    %v8055 = vunpack.c.l.b16 %v7745
    %v8056 = vunpack.c.h.b16 %v7745
    %v8057 = vunpack.c.l.b16 %v7746
    %v8058 = vunpack.c.h.b16 %v7746
    %v8059 = vunpack.c.l.b16 %v7747
    %v8060 = vunpack.c.h.b16 %v7747
    %v8061 = vunpack.c.l.b16 %v7748
    %v8062 = vunpack.c.h.b16 %v7748
    %v8063 = vunpack.c.l.b16 %v7749
    %v8064 = vunpack.c.h.b16 %v7749
    %v8065 = vunpack.c.l.b16 %v7750
    %v8066 = vunpack.c.h.b16 %v7750
    %v8067 = vunpack.c.l.b16 %v7751
    %v8068 = vunpack.c.h.b16 %v7751
    %v8069 = vunpack.c.l.b16 %v7752
    %v8070 = vunpack.c.h.b16 %v7752
    %v8071 = vunpack.c.l.b16 %v7753
    %v8072 = vunpack.c.h.b16 %v7753
    %v8073 = vunpack.c.l.b16 %v7754
    %v8074 = vunpack.c.h.b16 %v7754
    %v8075 = vunpack.c.l.b16 %v7755
    %v8076 = vunpack.c.h.b16 %v7755
    %v8077 = vunpack.c.l.b16 %v7756
    %v8078 = vunpack.c.h.b16 %v7756
    %v8079 = vunpack.c.l.b16 %v7757
    %v8080 = vunpack.c.h.b16 %v7757
    %v8081 = vunpack.c.l.b16 %v7758
    %v8082 = vunpack.c.h.b16 %v7758
    %v8083 = vunpack.c.l.b16 %v7759
    %v8084 = vunpack.c.h.b16 %v7759
    %v8085 = vunpack.c.l.b16 %v7760
    %v8086 = vunpack.c.h.b16 %v7760
    %v8087 = vunpack.c.l.b16 %v7761
    %v8088 = vunpack.c.h.b16 %v7761
    %v8089 = vunpack.c.l.b16 %v7762
    %v8090 = vunpack.c.h.b16 %v7762
    %v8091 = vunpack.c.l.b16 %v7763
    %v8092 = vunpack.c.h.b16 %v7763
    %v8093 = vunpack.c.l.b16 %v7764
    %v8094 = vunpack.c.h.b16 %v7764
    %v8095 = vunpack.c.l.b16 %v7765
    %v8096 = vunpack.c.h.b16 %v7765
    %v8097 = vunpack.c.l.b16 %v7766
    %v8098 = vunpack.c.h.b16 %v7766
    %v8099 = vunpack.c.l.b16 %v7767
    %v8100 = vunpack.c.h.b16 %v7767
    %v8101 = vunpack.c.l.b16 %v7768
    %v8102 = vunpack.c.h.b16 %v7768
    %v8103 = vunpack.c.l.b16 %v7769
    %v8104 = vunpack.c.h.b16 %v7769
    %v8105 = vpack.c.b16 %v7919, %v7913
    %v8106 = vpack.c.b16 %v7920, %v7914
    %v8107 = vpack.c.b16 %v7921, %v7915
    %v8108 = vpack.c.b16 %v7922, %v7916
    %v8109 = vpack.c.b16 %v7923, %v7917
    %v8110 = vpack.c.b16 %v7924, %v7918
    %v8111 = vpack.c.b16 %v7931, %v7925
    %v8112 = vpack.c.b16 %v7932, %v7926
    %v8113 = vpack.c.b16 %v7933, %v7927
    %v8114 = vpack.c.b16 %v7934, %v7928
    %v8115 = vpack.c.b16 %v7935, %v7929
    %v8116 = vpack.c.b16 %v7936, %v7930
    %v8117 = vpack.c.b16 %v7943, %v7937
    %v8118 = vpack.c.b16 %v7944, %v7938
    %v8119 = vpack.c.b16 %v7945, %v7939
    %v8120 = vpack.c.b16 %v7946, %v7940
    %v8121 = vpack.c.b16 %v7947, %v7941
    %v8122 = vpack.c.b16 %v7948, %v7942
    %v8123 = vpack.c.b16 %v7955, %v7949
    %v8124 = vpack.c.b16 %v7956, %v7950
    %v8125 = vpack.c.b16 %v7957, %v7951
    %v8126 = vpack.c.b16 %v7958, %v7952
    %v8127 = vpack.c.b16 %v7959, %v7953
    %v8128 = vpack.c.b16 %v7960, %v7954
    %v8129 = vpack.c.b16 %v7967, %v7961
    %v8130 = vpack.c.b16 %v7968, %v7962
    %v8131 = vpack.c.b16 %v7969, %v7963
    %v8132 = vpack.c.b16 %v7970, %v7964
    %v8133 = vpack.c.b16 %v7971, %v7965
    %v8134 = vpack.c.b16 %v7972, %v7966
    %v8135 = vpack.c.b16 %v7979, %v7973
    %v8136 = vpack.c.b16 %v7980, %v7974
    %v8137 = vpack.c.b16 %v7981, %v7975
    %v8138 = vpack.c.b16 %v7982, %v7976
    %v8139 = vpack.c.b16 %v7983, %v7977
    %v8140 = vpack.c.b16 %v7984, %v7978
    %v8141 = vpack.c.b16 %v7991, %v7985
    %v8142 = vpack.c.b16 %v7992, %v7986
    %v8143 = vpack.c.b16 %v7993, %v7987
    %v8144 = vpack.c.b16 %v7994, %v7988
    %v8145 = vpack.c.b16 %v7995, %v7989
    %v8146 = vpack.c.b16 %v7996, %v7990
    %v8147 = vpack.c.b16 %v8003, %v7997
    %v8148 = vpack.c.b16 %v8004, %v7998
    %v8149 = vpack.c.b16 %v8005, %v7999
    %v8150 = vpack.c.b16 %v8006, %v8000
    %v8151 = vpack.c.b16 %v8007, %v8001
    %v8152 = vpack.c.b16 %v8008, %v8002
    %v8153 = vpack.c.b16 %v8015, %v8009
    %v8154 = vpack.c.b16 %v8016, %v8010
    %v8155 = vpack.c.b16 %v8017, %v8011
    %v8156 = vpack.c.b16 %v8018, %v8012
    %v8157 = vpack.c.b16 %v8019, %v8013
    %v8158 = vpack.c.b16 %v8020, %v8014
    %v8159 = vpack.c.b16 %v8027, %v8021
    %v8160 = vpack.c.b16 %v8028, %v8022
    %v8161 = vpack.c.b16 %v8029, %v8023
    %v8162 = vpack.c.b16 %v8030, %v8024
    %v8163 = vpack.c.b16 %v8031, %v8025
    %v8164 = vpack.c.b16 %v8032, %v8026
    %v8165 = vpack.c.b16 %v8039, %v8033
    %v8166 = vpack.c.b16 %v8040, %v8034
    %v8167 = vpack.c.b16 %v8041, %v8035
    %v8168 = vpack.c.b16 %v8042, %v8036
    %v8169 = vpack.c.b16 %v8043, %v8037
    %v8170 = vpack.c.b16 %v8044, %v8038
    %v8171 = vpack.c.b16 %v8051, %v8045
    %v8172 = vpack.c.b16 %v8052, %v8046
    %v8173 = vpack.c.b16 %v8053, %v8047
    %v8174 = vpack.c.b16 %v8054, %v8048
    %v8175 = vpack.c.b16 %v8055, %v8049
    %v8176 = vpack.c.b16 %v8056, %v8050
    %v8177 = vpack.c.b16 %v8063, %v8057
    %v8178 = vpack.c.b16 %v8064, %v8058
    %v8179 = vpack.c.b16 %v8065, %v8059
    %v8180 = vpack.c.b16 %v8066, %v8060
    %v8181 = vpack.c.b16 %v8067, %v8061
    %v8182 = vpack.c.b16 %v8068, %v8062
    %v8183 = vpack.c.b16 %v8075, %v8069
    %v8184 = vpack.c.b16 %v8076, %v8070
    %v8185 = vpack.c.b16 %v8077, %v8071
    %v8186 = vpack.c.b16 %v8078, %v8072
    %v8187 = vpack.c.b16 %v8079, %v8073
    %v8188 = vpack.c.b16 %v8080, %v8074
    %v8189 = vpack.c.b16 %v8087, %v8081
    %v8190 = vpack.c.b16 %v8088, %v8082
    %v8191 = vpack.c.b16 %v8089, %v8083
    %v8192 = vpack.c.b16 %v8090, %v8084
    %v8193 = vpack.c.b16 %v8091, %v8085
    %v8194 = vpack.c.b16 %v8092, %v8086
    %v8195 = vpack.c.b16 %v8099, %v8093
    %v8196 = vpack.c.b16 %v8100, %v8094
    %v8197 = vpack.c.b16 %v8101, %v8095
    %v8198 = vpack.c.b16 %v8102, %v8096
    %v8199 = vpack.c.b16 %v8103, %v8097
    %v8200 = vpack.c.b16 %v8104, %v8098
    %8297 = vmatprep.subr.bf16.mxu0 %v8106
    %8298 = vmatpush1.bf16.msra.mxu0 %v8105
    %8299 = vmatprep.subr.bf16.mxu0 %v8112
    %8300 = vmatpush1.bf16.msra.mxu0 %v8111
    %8301 = vmatprep.subr.bf16.mxu0 %v8118
    %8302 = vmatpush1.bf16.msra.mxu0 %v8117
    %8303 = vmatprep.subr.bf16.mxu0 %v8124
    %8304 = vmatpush1.bf16.msra.mxu0 %v8123
    %8305 = vmatprep.subr.bf16.mxu0 %v8130
    %8306 = vmatpush1.bf16.msra.mxu0 %v8129
    %8307 = vmatprep.subr.bf16.mxu0 %v8136
    %8308 = vmatpush1.bf16.msra.mxu0 %v8135
    %8309 = vmatprep.subr.bf16.mxu0 %v8142
    %8310 = vmatpush1.bf16.msra.mxu0 %v8141
    %8311 = vmatprep.subr.bf16.mxu0 %v8148
    %8312 = vmatpush1.bf16.msra.mxu0 %v8147
    %8313 = vmatprep.subr.bf16.mxu0 %v8154
    %8314 = vmatpush1.bf16.msra.mxu0 %v8153
    %8315 = vmatprep.subr.bf16.mxu0 %v8160
    %8316 = vmatpush1.bf16.msra.mxu0 %v8159
    %8317 = vmatprep.subr.bf16.mxu0 %v8166
    %8318 = vmatpush1.bf16.msra.mxu0 %v8165
    %8319 = vmatprep.subr.bf16.mxu0 %v8172
    %8320 = vmatpush1.bf16.msra.mxu0 %v8171
    %8321 = vmatprep.subr.bf16.mxu0 %v8178
    %8322 = vmatpush1.bf16.msra.mxu0 %v8177
    %8323 = vmatprep.subr.bf16.mxu0 %v8184
    %8324 = vmatpush1.bf16.msra.mxu0 %v8183
    %8325 = vmatprep.subr.bf16.mxu0 %v8190
    %8326 = vmatpush1.bf16.msra.mxu0 %v8189
    %8327 = vmatprep.subr.bf16.mxu0 %v8196
    %8328 = vmatpush1.bf16.msra.mxu0 %v8195
    %8329 = vmatprep.mubr.bf16.mxu0 %v7814
    %8330 = vmatmul.mubr.bf16.gmra.mrb[0].mxu0 %v7813
    %v8331 = vpop.f32.mrb[0].mxu0
    %v8332 = vadd.f32 %v7784, %v8331
    %v8333 = vpop.f32.mrb[0].mxu0
    %v8334 = vadd.f32 %v7788, %v8333
    %v8335 = vpop.f32.mrb[0].mxu0
    %v8336 = vpop.f32.mrb[0].mxu0
    %8337 = vdwg.mxu0
    %8338 = vmatprep.subr.bf16.mxu0 %v8108
    %8339 = vmatpush1.bf16.msra.mxu0 %v8107
    %8340 = vmatprep.subr.bf16.mxu0 %v8114
    %8341 = vmatpush1.bf16.msra.mxu0 %v8113
    %8342 = vmatprep.subr.bf16.mxu0 %v8120
    %8343 = vmatpush1.bf16.msra.mxu0 %v8119
    %8344 = vmatprep.subr.bf16.mxu0 %v8126
    %8345 = vmatpush1.bf16.msra.mxu0 %v8125
    %8346 = vmatprep.subr.bf16.mxu0 %v8132
    %8347 = vmatpush1.bf16.msra.mxu0 %v8131
    %8348 = vmatprep.subr.bf16.mxu0 %v8138
    %8349 = vmatpush1.bf16.msra.mxu0 %v8137
    %8350 = vmatprep.subr.bf16.mxu0 %v8144
    %8351 = vmatpush1.bf16.msra.mxu0 %v8143
    %8352 = vmatprep.subr.bf16.mxu0 %v8150
    %8353 = vmatpush1.bf16.msra.mxu0 %v8149
    %8354 = vmatprep.subr.bf16.mxu0 %v8156
    %8355 = vmatpush1.bf16.msra.mxu0 %v8155
    %8356 = vmatprep.subr.bf16.mxu0 %v8162
    %8357 = vmatpush1.bf16.msra.mxu0 %v8161
    %8358 = vmatprep.subr.bf16.mxu0 %v8168
    %8359 = vmatpush1.bf16.msra.mxu0 %v8167
    %8360 = vmatprep.subr.bf16.mxu0 %v8174
    %8361 = vmatpush1.bf16.msra.mxu0 %v8173
    %8362 = vmatprep.subr.bf16.mxu0 %v8180
    %8363 = vmatpush1.bf16.msra.mxu0 %v8179
    %8364 = vmatprep.subr.bf16.mxu0 %v8186
    %8365 = vmatpush1.bf16.msra.mxu0 %v8185
    %8366 = vmatprep.subr.bf16.mxu0 %v8192
    %8367 = vmatpush1.bf16.msra.mxu0 %v8191
    %8368 = vmatprep.subr.bf16.mxu0 %v8198
    %8369 = vmatpush1.bf16.msra.mxu0 %v8197
    %8370 = vmatprep.mubr.bf16.mxu0 %v7814
    %8371 = vmatmul.mubr.bf16.gmra.mrb[0].mxu0 %v7813
    %v8372 = vpop.f32.mrb[0].mxu0
    %v8373 = vadd.f32 %v7792, %v8372
    %v8374 = vpop.f32.mrb[0].mxu0
    %v8375 = vadd.f32 %v7796, %v8374
    %v8376 = vpop.f32.mrb[0].mxu0
    %v8377 = vpop.f32.mrb[0].mxu0
    %8378 = vdwg.mxu0
    %8379 = vmatprep.subr.bf16.mxu0 %v8110
    %8380 = vmatpush1.bf16.msra.mxu0 %v8109
    %8381 = vmatprep.subr.bf16.mxu0 %v8116
    %8382 = vmatpush1.bf16.msra.mxu0 %v8115
    %8383 = vmatprep.subr.bf16.mxu0 %v8122
    %8384 = vmatpush1.bf16.msra.mxu0 %v8121
    %8385 = vmatprep.subr.bf16.mxu0 %v8128
    %8386 = vmatpush1.bf16.msra.mxu0 %v8127
    %8387 = vmatprep.subr.bf16.mxu0 %v8134
    %8388 = vmatpush1.bf16.msra.mxu0 %v8133
    %8389 = vmatprep.subr.bf16.mxu0 %v8140
    %8390 = vmatpush1.bf16.msra.mxu0 %v8139
    %8391 = vmatprep.subr.bf16.mxu0 %v8146
    %8392 = vmatpush1.bf16.msra.mxu0 %v8145
    %8393 = vmatprep.subr.bf16.mxu0 %v8152
    %8394 = vmatpush1.bf16.msra.mxu0 %v8151
    %8395 = vmatprep.subr.bf16.mxu0 %v8158
    %8396 = vmatpush1.bf16.msra.mxu0 %v8157
    %8397 = vmatprep.subr.bf16.mxu0 %v8164
    %8398 = vmatpush1.bf16.msra.mxu0 %v8163
    %8399 = vmatprep.subr.bf16.mxu0 %v8170
    %8400 = vmatpush1.bf16.msra.mxu0 %v8169
    %8401 = vmatprep.subr.bf16.mxu0 %v8176
    %8402 = vmatpush1.bf16.msra.mxu0 %v8175
    %8403 = vmatprep.subr.bf16.mxu0 %v8182
    %8404 = vmatpush1.bf16.msra.mxu0 %v8181
    %8405 = vmatprep.subr.bf16.mxu0 %v8188
    %8406 = vmatpush1.bf16.msra.mxu0 %v8187
    %8407 = vmatprep.subr.bf16.mxu0 %v8194
    %8408 = vmatpush1.bf16.msra.mxu0 %v8193
    %8409 = vmatprep.subr.bf16.mxu0 %v8200
    %8410 = vmatpush1.bf16.msra.mxu0 %v8199
    %8411 = vmatprep.mubr.bf16.mxu0 %v7814
    %8412 = vmatmul.mubr.bf16.gmra.mrb[0].mxu0 %v7813
    %v8413 = vpop.f32.mrb[0].mxu0
    %v8414 = vadd.f32 %v7800, %v8413
    %v8415 = vpop.f32.mrb[0].mxu0
    %v8416 = vadd.f32 %v7804, %v8415
    %v8417 = vpop.f32.mrb[0].mxu0
    %v8418 = vpop.f32.mrb[0].mxu0
    %8419 = vdwg.mxu0
    %v8420 = vadd.f32 %v7772, %v8332
    %v8421 = vadd.f32 %v7773, %v8334
    %v8422 = vxor.u32 %v8420, 2147483648
    %v8423 = vxor.u32 %v8421, 2147483648
    %v8424 = vmul.f32 %v8422, 1.442695
    %v8425 = vpow.pop %v8424
    %v8426 = vmul.f32 %v8423, 1.442695
    %v8427 = vpow.pop %v8426
    %v8428 = vadd.f32 %v8425, 1.0
    %v8429 = vadd.f32 %v8427, 1.0
    %v8430 = vrcp.pop %v8428
    %v8431 = vmul.f32 1.0, %v8430
    %v8432 = vrcp.pop %v8429
    %v8433 = vmul.f32 1.0, %v8432
    %v8434 = vadd.f32 %v7774, %v8373
    %v8435 = vadd.f32 %v7775, %v8375
    %v8436 = vxor.u32 %v8434, 2147483648
    %v8437 = vxor.u32 %v8435, 2147483648
    %v8438 = vmul.f32 %v8436, 1.442695
    %v8439 = vpow.pop %v8438
    %v8440 = vmul.f32 %v8437, 1.442695
    %v8441 = vpow.pop %v8440
    %v8442 = vadd.f32 %v8439, 1.0
    %v8443 = vadd.f32 %v8441, 1.0
    %v8444 = vrcp.pop %v8442
    %v8445 = vmul.f32 1.0, %v8444
    %v8446 = vrcp.pop %v8443
    %v8447 = vmul.f32 1.0, %v8446
    %v8448 = vmul.f32 %v8431, %v8414
    %v8449 = vmul.f32 %v8433, %v8416
    %v8450 = vadd.f32 %v7776, %v8448
    %v8451 = vadd.f32 %v7777, %v8449
    %v8452 = vtanh.pop %v8450
    %v8453 = vtanh.pop %v8451
    %v8454 = vsub.f32 1.0, %v8445
    %v8455 = vsub.f32 1.0, %v8447
    %v8456 = vmul.f32 %v8454, %v8452
    %v8457 = vmul.f32 %v8455, %v8453
    %v8460 = vrot.slane %v6921, 4
    %v8461 = vrot.slane %v6922, 4
    %v8464 = vmul.f32 %v8445, %v8460
    %v8465 = vmul.f32 %v8447, %v8461
    %v8466 = vadd.f32 %v8456, %v8464
    %v8467 = vadd.f32 %v8457, %v8465
    %8468 = vst [vmem:[#allocation4] sm:$0x3] %v8466
    %8469 = vst [vmem:[#allocation4 + $0x8] sm:$0x3] %v8467
    %v8470 = vld [vmem:[#allocation3] sm:$0xc]
    %v8471 = vld [vmem:[#allocation3 + $0x8] sm:$0xc]
    %v8472 = vld [vmem:[#allocation3 + $0x10] sm:$0xc]
    %v8473 = vld [vmem:[#allocation3 + $0x18] sm:$0xc]
    %v8474 = vld [vmem:[#allocation3 + $0x20] sm:$0xc]
    %v8475 = vld [vmem:[#allocation3 + $0x28] sm:$0xc]
    %v8476 = vpack.c.bf16 %v8466, %v8466
    %v8477 = vpack.c.bf16 %v8467, %v8467
    %8478 = vmatprep.subr.bf16.mxu0 %v8106
    %8479 = vmatpush1.bf16.msra.mxu0 %v8105
    %8480 = vmatprep.subr.bf16.mxu0 %v8112
    %8481 = vmatpush1.bf16.msra.mxu0 %v8111
    %8482 = vmatprep.subr.bf16.mxu0 %v8118
    %8483 = vmatpush1.bf16.msra.mxu0 %v8117
    %8484 = vmatprep.subr.bf16.mxu0 %v8124
    %8485 = vmatpush1.bf16.msra.mxu0 %v8123
    %8486 = vmatprep.subr.bf16.mxu0 %v8130
    %8487 = vmatpush1.bf16.msra.mxu0 %v8129
    %8488 = vmatprep.subr.bf16.mxu0 %v8136
    %8489 = vmatpush1.bf16.msra.mxu0 %v8135
    %8490 = vmatprep.subr.bf16.mxu0 %v8142
    %8491 = vmatpush1.bf16.msra.mxu0 %v8141
    %8492 = vmatprep.subr.bf16.mxu0 %v8148
    %8493 = vmatpush1.bf16.msra.mxu0 %v8147
    %8494 = vmatprep.subr.bf16.mxu0 %v8154
    %8495 = vmatpush1.bf16.msra.mxu0 %v8153
    %8496 = vmatprep.subr.bf16.mxu0 %v8160
    %8497 = vmatpush1.bf16.msra.mxu0 %v8159
    %8498 = vmatprep.subr.bf16.mxu0 %v8166
    %8499 = vmatpush1.bf16.msra.mxu0 %v8165
    %8500 = vmatprep.subr.bf16.mxu0 %v8172
    %8501 = vmatpush1.bf16.msra.mxu0 %v8171
    %8502 = vmatprep.subr.bf16.mxu0 %v8178
    %8503 = vmatpush1.bf16.msra.mxu0 %v8177
    %8504 = vmatprep.subr.bf16.mxu0 %v8184
    %8505 = vmatpush1.bf16.msra.mxu0 %v8183
    %8506 = vmatprep.subr.bf16.mxu0 %v8190
    %8507 = vmatpush1.bf16.msra.mxu0 %v8189
    %8508 = vmatprep.subr.bf16.mxu0 %v8196
    %8509 = vmatpush1.bf16.msra.mxu0 %v8195
    %8510 = vmatprep.mubr.bf16.mxu0 %v8477
    %8511 = vmatmul.mubr.bf16.gmra.mrb[0].mxu0 %v8476
    %v8512 = vpop.f32.mrb[0].mxu0
    %v8513 = vadd.f32 %v7784, %v8512
    %v8514 = vpop.f32.mrb[0].mxu0
    %v8515 = vadd.f32 %v7788, %v8514
    %v8516 = vpop.f32.mrb[0].mxu0
    %v8517 = vpop.f32.mrb[0].mxu0
    %8518 = vdwg.mxu0
    %8519 = vmatprep.subr.bf16.mxu0 %v8108
    %8520 = vmatpush1.bf16.msra.mxu0 %v8107
    %8521 = vmatprep.subr.bf16.mxu0 %v8114
    %8522 = vmatpush1.bf16.msra.mxu0 %v8113
    %8523 = vmatprep.subr.bf16.mxu0 %v8120
    %8524 = vmatpush1.bf16.msra.mxu0 %v8119
    %8525 = vmatprep.subr.bf16.mxu0 %v8126
    %8526 = vmatpush1.bf16.msra.mxu0 %v8125
    %8527 = vmatprep.subr.bf16.mxu0 %v8132
    %8528 = vmatpush1.bf16.msra.mxu0 %v8131
    %8529 = vmatprep.subr.bf16.mxu0 %v8138
    %8530 = vmatpush1.bf16.msra.mxu0 %v8137
    %8531 = vmatprep.subr.bf16.mxu0 %v8144
    %8532 = vmatpush1.bf16.msra.mxu0 %v8143
    %8533 = vmatprep.subr.bf16.mxu0 %v8150
    %8534 = vmatpush1.bf16.msra.mxu0 %v8149
    %8535 = vmatprep.subr.bf16.mxu0 %v8156
    %8536 = vmatpush1.bf16.msra.mxu0 %v8155
    %8537 = vmatprep.subr.bf16.mxu0 %v8162
    %8538 = vmatpush1.bf16.msra.mxu0 %v8161
    %8539 = vmatprep.subr.bf16.mxu0 %v8168
    %8540 = vmatpush1.bf16.msra.mxu0 %v8167
    %8541 = vmatprep.subr.bf16.mxu0 %v8174
    %8542 = vmatpush1.bf16.msra.mxu0 %v8173
    %8543 = vmatprep.subr.bf16.mxu0 %v8180
    %8544 = vmatpush1.bf16.msra.mxu0 %v8179
    %8545 = vmatprep.subr.bf16.mxu0 %v8186
    %8546 = vmatpush1.bf16.msra.mxu0 %v8185
    %8547 = vmatprep.subr.bf16.mxu0 %v8192
    %8548 = vmatpush1.bf16.msra.mxu0 %v8191
    %8549 = vmatprep.subr.bf16.mxu0 %v8198
    %8550 = vmatpush1.bf16.msra.mxu0 %v8197
    %8551 = vmatprep.mubr.bf16.mxu0 %v8477
    %8552 = vmatmul.mubr.bf16.gmra.mrb[0].mxu0 %v8476
    %v8553 = vpop.f32.mrb[0].mxu0
    %v8554 = vadd.f32 %v7792, %v8553
    %v8555 = vpop.f32.mrb[0].mxu0
    %v8556 = vadd.f32 %v7796, %v8555
    %v8557 = vpop.f32.mrb[0].mxu0
    %v8558 = vpop.f32.mrb[0].mxu0
    %8559 = vdwg.mxu0
    %8560 = vmatprep.subr.bf16.mxu0 %v8110
    %8561 = vmatpush1.bf16.msra.mxu0 %v8109
    %8562 = vmatprep.subr.bf16.mxu0 %v8116
    %8563 = vmatpush1.bf16.msra.mxu0 %v8115
    %8564 = vmatprep.subr.bf16.mxu0 %v8122
    %8565 = vmatpush1.bf16.msra.mxu0 %v8121
    %8566 = vmatprep.subr.bf16.mxu0 %v8128
    %8567 = vmatpush1.bf16.msra.mxu0 %v8127
    %8568 = vmatprep.subr.bf16.mxu0 %v8134
    %8569 = vmatpush1.bf16.msra.mxu0 %v8133
    %8570 = vmatprep.subr.bf16.mxu0 %v8140
    %8571 = vmatpush1.bf16.msra.mxu0 %v8139
    %8572 = vmatprep.subr.bf16.mxu0 %v8146
    %8573 = vmatpush1.bf16.msra.mxu0 %v8145
    %8574 = vmatprep.subr.bf16.mxu0 %v8152
    %8575 = vmatpush1.bf16.msra.mxu0 %v8151
    %8576 = vmatprep.subr.bf16.mxu0 %v8158
    %8577 = vmatpush1.bf16.msra.mxu0 %v8157
    %8578 = vmatprep.subr.bf16.mxu0 %v8164
    %8579 = vmatpush1.bf16.msra.mxu0 %v8163
    %8580 = vmatprep.subr.bf16.mxu0 %v8170
    %8581 = vmatpush1.bf16.msra.mxu0 %v8169
    %8582 = vmatprep.subr.bf16.mxu0 %v8176
    %8583 = vmatpush1.bf16.msra.mxu0 %v8175
    %8584 = vmatprep.subr.bf16.mxu0 %v8182
    %8585 = vmatpush1.bf16.msra.mxu0 %v8181
    %8586 = vmatprep.subr.bf16.mxu0 %v8188
    %8587 = vmatpush1.bf16.msra.mxu0 %v8187
    %8588 = vmatprep.subr.bf16.mxu0 %v8194
    %8589 = vmatpush1.bf16.msra.mxu0 %v8193
    %8590 = vmatprep.subr.bf16.mxu0 %v8200
    %8591 = vmatpush1.bf16.msra.mxu0 %v8199
    %8592 = vmatprep.mubr.bf16.mxu0 %v8477
    %8593 = vmatmul.mubr.bf16.gmra.mrb[0].mxu0 %v8476
    %v8594 = vpop.f32.mrb[0].mxu0
    %v8595 = vadd.f32 %v7800, %v8594
    %v8596 = vpop.f32.mrb[0].mxu0
    %v8597 = vadd.f32 %v7804, %v8596
    %v8598 = vpop.f32.mrb[0].mxu0
    %v8599 = vpop.f32.mrb[0].mxu0
    %8600 = vdwg.mxu0
    %v8603 = vrot.slane %v8513, 6
    %v8604 = vrot.slane %v8515, 6
    %v8607 = vadd.f32 %v8470, %v8603
    %v8608 = vadd.f32 %v8471, %v8604
    %v8609 = vxor.u32 %v8607, 2147483648
    %v8610 = vxor.u32 %v8608, 2147483648
    %v8611 = vmul.f32 %v8609, 1.442695
    %v8612 = vpow.pop %v8611
    %v8613 = vmul.f32 %v8610, 1.442695
    %v8614 = vpow.pop %v8613
    %v8615 = vadd.f32 %v8612, 1.0
    %v8616 = vadd.f32 %v8614, 1.0
    %v8617 = vrcp.pop %v8615
    %v8618 = vmul.f32 1.0, %v8617
    %v8619 = vrcp.pop %v8616
    %v8620 = vmul.f32 1.0, %v8619
    %v8623 = vrot.slane %v8554, 6
    %v8624 = vrot.slane %v8556, 6
    %v8627 = vadd.f32 %v8472, %v8623
    %v8628 = vadd.f32 %v8473, %v8624
    %v8629 = vxor.u32 %v8627, 2147483648
    %v8630 = vxor.u32 %v8628, 2147483648
    %v8631 = vmul.f32 %v8629, 1.442695
    %v8632 = vpow.pop %v8631
    %v8633 = vmul.f32 %v8630, 1.442695
    %v8634 = vpow.pop %v8633
    %v8635 = vadd.f32 %v8632, 1.0
    %v8636 = vadd.f32 %v8634, 1.0
    %v8637 = vrcp.pop %v8635
    %v8638 = vmul.f32 1.0, %v8637
    %v8639 = vrcp.pop %v8636
    %v8640 = vmul.f32 1.0, %v8639
    %v8643 = vrot.slane %v8595, 6
    %v8644 = vrot.slane %v8597, 6
    %v8647 = vmul.f32 %v8618, %v8643
    %v8648 = vmul.f32 %v8620, %v8644
    %v8649 = vadd.f32 %v8474, %v8647
    %v8650 = vadd.f32 %v8475, %v8648
    %v8651 = vtanh.pop %v8649
    %v8652 = vtanh.pop %v8650
    %v8653 = vsub.f32 1.0, %v8638
    %v8654 = vsub.f32 1.0, %v8640
    %v8655 = vmul.f32 %v8653, %v8651
    %v8656 = vmul.f32 %v8654, %v8652
    %v8659 = vrot.slane %v8466, 6
    %v8660 = vrot.slane %v8467, 6
    %v8663 = vmul.f32 %v8638, %v8659
    %v8664 = vmul.f32 %v8640, %v8660
    %v8665 = vadd.f32 %v8655, %v8663
    %v8666 = vadd.f32 %v8656, %v8664
    %8667 = vst [vmem:[#allocation4] sm:$0xc] %v8665
    %8668 = vst [vmem:[#allocation4 + $0x8] sm:$0xc] %v8666
    %v8669 = vld [vmem:[#allocation3] sm:$0x30]
    %v8670 = vld [vmem:[#allocation3 + $0x8] sm:$0x30]
    %v8671 = vld [vmem:[#allocation3 + $0x10] sm:$0x30]
    %v8672 = vld [vmem:[#allocation3 + $0x18] sm:$0x30]
    %v8673 = vld [vmem:[#allocation3 + $0x20] sm:$0x30]
    %v8674 = vld [vmem:[#allocation3 + $0x28] sm:$0x30]
    %v8675 = vpack.c.bf16 %v8665, %v8665
    %v8676 = vpack.c.bf16 %v8666, %v8666
    %v8679 = vrot.slane %v8675, 1
    %v8680 = vrot.slane %v8676, 1
    %8683 = vmatprep.subr.bf16.mxu0 %v8106
    %8684 = vmatpush1.bf16.msra.mxu0 %v8105
    %8685 = vmatprep.subr.bf16.mxu0 %v8112
    %8686 = vmatpush1.bf16.msra.mxu0 %v8111
    %8687 = vmatprep.subr.bf16.mxu0 %v8118
    %8688 = vmatpush1.bf16.msra.mxu0 %v8117
    %8689 = vmatprep.subr.bf16.mxu0 %v8124
    %8690 = vmatpush1.bf16.msra.mxu0 %v8123
    %8691 = vmatprep.subr.bf16.mxu0 %v8130
    %8692 = vmatpush1.bf16.msra.mxu0 %v8129
    %8693 = vmatprep.subr.bf16.mxu0 %v8136
    %8694 = vmatpush1.bf16.msra.mxu0 %v8135
    %8695 = vmatprep.subr.bf16.mxu0 %v8142
    %8696 = vmatpush1.bf16.msra.mxu0 %v8141
    %8697 = vmatprep.subr.bf16.mxu0 %v8148
    %8698 = vmatpush1.bf16.msra.mxu0 %v8147
    %8699 = vmatprep.subr.bf16.mxu0 %v8154
    %8700 = vmatpush1.bf16.msra.mxu0 %v8153
    %8701 = vmatprep.subr.bf16.mxu0 %v8160
    %8702 = vmatpush1.bf16.msra.mxu0 %v8159
    %8703 = vmatprep.subr.bf16.mxu0 %v8166
    %8704 = vmatpush1.bf16.msra.mxu0 %v8165
    %8705 = vmatprep.subr.bf16.mxu0 %v8172
    %8706 = vmatpush1.bf16.msra.mxu0 %v8171
    %8707 = vmatprep.subr.bf16.mxu0 %v8178
    %8708 = vmatpush1.bf16.msra.mxu0 %v8177
    %8709 = vmatprep.subr.bf16.mxu0 %v8184
    %8710 = vmatpush1.bf16.msra.mxu0 %v8183
    %8711 = vmatprep.subr.bf16.mxu0 %v8190
    %8712 = vmatpush1.bf16.msra.mxu0 %v8189
    %8713 = vmatprep.subr.bf16.mxu0 %v8196
    %8714 = vmatpush1.bf16.msra.mxu0 %v8195
    %8715 = vmatprep.mubr.bf16.mxu0 %v8680
    %8716 = vmatmul.mubr.bf16.gmra.mrb[0].mxu0 %v8679
    %v8717 = vpop.f32.mrb[0].mxu0
    %v8718 = vadd.f32 %v7784, %v8717
    %v8719 = vpop.f32.mrb[0].mxu0
    %v8720 = vadd.f32 %v7788, %v8719
    %v8721 = vpop.f32.mrb[0].mxu0
    %v8722 = vpop.f32.mrb[0].mxu0
    %8723 = vdwg.mxu0
    %8724 = vmatprep.subr.bf16.mxu0 %v8108
    %8725 = vmatpush1.bf16.msra.mxu0 %v8107
    %8726 = vmatprep.subr.bf16.mxu0 %v8114
    %8727 = vmatpush1.bf16.msra.mxu0 %v8113
    %8728 = vmatprep.subr.bf16.mxu0 %v8120
    %8729 = vmatpush1.bf16.msra.mxu0 %v8119
    %8730 = vmatprep.subr.bf16.mxu0 %v8126
    %8731 = vmatpush1.bf16.msra.mxu0 %v8125
    %8732 = vmatprep.subr.bf16.mxu0 %v8132
    %8733 = vmatpush1.bf16.msra.mxu0 %v8131
    %8734 = vmatprep.subr.bf16.mxu0 %v8138
    %8735 = vmatpush1.bf16.msra.mxu0 %v8137
    %8736 = vmatprep.subr.bf16.mxu0 %v8144
    %8737 = vmatpush1.bf16.msra.mxu0 %v8143
    %8738 = vmatprep.subr.bf16.mxu0 %v8150
    %8739 = vmatpush1.bf16.msra.mxu0 %v8149
    %8740 = vmatprep.subr.bf16.mxu0 %v8156
    %8741 = vmatpush1.bf16.msra.mxu0 %v8155
    %8742 = vmatprep.subr.bf16.mxu0 %v8162
    %8743 = vmatpush1.bf16.msra.mxu0 %v8161
    %8744 = vmatprep.subr.bf16.mxu0 %v8168
    %8745 = vmatpush1.bf16.msra.mxu0 %v8167
    %8746 = vmatprep.subr.bf16.mxu0 %v8174
    %8747 = vmatpush1.bf16.msra.mxu0 %v8173
    %8748 = vmatprep.subr.bf16.mxu0 %v8180
    %8749 = vmatpush1.bf16.msra.mxu0 %v8179
    %8750 = vmatprep.subr.bf16.mxu0 %v8186
    %8751 = vmatpush1.bf16.msra.mxu0 %v8185
    %8752 = vmatprep.subr.bf16.mxu0 %v8192
    %8753 = vmatpush1.bf16.msra.mxu0 %v8191
    %8754 = vmatprep.subr.bf16.mxu0 %v8198
    %8755 = vmatpush1.bf16.msra.mxu0 %v8197
    %8756 = vmatprep.mubr.bf16.mxu0 %v8680
    %8757 = vmatmul.mubr.bf16.gmra.mrb[0].mxu0 %v8679
    %v8758 = vpop.f32.mrb[0].mxu0
    %v8759 = vadd.f32 %v7792, %v8758
    %v8760 = vpop.f32.mrb[0].mxu0
    %v8761 = vadd.f32 %v7796, %v8760
    %v8762 = vpop.f32.mrb[0].mxu0
    %v8763 = vpop.f32.mrb[0].mxu0
    %8764 = vdwg.mxu0
    %8765 = vmatprep.subr.bf16.mxu0 %v8110
    %8766 = vmatpush1.bf16.msra.mxu0 %v8109
    %8767 = vmatprep.subr.bf16.mxu0 %v8116
    %8768 = vmatpush1.bf16.msra.mxu0 %v8115
    %8769 = vmatprep.subr.bf16.mxu0 %v8122
    %8770 = vmatpush1.bf16.msra.mxu0 %v8121
    %8771 = vmatprep.subr.bf16.mxu0 %v8128
    %8772 = vmatpush1.bf16.msra.mxu0 %v8127
    %8773 = vmatprep.subr.bf16.mxu0 %v8134
    %8774 = vmatpush1.bf16.msra.mxu0 %v8133
    %8775 = vmatprep.subr.bf16.mxu0 %v8140
    %8776 = vmatpush1.bf16.msra.mxu0 %v8139
    %8777 = vmatprep.subr.bf16.mxu0 %v8146
    %8778 = vmatpush1.bf16.msra.mxu0 %v8145
    %8779 = vmatprep.subr.bf16.mxu0 %v8152
    %8780 = vmatpush1.bf16.msra.mxu0 %v8151
    %8781 = vmatprep.subr.bf16.mxu0 %v8158
    %8782 = vmatpush1.bf16.msra.mxu0 %v8157
    %8783 = vmatprep.subr.bf16.mxu0 %v8164
    %8784 = vmatpush1.bf16.msra.mxu0 %v8163
    %8785 = vmatprep.subr.bf16.mxu0 %v8170
    %8786 = vmatpush1.bf16.msra.mxu0 %v8169
    %8787 = vmatprep.subr.bf16.mxu0 %v8176
    %8788 = vmatpush1.bf16.msra.mxu0 %v8175
    %8789 = vmatprep.subr.bf16.mxu0 %v8182
    %8790 = vmatpush1.bf16.msra.mxu0 %v8181
    %8791 = vmatprep.subr.bf16.mxu0 %v8188
    %8792 = vmatpush1.bf16.msra.mxu0 %v8187
    %8793 = vmatprep.subr.bf16.mxu0 %v8194
    %8794 = vmatpush1.bf16.msra.mxu0 %v8193
    %8795 = vmatprep.subr.bf16.mxu0 %v8200
    %8796 = vmatpush1.bf16.msra.mxu0 %v8199
    %8797 = vmatprep.mubr.bf16.mxu0 %v8680
    %8798 = vmatmul.mubr.bf16.gmra.mrb[0].mxu0 %v8679
    %v8799 = vpop.f32.mrb[0].mxu0
    %v8800 = vadd.f32 %v7800, %v8799
    %v8801 = vpop.f32.mrb[0].mxu0
    %v8802 = vadd.f32 %v7804, %v8801
    %v8803 = vpop.f32.mrb[0].mxu0
    %v8804 = vpop.f32.mrb[0].mxu0
    %8805 = vdwg.mxu0
    %v8808 = vrot.slane %v8718, 4
    %v8809 = vrot.slane %v8720, 4
    %v8812 = vadd.f32 %v8669, %v8808
    %v8813 = vadd.f32 %v8670, %v8809
    %v8814 = vxor.u32 %v8812, 2147483648
    %v8815 = vxor.u32 %v8813, 2147483648
    %v8816 = vmul.f32 %v8814, 1.442695
    %v8817 = vpow.pop %v8816
    %v8818 = vmul.f32 %v8815, 1.442695
    %v8819 = vpow.pop %v8818
    %v8820 = vadd.f32 %v8817, 1.0
    %v8821 = vadd.f32 %v8819, 1.0
    %v8822 = vrcp.pop %v8820
    %v8823 = vmul.f32 1.0, %v8822
    %v8824 = vrcp.pop %v8821
    %v8825 = vmul.f32 1.0, %v8824
    %v8828 = vrot.slane %v8759, 4
    %v8829 = vrot.slane %v8761, 4
    %v8832 = vadd.f32 %v8671, %v8828
    %v8833 = vadd.f32 %v8672, %v8829
    %v8834 = vxor.u32 %v8832, 2147483648
    %v8835 = vxor.u32 %v8833, 2147483648
    %v8836 = vmul.f32 %v8834, 1.442695
    %v8837 = vpow.pop %v8836
    %v8838 = vmul.f32 %v8835, 1.442695
    %v8839 = vpow.pop %v8838
    %v8840 = vadd.f32 %v8837, 1.0
    %v8841 = vadd.f32 %v8839, 1.0
    %v8842 = vrcp.pop %v8840
    %v8843 = vmul.f32 1.0, %v8842
    %v8844 = vrcp.pop %v8841
    %v8845 = vmul.f32 1.0, %v8844
    %v8848 = vrot.slane %v8800, 4
    %v8849 = vrot.slane %v8802, 4
    %v8852 = vmul.f32 %v8823, %v8848
    %v8853 = vmul.f32 %v8825, %v8849
    %v8854 = vadd.f32 %v8673, %v8852
    %v8855 = vadd.f32 %v8674, %v8853
    %v8856 = vtanh.pop %v8854
    %v8857 = vtanh.pop %v8855
    %v8858 = vsub.f32 1.0, %v8843
    %v8859 = vsub.f32 1.0, %v8845
    %v8860 = vmul.f32 %v8858, %v8856
    %v8861 = vmul.f32 %v8859, %v8857
    %v8864 = vrot.slane %v8665, 6
    %v8865 = vrot.slane %v8666, 6
    %v8868 = vmul.f32 %v8843, %v8864
    %v8869 = vmul.f32 %v8845, %v8865
    %v8870 = vadd.f32 %v8860, %v8868
    %v8871 = vadd.f32 %v8861, %v8869
    %8872 = vst [vmem:[#allocation4] sm:$0x30] %v8870
    %8873 = vst [vmem:[#allocation4 + $0x8] sm:$0x30] %v8871
    %v8874 = vld [vmem:[#allocation3] sm:$0xc0]
    %v8875 = vld [vmem:[#allocation3 + $0x8] sm:$0xc0]
    %v8876 = vld [vmem:[#allocation3 + $0x10] sm:$0xc0]
    %v8877 = vld [vmem:[#allocation3 + $0x18] sm:$0xc0]
    %v8878 = vld [vmem:[#allocation3 + $0x20] sm:$0xc0]
    %v8879 = vld [vmem:[#allocation3 + $0x28] sm:$0xc0]
    %v8880 = vpack.c.bf16 %v8870, %v8870
    %v8881 = vpack.c.bf16 %v8871, %v8871
    %v8884 = vrot.slane %v8880, 2
    %v8885 = vrot.slane %v8881, 2
    %8888 = vmatprep.subr.bf16.mxu0 %v8106
    %8889 = vmatpush1.bf16.msra.mxu0 %v8105
    %8890 = vmatprep.subr.bf16.mxu0 %v8112
    %8891 = vmatpush1.bf16.msra.mxu0 %v8111
    %8892 = vmatprep.subr.bf16.mxu0 %v8118
    %8893 = vmatpush1.bf16.msra.mxu0 %v8117
    %8894 = vmatprep.subr.bf16.mxu0 %v8124
    %8895 = vmatpush1.bf16.msra.mxu0 %v8123
    %8896 = vmatprep.subr.bf16.mxu0 %v8130
    %8897 = vmatpush1.bf16.msra.mxu0 %v8129
    %8898 = vmatprep.subr.bf16.mxu0 %v8136
    %8899 = vmatpush1.bf16.msra.mxu0 %v8135
    %8900 = vmatprep.subr.bf16.mxu0 %v8142
    %8901 = vmatpush1.bf16.msra.mxu0 %v8141
    %8902 = vmatprep.subr.bf16.mxu0 %v8148
    %8903 = vmatpush1.bf16.msra.mxu0 %v8147
    %8904 = vmatprep.subr.bf16.mxu0 %v8154
    %8905 = vmatpush1.bf16.msra.mxu0 %v8153
    %8906 = vmatprep.subr.bf16.mxu0 %v8160
    %8907 = vmatpush1.bf16.msra.mxu0 %v8159
    %8908 = vmatprep.subr.bf16.mxu0 %v8166
    %8909 = vmatpush1.bf16.msra.mxu0 %v8165
    %8910 = vmatprep.subr.bf16.mxu0 %v8172
    %8911 = vmatpush1.bf16.msra.mxu0 %v8171
    %8912 = vmatprep.subr.bf16.mxu0 %v8178
    %8913 = vmatpush1.bf16.msra.mxu0 %v8177
    %8914 = vmatprep.subr.bf16.mxu0 %v8184
    %8915 = vmatpush1.bf16.msra.mxu0 %v8183
    %8916 = vmatprep.subr.bf16.mxu0 %v8190
    %8917 = vmatpush1.bf16.msra.mxu0 %v8189
    %8918 = vmatprep.subr.bf16.mxu0 %v8196
    %8919 = vmatpush1.bf16.msra.mxu0 %v8195
    %8920 = vmatprep.mubr.bf16.mxu0 %v8885
    %8921 = vmatmul.mubr.bf16.gmra.mrb[0].mxu0 %v8884
    %v8922 = vpop.f32.mrb[0].mxu0
    %v8923 = vadd.f32 %v7784, %v8922
    %v8924 = vpop.f32.mrb[0].mxu0
    %v8925 = vadd.f32 %v7788, %v8924
    %v8926 = vpop.f32.mrb[0].mxu0
    %v8927 = vpop.f32.mrb[0].mxu0
    %8928 = vdwg.mxu0
    %8929 = vmatprep.subr.bf16.mxu0 %v8108
    %8930 = vmatpush1.bf16.msra.mxu0 %v8107
    %8931 = vmatprep.subr.bf16.mxu0 %v8114
    %8932 = vmatpush1.bf16.msra.mxu0 %v8113
    %8933 = vmatprep.subr.bf16.mxu0 %v8120
    %8934 = vmatpush1.bf16.msra.mxu0 %v8119
    %8935 = vmatprep.subr.bf16.mxu0 %v8126
    %8936 = vmatpush1.bf16.msra.mxu0 %v8125
    %8937 = vmatprep.subr.bf16.mxu0 %v8132
    %8938 = vmatpush1.bf16.msra.mxu0 %v8131
    %8939 = vmatprep.subr.bf16.mxu0 %v8138
    %8940 = vmatpush1.bf16.msra.mxu0 %v8137
    %8941 = vmatprep.subr.bf16.mxu0 %v8144
    %8942 = vmatpush1.bf16.msra.mxu0 %v8143
    %8943 = vmatprep.subr.bf16.mxu0 %v8150
    %8944 = vmatpush1.bf16.msra.mxu0 %v8149
    %8945 = vmatprep.subr.bf16.mxu0 %v8156
    %8946 = vmatpush1.bf16.msra.mxu0 %v8155
    %8947 = vmatprep.subr.bf16.mxu0 %v8162
    %8948 = vmatpush1.bf16.msra.mxu0 %v8161
    %8949 = vmatprep.subr.bf16.mxu0 %v8168
    %8950 = vmatpush1.bf16.msra.mxu0 %v8167
    %8951 = vmatprep.subr.bf16.mxu0 %v8174
    %8952 = vmatpush1.bf16.msra.mxu0 %v8173
    %8953 = vmatprep.subr.bf16.mxu0 %v8180
    %8954 = vmatpush1.bf16.msra.mxu0 %v8179
    %8955 = vmatprep.subr.bf16.mxu0 %v8186
    %8956 = vmatpush1.bf16.msra.mxu0 %v8185
    %8957 = vmatprep.subr.bf16.mxu0 %v8192
    %8958 = vmatpush1.bf16.msra.mxu0 %v8191
    %8959 = vmatprep.subr.bf16.mxu0 %v8198
    %8960 = vmatpush1.bf16.msra.mxu0 %v8197
    %8961 = vmatprep.mubr.bf16.mxu0 %v8885
    %8962 = vmatmul.mubr.bf16.gmra.mrb[0].mxu0 %v8884
    %v8963 = vpop.f32.mrb[0].mxu0
    %v8964 = vadd.f32 %v7792, %v8963
    %v8965 = vpop.f32.mrb[0].mxu0
    %v8966 = vadd.f32 %v7796, %v8965
    %v8967 = vpop.f32.mrb[0].mxu0
    %v8968 = vpop.f32.mrb[0].mxu0
    %8969 = vdwg.mxu0
    %8970 = vmatprep.subr.bf16.mxu0 %v8110
    %8971 = vmatpush1.bf16.msra.mxu0 %v8109
    %8972 = vmatprep.subr.bf16.mxu0 %v8116
    %8973 = vmatpush1.bf16.msra.mxu0 %v8115
    %8974 = vmatprep.subr.bf16.mxu0 %v8122
    %8975 = vmatpush1.bf16.msra.mxu0 %v8121
    %8976 = vmatprep.subr.bf16.mxu0 %v8128
    %8977 = vmatpush1.bf16.msra.mxu0 %v8127
    %8978 = vmatprep.subr.bf16.mxu0 %v8134
    %8979 = vmatpush1.bf16.msra.mxu0 %v8133
    %8980 = vmatprep.subr.bf16.mxu0 %v8140
    %8981 = vmatpush1.bf16.msra.mxu0 %v8139
    %8982 = vmatprep.subr.bf16.mxu0 %v8146
    %8983 = vmatpush1.bf16.msra.mxu0 %v8145
    %8984 = vmatprep.subr.bf16.mxu0 %v8152
    %8985 = vmatpush1.bf16.msra.mxu0 %v8151
    %8986 = vmatprep.subr.bf16.mxu0 %v8158
    %8987 = vmatpush1.bf16.msra.mxu0 %v8157
    %8988 = vmatprep.subr.bf16.mxu0 %v8164
    %8989 = vmatpush1.bf16.msra.mxu0 %v8163
    %8990 = vmatprep.subr.bf16.mxu0 %v8170
    %8991 = vmatpush1.bf16.msra.mxu0 %v8169
    %8992 = vmatprep.subr.bf16.mxu0 %v8176
    %8993 = vmatpush1.bf16.msra.mxu0 %v8175
    %8994 = vmatprep.subr.bf16.mxu0 %v8182
    %8995 = vmatpush1.bf16.msra.mxu0 %v8181
    %8996 = vmatprep.subr.bf16.mxu0 %v8188
    %8997 = vmatpush1.bf16.msra.mxu0 %v8187
    %8998 = vmatprep.subr.bf16.mxu0 %v8194
    %8999 = vmatpush1.bf16.msra.mxu0 %v8193
    %9000 = vmatprep.subr.bf16.mxu0 %v8200
    %9001 = vmatpush1.bf16.msra.mxu0 %v8199
    %9002 = vmatprep.mubr.bf16.mxu0 %v8885
    %9003 = vmatmul.mubr.bf16.gmra.mrb[0].mxu0 %v8884
    %v9004 = vpop.f32.mrb[0].mxu0
    %v9005 = vadd.f32 %v7800, %v9004
    %v9006 = vpop.f32.mrb[0].mxu0
    %v9007 = vadd.f32 %v7804, %v9006
    %v9008 = vpop.f32.mrb[0].mxu0
    %v9009 = vpop.f32.mrb[0].mxu0
    %9010 = vdwg.mxu0
    %v9013 = vrot.slane %v8923, 2
    %v9014 = vrot.slane %v8925, 2
    %v9017 = vadd.f32 %v8874, %v9013
    %v9018 = vadd.f32 %v8875, %v9014
    %v9019 = vxor.u32 %v9017, 2147483648
    %v9020 = vxor.u32 %v9018, 2147483648
    %v9021 = vmul.f32 %v9019, 1.442695
    %v9022 = vpow.pop %v9021
    %v9023 = vmul.f32 %v9020, 1.442695
    %v9024 = vpow.pop %v9023
    %v9025 = vadd.f32 %v9022, 1.0
    %v9026 = vadd.f32 %v9024, 1.0
    %v9027 = vrcp.pop %v9025
    %v9028 = vmul.f32 1.0, %v9027
    %v9029 = vrcp.pop %v9026
    %v9030 = vmul.f32 1.0, %v9029
    %v9033 = vrot.slane %v8964, 2
    %v9034 = vrot.slane %v8966, 2
    %v9037 = vadd.f32 %v8876, %v9033
    %v9038 = vadd.f32 %v8877, %v9034
    %v9039 = vxor.u32 %v9037, 2147483648
    %v9040 = vxor.u32 %v9038, 2147483648
    %v9041 = vmul.f32 %v9039, 1.442695
    %v9042 = vpow.pop %v9041
    %v9043 = vmul.f32 %v9040, 1.442695
    %v9044 = vpow.pop %v9043
    %v9045 = vadd.f32 %v9042, 1.0
    %v9046 = vadd.f32 %v9044, 1.0
    %v9047 = vrcp.pop %v9045
    %v9048 = vmul.f32 1.0, %v9047
    %v9049 = vrcp.pop %v9046
    %v9050 = vmul.f32 1.0, %v9049
    %v9053 = vrot.slane %v9005, 2
    %v9054 = vrot.slane %v9007, 2
    %v9057 = vmul.f32 %v9028, %v9053
    %v9058 = vmul.f32 %v9030, %v9054
    %v9059 = vadd.f32 %v8878, %v9057
    %v9060 = vadd.f32 %v8879, %v9058
    %v9061 = vtanh.pop %v9059
    %v9062 = vtanh.pop %v9060
    %v9063 = vsub.f32 1.0, %v9048
    %v9064 = vsub.f32 1.0, %v9050
    %v9065 = vmul.f32 %v9063, %v9061
    %v9066 = vmul.f32 %v9064, %v9062
    %v9069 = vrot.slane %v8870, 6
    %v9070 = vrot.slane %v8871, 6
    %v9073 = vmul.f32 %v9048, %v9069
    %v9074 = vmul.f32 %v9050, %v9070
    %v9075 = vadd.f32 %v9065, %v9073
    %v9076 = vadd.f32 %v9066, %v9074
    %9077 = vst [vmem:[#allocation4] sm:$0xc0] %v9075
    %9078 = vst [vmem:[#allocation4 + $0x8] sm:$0xc0] %v9076
    %v9079 = vld [vmem:[#allocation3 + $0x30] sm:$0x3]
    %v9080 = vld [vmem:[#allocation3 + $0x38] sm:$0x3]
    %v9081 = vld [vmem:[#allocation3 + $0x40] sm:$0x3]
    %v9082 = vld [vmem:[#allocation3 + $0x48] sm:$0x3]
    %v9083 = vld [vmem:[#allocation3 + $0x50] sm:$0x3]
    %v9084 = vld [vmem:[#allocation3 + $0x58] sm:$0x3]
    %v9085 = vpack.c.bf16 %v9075, %v9075
    %v9086 = vpack.c.bf16 %v9076, %v9076
    %v9089 = vrot.slane %v9085, 3
    %v9090 = vrot.slane %v9086, 3
    %9093 = vmatprep.subr.bf16.mxu0 %v8106
    %9094 = vmatpush1.bf16.msra.mxu0 %v8105
    %9095 = vmatprep.subr.bf16.mxu0 %v8112
    %9096 = vmatpush1.bf16.msra.mxu0 %v8111
    %9097 = vmatprep.subr.bf16.mxu0 %v8118
    %9098 = vmatpush1.bf16.msra.mxu0 %v8117
    %9099 = vmatprep.subr.bf16.mxu0 %v8124
    %9100 = vmatpush1.bf16.msra.mxu0 %v8123
    %9101 = vmatprep.subr.bf16.mxu0 %v8130
    %9102 = vmatpush1.bf16.msra.mxu0 %v8129
    %9103 = vmatprep.subr.bf16.mxu0 %v8136
    %9104 = vmatpush1.bf16.msra.mxu0 %v8135
    %9105 = vmatprep.subr.bf16.mxu0 %v8142
    %9106 = vmatpush1.bf16.msra.mxu0 %v8141
    %9107 = vmatprep.subr.bf16.mxu0 %v8148
    %9108 = vmatpush1.bf16.msra.mxu0 %v8147
    %9109 = vmatprep.subr.bf16.mxu0 %v8154
    %9110 = vmatpush1.bf16.msra.mxu0 %v8153
    %9111 = vmatprep.subr.bf16.mxu0 %v8160
    %9112 = vmatpush1.bf16.msra.mxu0 %v8159
    %9113 = vmatprep.subr.bf16.mxu0 %v8166
    %9114 = vmatpush1.bf16.msra.mxu0 %v8165
    %9115 = vmatprep.subr.bf16.mxu0 %v8172
    %9116 = vmatpush1.bf16.msra.mxu0 %v8171
    %9117 = vmatprep.subr.bf16.mxu0 %v8178
    %9118 = vmatpush1.bf16.msra.mxu0 %v8177
    %9119 = vmatprep.subr.bf16.mxu0 %v8184
    %9120 = vmatpush1.bf16.msra.mxu0 %v8183
    %9121 = vmatprep.subr.bf16.mxu0 %v8190
    %9122 = vmatpush1.bf16.msra.mxu0 %v8189
    %9123 = vmatprep.subr.bf16.mxu0 %v8196
    %9124 = vmatpush1.bf16.msra.mxu0 %v8195
    %9125 = vmatprep.mubr.bf16.mxu0 %v9090
    %9126 = vmatmul.mubr.bf16.gmra.mrb[0].mxu0 %v9089
    %v9127 = vpop.f32.mrb[0].mxu0
    %v9128 = vadd.f32 %v7784, %v9127
    %v9129 = vpop.f32.mrb[0].mxu0
    %v9130 = vadd.f32 %v7788, %v9129
    %v9131 = vpop.f32.mrb[0].mxu0
    %v9132 = vpop.f32.mrb[0].mxu0
    %9133 = vdwg.mxu0
    %9134 = vmatprep.subr.bf16.mxu0 %v8108
    %9135 = vmatpush1.bf16.msra.mxu0 %v8107
    %9136 = vmatprep.subr.bf16.mxu0 %v8114
    %9137 = vmatpush1.bf16.msra.mxu0 %v8113
    %9138 = vmatprep.subr.bf16.mxu0 %v8120
    %9139 = vmatpush1.bf16.msra.mxu0 %v8119
    %9140 = vmatprep.subr.bf16.mxu0 %v8126
    %9141 = vmatpush1.bf16.msra.mxu0 %v8125
    %9142 = vmatprep.subr.bf16.mxu0 %v8132
    %9143 = vmatpush1.bf16.msra.mxu0 %v8131
    %9144 = vmatprep.subr.bf16.mxu0 %v8138
    %9145 = vmatpush1.bf16.msra.mxu0 %v8137
    %9146 = vmatprep.subr.bf16.mxu0 %v8144
    %9147 = vmatpush1.bf16.msra.mxu0 %v8143
    %9148 = vmatprep.subr.bf16.mxu0 %v8150
    %9149 = vmatpush1.bf16.msra.mxu0 %v8149
    %9150 = vmatprep.subr.bf16.mxu0 %v8156
    %9151 = vmatpush1.bf16.msra.mxu0 %v8155
    %9152 = vmatprep.subr.bf16.mxu0 %v8162
    %9153 = vmatpush1.bf16.msra.mxu0 %v8161
    %9154 = vmatprep.subr.bf16.mxu0 %v8168
    %9155 = vmatpush1.bf16.msra.mxu0 %v8167
    %9156 = vmatprep.subr.bf16.mxu0 %v8174
    %9157 = vmatpush1.bf16.msra.mxu0 %v8173
    %9158 = vmatprep.subr.bf16.mxu0 %v8180
    %9159 = vmatpush1.bf16.msra.mxu0 %v8179
    %9160 = vmatprep.subr.bf16.mxu0 %v8186
    %9161 = vmatpush1.bf16.msra.mxu0 %v8185
    %9162 = vmatprep.subr.bf16.mxu0 %v8192
    %9163 = vmatpush1.bf16.msra.mxu0 %v8191
    %9164 = vmatprep.subr.bf16.mxu0 %v8198
    %9165 = vmatpush1.bf16.msra.mxu0 %v8197
    %9166 = vmatprep.mubr.bf16.mxu0 %v9090
    %9167 = vmatmul.mubr.bf16.gmra.mrb[0].mxu0 %v9089
    %v9168 = vpop.f32.mrb[0].mxu0
    %v9169 = vadd.f32 %v7792, %v9168
    %v9170 = vpop.f32.mrb[0].mxu0
    %v9171 = vadd.f32 %v7796, %v9170
    %v9172 = vpop.f32.mrb[0].mxu0
    %v9173 = vpop.f32.mrb[0].mxu0
    %9174 = vdwg.mxu0
    %9175 = vmatprep.subr.bf16.mxu0 %v8110
    %9176 = vmatpush1.bf16.msra.mxu0 %v8109
    %9177 = vmatprep.subr.bf16.mxu0 %v8116
    %9178 = vmatpush1.bf16.msra.mxu0 %v8115
    %9179 = vmatprep.subr.bf16.mxu0 %v8122
    %9180 = vmatpush1.bf16.msra.mxu0 %v8121
    %9181 = vmatprep.subr.bf16.mxu0 %v8128
    %9182 = vmatpush1.bf16.msra.mxu0 %v8127
    %9183 = vmatprep.subr.bf16.mxu0 %v8134
    %9184 = vmatpush1.bf16.msra.mxu0 %v8133
    %9185 = vmatprep.subr.bf16.mxu0 %v8140
    %9186 = vmatpush1.bf16.msra.mxu0 %v8139
    %9187 = vmatprep.subr.bf16.mxu0 %v8146
    %9188 = vmatpush1.bf16.msra.mxu0 %v8145
    %9189 = vmatprep.subr.bf16.mxu0 %v8152
    %9190 = vmatpush1.bf16.msra.mxu0 %v8151
    %9191 = vmatprep.subr.bf16.mxu0 %v8158
    %9192 = vmatpush1.bf16.msra.mxu0 %v8157
    %9193 = vmatprep.subr.bf16.mxu0 %v8164
    %9194 = vmatpush1.bf16.msra.mxu0 %v8163
    %9195 = vmatprep.subr.bf16.mxu0 %v8170
    %9196 = vmatpush1.bf16.msra.mxu0 %v8169
    %9197 = vmatprep.subr.bf16.mxu0 %v8176
    %9198 = vmatpush1.bf16.msra.mxu0 %v8175
    %9199 = vmatprep.subr.bf16.mxu0 %v8182
    %9200 = vmatpush1.bf16.msra.mxu0 %v8181
    %9201 = vmatprep.subr.bf16.mxu0 %v8188
    %9202 = vmatpush1.bf16.msra.mxu0 %v8187
    %9203 = vmatprep.subr.bf16.mxu0 %v8194
    %9204 = vmatpush1.bf16.msra.mxu0 %v8193
    %9205 = vmatprep.subr.bf16.mxu0 %v8200
    %9206 = vmatpush1.bf16.msra.mxu0 %v8199
    %9207 = vmatprep.mubr.bf16.mxu0 %v9090
    %9208 = vmatmul.mubr.bf16.gmra.mrb[0].mxu0 %v9089
    %v9209 = vpop.f32.mrb[0].mxu0
    %v9210 = vadd.f32 %v7800, %v9209
    %v9211 = vpop.f32.mrb[0].mxu0
    %v9212 = vadd.f32 %v7804, %v9211
    %v9213 = vpop.f32.mrb[0].mxu0
    %v9214 = vpop.f32.mrb[0].mxu0
    %9215 = vdwg.mxu0
    %v9216 = vadd.f32 %v9079, %v9128
    %v9217 = vadd.f32 %v9080, %v9130
    %v9218 = vxor.u32 %v9216, 2147483648
    %v9219 = vxor.u32 %v9217, 2147483648
    %v9220 = vmul.f32 %v9218, 1.442695
    %v9221 = vpow.pop %v9220
    %v9222 = vmul.f32 %v9219, 1.442695
    %v9223 = vpow.pop %v9222
    %v9224 = vadd.f32 %v9221, 1.0
    %v9225 = vadd.f32 %v9223, 1.0
    %v9226 = vrcp.pop %v9224
    %v9227 = vmul.f32 1.0, %v9226
    %v9228 = vrcp.pop %v9225
    %v9229 = vmul.f32 1.0, %v9228
    %v9230 = vadd.f32 %v9081, %v9169
    %v9231 = vadd.f32 %v9082, %v9171
    %v9232 = vxor.u32 %v9230, 2147483648
    %v9233 = vxor.u32 %v9231, 2147483648
    %v9234 = vmul.f32 %v9232, 1.442695
    %v9235 = vpow.pop %v9234
    %v9236 = vmul.f32 %v9233, 1.442695
    %v9237 = vpow.pop %v9236
    %v9238 = vadd.f32 %v9235, 1.0
    %v9239 = vadd.f32 %v9237, 1.0
    %v9240 = vrcp.pop %v9238
    %v9241 = vmul.f32 1.0, %v9240
    %v9242 = vrcp.pop %v9239
    %v9243 = vmul.f32 1.0, %v9242
    %v9244 = vmul.f32 %v9227, %v9210
    %v9245 = vmul.f32 %v9229, %v9212
    %v9246 = vadd.f32 %v9083, %v9244
    %v9247 = vadd.f32 %v9084, %v9245
    %v9248 = vtanh.pop %v9246
    %v9249 = vtanh.pop %v9247
    %v9250 = vsub.f32 1.0, %v9241
    %v9251 = vsub.f32 1.0, %v9243
    %v9252 = vmul.f32 %v9250, %v9248
    %v9253 = vmul.f32 %v9251, %v9249
    %v9256 = vrot.slane %v9075, 6
    %v9257 = vrot.slane %v9076, 6
    %v9260 = vmul.f32 %v9241, %v9256
    %v9261 = vmul.f32 %v9243, %v9257
    %v9262 = vadd.f32 %v9252, %v9260
    %v9263 = vadd.f32 %v9253, %v9261
    %9264 = vst [vmem:[#allocation4 + $0x10] sm:$0x3] %v9262
    %9265 = vst [vmem:[#allocation4 + $0x18] sm:$0x3] %v9263
    %v9266 = vld [vmem:[#allocation3 + $0x30] sm:$0xc]
    %v9267 = vld [vmem:[#allocation3 + $0x38] sm:$0xc]
    %v9268 = vld [vmem:[#allocation3 + $0x40] sm:$0xc]
    %v9269 = vld [vmem:[#allocation3 + $0x48] sm:$0xc]
    %v9270 = vld [vmem:[#allocation3 + $0x50] sm:$0xc]
    %v9271 = vld [vmem:[#allocation3 + $0x58] sm:$0xc]
    %v9272 = vpack.c.bf16 %v9262, %v9262
    %v9273 = vpack.c.bf16 %v9263, %v9263
    %9274 = vmatprep.subr.bf16.mxu0 %v8106
    %9275 = vmatpush1.bf16.msra.mxu0 %v8105
    %9276 = vmatprep.subr.bf16.mxu0 %v8112
    %9277 = vmatpush1.bf16.msra.mxu0 %v8111
    %9278 = vmatprep.subr.bf16.mxu0 %v8118
    %9279 = vmatpush1.bf16.msra.mxu0 %v8117
    %9280 = vmatprep.subr.bf16.mxu0 %v8124
    %9281 = vmatpush1.bf16.msra.mxu0 %v8123
    %9282 = vmatprep.subr.bf16.mxu0 %v8130
    %9283 = vmatpush1.bf16.msra.mxu0 %v8129
    %9284 = vmatprep.subr.bf16.mxu0 %v8136
    %9285 = vmatpush1.bf16.msra.mxu0 %v8135
    %9286 = vmatprep.subr.bf16.mxu0 %v8142
    %9287 = vmatpush1.bf16.msra.mxu0 %v8141
    %9288 = vmatprep.subr.bf16.mxu0 %v8148
    %9289 = vmatpush1.bf16.msra.mxu0 %v8147
    %9290 = vmatprep.subr.bf16.mxu0 %v8154
    %9291 = vmatpush1.bf16.msra.mxu0 %v8153
    %9292 = vmatprep.subr.bf16.mxu0 %v8160
    %9293 = vmatpush1.bf16.msra.mxu0 %v8159
    %9294 = vmatprep.subr.bf16.mxu0 %v8166
    %9295 = vmatpush1.bf16.msra.mxu0 %v8165
    %9296 = vmatprep.subr.bf16.mxu0 %v8172
    %9297 = vmatpush1.bf16.msra.mxu0 %v8171
    %9298 = vmatprep.subr.bf16.mxu0 %v8178
    %9299 = vmatpush1.bf16.msra.mxu0 %v8177
    %9300 = vmatprep.subr.bf16.mxu0 %v8184
    %9301 = vmatpush1.bf16.msra.mxu0 %v8183
    %9302 = vmatprep.subr.bf16.mxu0 %v8190
    %9303 = vmatpush1.bf16.msra.mxu0 %v8189
    %9304 = vmatprep.subr.bf16.mxu0 %v8196
    %9305 = vmatpush1.bf16.msra.mxu0 %v8195
    %9306 = vmatprep.mubr.bf16.mxu0 %v9273
    %9307 = vmatmul.mubr.bf16.gmra.mrb[0].mxu0 %v9272
    %v9308 = vpop.f32.mrb[0].mxu0
    %v9309 = vadd.f32 %v7784, %v9308
    %v9310 = vpop.f32.mrb[0].mxu0
    %v9311 = vadd.f32 %v7788, %v9310
    %v9312 = vpop.f32.mrb[0].mxu0
    %v9313 = vpop.f32.mrb[0].mxu0
    %9314 = vdwg.mxu0
    %9315 = vmatprep.subr.bf16.mxu0 %v8108
    %9316 = vmatpush1.bf16.msra.mxu0 %v8107
    %9317 = vmatprep.subr.bf16.mxu0 %v8114
    %9318 = vmatpush1.bf16.msra.mxu0 %v8113
    %9319 = vmatprep.subr.bf16.mxu0 %v8120
    %9320 = vmatpush1.bf16.msra.mxu0 %v8119
    %9321 = vmatprep.subr.bf16.mxu0 %v8126
    %9322 = vmatpush1.bf16.msra.mxu0 %v8125
    %9323 = vmatprep.subr.bf16.mxu0 %v8132
    %9324 = vmatpush1.bf16.msra.mxu0 %v8131
    %9325 = vmatprep.subr.bf16.mxu0 %v8138
    %9326 = vmatpush1.bf16.msra.mxu0 %v8137
    %9327 = vmatprep.subr.bf16.mxu0 %v8144
    %9328 = vmatpush1.bf16.msra.mxu0 %v8143
    %9329 = vmatprep.subr.bf16.mxu0 %v8150
    %9330 = vmatpush1.bf16.msra.mxu0 %v8149
    %9331 = vmatprep.subr.bf16.mxu0 %v8156
    %9332 = vmatpush1.bf16.msra.mxu0 %v8155
    %9333 = vmatprep.subr.bf16.mxu0 %v8162
    %9334 = vmatpush1.bf16.msra.mxu0 %v8161
    %9335 = vmatprep.subr.bf16.mxu0 %v8168
    %9336 = vmatpush1.bf16.msra.mxu0 %v8167
    %9337 = vmatprep.subr.bf16.mxu0 %v8174
    %9338 = vmatpush1.bf16.msra.mxu0 %v8173
    %9339 = vmatprep.subr.bf16.mxu0 %v8180
    %9340 = vmatpush1.bf16.msra.mxu0 %v8179
    %9341 = vmatprep.subr.bf16.mxu0 %v8186
    %9342 = vmatpush1.bf16.msra.mxu0 %v8185
    %9343 = vmatprep.subr.bf16.mxu0 %v8192
    %9344 = vmatpush1.bf16.msra.mxu0 %v8191
    %9345 = vmatprep.subr.bf16.mxu0 %v8198
    %9346 = vmatpush1.bf16.msra.mxu0 %v8197
    %9347 = vmatprep.mubr.bf16.mxu0 %v9273
    %9348 = vmatmul.mubr.bf16.gmra.mrb[0].mxu0 %v9272
    %v9349 = vpop.f32.mrb[0].mxu0
    %v9350 = vadd.f32 %v7792, %v9349
    %v9351 = vpop.f32.mrb[0].mxu0
    %v9352 = vadd.f32 %v7796, %v9351
    %v9353 = vpop.f32.mrb[0].mxu0
    %v9354 = vpop.f32.mrb[0].mxu0
    %9355 = vdwg.mxu0
    %9356 = vmatprep.subr.bf16.mxu0 %v8110
    %9357 = vmatpush1.bf16.msra.mxu0 %v8109
    %9358 = vmatprep.subr.bf16.mxu0 %v8116
    %9359 = vmatpush1.bf16.msra.mxu0 %v8115
    %9360 = vmatprep.subr.bf16.mxu0 %v8122
    %9361 = vmatpush1.bf16.msra.mxu0 %v8121
    %9362 = vmatprep.subr.bf16.mxu0 %v8128
    %9363 = vmatpush1.bf16.msra.mxu0 %v8127
    %9364 = vmatprep.subr.bf16.mxu0 %v8134
    %9365 = vmatpush1.bf16.msra.mxu0 %v8133
    %9366 = vmatprep.subr.bf16.mxu0 %v8140
    %9367 = vmatpush1.bf16.msra.mxu0 %v8139
    %9368 = vmatprep.subr.bf16.mxu0 %v8146
    %9369 = vmatpush1.bf16.msra.mxu0 %v8145
    %9370 = vmatprep.subr.bf16.mxu0 %v8152
    %9371 = vmatpush1.bf16.msra.mxu0 %v8151
    %9372 = vmatprep.subr.bf16.mxu0 %v8158
    %9373 = vmatpush1.bf16.msra.mxu0 %v8157
    %9374 = vmatprep.subr.bf16.mxu0 %v8164
    %9375 = vmatpush1.bf16.msra.mxu0 %v8163
    %9376 = vmatprep.subr.bf16.mxu0 %v8170
    %9377 = vmatpush1.bf16.msra.mxu0 %v8169
    %9378 = vmatprep.subr.bf16.mxu0 %v8176
    %9379 = vmatpush1.bf16.msra.mxu0 %v8175
    %9380 = vmatprep.subr.bf16.mxu0 %v8182
    %9381 = vmatpush1.bf16.msra.mxu0 %v8181
    %9382 = vmatprep.subr.bf16.mxu0 %v8188
    %9383 = vmatpush1.bf16.msra.mxu0 %v8187
    %9384 = vmatprep.subr.bf16.mxu0 %v8194
    %9385 = vmatpush1.bf16.msra.mxu0 %v8193
    %9386 = vmatprep.subr.bf16.mxu0 %v8200
    %9387 = vmatpush1.bf16.msra.mxu0 %v8199
    %9388 = vmatprep.mubr.bf16.mxu0 %v9273
    %9389 = vmatmul.mubr.bf16.gmra.mrb[0].mxu0 %v9272
    %v9390 = vpop.f32.mrb[0].mxu0
    %v9391 = vadd.f32 %v7800, %v9390
    %v9392 = vpop.f32.mrb[0].mxu0
    %v9393 = vadd.f32 %v7804, %v9392
    %v9394 = vpop.f32.mrb[0].mxu0
    %v9395 = vpop.f32.mrb[0].mxu0
    %9396 = vdwg.mxu0
    %v9399 = vrot.slane %v9309, 6
    %v9400 = vrot.slane %v9311, 6
    %v9403 = vadd.f32 %v9266, %v9399
    %v9404 = vadd.f32 %v9267, %v9400
    %v9405 = vxor.u32 %v9403, 2147483648
    %v9406 = vxor.u32 %v9404, 2147483648
    %v9407 = vmul.f32 %v9405, 1.442695
    %v9408 = vpow.pop %v9407
    %v9409 = vmul.f32 %v9406, 1.442695
    %v9410 = vpow.pop %v9409
    %v9411 = vadd.f32 %v9408, 1.0
    %v9412 = vadd.f32 %v9410, 1.0
    %v9413 = vrcp.pop %v9411
    %v9414 = vmul.f32 1.0, %v9413
    %v9415 = vrcp.pop %v9412
    %v9416 = vmul.f32 1.0, %v9415
    %v9419 = vrot.slane %v9350, 6
    %v9420 = vrot.slane %v9352, 6
    %v9423 = vadd.f32 %v9268, %v9419
    %v9424 = vadd.f32 %v9269, %v9420
    %v9425 = vxor.u32 %v9423, 2147483648
    %v9426 = vxor.u32 %v9424, 2147483648
    %v9427 = vmul.f32 %v9425, 1.442695
    %v9428 = vpow.pop %v9427
    %v9429 = vmul.f32 %v9426, 1.442695
    %v9430 = vpow.pop %v9429
    %v9431 = vadd.f32 %v9428, 1.0
    %v9432 = vadd.f32 %v9430, 1.0
    %v9433 = vrcp.pop %v9431
    %v9434 = vmul.f32 1.0, %v9433
    %v9435 = vrcp.pop %v9432
    %v9436 = vmul.f32 1.0, %v9435
    %v9439 = vrot.slane %v9391, 6
    %v9440 = vrot.slane %v9393, 6
    %v9443 = vmul.f32 %v9414, %v9439
    %v9444 = vmul.f32 %v9416, %v9440
    %v9445 = vadd.f32 %v9270, %v9443
    %v9446 = vadd.f32 %v9271, %v9444
    %v9447 = vtanh.pop %v9445
    %v9448 = vtanh.pop %v9446
    %v9449 = vsub.f32 1.0, %v9434
    %v9450 = vsub.f32 1.0, %v9436
    %v9451 = vmul.f32 %v9449, %v9447
    %v9452 = vmul.f32 %v9450, %v9448
    %v9455 = vrot.slane %v9262, 6
    %v9456 = vrot.slane %v9263, 6
    %v9459 = vmul.f32 %v9434, %v9455
    %v9460 = vmul.f32 %v9436, %v9456
    %v9461 = vadd.f32 %v9451, %v9459
    %v9462 = vadd.f32 %v9452, %v9460
    %9463 = vst [vmem:[#allocation4 + $0x10] sm:$0xc] %v9461
    %9464 = vst [vmem:[#allocation4 + $0x18] sm:$0xc] %v9462
    %v9465 = vld [vmem:[#allocation3 + $0x30] sm:$0x30]
    %v9466 = vld [vmem:[#allocation3 + $0x38] sm:$0x30]
    %v9467 = vld [vmem:[#allocation3 + $0x40] sm:$0x30]
    %v9468 = vld [vmem:[#allocation3 + $0x48] sm:$0x30]
    %v9469 = vld [vmem:[#allocation3 + $0x50] sm:$0x30]
    %v9470 = vld [vmem:[#allocation3 + $0x58] sm:$0x30]
    %v9471 = vpack.c.bf16 %v9461, %v9461
    %v9472 = vpack.c.bf16 %v9462, %v9462
    %v9475 = vrot.slane %v9471, 1
    %v9476 = vrot.slane %v9472, 1
    %9479 = vmatprep.subr.bf16.mxu0 %v8106
    %9480 = vmatpush1.bf16.msra.mxu0 %v8105
    %9481 = vmatprep.subr.bf16.mxu0 %v8112
    %9482 = vmatpush1.bf16.msra.mxu0 %v8111
    %9483 = vmatprep.subr.bf16.mxu0 %v8118
    %9484 = vmatpush1.bf16.msra.mxu0 %v8117
    %9485 = vmatprep.subr.bf16.mxu0 %v8124
    %9486 = vmatpush1.bf16.msra.mxu0 %v8123
    %9487 = vmatprep.subr.bf16.mxu0 %v8130
    %9488 = vmatpush1.bf16.msra.mxu0 %v8129
    %9489 = vmatprep.subr.bf16.mxu0 %v8136
    %9490 = vmatpush1.bf16.msra.mxu0 %v8135
    %9491 = vmatprep.subr.bf16.mxu0 %v8142
    %9492 = vmatpush1.bf16.msra.mxu0 %v8141
    %9493 = vmatprep.subr.bf16.mxu0 %v8148
    %9494 = vmatpush1.bf16.msra.mxu0 %v8147
    %9495 = vmatprep.subr.bf16.mxu0 %v8154
    %9496 = vmatpush1.bf16.msra.mxu0 %v8153
    %9497 = vmatprep.subr.bf16.mxu0 %v8160
    %9498 = vmatpush1.bf16.msra.mxu0 %v8159
    %9499 = vmatprep.subr.bf16.mxu0 %v8166
    %9500 = vmatpush1.bf16.msra.mxu0 %v8165
    %9501 = vmatprep.subr.bf16.mxu0 %v8172
    %9502 = vmatpush1.bf16.msra.mxu0 %v8171
    %9503 = vmatprep.subr.bf16.mxu0 %v8178
    %9504 = vmatpush1.bf16.msra.mxu0 %v8177
    %9505 = vmatprep.subr.bf16.mxu0 %v8184
    %9506 = vmatpush1.bf16.msra.mxu0 %v8183
    %9507 = vmatprep.subr.bf16.mxu0 %v8190
    %9508 = vmatpush1.bf16.msra.mxu0 %v8189
    %9509 = vmatprep.subr.bf16.mxu0 %v8196
    %9510 = vmatpush1.bf16.msra.mxu0 %v8195
    %9511 = vmatprep.mubr.bf16.mxu0 %v9476
    %9512 = vmatmul.mubr.bf16.gmra.mrb[0].mxu0 %v9475
    %v9513 = vpop.f32.mrb[0].mxu0
    %v9514 = vadd.f32 %v7784, %v9513
    %v9515 = vpop.f32.mrb[0].mxu0
    %v9516 = vadd.f32 %v7788, %v9515
    %v9517 = vpop.f32.mrb[0].mxu0
    %v9518 = vpop.f32.mrb[0].mxu0
    %9519 = vdwg.mxu0
    %9520 = vmatprep.subr.bf16.mxu0 %v8108
    %9521 = vmatpush1.bf16.msra.mxu0 %v8107
    %9522 = vmatprep.subr.bf16.mxu0 %v8114
    %9523 = vmatpush1.bf16.msra.mxu0 %v8113
    %9524 = vmatprep.subr.bf16.mxu0 %v8120
    %9525 = vmatpush1.bf16.msra.mxu0 %v8119
    %9526 = vmatprep.subr.bf16.mxu0 %v8126
    %9527 = vmatpush1.bf16.msra.mxu0 %v8125
    %9528 = vmatprep.subr.bf16.mxu0 %v8132
    %9529 = vmatpush1.bf16.msra.mxu0 %v8131
    %9530 = vmatprep.subr.bf16.mxu0 %v8138
    %9531 = vmatpush1.bf16.msra.mxu0 %v8137
    %9532 = vmatprep.subr.bf16.mxu0 %v8144
    %9533 = vmatpush1.bf16.msra.mxu0 %v8143
    %9534 = vmatprep.subr.bf16.mxu0 %v8150
    %9535 = vmatpush1.bf16.msra.mxu0 %v8149
    %9536 = vmatprep.subr.bf16.mxu0 %v8156
    %9537 = vmatpush1.bf16.msra.mxu0 %v8155
    %9538 = vmatprep.subr.bf16.mxu0 %v8162
    %9539 = vmatpush1.bf16.msra.mxu0 %v8161
    %9540 = vmatprep.subr.bf16.mxu0 %v8168
    %9541 = vmatpush1.bf16.msra.mxu0 %v8167
    %9542 = vmatprep.subr.bf16.mxu0 %v8174
    %9543 = vmatpush1.bf16.msra.mxu0 %v8173
    %9544 = vmatprep.subr.bf16.mxu0 %v8180
    %9545 = vmatpush1.bf16.msra.mxu0 %v8179
    %9546 = vmatprep.subr.bf16.mxu0 %v8186
    %9547 = vmatpush1.bf16.msra.mxu0 %v8185
    %9548 = vmatprep.subr.bf16.mxu0 %v8192
    %9549 = vmatpush1.bf16.msra.mxu0 %v8191
    %9550 = vmatprep.subr.bf16.mxu0 %v8198
    %9551 = vmatpush1.bf16.msra.mxu0 %v8197
    %9552 = vmatprep.mubr.bf16.mxu0 %v9476
    %9553 = vmatmul.mubr.bf16.gmra.mrb[0].mxu0 %v9475
    %v9554 = vpop.f32.mrb[0].mxu0
    %v9555 = vadd.f32 %v7792, %v9554
    %v9556 = vpop.f32.mrb[0].mxu0
    %v9557 = vadd.f32 %v7796, %v9556
    %v9558 = vpop.f32.mrb[0].mxu0
    %v9559 = vpop.f32.mrb[0].mxu0
    %9560 = vdwg.mxu0
    %9561 = vmatprep.subr.bf16.mxu0 %v8110
    %9562 = vmatpush1.bf16.msra.mxu0 %v8109
    %9563 = vmatprep.subr.bf16.mxu0 %v8116
    %9564 = vmatpush1.bf16.msra.mxu0 %v8115
    %9565 = vmatprep.subr.bf16.mxu0 %v8122
    %9566 = vmatpush1.bf16.msra.mxu0 %v8121
    %9567 = vmatprep.subr.bf16.mxu0 %v8128
    %9568 = vmatpush1.bf16.msra.mxu0 %v8127
    %9569 = vmatprep.subr.bf16.mxu0 %v8134
    %9570 = vmatpush1.bf16.msra.mxu0 %v8133
    %9571 = vmatprep.subr.bf16.mxu0 %v8140
    %9572 = vmatpush1.bf16.msra.mxu0 %v8139
    %9573 = vmatprep.subr.bf16.mxu0 %v8146
    %9574 = vmatpush1.bf16.msra.mxu0 %v8145
    %9575 = vmatprep.subr.bf16.mxu0 %v8152
    %9576 = vmatpush1.bf16.msra.mxu0 %v8151
    %9577 = vmatprep.subr.bf16.mxu0 %v8158
    %9578 = vmatpush1.bf16.msra.mxu0 %v8157
    %9579 = vmatprep.subr.bf16.mxu0 %v8164
    %9580 = vmatpush1.bf16.msra.mxu0 %v8163
    %9581 = vmatprep.subr.bf16.mxu0 %v8170
    %9582 = vmatpush1.bf16.msra.mxu0 %v8169
    %9583 = vmatprep.subr.bf16.mxu0 %v8176
    %9584 = vmatpush1.bf16.msra.mxu0 %v8175
    %9585 = vmatprep.subr.bf16.mxu0 %v8182
    %9586 = vmatpush1.bf16.msra.mxu0 %v8181
    %9587 = vmatprep.subr.bf16.mxu0 %v8188
    %9588 = vmatpush1.bf16.msra.mxu0 %v8187
    %9589 = vmatprep.subr.bf16.mxu0 %v8194
    %9590 = vmatpush1.bf16.msra.mxu0 %v8193
    %9591 = vmatprep.subr.bf16.mxu0 %v8200
    %9592 = vmatpush1.bf16.msra.mxu0 %v8199
    %9593 = vmatprep.mubr.bf16.mxu0 %v9476
    %9594 = vmatmul.mubr.bf16.gmra.mrb[0].mxu0 %v9475
    %v9595 = vpop.f32.mrb[0].mxu0
    %v9596 = vadd.f32 %v7800, %v9595
    %v9597 = vpop.f32.mrb[0].mxu0
    %v9598 = vadd.f32 %v7804, %v9597
    %v9599 = vpop.f32.mrb[0].mxu0
    %v9600 = vpop.f32.mrb[0].mxu0
    %9601 = vdwg.mxu0
    %v9604 = vrot.slane %v9514, 4
    %v9605 = vrot.slane %v9516, 4
    %v9608 = vadd.f32 %v9465, %v9604
    %v9609 = vadd.f32 %v9466, %v9605
    %v9610 = vxor.u32 %v9608, 2147483648
    %v9611 = vxor.u32 %v9609, 2147483648
    %v9612 = vmul.f32 %v9610, 1.442695
    %v9613 = vpow.pop %v9612
    %v9614 = vmul.f32 %v9611, 1.442695
    %v9615 = vpow.pop %v9614
    %v9616 = vadd.f32 %v9613, 1.0
    %v9617 = vadd.f32 %v9615, 1.0
    %v9618 = vrcp.pop %v9616
    %v9619 = vmul.f32 1.0, %v9618
    %v9620 = vrcp.pop %v9617
    %v9621 = vmul.f32 1.0, %v9620
    %v9624 = vrot.slane %v9555, 4
    %v9625 = vrot.slane %v9557, 4
    %v9628 = vadd.f32 %v9467, %v9624
    %v9629 = vadd.f32 %v9468, %v9625
    %v9630 = vxor.u32 %v9628, 2147483648
    %v9631 = vxor.u32 %v9629, 2147483648
    %v9632 = vmul.f32 %v9630, 1.442695
    %v9633 = vpow.pop %v9632
    %v9634 = vmul.f32 %v9631, 1.442695
    %v9635 = vpow.pop %v9634
    %v9636 = vadd.f32 %v9633, 1.0
    %v9637 = vadd.f32 %v9635, 1.0
    %v9638 = vrcp.pop %v9636
    %v9639 = vmul.f32 1.0, %v9638
    %v9640 = vrcp.pop %v9637
    %v9641 = vmul.f32 1.0, %v9640
    %v9644 = vrot.slane %v9596, 4
    %v9645 = vrot.slane %v9598, 4
    %v9648 = vmul.f32 %v9619, %v9644
    %v9649 = vmul.f32 %v9621, %v9645
    %v9650 = vadd.f32 %v9469, %v9648
    %v9651 = vadd.f32 %v9470, %v9649
    %v9652 = vtanh.pop %v9650
    %v9653 = vtanh.pop %v9651
    %v9654 = vsub.f32 1.0, %v9639
    %v9655 = vsub.f32 1.0, %v9641
    %v9656 = vmul.f32 %v9654, %v9652
    %v9657 = vmul.f32 %v9655, %v9653
    %v9660 = vrot.slane %v9461, 6
    %v9661 = vrot.slane %v9462, 6
    %v9664 = vmul.f32 %v9639, %v9660
    %v9665 = vmul.f32 %v9641, %v9661
    %v9666 = vadd.f32 %v9656, %v9664
    %v9667 = vadd.f32 %v9657, %v9665
    %9668 = vst [vmem:[#allocation4 + $0x10] sm:$0x30] %v9666
    %9669 = vst [vmem:[#allocation4 + $0x18] sm:$0x30] %v9667
    %v9670 = vld [vmem:[#allocation3 + $0x30] sm:$0xc0]
    %v9671 = vld [vmem:[#allocation3 + $0x38] sm:$0xc0]
    %v9672 = vld [vmem:[#allocation3 + $0x40] sm:$0xc0]
    %v9673 = vld [vmem:[#allocation3 + $0x48] sm:$0xc0]
    %v9674 = vld [vmem:[#allocation3 + $0x50] sm:$0xc0]
    %v9675 = vld [vmem:[#allocation3 + $0x58] sm:$0xc0]
    %v9676 = vpack.c.bf16 %v9666, %v9666
    %v9677 = vpack.c.bf16 %v9667, %v9667
    %v9680 = vrot.slane %v9676, 2
    %v9681 = vrot.slane %v9677, 2
    %9684 = vmatprep.subr.bf16.mxu0 %v8106
    %9685 = vmatpush1.bf16.msra.mxu0 %v8105
    %9686 = vmatprep.subr.bf16.mxu0 %v8112
    %9687 = vmatpush1.bf16.msra.mxu0 %v8111
    %9688 = vmatprep.subr.bf16.mxu0 %v8118
    %9689 = vmatpush1.bf16.msra.mxu0 %v8117
    %9690 = vmatprep.subr.bf16.mxu0 %v8124
    %9691 = vmatpush1.bf16.msra.mxu0 %v8123
    %9692 = vmatprep.subr.bf16.mxu0 %v8130
    %9693 = vmatpush1.bf16.msra.mxu0 %v8129
    %9694 = vmatprep.subr.bf16.mxu0 %v8136
    %9695 = vmatpush1.bf16.msra.mxu0 %v8135
    %9696 = vmatprep.subr.bf16.mxu0 %v8142
    %9697 = vmatpush1.bf16.msra.mxu0 %v8141
    %9698 = vmatprep.subr.bf16.mxu0 %v8148
    %9699 = vmatpush1.bf16.msra.mxu0 %v8147
    %9700 = vmatprep.subr.bf16.mxu0 %v8154
    %9701 = vmatpush1.bf16.msra.mxu0 %v8153
    %9702 = vmatprep.subr.bf16.mxu0 %v8160
    %9703 = vmatpush1.bf16.msra.mxu0 %v8159
    %9704 = vmatprep.subr.bf16.mxu0 %v8166
    %9705 = vmatpush1.bf16.msra.mxu0 %v8165
    %9706 = vmatprep.subr.bf16.mxu0 %v8172
    %9707 = vmatpush1.bf16.msra.mxu0 %v8171
    %9708 = vmatprep.subr.bf16.mxu0 %v8178
    %9709 = vmatpush1.bf16.msra.mxu0 %v8177
    %9710 = vmatprep.subr.bf16.mxu0 %v8184
    %9711 = vmatpush1.bf16.msra.mxu0 %v8183
    %9712 = vmatprep.subr.bf16.mxu0 %v8190
    %9713 = vmatpush1.bf16.msra.mxu0 %v8189
    %9714 = vmatprep.subr.bf16.mxu0 %v8196
    %9715 = vmatpush1.bf16.msra.mxu0 %v8195
    %9716 = vmatprep.mubr.bf16.mxu0 %v9681
    %9717 = vmatmul.mubr.bf16.gmra.mrb[0].mxu0 %v9680
    %v9718 = vpop.f32.mrb[0].mxu0
    %v9719 = vadd.f32 %v7784, %v9718
    %v9720 = vpop.f32.mrb[0].mxu0
    %v9721 = vadd.f32 %v7788, %v9720
    %v9722 = vpop.f32.mrb[0].mxu0
    %v9723 = vpop.f32.mrb[0].mxu0
    %9724 = vdwg.mxu0
    %9725 = vmatprep.subr.bf16.mxu0 %v8108
    %9726 = vmatpush1.bf16.msra.mxu0 %v8107
    %9727 = vmatprep.subr.bf16.mxu0 %v8114
    %9728 = vmatpush1.bf16.msra.mxu0 %v8113
    %9729 = vmatprep.subr.bf16.mxu0 %v8120
    %9730 = vmatpush1.bf16.msra.mxu0 %v8119
    %9731 = vmatprep.subr.bf16.mxu0 %v8126
    %9732 = vmatpush1.bf16.msra.mxu0 %v8125
    %9733 = vmatprep.subr.bf16.mxu0 %v8132
    %9734 = vmatpush1.bf16.msra.mxu0 %v8131
    %9735 = vmatprep.subr.bf16.mxu0 %v8138
    %9736 = vmatpush1.bf16.msra.mxu0 %v8137
    %9737 = vmatprep.subr.bf16.mxu0 %v8144
    %9738 = vmatpush1.bf16.msra.mxu0 %v8143
    %9739 = vmatprep.subr.bf16.mxu0 %v8150
    %9740 = vmatpush1.bf16.msra.mxu0 %v8149
    %9741 = vmatprep.subr.bf16.mxu0 %v8156
    %9742 = vmatpush1.bf16.msra.mxu0 %v8155
    %9743 = vmatprep.subr.bf16.mxu0 %v8162
    %9744 = vmatpush1.bf16.msra.mxu0 %v8161
    %9745 = vmatprep.subr.bf16.mxu0 %v8168
    %9746 = vmatpush1.bf16.msra.mxu0 %v8167
    %9747 = vmatprep.subr.bf16.mxu0 %v8174
    %9748 = vmatpush1.bf16.msra.mxu0 %v8173
    %9749 = vmatprep.subr.bf16.mxu0 %v8180
    %9750 = vmatpush1.bf16.msra.mxu0 %v8179
    %9751 = vmatprep.subr.bf16.mxu0 %v8186
    %9752 = vmatpush1.bf16.msra.mxu0 %v8185
    %9753 = vmatprep.subr.bf16.mxu0 %v8192
    %9754 = vmatpush1.bf16.msra.mxu0 %v8191
    %9755 = vmatprep.subr.bf16.mxu0 %v8198
    %9756 = vmatpush1.bf16.msra.mxu0 %v8197
    %9757 = vmatprep.mubr.bf16.mxu0 %v9681
    %9758 = vmatmul.mubr.bf16.gmra.mrb[0].mxu0 %v9680
    %v9759 = vpop.f32.mrb[0].mxu0
    %v9760 = vadd.f32 %v7792, %v9759
    %v9761 = vpop.f32.mrb[0].mxu0
    %v9762 = vadd.f32 %v7796, %v9761
    %v9763 = vpop.f32.mrb[0].mxu0
    %v9764 = vpop.f32.mrb[0].mxu0
    %9765 = vdwg.mxu0
    %9766 = vmatprep.subr.bf16.mxu0 %v8110
    %9767 = vmatpush1.bf16.msra.mxu0 %v8109
    %9768 = vmatprep.subr.bf16.mxu0 %v8116
    %9769 = vmatpush1.bf16.msra.mxu0 %v8115
    %9770 = vmatprep.subr.bf16.mxu0 %v8122
    %9771 = vmatpush1.bf16.msra.mxu0 %v8121
    %9772 = vmatprep.subr.bf16.mxu0 %v8128
    %9773 = vmatpush1.bf16.msra.mxu0 %v8127
    %9774 = vmatprep.subr.bf16.mxu0 %v8134
    %9775 = vmatpush1.bf16.msra.mxu0 %v8133
    %9776 = vmatprep.subr.bf16.mxu0 %v8140
    %9777 = vmatpush1.bf16.msra.mxu0 %v8139
    %9778 = vmatprep.subr.bf16.mxu0 %v8146
    %9779 = vmatpush1.bf16.msra.mxu0 %v8145
    %9780 = vmatprep.subr.bf16.mxu0 %v8152
    %9781 = vmatpush1.bf16.msra.mxu0 %v8151
    %9782 = vmatprep.subr.bf16.mxu0 %v8158
    %9783 = vmatpush1.bf16.msra.mxu0 %v8157
    %9784 = vmatprep.subr.bf16.mxu0 %v8164
    %9785 = vmatpush1.bf16.msra.mxu0 %v8163
    %9786 = vmatprep.subr.bf16.mxu0 %v8170
    %9787 = vmatpush1.bf16.msra.mxu0 %v8169
    %9788 = vmatprep.subr.bf16.mxu0 %v8176
    %9789 = vmatpush1.bf16.msra.mxu0 %v8175
    %9790 = vmatprep.subr.bf16.mxu0 %v8182
    %9791 = vmatpush1.bf16.msra.mxu0 %v8181
    %9792 = vmatprep.subr.bf16.mxu0 %v8188
    %9793 = vmatpush1.bf16.msra.mxu0 %v8187
    %9794 = vmatprep.subr.bf16.mxu0 %v8194
    %9795 = vmatpush1.bf16.msra.mxu0 %v8193
    %9796 = vmatprep.subr.bf16.mxu0 %v8200
    %9797 = vmatpush1.bf16.msra.mxu0 %v8199
    %9798 = vmatprep.mubr.bf16.mxu0 %v9681
    %9799 = vmatmul.mubr.bf16.gmra.mrb[0].mxu0 %v9680
    %v9800 = vpop.f32.mrb[0].mxu0
    %v9801 = vadd.f32 %v7800, %v9800
    %v9802 = vpop.f32.mrb[0].mxu0
    %v9803 = vadd.f32 %v7804, %v9802
    %v9804 = vpop.f32.mrb[0].mxu0
    %v9805 = vpop.f32.mrb[0].mxu0
    %9806 = vdwg.mxu0
    %v9809 = vrot.slane %v9719, 2
    %v9810 = vrot.slane %v9721, 2
    %v9813 = vadd.f32 %v9670, %v9809
    %v9814 = vadd.f32 %v9671, %v9810
    %v9815 = vxor.u32 %v9813, 2147483648
    %v9816 = vxor.u32 %v9814, 2147483648
    %v9817 = vmul.f32 %v9815, 1.442695
    %v9818 = vpow.pop %v9817
    %v9819 = vmul.f32 %v9816, 1.442695
    %v9820 = vpow.pop %v9819
    %v9821 = vadd.f32 %v9818, 1.0
    %v9822 = vadd.f32 %v9820, 1.0
    %v9823 = vrcp.pop %v9821
    %v9824 = vmul.f32 1.0, %v9823
    %v9825 = vrcp.pop %v9822
    %v9826 = vmul.f32 1.0, %v9825
    %v9829 = vrot.slane %v9760, 2
    %v9830 = vrot.slane %v9762, 2
    %v9833 = vadd.f32 %v9672, %v9829
    %v9834 = vadd.f32 %v9673, %v9830
    %v9835 = vxor.u32 %v9833, 2147483648
    %v9836 = vxor.u32 %v9834, 2147483648
    %v9837 = vmul.f32 %v9835, 1.442695
    %v9838 = vpow.pop %v9837
    %v9839 = vmul.f32 %v9836, 1.442695
    %v9840 = vpow.pop %v9839
    %v9841 = vadd.f32 %v9838, 1.0
    %v9842 = vadd.f32 %v9840, 1.0
    %v9843 = vrcp.pop %v9841
    %v9844 = vmul.f32 1.0, %v9843
    %v9845 = vrcp.pop %v9842
    %v9846 = vmul.f32 1.0, %v9845
    %v9849 = vrot.slane %v9801, 2
    %v9850 = vrot.slane %v9803, 2
    %v9853 = vmul.f32 %v9824, %v9849
    %v9854 = vmul.f32 %v9826, %v9850
    %v9855 = vadd.f32 %v9674, %v9853
    %v9856 = vadd.f32 %v9675, %v9854
    %v9857 = vtanh.pop %v9855
    %v9858 = vtanh.pop %v9856
    %v9859 = vsub.f32 1.0, %v9844
    %v9860 = vsub.f32 1.0, %v9846
    %v9861 = vmul.f32 %v9859, %v9857
    %v9862 = vmul.f32 %v9860, %v9858
    %v9865 = vrot.slane %v9666, 6
    %v9866 = vrot.slane %v9667, 6
    %v9869 = vmul.f32 %v9844, %v9865
    %v9870 = vmul.f32 %v9846, %v9866
    %v9871 = vadd.f32 %v9861, %v9869
    %v9872 = vadd.f32 %v9862, %v9870
    %9873 = vst [vmem:[#allocation4 + $0x10] sm:$0xc0] %v9871
    %9874 = vst [vmem:[#allocation4 + $0x18] sm:$0xc0] %v9872
    %v9875 = vld [vmem:[#allocation4] sm:$0xff]
    %v9876 = vld [vmem:[#allocation4 + $0x8] sm:$0xff]
    %v9877 = vld [vmem:[#allocation4 + $0x10] sm:$0xff]
    %v9878 = vld [vmem:[#allocation4 + $0x18] sm:$0xff]
    %v9879 = vpack.c.bf16 %v9877, %v9875
    %v9880 = vpack.c.bf16 %v9878, %v9876
    %v9881 = vld [vmem:[#allocation28] sm:$0xf]
    %v9882 = vld [vmem:[#allocation28 + $0x4] sm:$0xf]
    %v9883 = vld [vmem:[#allocation28 + $0x8] sm:$0xf]
    %v9884 = vld [vmem:[#allocation28 + $0xc] sm:$0xf]
    %v9885 = vld [vmem:[#allocation28 + $0x10] sm:$0xf]
    %v9886 = vld [vmem:[#allocation28 + $0x14] sm:$0xf]
    %v9887 = vld [vmem:[#allocation28 + $0x18] sm:$0xf]
    %v9888 = vld [vmem:[#allocation28 + $0x1c] sm:$0xf]
    %v9889 = vld [vmem:[#allocation28 + $0x20] sm:$0xf]
    %v9890 = vld [vmem:[#allocation28 + $0x24] sm:$0xf]
    %v9891 = vld [vmem:[#allocation28 + $0x28] sm:$0xf]
    %v9892 = vld [vmem:[#allocation28 + $0x2c] sm:$0xf]
    %v9893 = vld [vmem:[#allocation28 + $0x30] sm:$0xf]
    %v9894 = vld [vmem:[#allocation28 + $0x34] sm:$0xf]
    %v9895 = vld [vmem:[#allocation28 + $0x38] sm:$0xf]
    %v9896 = vld [vmem:[#allocation28 + $0x3c] sm:$0xf]
    %v9897 = vld [vmem:[#allocation28 + $0x40] sm:$0xf]
    %v9898 = vld [vmem:[#allocation28 + $0x44] sm:$0xf]
    %v9899 = vld [vmem:[#allocation28 + $0x48] sm:$0xf]
    %v9900 = vld [vmem:[#allocation28 + $0x4c] sm:$0xf]
    %v9901 = vld [vmem:[#allocation28 + $0x50] sm:$0xf]
    %v9902 = vld [vmem:[#allocation28 + $0x54] sm:$0xf]
    %v9903 = vld [vmem:[#allocation28 + $0x58] sm:$0xf]
    %v9904 = vld [vmem:[#allocation28 + $0x5c] sm:$0xf]
    %v9905 = vld [vmem:[#allocation28 + $0x60] sm:$0xf]
    %v9906 = vld [vmem:[#allocation28 + $0x64] sm:$0xf]
    %v9907 = vld [vmem:[#allocation28 + $0x68] sm:$0xf]
    %v9908 = vld [vmem:[#allocation28 + $0x6c] sm:$0xf]
    %v9909 = vld [vmem:[#allocation28 + $0x70] sm:$0xf]
    %v9910 = vld [vmem:[#allocation28 + $0x74] sm:$0xf]
    %v9911 = vld [vmem:[#allocation28 + $0x78] sm:$0xf]
    %v9912 = vld [vmem:[#allocation28 + $0x7c] sm:$0xf]
    %v9913 = vld [vmem:[#allocation29] sm:$0x1]
    %v9915 = vlaneseq
    %v9916 = vshrl.u32 %v9915, 7
    %v9917 = vsub.s32 0, %v9916
    %v9918 = vrot.slane %v9913, %v9917
    %v9952 = vunpack.c.l.b16 %v9881
    %v9953 = vunpack.c.l.b16 %v9882
    %v9954 = vunpack.c.l.b16 %v9883
    %v9955 = vunpack.c.l.b16 %v9884
    %v9956 = vunpack.c.l.b16 %v9885
    %v9957 = vunpack.c.l.b16 %v9886
    %v9958 = vunpack.c.l.b16 %v9887
    %v9959 = vunpack.c.l.b16 %v9888
    %v9960 = vunpack.c.l.b16 %v9889
    %v9961 = vunpack.c.l.b16 %v9890
    %v9962 = vunpack.c.l.b16 %v9891
    %v9963 = vunpack.c.l.b16 %v9892
    %v9964 = vunpack.c.l.b16 %v9893
    %v9965 = vunpack.c.l.b16 %v9894
    %v9966 = vunpack.c.l.b16 %v9895
    %v9967 = vunpack.c.l.b16 %v9896
    %v9968 = vunpack.c.l.b16 %v9897
    %v9969 = vunpack.c.l.b16 %v9898
    %v9970 = vunpack.c.l.b16 %v9899
    %v9971 = vunpack.c.l.b16 %v9900
    %v9972 = vunpack.c.l.b16 %v9901
    %v9973 = vunpack.c.l.b16 %v9902
    %v9974 = vunpack.c.l.b16 %v9903
    %v9975 = vunpack.c.l.b16 %v9904
    %v9976 = vunpack.c.l.b16 %v9905
    %v9977 = vunpack.c.l.b16 %v9906
    %v9978 = vunpack.c.l.b16 %v9907
    %v9979 = vunpack.c.l.b16 %v9908
    %v9980 = vunpack.c.l.b16 %v9909
    %v9981 = vunpack.c.l.b16 %v9910
    %v9982 = vunpack.c.l.b16 %v9911
    %v9983 = vunpack.c.l.b16 %v9912
    %v9984 = vpack.c.b16 %v9953, %v9952
    %v9985 = vpack.c.b16 %v9955, %v9954
    %v9986 = vpack.c.b16 %v9957, %v9956
    %v9987 = vpack.c.b16 %v9959, %v9958
    %v9988 = vpack.c.b16 %v9961, %v9960
    %v9989 = vpack.c.b16 %v9963, %v9962
    %v9990 = vpack.c.b16 %v9965, %v9964
    %v9991 = vpack.c.b16 %v9967, %v9966
    %v9992 = vpack.c.b16 %v9969, %v9968
    %v9993 = vpack.c.b16 %v9971, %v9970
    %v9994 = vpack.c.b16 %v9973, %v9972
    %v9995 = vpack.c.b16 %v9975, %v9974
    %v9996 = vpack.c.b16 %v9977, %v9976
    %v9997 = vpack.c.b16 %v9979, %v9978
    %v9998 = vpack.c.b16 %v9981, %v9980
    %v9999 = vpack.c.b16 %v9983, %v9982
    %10016 = vmatprep.subr.bf16.mxu0 0
    %10017 = vmatpush1.bf16.msra.mxu0 %v9984
    %10018 = vmatprep.subr.bf16.mxu0 0
    %10019 = vmatpush1.bf16.msra.mxu0 %v9985
    %10020 = vmatprep.subr.bf16.mxu0 0
    %10021 = vmatpush1.bf16.msra.mxu0 %v9986
    %10022 = vmatprep.subr.bf16.mxu0 0
    %10023 = vmatpush1.bf16.msra.mxu0 %v9987
    %10024 = vmatprep.subr.bf16.mxu0 0
    %10025 = vmatpush1.bf16.msra.mxu0 %v9988
    %10026 = vmatprep.subr.bf16.mxu0 0
    %10027 = vmatpush1.bf16.msra.mxu0 %v9989
    %10028 = vmatprep.subr.bf16.mxu0 0
    %10029 = vmatpush1.bf16.msra.mxu0 %v9990
    %10030 = vmatprep.subr.bf16.mxu0 0
    %10031 = vmatpush1.bf16.msra.mxu0 %v9991
    %10032 = vmatprep.subr.bf16.mxu0 0
    %10033 = vmatpush1.bf16.msra.mxu0 %v9992
    %10034 = vmatprep.subr.bf16.mxu0 0
    %10035 = vmatpush1.bf16.msra.mxu0 %v9993
    %10036 = vmatprep.subr.bf16.mxu0 0
    %10037 = vmatpush1.bf16.msra.mxu0 %v9994
    %10038 = vmatprep.subr.bf16.mxu0 0
    %10039 = vmatpush1.bf16.msra.mxu0 %v9995
    %10040 = vmatprep.subr.bf16.mxu0 0
    %10041 = vmatpush1.bf16.msra.mxu0 %v9996
    %10042 = vmatprep.subr.bf16.mxu0 0
    %10043 = vmatpush1.bf16.msra.mxu0 %v9997
    %10044 = vmatprep.subr.bf16.mxu0 0
    %10045 = vmatpush1.bf16.msra.mxu0 %v9998
    %10046 = vmatprep.subr.bf16.mxu0 0
    %10047 = vmatpush1.bf16.msra.mxu0 %v9999
    %10048 = vmatprep.mubr.bf16.mxu0 %v9880
    %10049 = vmatmul.mubr.bf16.gmra.mrb[0].mxu0 %v9879
    %v10050 = vpop.f32.mrb[0].mxu0
    %v10051 = vadd.f32 %v9918, %v10050
    %v10052 = vpop.f32.mrb[0].mxu0
    %v10053 = vpop.f32.mrb[0].mxu0
    %v10054 = vadd.f32 %v9918, %v10053
    %v10055 = vpop.f32.mrb[0].mxu0
    %10056 = vdwg.mxu0
    %v10057 = vxor.u32 %v10051, 2147483648
    %v10058 = vxor.u32 %v10054, 2147483648
    %v10059 = vmul.f32 %v10057, 1.442695
    %v10060 = vpow.pop %v10059
    %v10061 = vmul.f32 %v10058, 1.442695
    %v10062 = vpow.pop %v10061
    %v10063 = vadd.f32 %v10060, 1.0
    %v10064 = vadd.f32 %v10062, 1.0
    %v10065 = vrcp.pop %v10063
    %v10066 = vmul.f32 1.0, %v10065
    %v10067 = vrcp.pop %v10064
    %v10068 = vmul.f32 1.0, %v10067
    %vm10069 = vcmask 269312
    %10070 = vst.msk [vmem:[#allocation32] sm:$0xff] %vm10069, %v10066
    %10071 = vst.msk [vmem:[#allocation32 + $0x8] sm:$0xff] %vm10069, %v10068
    %v10074 = vrot.slane %v3955, 6
    %v10075 = vrot.slane %v3956, 6
    %10078 = vst [vmem:[#allocation33] sm:$0x3] %v10074
    %10079 = vst [vmem:[#allocation33 + $0x8] sm:$0x3] %v10075
    %v10082 = vrot.slane %v6913, 4
    %v10083 = vrot.slane %v6914, 4
    %10086 = vst [vmem:[#allocation33] sm:$0xc] %v10082
    %10087 = vst [vmem:[#allocation33 + $0x8] sm:$0xc] %v10083
    %v10090 = vrot.slane %v9871, 2
    %v10091 = vrot.slane %v9872, 2
    %10094 = vst [vmem:[#allocation33] sm:$0x30] %v10090
    %10095 = vst [vmem:[#allocation33 + $0x8] sm:$0x30] %v10091
    // Predicated region
    $region138: #{rnnoise_forward.1} parent=1 // pred_check
      _
    $region139: #{rnnoise_forward.1} parent=1 // pred_check_branch
      %10097 = sbr.rel (0) target = $region141
    $region140: #{rnnoise_forward.1} parent=1 // pred_region
      %s10099 = ssub.s32 256, 256
      %10100 = vsyncadd [#allocation7], %s10099
      %s10101 = sshll.u32 [#allocation32], 4
      %s10102 = int_to_ptr.vmem [resolvable:$true] %s10101
      %10107 = dma.vmem_to_hbm [thread:$0]  %s10102, 256, %s17, [#allocation7], 128, 128, 8
    $region141: #{rnnoise_forward.1} parent=1 // pred_fallthru
      _
    // Predicated region
    $region142: #{rnnoise_forward.1} parent=1 // pred_check
      _
    $region143: #{rnnoise_forward.1} parent=1 // pred_check_branch
      %10109 = sbr.rel (0) target = $region145
    $region144: #{rnnoise_forward.1} parent=1 // pred_region
      %s10111 = ssub.s32 256, 256
      %10112 = vsyncadd [#allocation34], %s10111
      %s10114 = sshll.u32 [#allocation33], 4
      %s10115 = int_to_ptr.vmem [resolvable:$true] %s10114
      %10117 = dma.vmem_to_hbm [thread:$0]  %s10115, 256, %s18, [#allocation34]
    $region145: #{rnnoise_forward.1} parent=1 // pred_fallthru
      _
    // Predicated region
    $region146: #{rnnoise_forward.1} parent=1 // pred_check
      _
    $region147: #{rnnoise_forward.1} parent=1 // pred_check_branch
      %10119 = sbr.rel (0) target = $region149
    $region148: #{rnnoise_forward.1} parent=1 // pred_region
      %10120 = dma.done [#allocation7], 256
    $region149: #{rnnoise_forward.1} parent=1 // pred_fallthru
      _
    // Predicated region
    $region150: #{rnnoise_forward.1} parent=1 // pred_check
      _
    $region151: #{rnnoise_forward.1} parent=1 // pred_check_branch
      %10122 = sbr.rel (0) target = $region153
    $region152: #{rnnoise_forward.1} parent=1 // pred_region
      %10123 = dma.done [#allocation34], 256
    $region153: #{rnnoise_forward.1} parent=1 // pred_fallthru
      _
    %10124 = vsyncpa [#allocation6], 1
    %10125 = vsyncpa [#allocation9], 1
    %10126 = vsyncpa [#allocation12], 1
    %10127 = vsyncpa [#allocation15], 1
    %10128 = vsyncpa [#allocation18], 1
    %10129 = vsyncpa [#allocation21], 1
    %10130 = vsyncpa [#allocation24], 1
    %10131 = vsyncpa [#allocation27], 1
    %10132 = vsyncpa [#allocation30], 1
    %10133 = vsyncpa [#allocation7], 1
    %10134 = vsyncpa [#allocation34], 1

</llo_original>
